<compile_context>
chip_gen: v7x
topology: tpu7x:2x2x1
jax: 0.10.0
libtpu: 0.0.40
codegen_flags: <defaults>
</compile_context>

<pallas_src>
import jax
import jax.numpy as jnp
from jax import lax
from jax.experimental import pallas as pl
from jax.experimental.pallas import tpu as pltpu

LN_EPS = 1e-5
DIMS = (1024, 512, 256, 128)


def _round_up(n, m):
    return ((n + m - 1) // m) * m


def _ln_relu(h, gamma, beta, out_dtype):
    """LayerNorm over last dim (two-pass variance, f32) + ReLU + cast.

    The affine is folded into a single per-element scale s = gamma * rsqrt(var)
    and the ReLU / cast-to-matmul-dtype are fused into the same epilogue.
    (On v5e keep out_dtype's role purely as the MXU input dtype -- the
    normalize itself stays in f32 on every generation.)"""
    mu = jnp.mean(h, axis=-1, keepdims=True)
    d = h - mu
    var = jnp.mean(d * d, axis=-1, keepdims=True)
    s = gamma * lax.rsqrt(var + LN_EPS)           # EUP rsqrt; (rows, d) fused scale
    return jnp.maximum(d * s + beta, 0.0).astype(out_dtype)


def ndsupcon_kernel(
    x_ref,
    w1_ref, b1_ref, g1_ref, be1_ref,
    w2_ref, b2_ref, g2_ref, be2_ref,
    w3_ref, b3_ref, g3_ref, be3_ref,
    w4_ref, b4_ref,
    o_ref,
):
    dot_dtype = w1_ref.dtype                       # bf16 in production, f32 for checks

    # Hidden block 1: in -> 1024.  Input cast happens here (hidden under MXU).
    h = jnp.dot(x_ref[...].astype(dot_dtype), w1_ref[...],
                preferred_element_type=jnp.float32)
    h = _ln_relu(h + b1_ref[...], g1_ref[...], be1_ref[...], dot_dtype)

    # Hidden block 2: 1024 -> 512
    h = jnp.dot(h, w2_ref[...], preferred_element_type=jnp.float32)
    h = _ln_relu(h + b2_ref[...], g2_ref[...], be2_ref[...], dot_dtype)

    # Hidden block 3: 512 -> 256
    h = jnp.dot(h, w3_ref[...], preferred_element_type=jnp.float32)
    h = _ln_relu(h + b3_ref[...], g3_ref[...], be3_ref[...], dot_dtype)

    # Output projection (layer4): 256 -> 128, no norm / relu / dropout.
    out = jnp.dot(h, w4_ref[...], preferred_element_type=jnp.float32) + b4_ref[...]
    o_ref[...] = out.astype(o_ref.dtype)


# ----------------------------------------------------------------------------
# Wrapper helpers
# ----------------------------------------------------------------------------

def _vmem_cap_bytes():
    try:
        return int(0.85 * pltpu.get_tpu_info().vmem_capacity_bytes)
    except Exception:
        return 48 << 20        # conservative fallback: fits v7x's 64 MiB physical VMEM


def _vmem_limit_bytes(block_b, in_dim_p, dot_bytes, x_bytes, out_bytes):
    d1, d2, d3, d4 = DIMS
    w = (in_dim_p * d1 + d1 * d2 + d2 * d3 + d3 * d4) * dot_bytes   # single-buffered weights
    vecs = (3 * (d1 + d2 + d3) + d4) * 4                            # f32 b / gamma / beta
    stream = 2 * block_b * (in_dim_p * x_bytes + d4 * out_bytes)    # dbl-buffered x / out tiles
    acts = 3 * block_b * (d1 + d2 + d3 + d4) * 4                    # f32 intermediates headroom
    need = w + vecs + stream + acts
    cap = _vmem_cap_bytes()
    if need > cap:
        raise ValueError(
            f"NDSUPCON kernel needs ~{need >> 20} MiB VMEM but the cap is {cap >> 20} MiB; "
            "reduce block_b or split the first matmul's contraction over a grid axis.")
    return int(min(max(need, 32 << 20), cap))


def _pick_block_b(batch, requested=512):
    """Largest tile <= `requested` rows, multiple of 8, keeping >=2 grid steps
    when the batch allows (both v7x TensorCores stay busy)."""
    bb = min(int(requested), _round_up(max(-(-batch // 2), 8), 8))
    return max(8, bb)


def _const_spec(shape, single_buffered):
    index_map = lambda i: (0,) * len(shape)
    if single_buffered:
        try:
            # These blocks never change across the batch grid: one VMEM buffer
            # is enough (halves resident-weight footprint vs. default 2).
            return pl.BlockSpec(shape, index_map, pipeline_mode=pl.Buffered(1))
        except Exception:
            pass
    return pl.BlockSpec(shape, index_map)


def prepare_params(params, dot_dtype=jnp.bfloat16):
    """One-time conversion of the f32 master params into inference operands:
    weights cast to the MXU dtype, w1 zero-padded on its input dim to a
    multiple of 128; bias / LayerNorm vectors stay f32.  Do this once and
    reuse -- avoids a per-forward cast pass over ~5 MiB of weights."""
    out = {}
    w1 = params["w1"]
    in_dim = w1.shape[0]
    in_dim_p = _round_up(in_dim, 128)
    if in_dim_p != in_dim:
        w1 = jnp.pad(w1, ((0, in_dim_p - in_dim), (0, 0)))
    out["w1"] = w1.astype(dot_dtype)
    for i in range(2, 5):
        out[f"w{i}"] = params[f"w{i}"].astype(dot_dtype)
    for i in range(1, 5):
        out[f"b{i}"] = params[f"b{i}"].astype(jnp.float32)
    for i in range(1, 4):
        out[f"g{i}"] = params[f"g{i}"].astype(jnp.float32)
        out[f"be{i}"] = params[f"be{i}"].astype(jnp.float32)
    return out


def ndsupcon_forward(x, prep, *, block_b=None, out_dtype=jnp.float32):
    """x: (B, input_size) float32 (or bf16).  prep: output of prepare_params."""
    B, in_dim = x.shape
    d1, d2, d3, d4 = DIMS
    dot_dtype = prep["w1"].dtype
    in_dim_p = prep["w1"].shape[0]

    if in_dim_p != in_dim:                         # pad contraction dim to x128
        x = jnp.pad(x, ((0, 0), (0, in_dim_p - in_dim)))
    if block_b is None:
        block_b = _pick_block_b(B)
    B_pad = _round_up(B, block_b)
    if B_pad != B:                                 # padded rows are discarded below
        x = jnp.pad(x, ((0, B_pad - B), (0, 0)))

    vmem_limit = _vmem_limit_bytes(
        block_b, in_dim_p,
        dot_bytes=jnp.dtype(dot_dtype).itemsize,
        x_bytes=jnp.dtype(x.dtype).itemsize,
        out_bytes=jnp.dtype(out_dtype).itemsize)

    def _call(single_buffered):
        in_specs = [pl.BlockSpec((block_b, in_dim_p), lambda i: (i, 0))]       # x tile
        in_specs += [
            _const_spec((in_dim_p, d1), single_buffered),
            _const_spec((1, d1), single_buffered), _const_spec((1, d1), single_buffered),
            _const_spec((1, d1), single_buffered),
            _const_spec((d1, d2), single_buffered),
            _const_spec((1, d2), single_buffered), _const_spec((1, d2), single_buffered),
            _const_spec((1, d2), single_buffered),
            _const_spec((d2, d3), single_buffered),
            _const_spec((1, d3), single_buffered), _const_spec((1, d3), single_buffered),
            _const_spec((1, d3), single_buffered),
            _const_spec((d3, d4), single_buffered),
            _const_spec((1, d4), single_buffered),
        ]
        out_specs = pl.BlockSpec((block_b, d4), lambda i: (i, 0))
        return pl.pallas_call(
            ndsupcon_kernel,
            out_shape=jax.ShapeDtypeStruct((B_pad, d4), out_dtype),
            grid_spec=pltpu.PrefetchScalarGridSpec(
                num_scalar_prefetch=0,
                grid=(B_pad // block_b,),
                in_specs=in_specs,
                out_specs=out_specs,
            ),
            compiler_params=pltpu.CompilerParams(
                dimension_semantics=("parallel",),         # megacore sharding on v7x
                vmem_limit_bytes=vmem_limit,
            ),
        )(
            x,
            prep["w1"], prep["b1"], prep["g1"], prep["be1"],
            prep["w2"], prep["b2"], prep["g2"], prep["be2"],
            prep["w3"], prep["b3"], prep["g3"], prep["be3"],
            prep["w4"], prep["b4"],
        )

    try:
        out = _call(True)
    except Exception:
        # Fallback for jax builds where Buffered(1) is rejected at lowering.
        out = _call(False)
    return out[:B]


# ----------------------------------------------------------------------------
# Parameter init + pure-JAX reference (mirrors the PyTorch module)
# ----------------------------------------------------------------------------

def init_params(key, input_size):
    """layer1..layer4 weights: xavier_uniform (NDSUPCON.__init__ loop),
    biases: U(-1/sqrt(fan_in), 1/sqrt(fan_in)) (torch Linear default),
    LayerNorm: gamma=1, beta=0.  Weights stored (in, out), f32 masters."""
    dims = [input_size] + list(DIMS)
    params = {}
    for i in range(4):
        fan_in, fan_out = dims[i], dims[i + 1]
        key, kw, kb = jax.random.split(key, 3)
        limit = (6.0 / (fan_in + fan_out)) ** 0.5
        params[f"w{i+1}"] = jax.random.uniform(kw, (fan_in, fan_out), jnp.float32, -limit, limit)
        bb = 1.0 / (fan_in ** 0.5)
        params[f"b{i+1}"] = jax.random.uniform(kb, (1, fan_out), jnp.float32, -bb, bb)
        if i < 3:                                   # LayerNorm only on hidden layers 1..3
            params[f"g{i+1}"] = jnp.ones((1, fan_out), jnp.float32)
            params[f"be{i+1}"] = jnp.zeros((1, fan_out), jnp.float32)
    return params


def reference_forward_f32(x, p):
    """Full-f32 reference faithful to the PyTorch module (HIGHEST-precision dots)."""
    h = x
    for i in range(1, 4):
        h = jnp.dot(h, p[f"w{i}"], precision=lax.Precision.HIGHEST) + p[f"b{i}"]
        mu = jnp.mean(h, axis=-1, keepdims=True)
        var = jnp.mean(jnp.square(h - mu), axis=-1, keepdims=True)
        h = (h - mu) / jnp.sqrt(var + LN_EPS) * p[f"g{i}"] + p[f"be{i}"]
        h = jnp.maximum(h, 0.0)
    return jnp.dot(h, p["w4"], precision=lax.Precision.HIGHEST) + p["b4"]


def _rel_err(a, b):
    a = a.astype(jnp.float32)
    b = b.astype(jnp.float32)
    return float(jnp.linalg.norm(a - b) / (jnp.linalg.norm(b) + 1e-12))


if __name__ == "__main__":
    key = jax.random.PRNGKey(0)
    input_size = 256           # ND(input_size=...) parameter, kept small
    batch = 64                 # small batch -> block_b=32, 2 grid steps

    kx, kp = jax.random.split(key)
    x = jax.random.normal(kx, (batch, input_size), jnp.float32)
    params = init_params(kp, input_size)
    ref = reference_forward_f32(x, params)

    # 1) f32 compute path: proves the fused kernel math matches the module.
    prep_f32 = prepare_params(params, dot_dtype=jnp.float32)
    out_f32 = jax.block_until_ready(ndsupcon_forward(x, prep_f32))
    assert out_f32.shape == (batch, 128) and out_f32.dtype == jnp.float32
    e32 = _rel_err(out_f32, ref)
    assert e32 < 1e-2, f"f32 path relative error too large: {e32}"

    # 2) Production bf16-MXU path: realistic tolerance vs. the f32 reference.
    prep_bf16 = prepare_params(params, dot_dtype=jnp.bfloat16)
    out_bf16 = jax.block_until_ready(ndsupcon_forward(x, prep_bf16))
    assert out_bf16.shape == (batch, 128) and out_bf16.dtype == jnp.float32
    e16 = _rel_err(out_bf16, ref)
    assert e16 < 6e-2, f"bf16 path relative error too large: {e16}"

    # TODO(synk): Dropout path is config-gated ('DROPOUT'=='on'); eval/off == identity here.
    print("KERNEL_OK")
</pallas_src>

<mosaic_0001>
module attributes {stable_mosaic.version = 11 : i64} {
  func.func @ndsupcon_kernel(%arg0: i32, %arg1: memref<32x256xf32, #tpu.memory_space<vmem>>, %arg2: memref<256x1024xf32, #tpu.memory_space<vmem>>, %arg3: memref<1x1024xf32, #tpu.memory_space<vmem>>, %arg4: memref<1x1024xf32, #tpu.memory_space<vmem>>, %arg5: memref<1x1024xf32, #tpu.memory_space<vmem>>, %arg6: memref<1024x512xf32, #tpu.memory_space<vmem>>, %arg7: memref<1x512xf32, #tpu.memory_space<vmem>>, %arg8: memref<1x512xf32, #tpu.memory_space<vmem>>, %arg9: memref<1x512xf32, #tpu.memory_space<vmem>>, %arg10: memref<512x256xf32, #tpu.memory_space<vmem>>, %arg11: memref<1x256xf32, #tpu.memory_space<vmem>>, %arg12: memref<1x256xf32, #tpu.memory_space<vmem>>, %arg13: memref<1x256xf32, #tpu.memory_space<vmem>>, %arg14: memref<256x128xf32, #tpu.memory_space<vmem>>, %arg15: memref<1x128xf32, #tpu.memory_space<vmem>>, %arg16: memref<32x128xf32, #tpu.memory_space<vmem>>) attributes {dimension_semantics = [#tpu.dimension_semantics<parallel>], iteration_bounds = array<i64: 2>, scalar_prefetch = 0 : i64, scratch_operands = 0 : i64, tpu.core_type = #tpu.core_type<tc>, window_params = [{transform_indices = @transform_0, window_bounds = array<i64: 32, 256>}, {pipeline_mode = #tpu.pipeline_mode<synchronous>, transform_indices = @transform_1, window_bounds = array<i64: 256, 1024>}, {pipeline_mode = #tpu.pipeline_mode<synchronous>, transform_indices = @transform_2, window_bounds = array<i64: 1, 1024>}, {pipeline_mode = #tpu.pipeline_mode<synchronous>, transform_indices = @transform_3, window_bounds = array<i64: 1, 1024>}, {pipeline_mode = #tpu.pipeline_mode<synchronous>, transform_indices = @transform_4, window_bounds = array<i64: 1, 1024>}, {pipeline_mode = #tpu.pipeline_mode<synchronous>, transform_indices = @transform_5, window_bounds = array<i64: 1024, 512>}, {pipeline_mode = #tpu.pipeline_mode<synchronous>, transform_indices = @transform_6, window_bounds = array<i64: 1, 512>}, {pipeline_mode = #tpu.pipeline_mode<synchronous>, transform_indices = @transform_7, window_bounds = array<i64: 1, 512>}, {pipeline_mode = #tpu.pipeline_mode<synchronous>, transform_indices = @transform_8, window_bounds = array<i64: 1, 512>}, {pipeline_mode = #tpu.pipeline_mode<synchronous>, transform_indices = @transform_9, window_bounds = array<i64: 512, 256>}, {pipeline_mode = #tpu.pipeline_mode<synchronous>, transform_indices = @transform_10, window_bounds = array<i64: 1, 256>}, {pipeline_mode = #tpu.pipeline_mode<synchronous>, transform_indices = @transform_11, window_bounds = array<i64: 1, 256>}, {pipeline_mode = #tpu.pipeline_mode<synchronous>, transform_indices = @transform_12, window_bounds = array<i64: 1, 256>}, {pipeline_mode = #tpu.pipeline_mode<synchronous>, transform_indices = @transform_13, window_bounds = array<i64: 256, 128>}, {pipeline_mode = #tpu.pipeline_mode<synchronous>, transform_indices = @transform_14, window_bounds = array<i64: 1, 128>}, {transform_indices = @transform_15, window_bounds = array<i64: 32, 128>}]} {
    %c0 = arith.constant 0 : index
    %c0_0 = arith.constant 0 : index
    %0 = vector.load %arg1[%c0, %c0_0] : memref<32x256xf32, #tpu.memory_space<vmem>>, vector<32x256xf32>
    %c0_1 = arith.constant 0 : index
    %c0_2 = arith.constant 0 : index
    %1 = vector.load %arg2[%c0_1, %c0_2] : memref<256x1024xf32, #tpu.memory_space<vmem>>, vector<256x1024xf32>
    %cst = arith.constant dense<0.000000e+00> : vector<32x1024xf32>
    %2 = tpu.matmul %0, %1, %cst {dimension_numbers = #tpu.dot_dimension_numbers<[1], [0], [0], [1], [0, 0, 1, 1], [], []>} : vector<32x256xf32>, vector<256x1024xf32>, vector<32x1024xf32> -> vector<32x1024xf32>
    %c0_3 = arith.constant 0 : index
    %c0_4 = arith.constant 0 : index
    %3 = vector.load %arg3[%c0_3, %c0_4] : memref<1x1024xf32, #tpu.memory_space<vmem>>, vector<1x1024xf32>
    %4 = vector.broadcast %3 : vector<1x1024xf32> to vector<32x1024xf32>
    %5 = arith.addf %2, %4 : vector<32x1024xf32>
    %c0_5 = arith.constant 0 : index
    %c0_6 = arith.constant 0 : index
    %6 = vector.load %arg4[%c0_5, %c0_6] : memref<1x1024xf32, #tpu.memory_space<vmem>>, vector<1x1024xf32>
    %c0_7 = arith.constant 0 : index
    %c0_8 = arith.constant 0 : index
    %7 = vector.load %arg5[%c0_7, %c0_8] : memref<1x1024xf32, #tpu.memory_space<vmem>>, vector<1x1024xf32>
    %cst_9 = arith.constant dense<0.000000e+00> : vector<32xf32>
    %8 = vector.multi_reduction <add>, %5, %cst_9 [1] : vector<32x1024xf32> to vector<32xf32>
    %9 = vector.shape_cast %8 : vector<32xf32> to vector<32x1xf32>
    %cst_10 = arith.constant 1.024000e+03 : f32
    %10 = vector.broadcast %cst_10 : f32 to vector<32x1xf32>
    %11 = arith.divf %9, %10 : vector<32x1xf32>
    %12 = vector.broadcast %11 : vector<32x1xf32> to vector<32x1024xf32>
    %13 = arith.subf %5, %12 : vector<32x1024xf32>
    %14 = arith.mulf %13, %13 : vector<32x1024xf32>
    %cst_11 = arith.constant dense<0.000000e+00> : vector<32xf32>
    %15 = vector.multi_reduction <add>, %14, %cst_11 [1] : vector<32x1024xf32> to vector<32xf32>
    %16 = vector.shape_cast %15 : vector<32xf32> to vector<32x1xf32>
    %cst_12 = arith.constant 1.024000e+03 : f32
    %17 = vector.broadcast %cst_12 : f32 to vector<32x1xf32>
    %18 = arith.divf %16, %17 : vector<32x1xf32>
    %cst_13 = arith.constant 9.99999974E-6 : f32
    %19 = vector.broadcast %cst_13 : f32 to vector<32x1xf32>
    %20 = arith.addf %18, %19 : vector<32x1xf32>
    %21 = math.rsqrt %20 : vector<32x1xf32>
    %22 = vector.broadcast %6 : vector<1x1024xf32> to vector<32x1024xf32>
    %23 = vector.broadcast %21 : vector<32x1xf32> to vector<32x1024xf32>
    %24 = arith.mulf %22, %23 : vector<32x1024xf32>
    %25 = arith.mulf %13, %24 : vector<32x1024xf32>
    %26 = vector.broadcast %7 : vector<1x1024xf32> to vector<32x1024xf32>
    %27 = arith.addf %25, %26 : vector<32x1024xf32>
    %cst_14 = arith.constant 0.000000e+00 : f32
    %28 = vector.broadcast %cst_14 : f32 to vector<32x1024xf32>
    %29 = arith.maximumf %27, %28 : vector<32x1024xf32>
    %c0_15 = arith.constant 0 : index
    %c0_16 = arith.constant 0 : index
    %30 = vector.load %arg6[%c0_15, %c0_16] : memref<1024x512xf32, #tpu.memory_space<vmem>>, vector<1024x512xf32>
    %cst_17 = arith.constant dense<0.000000e+00> : vector<32x512xf32>
    %31 = tpu.matmul %29, %30, %cst_17 {dimension_numbers = #tpu.dot_dimension_numbers<[1], [0], [0], [1], [0, 0, 1, 1], [], []>} : vector<32x1024xf32>, vector<1024x512xf32>, vector<32x512xf32> -> vector<32x512xf32>
    %c0_18 = arith.constant 0 : index
    %c0_19 = arith.constant 0 : index
    %32 = vector.load %arg7[%c0_18, %c0_19] : memref<1x512xf32, #tpu.memory_space<vmem>>, vector<1x512xf32>
    %33 = vector.broadcast %32 : vector<1x512xf32> to vector<32x512xf32>
    %34 = arith.addf %31, %33 : vector<32x512xf32>
    %c0_20 = arith.constant 0 : index
    %c0_21 = arith.constant 0 : index
    %35 = vector.load %arg8[%c0_20, %c0_21] : memref<1x512xf32, #tpu.memory_space<vmem>>, vector<1x512xf32>
    %c0_22 = arith.constant 0 : index
    %c0_23 = arith.constant 0 : index
    %36 = vector.load %arg9[%c0_22, %c0_23] : memref<1x512xf32, #tpu.memory_space<vmem>>, vector<1x512xf32>
    %cst_24 = arith.constant dense<0.000000e+00> : vector<32xf32>
    %37 = vector.multi_reduction <add>, %34, %cst_24 [1] : vector<32x512xf32> to vector<32xf32>
    %38 = vector.shape_cast %37 : vector<32xf32> to vector<32x1xf32>
    %cst_25 = arith.constant 5.120000e+02 : f32
    %39 = vector.broadcast %cst_25 : f32 to vector<32x1xf32>
    %40 = arith.divf %38, %39 : vector<32x1xf32>
    %41 = vector.broadcast %40 : vector<32x1xf32> to vector<32x512xf32>
    %42 = arith.subf %34, %41 : vector<32x512xf32>
    %43 = arith.mulf %42, %42 : vector<32x512xf32>
    %cst_26 = arith.constant dense<0.000000e+00> : vector<32xf32>
    %44 = vector.multi_reduction <add>, %43, %cst_26 [1] : vector<32x512xf32> to vector<32xf32>
    %45 = vector.shape_cast %44 : vector<32xf32> to vector<32x1xf32>
    %cst_27 = arith.constant 5.120000e+02 : f32
    %46 = vector.broadcast %cst_27 : f32 to vector<32x1xf32>
    %47 = arith.divf %45, %46 : vector<32x1xf32>
    %cst_28 = arith.constant 9.99999974E-6 : f32
    %48 = vector.broadcast %cst_28 : f32 to vector<32x1xf32>
    %49 = arith.addf %47, %48 : vector<32x1xf32>
    %50 = math.rsqrt %49 : vector<32x1xf32>
    %51 = vector.broadcast %35 : vector<1x512xf32> to vector<32x512xf32>
    %52 = vector.broadcast %50 : vector<32x1xf32> to vector<32x512xf32>
    %53 = arith.mulf %51, %52 : vector<32x512xf32>
    %54 = arith.mulf %42, %53 : vector<32x512xf32>
    %55 = vector.broadcast %36 : vector<1x512xf32> to vector<32x512xf32>
    %56 = arith.addf %54, %55 : vector<32x512xf32>
    %cst_29 = arith.constant 0.000000e+00 : f32
    %57 = vector.broadcast %cst_29 : f32 to vector<32x512xf32>
    %58 = arith.maximumf %56, %57 : vector<32x512xf32>
    %c0_30 = arith.constant 0 : index
    %c0_31 = arith.constant 0 : index
    %59 = vector.load %arg10[%c0_30, %c0_31] : memref<512x256xf32, #tpu.memory_space<vmem>>, vector<512x256xf32>
    %cst_32 = arith.constant dense<0.000000e+00> : vector<32x256xf32>
    %60 = tpu.matmul %58, %59, %cst_32 {dimension_numbers = #tpu.dot_dimension_numbers<[1], [0], [0], [1], [0, 0, 1, 1], [], []>} : vector<32x512xf32>, vector<512x256xf32>, vector<32x256xf32> -> vector<32x256xf32>
    %c0_33 = arith.constant 0 : index
    %c0_34 = arith.constant 0 : index
    %61 = vector.load %arg11[%c0_33, %c0_34] : memref<1x256xf32, #tpu.memory_space<vmem>>, vector<1x256xf32>
    %62 = vector.broadcast %61 : vector<1x256xf32> to vector<32x256xf32>
    %63 = arith.addf %60, %62 : vector<32x256xf32>
    %c0_35 = arith.constant 0 : index
    %c0_36 = arith.constant 0 : index
    %64 = vector.load %arg12[%c0_35, %c0_36] : memref<1x256xf32, #tpu.memory_space<vmem>>, vector<1x256xf32>
    %c0_37 = arith.constant 0 : index
    %c0_38 = arith.constant 0 : index
    %65 = vector.load %arg13[%c0_37, %c0_38] : memref<1x256xf32, #tpu.memory_space<vmem>>, vector<1x256xf32>
    %cst_39 = arith.constant dense<0.000000e+00> : vector<32xf32>
    %66 = vector.multi_reduction <add>, %63, %cst_39 [1] : vector<32x256xf32> to vector<32xf32>
    %67 = vector.shape_cast %66 : vector<32xf32> to vector<32x1xf32>
    %cst_40 = arith.constant 2.560000e+02 : f32
    %68 = vector.broadcast %cst_40 : f32 to vector<32x1xf32>
    %69 = arith.divf %67, %68 : vector<32x1xf32>
    %70 = vector.broadcast %69 : vector<32x1xf32> to vector<32x256xf32>
    %71 = arith.subf %63, %70 : vector<32x256xf32>
    %72 = arith.mulf %71, %71 : vector<32x256xf32>
    %cst_41 = arith.constant dense<0.000000e+00> : vector<32xf32>
    %73 = vector.multi_reduction <add>, %72, %cst_41 [1] : vector<32x256xf32> to vector<32xf32>
    %74 = vector.shape_cast %73 : vector<32xf32> to vector<32x1xf32>
    %cst_42 = arith.constant 2.560000e+02 : f32
    %75 = vector.broadcast %cst_42 : f32 to vector<32x1xf32>
    %76 = arith.divf %74, %75 : vector<32x1xf32>
    %cst_43 = arith.constant 9.99999974E-6 : f32
    %77 = vector.broadcast %cst_43 : f32 to vector<32x1xf32>
    %78 = arith.addf %76, %77 : vector<32x1xf32>
    %79 = math.rsqrt %78 : vector<32x1xf32>
    %80 = vector.broadcast %64 : vector<1x256xf32> to vector<32x256xf32>
    %81 = vector.broadcast %79 : vector<32x1xf32> to vector<32x256xf32>
    %82 = arith.mulf %80, %81 : vector<32x256xf32>
    %83 = arith.mulf %71, %82 : vector<32x256xf32>
    %84 = vector.broadcast %65 : vector<1x256xf32> to vector<32x256xf32>
    %85 = arith.addf %83, %84 : vector<32x256xf32>
    %cst_44 = arith.constant 0.000000e+00 : f32
    %86 = vector.broadcast %cst_44 : f32 to vector<32x256xf32>
    %87 = arith.maximumf %85, %86 : vector<32x256xf32>
    %c0_45 = arith.constant 0 : index
    %c0_46 = arith.constant 0 : index
    %88 = vector.load %arg14[%c0_45, %c0_46] : memref<256x128xf32, #tpu.memory_space<vmem>>, vector<256x128xf32>
    %cst_47 = arith.constant dense<0.000000e+00> : vector<32x128xf32>
    %89 = tpu.matmul %87, %88, %cst_47 {dimension_numbers = #tpu.dot_dimension_numbers<[1], [0], [0], [1], [0, 0, 1, 1], [], []>} : vector<32x256xf32>, vector<256x128xf32>, vector<32x128xf32> -> vector<32x128xf32>
    %c0_48 = arith.constant 0 : index
    %c0_49 = arith.constant 0 : index
    %90 = vector.load %arg15[%c0_48, %c0_49] : memref<1x128xf32, #tpu.memory_space<vmem>>, vector<1x128xf32>
    %91 = vector.broadcast %90 : vector<1x128xf32> to vector<32x128xf32>
    %92 = arith.addf %89, %91 : vector<32x128xf32>
    %c0_50 = arith.constant 0 : index
    %c0_51 = arith.constant 0 : index
    %93 = vector.load %arg16[%c0_50, %c0_51] : memref<32x128xf32, #tpu.memory_space<vmem>>, vector<32x128xf32>
    tpu.vector_store %arg16[%c0_50, %c0_51], %92 {strides = array<i32>} : memref<32x128xf32, #tpu.memory_space<vmem>>, vector<32x128xf32>,
    return
  }
  func.func @transform_0(%arg0: i32) -> (i32, i32) {
    %c0_i32 = arith.constant 0 : i32
    %c0_i32_0 = arith.constant 0 : i32
    return %arg0, %c0_i32 : i32, i32
  }
  func.func @transform_1(%arg0: i32) -> (i32, i32) {
    %c0_i32 = arith.constant 0 : i32
    %c0_i32_0 = arith.constant 0 : i32
    %c0_i32_1 = arith.constant 0 : i32
    return %c0_i32, %c0_i32_0 : i32, i32
  }
  func.func @transform_2(%arg0: i32) -> (i32, i32) {
    %c0_i32 = arith.constant 0 : i32
    %c0_i32_0 = arith.constant 0 : i32
    %c0_i32_1 = arith.constant 0 : i32
    return %c0_i32, %c0_i32_0 : i32, i32
  }
  func.func @transform_3(%arg0: i32) -> (i32, i32) {
    %c0_i32 = arith.constant 0 : i32
    %c0_i32_0 = arith.constant 0 : i32
    %c0_i32_1 = arith.constant 0 : i32
    return %c0_i32, %c0_i32_0 : i32, i32
  }
  func.func @transform_4(%arg0: i32) -> (i32, i32) {
    %c0_i32 = arith.constant 0 : i32
    %c0_i32_0 = arith.constant 0 : i32
    %c0_i32_1 = arith.constant 0 : i32
    return %c0_i32, %c0_i32_0 : i32, i32
  }
  func.func @transform_5(%arg0: i32) -> (i32, i32) {
    %c0_i32 = arith.constant 0 : i32
    %c0_i32_0 = arith.constant 0 : i32
    %c0_i32_1 = arith.constant 0 : i32
    return %c0_i32, %c0_i32_0 : i32, i32
  }
  func.func @transform_6(%arg0: i32) -> (i32, i32) {
    %c0_i32 = arith.constant 0 : i32
    %c0_i32_0 = arith.constant 0 : i32
    %c0_i32_1 = arith.constant 0 : i32
    return %c0_i32, %c0_i32_0 : i32, i32
  }
  func.func @transform_7(%arg0: i32) -> (i32, i32) {
    %c0_i32 = arith.constant 0 : i32
    %c0_i32_0 = arith.constant 0 : i32
    %c0_i32_1 = arith.constant 0 : i32
    return %c0_i32, %c0_i32_0 : i32, i32
  }
  func.func @transform_8(%arg0: i32) -> (i32, i32) {
    %c0_i32 = arith.constant 0 : i32
    %c0_i32_0 = arith.constant 0 : i32
    %c0_i32_1 = arith.constant 0 : i32
    return %c0_i32, %c0_i32_0 : i32, i32
  }
  func.func @transform_9(%arg0: i32) -> (i32, i32) {
    %c0_i32 = arith.constant 0 : i32
    %c0_i32_0 = arith.constant 0 : i32
    %c0_i32_1 = arith.constant 0 : i32
    return %c0_i32, %c0_i32_0 : i32, i32
  }
  func.func @transform_10(%arg0: i32) -> (i32, i32) {
    %c0_i32 = arith.constant 0 : i32
    %c0_i32_0 = arith.constant 0 : i32
    %c0_i32_1 = arith.constant 0 : i32
    return %c0_i32, %c0_i32_0 : i32, i32
  }
  func.func @transform_11(%arg0: i32) -> (i32, i32) {
    %c0_i32 = arith.constant 0 : i32
    %c0_i32_0 = arith.constant 0 : i32
    %c0_i32_1 = arith.constant 0 : i32
    return %c0_i32, %c0_i32_0 : i32, i32
  }
  func.func @transform_12(%arg0: i32) -> (i32, i32) {
    %c0_i32 = arith.constant 0 : i32
    %c0_i32_0 = arith.constant 0 : i32
    %c0_i32_1 = arith.constant 0 : i32
    return %c0_i32, %c0_i32_0 : i32, i32
  }
  func.func @transform_13(%arg0: i32) -> (i32, i32) {
    %c0_i32 = arith.constant 0 : i32
    %c0_i32_0 = arith.constant 0 : i32
    %c0_i32_1 = arith.constant 0 : i32
    return %c0_i32, %c0_i32_0 : i32, i32
  }
  func.func @transform_14(%arg0: i32) -> (i32, i32) {
    %c0_i32 = arith.constant 0 : i32
    %c0_i32_0 = arith.constant 0 : i32
    %c0_i32_1 = arith.constant 0 : i32
    return %c0_i32, %c0_i32_0 : i32, i32
  }
  func.func @transform_15(%arg0: i32) -> (i32, i32) {
    %c0_i32 = arith.constant 0 : i32
    %c0_i32_0 = arith.constant 0 : i32
    return %arg0, %c0_i32 : i32, i32
  }
}

module attributes {stable_mosaic.version = 11 : i64} {
  func.func @ndsupcon_kernel(%arg0: i32, %arg1: memref<32x256xf32, #tpu.memory_space<vmem>>, %arg2: memref<256x1024xf32, #tpu.memory_space<vmem>>, %arg3: memref<1x1024xf32, #tpu.memory_space<vmem>>, %arg4: memref<1x1024xf32, #tpu.memory_space<vmem>>, %arg5: memref<1x1024xf32, #tpu.memory_space<vmem>>, %arg6: memref<1024x512xf32, #tpu.memory_space<vmem>>, %arg7: memref<1x512xf32, #tpu.memory_space<vmem>>, %arg8: memref<1x512xf32, #tpu.memory_space<vmem>>, %arg9: memref<1x512xf32, #tpu.memory_space<vmem>>, %arg10: memref<512x256xf32, #tpu.memory_space<vmem>>, %arg11: memref<1x256xf32, #tpu.memory_space<vmem>>, %arg12: memref<1x256xf32, #tpu.memory_space<vmem>>, %arg13: memref<1x256xf32, #tpu.memory_space<vmem>>, %arg14: memref<256x128xf32, #tpu.memory_space<vmem>>, %arg15: memref<1x128xf32, #tpu.memory_space<vmem>>, %arg16: memref<32x128xf32, #tpu.memory_space<vmem>>) attributes {dimension_semantics = [#tpu.dimension_semantics<parallel>], iteration_bounds = array<i64: 2>, scalar_prefetch = 0 : i64, scratch_operands = 0 : i64, tpu.core_type = #tpu.core_type<tc>, window_params = [{transform_indices = @transform_0, window_bounds = array<i64: 32, 256>}, {pipeline_mode = #tpu.pipeline_mode<synchronous>, transform_indices = @transform_1, window_bounds = array<i64: 256, 1024>}, {pipeline_mode = #tpu.pipeline_mode<synchronous>, transform_indices = @transform_2, window_bounds = array<i64: 1, 1024>}, {pipeline_mode = #tpu.pipeline_mode<synchronous>, transform_indices = @transform_3, window_bounds = array<i64: 1, 1024>}, {pipeline_mode = #tpu.pipeline_mode<synchronous>, transform_indices = @transform_4, window_bounds = array<i64: 1, 1024>}, {pipeline_mode = #tpu.pipeline_mode<synchronous>, transform_indices = @transform_5, window_bounds = array<i64: 1024, 512>}, {pipeline_mode = #tpu.pipeline_mode<synchronous>, transform_indices = @transform_6, window_bounds = array<i64: 1, 512>}, {pipeline_mode = #tpu.pipeline_mode<synchronous>, transform_indices = @transform_7, window_bounds = array<i64: 1, 512>}, {pipeline_mode = #tpu.pipeline_mode<synchronous>, transform_indices = @transform_8, window_bounds = array<i64: 1, 512>}, {pipeline_mode = #tpu.pipeline_mode<synchronous>, transform_indices = @transform_9, window_bounds = array<i64: 512, 256>}, {pipeline_mode = #tpu.pipeline_mode<synchronous>, transform_indices = @transform_10, window_bounds = array<i64: 1, 256>}, {pipeline_mode = #tpu.pipeline_mode<synchronous>, transform_indices = @transform_11, window_bounds = array<i64: 1, 256>}, {pipeline_mode = #tpu.pipeline_mode<synchronous>, transform_indices = @transform_12, window_bounds = array<i64: 1, 256>}, {pipeline_mode = #tpu.pipeline_mode<synchronous>, transform_indices = @transform_13, window_bounds = array<i64: 256, 128>}, {pipeline_mode = #tpu.pipeline_mode<synchronous>, transform_indices = @transform_14, window_bounds = array<i64: 1, 128>}, {transform_indices = @transform_15, window_bounds = array<i64: 32, 128>}]} {
    %c0 = arith.constant 0 : index
    %c0_0 = arith.constant 0 : index
    %0 = vector.load %arg1[%c0, %c0_0] : memref<32x256xf32, #tpu.memory_space<vmem>>, vector<32x256xf32>
    %c0_1 = arith.constant 0 : index
    %c0_2 = arith.constant 0 : index
    %1 = vector.load %arg2[%c0_1, %c0_2] : memref<256x1024xf32, #tpu.memory_space<vmem>>, vector<256x1024xf32>
    %cst = arith.constant dense<0.000000e+00> : vector<32x1024xf32>
    %2 = tpu.matmul %0, %1, %cst {dimension_numbers = #tpu.dot_dimension_numbers<[1], [0], [0], [1], [0, 0, 1, 1], [], []>} : vector<32x256xf32>, vector<256x1024xf32>, vector<32x1024xf32> -> vector<32x1024xf32>
    %c0_3 = arith.constant 0 : index
    %c0_4 = arith.constant 0 : index
    %3 = vector.load %arg3[%c0_3, %c0_4] : memref<1x1024xf32, #tpu.memory_space<vmem>>, vector<1x1024xf32>
    %4 = vector.broadcast %3 : vector<1x1024xf32> to vector<32x1024xf32>
    %5 = arith.addf %2, %4 : vector<32x1024xf32>
    %c0_5 = arith.constant 0 : index
    %c0_6 = arith.constant 0 : index
    %6 = vector.load %arg4[%c0_5, %c0_6] : memref<1x1024xf32, #tpu.memory_space<vmem>>, vector<1x1024xf32>
    %c0_7 = arith.constant 0 : index
    %c0_8 = arith.constant 0 : index
    %7 = vector.load %arg5[%c0_7, %c0_8] : memref<1x1024xf32, #tpu.memory_space<vmem>>, vector<1x1024xf32>
    %cst_9 = arith.constant dense<0.000000e+00> : vector<32xf32>
    %8 = vector.multi_reduction <add>, %5, %cst_9 [1] : vector<32x1024xf32> to vector<32xf32>
    %9 = vector.shape_cast %8 : vector<32xf32> to vector<32x1xf32>
    %cst_10 = arith.constant 1.024000e+03 : f32
    %10 = vector.broadcast %cst_10 : f32 to vector<32x1xf32>
    %11 = arith.divf %9, %10 : vector<32x1xf32>
    %12 = vector.broadcast %11 : vector<32x1xf32> to vector<32x1024xf32>
    %13 = arith.subf %5, %12 : vector<32x1024xf32>
    %14 = arith.mulf %13, %13 : vector<32x1024xf32>
    %cst_11 = arith.constant dense<0.000000e+00> : vector<32xf32>
    %15 = vector.multi_reduction <add>, %14, %cst_11 [1] : vector<32x1024xf32> to vector<32xf32>
    %16 = vector.shape_cast %15 : vector<32xf32> to vector<32x1xf32>
    %cst_12 = arith.constant 1.024000e+03 : f32
    %17 = vector.broadcast %cst_12 : f32 to vector<32x1xf32>
    %18 = arith.divf %16, %17 : vector<32x1xf32>
    %cst_13 = arith.constant 9.99999974E-6 : f32
    %19 = vector.broadcast %cst_13 : f32 to vector<32x1xf32>
    %20 = arith.addf %18, %19 : vector<32x1xf32>
    %21 = math.rsqrt %20 : vector<32x1xf32>
    %22 = vector.broadcast %6 : vector<1x1024xf32> to vector<32x1024xf32>
    %23 = vector.broadcast %21 : vector<32x1xf32> to vector<32x1024xf32>
    %24 = arith.mulf %22, %23 : vector<32x1024xf32>
    %25 = arith.mulf %13, %24 : vector<32x1024xf32>
    %26 = vector.broadcast %7 : vector<1x1024xf32> to vector<32x1024xf32>
    %27 = arith.addf %25, %26 : vector<32x1024xf32>
    %cst_14 = arith.constant 0.000000e+00 : f32
    %28 = vector.broadcast %cst_14 : f32 to vector<32x1024xf32>
    %29 = arith.maximumf %27, %28 : vector<32x1024xf32>
    %c0_15 = arith.constant 0 : index
    %c0_16 = arith.constant 0 : index
    %30 = vector.load %arg6[%c0_15, %c0_16] : memref<1024x512xf32, #tpu.memory_space<vmem>>, vector<1024x512xf32>
    %cst_17 = arith.constant dense<0.000000e+00> : vector<32x512xf32>
    %31 = tpu.matmul %29, %30, %cst_17 {dimension_numbers = #tpu.dot_dimension_numbers<[1], [0], [0], [1], [0, 0, 1, 1], [], []>} : vector<32x1024xf32>, vector<1024x512xf32>, vector<32x512xf32> -> vector<32x512xf32>
    %c0_18 = arith.constant 0 : index
    %c0_19 = arith.constant 0 : index
    %32 = vector.load %arg7[%c0_18, %c0_19] : memref<1x512xf32, #tpu.memory_space<vmem>>, vector<1x512xf32>
    %33 = vector.broadcast %32 : vector<1x512xf32> to vector<32x512xf32>
    %34 = arith.addf %31, %33 : vector<32x512xf32>
    %c0_20 = arith.constant 0 : index
    %c0_21 = arith.constant 0 : index
    %35 = vector.load %arg8[%c0_20, %c0_21] : memref<1x512xf32, #tpu.memory_space<vmem>>, vector<1x512xf32>
    %c0_22 = arith.constant 0 : index
    %c0_23 = arith.constant 0 : index
    %36 = vector.load %arg9[%c0_22, %c0_23] : memref<1x512xf32, #tpu.memory_space<vmem>>, vector<1x512xf32>
    %cst_24 = arith.constant dense<0.000000e+00> : vector<32xf32>
    %37 = vector.multi_reduction <add>, %34, %cst_24 [1] : vector<32x512xf32> to vector<32xf32>
    %38 = vector.shape_cast %37 : vector<32xf32> to vector<32x1xf32>
    %cst_25 = arith.constant 5.120000e+02 : f32
    %39 = vector.broadcast %cst_25 : f32 to vector<32x1xf32>
    %40 = arith.divf %38, %39 : vector<32x1xf32>
    %41 = vector.broadcast %40 : vector<32x1xf32> to vector<32x512xf32>
    %42 = arith.subf %34, %41 : vector<32x512xf32>
    %43 = arith.mulf %42, %42 : vector<32x512xf32>
    %cst_26 = arith.constant dense<0.000000e+00> : vector<32xf32>
    %44 = vector.multi_reduction <add>, %43, %cst_26 [1] : vector<32x512xf32> to vector<32xf32>
    %45 = vector.shape_cast %44 : vector<32xf32> to vector<32x1xf32>
    %cst_27 = arith.constant 5.120000e+02 : f32
    %46 = vector.broadcast %cst_27 : f32 to vector<32x1xf32>
    %47 = arith.divf %45, %46 : vector<32x1xf32>
    %cst_28 = arith.constant 9.99999974E-6 : f32
    %48 = vector.broadcast %cst_28 : f32 to vector<32x1xf32>
    %49 = arith.addf %47, %48 : vector<32x1xf32>
    %50 = math.rsqrt %49 : vector<32x1xf32>
    %51 = vector.broadcast %35 : vector<1x512xf32> to vector<32x512xf32>
    %52 = vector.broadcast %50 : vector<32x1xf32> to vector<32x512xf32>
    %53 = arith.mulf %51, %52 : vector<32x512xf32>
    %54 = arith.mulf %42, %53 : vector<32x512xf32>
    %55 = vector.broadcast %36 : vector<1x512xf32> to vector<32x512xf32>
    %56 = arith.addf %54, %55 : vector<32x512xf32>
    %cst_29 = arith.constant 0.000000e+00 : f32
    %57 = vector.broadcast %cst_29 : f32 to vector<32x512xf32>
    %58 = arith.maximumf %56, %57 : vector<32x512xf32>
    %c0_30 = arith.constant 0 : index
    %c0_31 = arith.constant 0 : index
    %59 = vector.load %arg10[%c0_30, %c0_31] : memref<512x256xf32, #tpu.memory_space<vmem>>, vector<512x256xf32>
    %cst_32 = arith.constant dense<0.000000e+00> : vector<32x256xf32>
    %60 = tpu.matmul %58, %59, %cst_32 {dimension_numbers = #tpu.dot_dimension_numbers<[1], [0], [0], [1], [0, 0, 1, 1], [], []>} : vector<32x512xf32>, vector<512x256xf32>, vector<32x256xf32> -> vector<32x256xf32>
    %c0_33 = arith.constant 0 : index
    %c0_34 = arith.constant 0 : index
    %61 = vector.load %arg11[%c0_33, %c0_34] : memref<1x256xf32, #tpu.memory_space<vmem>>, vector<1x256xf32>
    %62 = vector.broadcast %61 : vector<1x256xf32> to vector<32x256xf32>
    %63 = arith.addf %60, %62 : vector<32x256xf32>
    %c0_35 = arith.constant 0 : index
    %c0_36 = arith.constant 0 : index
    %64 = vector.load %arg12[%c0_35, %c0_36] : memref<1x256xf32, #tpu.memory_space<vmem>>, vector<1x256xf32>
    %c0_37 = arith.constant 0 : index
    %c0_38 = arith.constant 0 : index
    %65 = vector.load %arg13[%c0_37, %c0_38] : memref<1x256xf32, #tpu.memory_space<vmem>>, vector<1x256xf32>
    %cst_39 = arith.constant dense<0.000000e+00> : vector<32xf32>
    %66 = vector.multi_reduction <add>, %63, %cst_39 [1] : vector<32x256xf32> to vector<32xf32>
    %67 = vector.shape_cast %66 : vector<32xf32> to vector<32x1xf32>
    %cst_40 = arith.constant 2.560000e+02 : f32
    %68 = vector.broadcast %cst_40 : f32 to vector<32x1xf32>
    %69 = arith.divf %67, %68 : vector<32x1xf32>
    %70 = vector.broadcast %69 : vector<32x1xf32> to vector<32x256xf32>
    %71 = arith.subf %63, %70 : vector<32x256xf32>
    %72 = arith.mulf %71, %71 : vector<32x256xf32>
    %cst_41 = arith.constant dense<0.000000e+00> : vector<32xf32>
    %73 = vector.multi_reduction <add>, %72, %cst_41 [1] : vector<32x256xf32> to vector<32xf32>
    %74 = vector.shape_cast %73 : vector<32xf32> to vector<32x1xf32>
    %cst_42 = arith.constant 2.560000e+02 : f32
    %75 = vector.broadcast %cst_42 : f32 to vector<32x1xf32>
    %76 = arith.divf %74, %75 : vector<32x1xf32>
    %cst_43 = arith.constant 9.99999974E-6 : f32
    %77 = vector.broadcast %cst_43 : f32 to vector<32x1xf32>
    %78 = arith.addf %76, %77 : vector<32x1xf32>
    %79 = math.rsqrt %78 : vector<32x1xf32>
    %80 = vector.broadcast %64 : vector<1x256xf32> to vector<32x256xf32>
    %81 = vector.broadcast %79 : vector<32x1xf32> to vector<32x256xf32>
    %82 = arith.mulf %80, %81 : vector<32x256xf32>
    %83 = arith.mulf %71, %82 : vector<32x256xf32>
    %84 = vector.broadcast %65 : vector<1x256xf32> to vector<32x256xf32>
    %85 = arith.addf %83, %84 : vector<32x256xf32>
    %cst_44 = arith.constant 0.000000e+00 : f32
    %86 = vector.broadcast %cst_44 : f32 to vector<32x256xf32>
    %87 = arith.maximumf %85, %86 : vector<32x256xf32>
    %c0_45 = arith.constant 0 : index
    %c0_46 = arith.constant 0 : index
    %88 = vector.load %arg14[%c0_45, %c0_46] : memref<256x128xf32, #tpu.memory_space<vmem>>, vector<256x128xf32>
    %cst_47 = arith.constant dense<0.000000e+00> : vector<32x128xf32>
    %89 = tpu.matmul %87, %88, %cst_47 {dimension_numbers = #tpu.dot_dimension_numbers<[1], [0], [0], [1], [0, 0, 1, 1], [], []>} : vector<32x256xf32>, vector<256x128xf32>, vector<32x128xf32> -> vector<32x128xf32>
    %c0_48 = arith.constant 0 : index
    %c0_49 = arith.constant 0 : index
    %90 = vector.load %arg15[%c0_48, %c0_49] : memref<1x128xf32, #tpu.memory_space<vmem>>, vector<1x128xf32>
    %91 = vector.broadcast %90 : vector<1x128xf32> to vector<32x128xf32>
    %92 = arith.addf %89, %91 : vector<32x128xf32>
    %c0_50 = arith.constant 0 : index
    %c0_51 = arith.constant 0 : index
    %93 = vector.load %arg16[%c0_50, %c0_51] : memref<32x128xf32, #tpu.memory_space<vmem>>, vector<32x128xf32>
    tpu.vector_store %arg16[%c0_50, %c0_51], %92 {strides = array<i32>} : memref<32x128xf32, #tpu.memory_space<vmem>>, vector<32x128xf32>,
    return
  }
  func.func @transform_0(%arg0: i32) -> (i32, i32) {
    %c0_i32 = arith.constant 0 : i32
    %c0_i32_0 = arith.constant 0 : i32
    return %arg0, %c0_i32 : i32, i32
  }
  func.func @transform_1(%arg0: i32) -> (i32, i32) {
    %c0_i32 = arith.constant 0 : i32
    %c0_i32_0 = arith.constant 0 : i32
    %c0_i32_1 = arith.constant 0 : i32
    return %c0_i32, %c0_i32_0 : i32, i32
  }
  func.func @transform_2(%arg0: i32) -> (i32, i32) {
    %c0_i32 = arith.constant 0 : i32
    %c0_i32_0 = arith.constant 0 : i32
    %c0_i32_1 = arith.constant 0 : i32
    return %c0_i32, %c0_i32_0 : i32, i32
  }
  func.func @transform_3(%arg0: i32) -> (i32, i32) {
    %c0_i32 = arith.constant 0 : i32
    %c0_i32_0 = arith.constant 0 : i32
    %c0_i32_1 = arith.constant 0 : i32
    return %c0_i32, %c0_i32_0 : i32, i32
  }
  func.func @transform_4(%arg0: i32) -> (i32, i32) {
    %c0_i32 = arith.constant 0 : i32
    %c0_i32_0 = arith.constant 0 : i32
    %c0_i32_1 = arith.constant 0 : i32
    return %c0_i32, %c0_i32_0 : i32, i32
  }
  func.func @transform_5(%arg0: i32) -> (i32, i32) {
    %c0_i32 = arith.constant 0 : i32
    %c0_i32_0 = arith.constant 0 : i32
    %c0_i32_1 = arith.constant 0 : i32
    return %c0_i32, %c0_i32_0 : i32, i32
  }
  func.func @transform_6(%arg0: i32) -> (i32, i32) {
    %c0_i32 = arith.constant 0 : i32
    %c0_i32_0 = arith.constant 0 : i32
    %c0_i32_1 = arith.constant 0 : i32
    return %c0_i32, %c0_i32_0 : i32, i32
  }
  func.func @transform_7(%arg0: i32) -> (i32, i32) {
    %c0_i32 = arith.constant 0 : i32
    %c0_i32_0 = arith.constant 0 : i32
    %c0_i32_1 = arith.constant 0 : i32
    return %c0_i32, %c0_i32_0 : i32, i32
  }
  func.func @transform_8(%arg0: i32) -> (i32, i32) {
    %c0_i32 = arith.constant 0 : i32
    %c0_i32_0 = arith.constant 0 : i32
    %c0_i32_1 = arith.constant 0 : i32
    return %c0_i32, %c0_i32_0 : i32, i32
  }
  func.func @transform_9(%arg0: i32) -> (i32, i32) {
    %c0_i32 = arith.constant 0 : i32
    %c0_i32_0 = arith.constant 0 : i32
    %c0_i32_1 = arith.constant 0 : i32
    return %c0_i32, %c0_i32_0 : i32, i32
  }
  func.func @transform_10(%arg0: i32) -> (i32, i32) {
    %c0_i32 = arith.constant 0 : i32
    %c0_i32_0 = arith.constant 0 : i32
    %c0_i32_1 = arith.constant 0 : i32
    return %c0_i32, %c0_i32_0 : i32, i32
  }
  func.func @transform_11(%arg0: i32) -> (i32, i32) {
    %c0_i32 = arith.constant 0 : i32
    %c0_i32_0 = arith.constant 0 : i32
    %c0_i32_1 = arith.constant 0 : i32
    return %c0_i32, %c0_i32_0 : i32, i32
  }
  func.func @transform_12(%arg0: i32) -> (i32, i32) {
    %c0_i32 = arith.constant 0 : i32
    %c0_i32_0 = arith.constant 0 : i32
    %c0_i32_1 = arith.constant 0 : i32
    return %c0_i32, %c0_i32_0 : i32, i32
  }
  func.func @transform_13(%arg0: i32) -> (i32, i32) {
    %c0_i32 = arith.constant 0 : i32
    %c0_i32_0 = arith.constant 0 : i32
    %c0_i32_1 = arith.constant 0 : i32
    return %c0_i32, %c0_i32_0 : i32, i32
  }
  func.func @transform_14(%arg0: i32) -> (i32, i32) {
    %c0_i32 = arith.constant 0 : i32
    %c0_i32_0 = arith.constant 0 : i32
    %c0_i32_1 = arith.constant 0 : i32
    return %c0_i32, %c0_i32_0 : i32, i32
  }
  func.func @transform_15(%arg0: i32) -> (i32, i32) {
    %c0_i32 = arith.constant 0 : i32
    %c0_i32_0 = arith.constant 0 : i32
    return %arg0, %c0_i32 : i32, i32
  }
}

</mosaic_0001>

<llo_original>
// kernel: tpu_custom_call.1
$region0: #{tpu_custom_call.1}
  #allocation0 [shape = 'u32[]', space=smem, size = 0x4, offset = 0x4, fixed_abs, tag = 'smem constant byte address 0x4 - core index']
  #allocation1 [shape = 'u32[144,128]{1,0:T(1,128)}', space=vmem, size = 0x12000, scoped, tag = 'internal scratch']
  %s0 = inlined_call_operand.hbm [shape: f32[64,256], index: 0, kind: input, shape index: {}]
  %s1 = inlined_call_operand.hbm [shape: f32[256,1024], index: 1, kind: input, shape index: {}]
  %s2 = inlined_call_operand.hbm [shape: f32[1,1024], index: 2, kind: input, shape index: {}]
  %s3 = inlined_call_operand.hbm [shape: f32[1,1024], index: 3, kind: input, shape index: {}]
  %s4 = inlined_call_operand.hbm [shape: f32[1,1024], index: 4, kind: input, shape index: {}]
  %s5 = inlined_call_operand.hbm [shape: f32[1024,512], index: 5, kind: input, shape index: {}]
  %s6 = inlined_call_operand.hbm [shape: f32[1,512], index: 6, kind: input, shape index: {}]
  %s7 = inlined_call_operand.hbm [shape: f32[1,512], index: 7, kind: input, shape index: {}]
  %s8 = inlined_call_operand.hbm [shape: f32[1,512], index: 8, kind: input, shape index: {}]
  %s9 = inlined_call_operand.hbm [shape: f32[512,256], index: 9, kind: input, shape index: {}]
  %s10 = inlined_call_operand.hbm [shape: f32[1,256], index: 10, kind: input, shape index: {}]
  %s11 = inlined_call_operand.hbm [shape: f32[1,256], index: 11, kind: input, shape index: {}]
  %s12 = inlined_call_operand.hbm [shape: f32[1,256], index: 12, kind: input, shape index: {}]
  %s13 = inlined_call_operand.hbm [shape: f32[256,128], index: 13, kind: input, shape index: {}]
  %s14 = inlined_call_operand.hbm [shape: f32[1,128], index: 14, kind: input, shape index: {}]
  %s15 = inlined_call_operand.hbm [shape: f32[64,128], index: 15, kind: output, shape index: {}]
  %s16 = sld [smem:[#allocation0]]
  $region153: #{tpu_custom_call.1} parent=0
    _
  %s18 = ssub.s32 1, %s16
  %s19 = scalar_select 0, %s18, %s16
  $region1: #{tpu_custom_call.1} parent=0
    #allocation2 [shape = 'u8[65536]{0}', space=vmem, size = 0x10000, scoped, tag = 'input window, operand 0']
    #allocation3 [shape = 's32[2]{0}', space=sflag, size = 0x8, scoped, tag = 'scoped memory for tpu_custom_call.1']
    #allocation4 [shape = 's32[2]{0}', space=sflag, size = 0x8, scoped, tag = 'scoped memory for tpu_custom_call.1']
    #allocation5 [shape = 'u8[1048576]{0}', space=vmem, size = 0x100000, scoped, tag = 'input window, operand 1, single buffered']
    #allocation6 [shape = 's32[1]{0}', space=sflag, size = 0x4, scoped, tag = 'scoped memory for tpu_custom_call.1']
    #allocation7 [shape = 'u8[4096]{0}', space=vmem, size = 0x1000, scoped, tag = 'input window, operand 2, single buffered']
    #allocation8 [shape = 'u8[4096]{0}', space=vmem, size = 0x1000, scoped, tag = 'input window, operand 3, single buffered']
    #allocation9 [shape = 's32[1]{0}', space=sflag, size = 0x4, scoped, tag = 'scoped memory for tpu_custom_call.1']
    #allocation10 [shape = 'u8[4096]{0}', space=vmem, size = 0x1000, scoped, tag = 'input window, operand 4, single buffered']
    #allocation11 [shape = 'u8[2097152]{0}', space=vmem, size = 0x200000, scoped, tag = 'input window, operand 5, single buffered']
    #allocation12 [shape = 's32[1]{0}', space=sflag, size = 0x4, scoped, tag = 'scoped memory for tpu_custom_call.1']
    #allocation13 [shape = 'u8[2048]{0}', space=vmem, size = 0x800, scoped, tag = 'input window, operand 6, single buffered']
    #allocation14 [shape = 'u8[2048]{0}', space=vmem, size = 0x800, scoped, tag = 'input window, operand 7, single buffered']
    #allocation15 [shape = 's32[1]{0}', space=sflag, size = 0x4, scoped, tag = 'scoped memory for tpu_custom_call.1']
    #allocation16 [shape = 'u8[2048]{0}', space=vmem, size = 0x800, scoped, tag = 'input window, operand 8, single buffered']
    #allocation17 [shape = 'u8[524288]{0}', space=vmem, size = 0x80000, scoped, tag = 'input window, operand 9, single buffered']
    #allocation18 [shape = 's32[1]{0}', space=sflag, size = 0x4, scoped, tag = 'scoped memory for tpu_custom_call.1']
    #allocation19 [shape = 'u8[1024]{0}', space=vmem, size = 0x400, scoped, tag = 'input window, operand 10, single buffered']
    #allocation20 [shape = 'u8[1024]{0}', space=vmem, size = 0x400, scoped, tag = 'input window, operand 11, single buffered']
    #allocation21 [shape = 's32[1]{0}', space=sflag, size = 0x4, scoped, tag = 'scoped memory for tpu_custom_call.1']
    #allocation22 [shape = 'u8[1024]{0}', space=vmem, size = 0x400, scoped, tag = 'input window, operand 12, single buffered']
    #allocation23 [shape = 'u8[131072]{0}', space=vmem, size = 0x20000, scoped, tag = 'input window, operand 13, single buffered']
    #allocation24 [shape = 's32[1]{0}', space=sflag, size = 0x4, scoped, tag = 'scoped memory for tpu_custom_call.1']
    #allocation25 [shape = 'u8[512]{0}', space=vmem, size = 0x400, scoped, tag = 'input window, operand 14, single buffered']
    #allocation26 [shape = 'u8[32768]{0}', space=vmem, size = 0x8000, scoped, tag = 'output window, operand 0']
    %20 = vsyncpa [#allocation3], 0
    %s21 = scalar_lea.sflag [#allocation3], 1
    %22 = vsyncpa %s21, 0
    %23 = vsyncpa [#allocation6], 0
    %24 = vsyncpa [#allocation9], 0
    %25 = vsyncpa [#allocation12], 0
    %26 = vsyncpa [#allocation15], 0
    %27 = vsyncpa [#allocation18], 0
    %28 = vsyncpa [#allocation21], 0
    %29 = vsyncpa [#allocation24], 0
    %30 = vsyncpa [#allocation4], 0
    %s31 = scalar_lea.sflag [#allocation4], 1
    %32 = vsyncpa %s31, 0
    loop: start=0, step=1, limit=4
    $region2: #{tpu_custom_call.1} parent=1 // loop_pre_header
      _
    $region3: #{tpu_custom_call.1} parent=1 // loop_header
      %s34 = sphi 0, %s38
      %p35 = scmp.ge.s32.totalorder %s34, 4
      %s44 = sphi 0, %s46
      %s47 = sphi 0, %s44
      %s48 = sphi 0, %s47
      %s64 = sphi 0, %s48
      %s68 = sphi 0, %s68
      %s70 = sphi 0, %s68
      %s71 = sphi 0, %s70
      %s85 = sphi 0, %s71
      %s89 = sphi 0, %s89
      %s91 = sphi 0, %s89
      %s92 = sphi 0, %s91
      %s106 = sphi 0, %s92
      %s110 = sphi 0, %s110
      %s112 = sphi 0, %s110
      %s113 = sphi 0, %s112
      %s127 = sphi 0, %s113
      %s131 = sphi 0, %s131
      %s133 = sphi 0, %s131
      %s134 = sphi 0, %s133
      %s148 = sphi 0, %s134
      %s152 = sphi 0, %s152
      %s154 = sphi 0, %s152
      %s155 = sphi 0, %s154
      %s169 = sphi 0, %s155
      %s173 = sphi 0, %s173
      %s175 = sphi 0, %s173
      %s176 = sphi 0, %s175
      %s190 = sphi 0, %s176
      %s194 = sphi 0, %s194
      %s196 = sphi 0, %s194
      %s197 = sphi 0, %s196
      %s211 = sphi 0, %s197
      %s215 = sphi 0, %s215
      %s217 = sphi 0, %s215
      %s218 = sphi 0, %s217
      %s232 = sphi 0, %s218
      %s236 = sphi 0, %s236
      %s238 = sphi 0, %s236
      %s239 = sphi 0, %s238
      %s253 = sphi 0, %s239
      %s257 = sphi 0, %s257
      %s259 = sphi 0, %s257
      %s260 = sphi 0, %s259
      %s274 = sphi 0, %s260
      %s278 = sphi 0, %s278
      %s280 = sphi 0, %s278
      %s281 = sphi 0, %s280
      %s295 = sphi 0, %s281
      %s299 = sphi 0, %s299
      %s301 = sphi 0, %s299
      %s302 = sphi 0, %s301
      %s316 = sphi 0, %s302
      %s320 = sphi 0, %s320
      %s322 = sphi 0, %s320
      %s323 = sphi 0, %s322
      %s337 = sphi 0, %s323
      %s341 = sphi 0, %s341
      %s343 = sphi 0, %s341
      %s344 = sphi 0, %s343
      %s358 = sphi 0, %s344
      %s364 = sphi 0, %s366
      %s367 = sphi 0, %s364
      %s368 = sphi 0, %s367
      %s384 = sphi 0, %s368
    $region4: #{tpu_custom_call.1} parent=1 // loop_header_branch
      %37 = sbr.rel (%p35) target = $region8
    $region5: #{tpu_custom_call.1} parent=1 // loop_body
      %s39 = ssub.s32 %s34, 1
      %s40 = ssub.s32 %s34, 2
      %s41 = sadd.s32 %s34, 1
      %s42 = ssub.s32 %s34, %s41
      %p43 = scmp.eq.s32.totalorder %s42, 0
      %s45 = sadd.s32 %s44, 1
      %s46 = scalar_select %p43, %s44, %s45
      %p49 = pneg %p43
      %p50 = scmp.eq.s32.totalorder %s34, 1
      %p51 = por %p49, %p50
      %p52 = scmp.ne.s32.totalorder %s44, %s47
      %p53 = scmp.eq.s32.totalorder %s34, 0
      %p54 = por %p52, %p53
      %p55 = scmp.ne.s32.totalorder %s44, %s47
      %p56 = scmp.eq.s32.totalorder %s39, 1
      %p57 = por %p55, %p56
      %p58 = scmp.ne.s32.totalorder %s47, %s48
      %p59 = scmp.eq.s32.totalorder %s39, 0
      %p60 = por %p58, %p59
      %p61 = scmp.ne.s32.totalorder %s47, %s48
      %p62 = scmp.eq.s32.totalorder %s40, 1
      %p63 = por %p61, %p62
      %p65 = scmp.ne.s32.totalorder %s48, %s64
      %p66 = scmp.eq.s32.totalorder %s40, 0
      %p67 = por %p65, %p66
      %s69 = sadd.s32 %s68, 1
      %p72 = scmp.eq.s32.totalorder %s34, 1
      %p73 = scmp.ne.s32.totalorder %s68, %s70
      %p74 = scmp.eq.s32.totalorder %s34, 0
      %p75 = por %p73, %p74
      %p76 = scmp.ne.s32.totalorder %s68, %s70
      %p77 = scmp.eq.s32.totalorder %s39, 1
      %p78 = por %p76, %p77
      %p79 = scmp.ne.s32.totalorder %s70, %s71
      %p80 = scmp.eq.s32.totalorder %s39, 0
      %p81 = por %p79, %p80
      %p82 = scmp.ne.s32.totalorder %s70, %s71
      %p83 = scmp.eq.s32.totalorder %s40, 1
      %p84 = por %p82, %p83
      %p86 = scmp.ne.s32.totalorder %s71, %s85
      %p87 = scmp.eq.s32.totalorder %s40, 0
      %p88 = por %p86, %p87
      %s90 = sadd.s32 %s89, 1
      %p93 = scmp.eq.s32.totalorder %s34, 1
      %p94 = scmp.ne.s32.totalorder %s89, %s91
      %p95 = scmp.eq.s32.totalorder %s34, 0
      %p96 = por %p94, %p95
      %p97 = scmp.ne.s32.totalorder %s89, %s91
      %p98 = scmp.eq.s32.totalorder %s39, 1
      %p99 = por %p97, %p98
      %p100 = scmp.ne.s32.totalorder %s91, %s92
      %p101 = scmp.eq.s32.totalorder %s39, 0
      %p102 = por %p100, %p101
      %p103 = scmp.ne.s32.totalorder %s91, %s92
      %p104 = scmp.eq.s32.totalorder %s40, 1
      %p105 = por %p103, %p104
      %p107 = scmp.ne.s32.totalorder %s92, %s106
      %p108 = scmp.eq.s32.totalorder %s40, 0
      %p109 = por %p107, %p108
      %s111 = sadd.s32 %s110, 1
      %p114 = scmp.eq.s32.totalorder %s34, 1
      %p115 = scmp.ne.s32.totalorder %s110, %s112
      %p116 = scmp.eq.s32.totalorder %s34, 0
      %p117 = por %p115, %p116
      %p118 = scmp.ne.s32.totalorder %s110, %s112
      %p119 = scmp.eq.s32.totalorder %s39, 1
      %p120 = por %p118, %p119
      %p121 = scmp.ne.s32.totalorder %s112, %s113
      %p122 = scmp.eq.s32.totalorder %s39, 0
      %p123 = por %p121, %p122
      %p124 = scmp.ne.s32.totalorder %s112, %s113
      %p125 = scmp.eq.s32.totalorder %s40, 1
      %p126 = por %p124, %p125
      %p128 = scmp.ne.s32.totalorder %s113, %s127
      %p129 = scmp.eq.s32.totalorder %s40, 0
      %p130 = por %p128, %p129
      %s132 = sadd.s32 %s131, 1
      %p135 = scmp.eq.s32.totalorder %s34, 1
      %p136 = scmp.ne.s32.totalorder %s131, %s133
      %p137 = scmp.eq.s32.totalorder %s34, 0
      %p138 = por %p136, %p137
      %p139 = scmp.ne.s32.totalorder %s131, %s133
      %p140 = scmp.eq.s32.totalorder %s39, 1
      %p141 = por %p139, %p140
      %p142 = scmp.ne.s32.totalorder %s133, %s134
      %p143 = scmp.eq.s32.totalorder %s39, 0
      %p144 = por %p142, %p143
      %p145 = scmp.ne.s32.totalorder %s133, %s134
      %p146 = scmp.eq.s32.totalorder %s40, 1
      %p147 = por %p145, %p146
      %p149 = scmp.ne.s32.totalorder %s134, %s148
      %p150 = scmp.eq.s32.totalorder %s40, 0
      %p151 = por %p149, %p150
      %s153 = sadd.s32 %s152, 1
      %p156 = scmp.eq.s32.totalorder %s34, 1
      %p157 = scmp.ne.s32.totalorder %s152, %s154
      %p158 = scmp.eq.s32.totalorder %s34, 0
      %p159 = por %p157, %p158
      %p160 = scmp.ne.s32.totalorder %s152, %s154
      %p161 = scmp.eq.s32.totalorder %s39, 1
      %p162 = por %p160, %p161
      %p163 = scmp.ne.s32.totalorder %s154, %s155
      %p164 = scmp.eq.s32.totalorder %s39, 0
      %p165 = por %p163, %p164
      %p166 = scmp.ne.s32.totalorder %s154, %s155
      %p167 = scmp.eq.s32.totalorder %s40, 1
      %p168 = por %p166, %p167
      %p170 = scmp.ne.s32.totalorder %s155, %s169
      %p171 = scmp.eq.s32.totalorder %s40, 0
      %p172 = por %p170, %p171
      %s174 = sadd.s32 %s173, 1
      %p177 = scmp.eq.s32.totalorder %s34, 1
      %p178 = scmp.ne.s32.totalorder %s173, %s175
      %p179 = scmp.eq.s32.totalorder %s34, 0
      %p180 = por %p178, %p179
      %p181 = scmp.ne.s32.totalorder %s173, %s175
      %p182 = scmp.eq.s32.totalorder %s39, 1
      %p183 = por %p181, %p182
      %p184 = scmp.ne.s32.totalorder %s175, %s176
      %p185 = scmp.eq.s32.totalorder %s39, 0
      %p186 = por %p184, %p185
      %p187 = scmp.ne.s32.totalorder %s175, %s176
      %p188 = scmp.eq.s32.totalorder %s40, 1
      %p189 = por %p187, %p188
      %p191 = scmp.ne.s32.totalorder %s176, %s190
      %p192 = scmp.eq.s32.totalorder %s40, 0
      %p193 = por %p191, %p192
      %s195 = sadd.s32 %s194, 1
      %p198 = scmp.eq.s32.totalorder %s34, 1
      %p199 = scmp.ne.s32.totalorder %s194, %s196
      %p200 = scmp.eq.s32.totalorder %s34, 0
      %p201 = por %p199, %p200
      %p202 = scmp.ne.s32.totalorder %s194, %s196
      %p203 = scmp.eq.s32.totalorder %s39, 1
      %p204 = por %p202, %p203
      %p205 = scmp.ne.s32.totalorder %s196, %s197
      %p206 = scmp.eq.s32.totalorder %s39, 0
      %p207 = por %p205, %p206
      %p208 = scmp.ne.s32.totalorder %s196, %s197
      %p209 = scmp.eq.s32.totalorder %s40, 1
      %p210 = por %p208, %p209
      %p212 = scmp.ne.s32.totalorder %s197, %s211
      %p213 = scmp.eq.s32.totalorder %s40, 0
      %p214 = por %p212, %p213
      %s216 = sadd.s32 %s215, 1
      %p219 = scmp.eq.s32.totalorder %s34, 1
      %p220 = scmp.ne.s32.totalorder %s215, %s217
      %p221 = scmp.eq.s32.totalorder %s34, 0
      %p222 = por %p220, %p221
      %p223 = scmp.ne.s32.totalorder %s215, %s217
      %p224 = scmp.eq.s32.totalorder %s39, 1
      %p225 = por %p223, %p224
      %p226 = scmp.ne.s32.totalorder %s217, %s218
      %p227 = scmp.eq.s32.totalorder %s39, 0
      %p228 = por %p226, %p227
      %p229 = scmp.ne.s32.totalorder %s217, %s218
      %p230 = scmp.eq.s32.totalorder %s40, 1
      %p231 = por %p229, %p230
      %p233 = scmp.ne.s32.totalorder %s218, %s232
      %p234 = scmp.eq.s32.totalorder %s40, 0
      %p235 = por %p233, %p234
      %s237 = sadd.s32 %s236, 1
      %p240 = scmp.eq.s32.totalorder %s34, 1
      %p241 = scmp.ne.s32.totalorder %s236, %s238
      %p242 = scmp.eq.s32.totalorder %s34, 0
      %p243 = por %p241, %p242
      %p244 = scmp.ne.s32.totalorder %s236, %s238
      %p245 = scmp.eq.s32.totalorder %s39, 1
      %p246 = por %p244, %p245
      %p247 = scmp.ne.s32.totalorder %s238, %s239
      %p248 = scmp.eq.s32.totalorder %s39, 0
      %p249 = por %p247, %p248
      %p250 = scmp.ne.s32.totalorder %s238, %s239
      %p251 = scmp.eq.s32.totalorder %s40, 1
      %p252 = por %p250, %p251
      %p254 = scmp.ne.s32.totalorder %s239, %s253
      %p255 = scmp.eq.s32.totalorder %s40, 0
      %p256 = por %p254, %p255
      %s258 = sadd.s32 %s257, 1
      %p261 = scmp.eq.s32.totalorder %s34, 1
      %p262 = scmp.ne.s32.totalorder %s257, %s259
      %p263 = scmp.eq.s32.totalorder %s34, 0
      %p264 = por %p262, %p263
      %p265 = scmp.ne.s32.totalorder %s257, %s259
      %p266 = scmp.eq.s32.totalorder %s39, 1
      %p267 = por %p265, %p266
      %p268 = scmp.ne.s32.totalorder %s259, %s260
      %p269 = scmp.eq.s32.totalorder %s39, 0
      %p270 = por %p268, %p269
      %p271 = scmp.ne.s32.totalorder %s259, %s260
      %p272 = scmp.eq.s32.totalorder %s40, 1
      %p273 = por %p271, %p272
      %p275 = scmp.ne.s32.totalorder %s260, %s274
      %p276 = scmp.eq.s32.totalorder %s40, 0
      %p277 = por %p275, %p276
      %s279 = sadd.s32 %s278, 1
      %p282 = scmp.eq.s32.totalorder %s34, 1
      %p283 = scmp.ne.s32.totalorder %s278, %s280
      %p284 = scmp.eq.s32.totalorder %s34, 0
      %p285 = por %p283, %p284
      %p286 = scmp.ne.s32.totalorder %s278, %s280
      %p287 = scmp.eq.s32.totalorder %s39, 1
      %p288 = por %p286, %p287
      %p289 = scmp.ne.s32.totalorder %s280, %s281
      %p290 = scmp.eq.s32.totalorder %s39, 0
      %p291 = por %p289, %p290
      %p292 = scmp.ne.s32.totalorder %s280, %s281
      %p293 = scmp.eq.s32.totalorder %s40, 1
      %p294 = por %p292, %p293
      %p296 = scmp.ne.s32.totalorder %s281, %s295
      %p297 = scmp.eq.s32.totalorder %s40, 0
      %p298 = por %p296, %p297
      %s300 = sadd.s32 %s299, 1
      %p303 = scmp.eq.s32.totalorder %s34, 1
      %p304 = scmp.ne.s32.totalorder %s299, %s301
      %p305 = scmp.eq.s32.totalorder %s34, 0
      %p306 = por %p304, %p305
      %p307 = scmp.ne.s32.totalorder %s299, %s301
      %p308 = scmp.eq.s32.totalorder %s39, 1
      %p309 = por %p307, %p308
      %p310 = scmp.ne.s32.totalorder %s301, %s302
      %p311 = scmp.eq.s32.totalorder %s39, 0
      %p312 = por %p310, %p311
      %p313 = scmp.ne.s32.totalorder %s301, %s302
      %p314 = scmp.eq.s32.totalorder %s40, 1
      %p315 = por %p313, %p314
      %p317 = scmp.ne.s32.totalorder %s302, %s316
      %p318 = scmp.eq.s32.totalorder %s40, 0
      %p319 = por %p317, %p318
      %s321 = sadd.s32 %s320, 1
      %p324 = scmp.eq.s32.totalorder %s34, 1
      %p325 = scmp.ne.s32.totalorder %s320, %s322
      %p326 = scmp.eq.s32.totalorder %s34, 0
      %p327 = por %p325, %p326
      %p328 = scmp.ne.s32.totalorder %s320, %s322
      %p329 = scmp.eq.s32.totalorder %s39, 1
      %p330 = por %p328, %p329
      %p331 = scmp.ne.s32.totalorder %s322, %s323
      %p332 = scmp.eq.s32.totalorder %s39, 0
      %p333 = por %p331, %p332
      %p334 = scmp.ne.s32.totalorder %s322, %s323
      %p335 = scmp.eq.s32.totalorder %s40, 1
      %p336 = por %p334, %p335
      %p338 = scmp.ne.s32.totalorder %s323, %s337
      %p339 = scmp.eq.s32.totalorder %s40, 0
      %p340 = por %p338, %p339
      %s342 = sadd.s32 %s341, 1
      %p345 = scmp.eq.s32.totalorder %s34, 1
      %p346 = scmp.ne.s32.totalorder %s341, %s343
      %p347 = scmp.eq.s32.totalorder %s34, 0
      %p348 = por %p346, %p347
      %p349 = scmp.ne.s32.totalorder %s341, %s343
      %p350 = scmp.eq.s32.totalorder %s39, 1
      %p351 = por %p349, %p350
      %p352 = scmp.ne.s32.totalorder %s343, %s344
      %p353 = scmp.eq.s32.totalorder %s39, 0
      %p354 = por %p352, %p353
      %p355 = scmp.ne.s32.totalorder %s343, %s344
      %p356 = scmp.eq.s32.totalorder %s40, 1
      %p357 = por %p355, %p356
      %p359 = scmp.ne.s32.totalorder %s344, %s358
      %p360 = scmp.eq.s32.totalorder %s40, 0
      %p361 = por %p359, %p360
      %s362 = ssub.s32 %s34, %s41
      %p363 = scmp.eq.s32.totalorder %s362, 0
      %s365 = sadd.s32 %s364, 1
      %s366 = scalar_select %p363, %s364, %s365
      %p369 = pneg %p363
      %p370 = scmp.eq.s32.totalorder %s34, 1
      %p371 = por %p369, %p370
      %p372 = scmp.ne.s32.totalorder %s364, %s367
      %p373 = scmp.eq.s32.totalorder %s34, 0
      %p374 = por %p372, %p373
      %p375 = scmp.ne.s32.totalorder %s364, %s367
      %p376 = scmp.eq.s32.totalorder %s39, 1
      %p377 = por %p375, %p376
      %p378 = scmp.ne.s32.totalorder %s367, %s368
      %p379 = scmp.eq.s32.totalorder %s39, 0
      %p380 = por %p378, %p379
      %p381 = scmp.ne.s32.totalorder %s367, %s368
      %p382 = scmp.eq.s32.totalorder %s40, 1
      %p383 = por %p381, %p382
      %p385 = scmp.ne.s32.totalorder %s368, %s384
      %p386 = scmp.eq.s32.totalorder %s40, 0
      %p387 = por %p385, %p386
      %p388 = scmp.le.s32.totalorder 1, %s34
      %p389 = scmp.lt.s32.totalorder %s34, 3
      %p390 = pnand %p388, %p389
      %p391 = pneg %p390
      // Predicated region
      $region9: #{tpu_custom_call.1} parent=5 // pred_check
        _
      $region10: #{tpu_custom_call.1} parent=5 // pred_check_branch
        %393 = sbr.rel (%p390) target = $region12
      $region11: #{tpu_custom_call.1} parent=5 // pred_region
        %s394 = ssub.s32 %s34, 1
        // Predicated region
        $region13: #{tpu_custom_call.1} parent=11 // pred_check
          %p395 = pneg %p81
        $region14: #{tpu_custom_call.1} parent=11 // pred_check_branch
          %397 = sbr.rel (%p395) target = $region16
        $region15: #{tpu_custom_call.1} parent=11 // pred_region
          %s399 = ssub.s32 32768, 32768
          %400 = vsyncadd [#allocation6], %s399
          %s401 = sshll.u32 [#allocation5], 4
          %s402 = int_to_ptr.vmem [resolvable:$true] %s401
          %407 = dma.hbm_to_vmem [thread:$0]  %s1, 32768, %s402, [#allocation6], 1024, 1024, 64
        $region16: #{tpu_custom_call.1} parent=11 // pred_fallthru
          _
        // Predicated region
        $region17: #{tpu_custom_call.1} parent=11 // pred_check
          %p408 = pneg %p102
        $region18: #{tpu_custom_call.1} parent=11 // pred_check_branch
          %410 = sbr.rel (%p408) target = $region20
        $region19: #{tpu_custom_call.1} parent=11 // pred_region
          %s412 = ssub.s32 128, 128
          %413 = vsyncadd [#allocation6], %s412
          %s415 = sshll.u32 [#allocation7], 4
          %s416 = int_to_ptr.vmem [resolvable:$true] %s415
          %418 = dma.hbm_to_vmem [thread:$0]  %s2, 128, %s416, [#allocation6]
        $region20: #{tpu_custom_call.1} parent=11 // pred_fallthru
          _
        // Predicated region
        $region21: #{tpu_custom_call.1} parent=11 // pred_check
          %p419 = pneg %p123
        $region22: #{tpu_custom_call.1} parent=11 // pred_check_branch
          %421 = sbr.rel (%p419) target = $region24
        $region23: #{tpu_custom_call.1} parent=11 // pred_region
          %s423 = ssub.s32 128, 128
          %424 = vsyncadd [#allocation9], %s423
          %s426 = sshll.u32 [#allocation8], 4
          %s427 = int_to_ptr.vmem [resolvable:$true] %s426
          %429 = dma.hbm_to_vmem [thread:$0]  %s3, 128, %s427, [#allocation9]
        $region24: #{tpu_custom_call.1} parent=11 // pred_fallthru
          _
        // Predicated region
        $region25: #{tpu_custom_call.1} parent=11 // pred_check
          %p430 = pneg %p144
        $region26: #{tpu_custom_call.1} parent=11 // pred_check_branch
          %432 = sbr.rel (%p430) target = $region28
        $region27: #{tpu_custom_call.1} parent=11 // pred_region
          %s434 = ssub.s32 128, 128
          %435 = vsyncadd [#allocation9], %s434
          %s437 = sshll.u32 [#allocation10], 4
          %s438 = int_to_ptr.vmem [resolvable:$true] %s437
          %440 = dma.hbm_to_vmem [thread:$0]  %s4, 128, %s438, [#allocation9]
        $region28: #{tpu_custom_call.1} parent=11 // pred_fallthru
          _
        // Predicated region
        $region29: #{tpu_custom_call.1} parent=11 // pred_check
          %p441 = pneg %p165
        $region30: #{tpu_custom_call.1} parent=11 // pred_check_branch
          %443 = sbr.rel (%p441) target = $region32
        $region31: #{tpu_custom_call.1} parent=11 // pred_region
          %s445 = ssub.s32 65536, 65536
          %446 = vsyncadd [#allocation12], %s445
          %s447 = sshll.u32 [#allocation11], 4
          %s448 = int_to_ptr.vmem [resolvable:$true] %s447
          %453 = dma.hbm_to_vmem [thread:$0]  %s5, 65536, %s448, [#allocation12], 512, 512, 32
        $region32: #{tpu_custom_call.1} parent=11 // pred_fallthru
          _
        // Predicated region
        $region33: #{tpu_custom_call.1} parent=11 // pred_check
          %p454 = pneg %p186
        $region34: #{tpu_custom_call.1} parent=11 // pred_check_branch
          %456 = sbr.rel (%p454) target = $region36
        $region35: #{tpu_custom_call.1} parent=11 // pred_region
          %s458 = ssub.s32 64, 64
          %459 = vsyncadd [#allocation12], %s458
          %s461 = sshll.u32 [#allocation13], 4
          %s462 = int_to_ptr.vmem [resolvable:$true] %s461
          %464 = dma.hbm_to_vmem [thread:$0]  %s6, 64, %s462, [#allocation12]
        $region36: #{tpu_custom_call.1} parent=11 // pred_fallthru
          _
        // Predicated region
        $region37: #{tpu_custom_call.1} parent=11 // pred_check
          %p465 = pneg %p207
        $region38: #{tpu_custom_call.1} parent=11 // pred_check_branch
          %467 = sbr.rel (%p465) target = $region40
        $region39: #{tpu_custom_call.1} parent=11 // pred_region
          %s469 = ssub.s32 64, 64
          %470 = vsyncadd [#allocation15], %s469
          %s472 = sshll.u32 [#allocation14], 4
          %s473 = int_to_ptr.vmem [resolvable:$true] %s472
          %475 = dma.hbm_to_vmem [thread:$0]  %s7, 64, %s473, [#allocation15]
        $region40: #{tpu_custom_call.1} parent=11 // pred_fallthru
          _
        // Predicated region
        $region41: #{tpu_custom_call.1} parent=11 // pred_check
          %p476 = pneg %p228
        $region42: #{tpu_custom_call.1} parent=11 // pred_check_branch
          %478 = sbr.rel (%p476) target = $region44
        $region43: #{tpu_custom_call.1} parent=11 // pred_region
          %s480 = ssub.s32 64, 64
          %481 = vsyncadd [#allocation15], %s480
          %s483 = sshll.u32 [#allocation16], 4
          %s484 = int_to_ptr.vmem [resolvable:$true] %s483
          %486 = dma.hbm_to_vmem [thread:$0]  %s8, 64, %s484, [#allocation15]
        $region44: #{tpu_custom_call.1} parent=11 // pred_fallthru
          _
        // Predicated region
        $region45: #{tpu_custom_call.1} parent=11 // pred_check
          %p487 = pneg %p249
        $region46: #{tpu_custom_call.1} parent=11 // pred_check_branch
          %489 = sbr.rel (%p487) target = $region48
        $region47: #{tpu_custom_call.1} parent=11 // pred_region
          %s491 = ssub.s32 16384, 16384
          %492 = vsyncadd [#allocation18], %s491
          %s493 = sshll.u32 [#allocation17], 4
          %s494 = int_to_ptr.vmem [resolvable:$true] %s493
          %499 = dma.hbm_to_vmem [thread:$0]  %s9, 16384, %s494, [#allocation18], 256, 256, 16
        $region48: #{tpu_custom_call.1} parent=11 // pred_fallthru
          _
        // Predicated region
        $region49: #{tpu_custom_call.1} parent=11 // pred_check
          %p500 = pneg %p270
        $region50: #{tpu_custom_call.1} parent=11 // pred_check_branch
          %502 = sbr.rel (%p500) target = $region52
        $region51: #{tpu_custom_call.1} parent=11 // pred_region
          %s504 = ssub.s32 32, 32
          %505 = vsyncadd [#allocation18], %s504
          %s507 = sshll.u32 [#allocation19], 4
          %s508 = int_to_ptr.vmem [resolvable:$true] %s507
          %510 = dma.hbm_to_vmem [thread:$0]  %s10, 32, %s508, [#allocation18]
        $region52: #{tpu_custom_call.1} parent=11 // pred_fallthru
          _
        // Predicated region
        $region53: #{tpu_custom_call.1} parent=11 // pred_check
          %p511 = pneg %p291
        $region54: #{tpu_custom_call.1} parent=11 // pred_check_branch
          %513 = sbr.rel (%p511) target = $region56
        $region55: #{tpu_custom_call.1} parent=11 // pred_region
          %s515 = ssub.s32 32, 32
          %516 = vsyncadd [#allocation21], %s515
          %s518 = sshll.u32 [#allocation20], 4
          %s519 = int_to_ptr.vmem [resolvable:$true] %s518
          %521 = dma.hbm_to_vmem [thread:$0]  %s11, 32, %s519, [#allocation21]
        $region56: #{tpu_custom_call.1} parent=11 // pred_fallthru
          _
        // Predicated region
        $region57: #{tpu_custom_call.1} parent=11 // pred_check
          %p522 = pneg %p312
        $region58: #{tpu_custom_call.1} parent=11 // pred_check_branch
          %524 = sbr.rel (%p522) target = $region60
        $region59: #{tpu_custom_call.1} parent=11 // pred_region
          %s526 = ssub.s32 32, 32
          %527 = vsyncadd [#allocation21], %s526
          %s529 = sshll.u32 [#allocation22], 4
          %s530 = int_to_ptr.vmem [resolvable:$true] %s529
          %532 = dma.hbm_to_vmem [thread:$0]  %s12, 32, %s530, [#allocation21]
        $region60: #{tpu_custom_call.1} parent=11 // pred_fallthru
          _
        // Predicated region
        $region61: #{tpu_custom_call.1} parent=11 // pred_check
          %p533 = pneg %p333
        $region62: #{tpu_custom_call.1} parent=11 // pred_check_branch
          %535 = sbr.rel (%p533) target = $region64
        $region63: #{tpu_custom_call.1} parent=11 // pred_region
          %s537 = ssub.s32 4096, 4096
          %538 = vsyncadd [#allocation24], %s537
          %s539 = sshll.u32 [#allocation23], 4
          %s540 = int_to_ptr.vmem [resolvable:$true] %s539
          %545 = dma.hbm_to_vmem [thread:$0]  %s13, 4096, %s540, [#allocation24], 128, 128, 8
        $region64: #{tpu_custom_call.1} parent=11 // pred_fallthru
          _
        // Predicated region
        $region65: #{tpu_custom_call.1} parent=11 // pred_check
          %p546 = pneg %p354
        $region66: #{tpu_custom_call.1} parent=11 // pred_check_branch
          %548 = sbr.rel (%p546) target = $region68
        $region67: #{tpu_custom_call.1} parent=11 // pred_region
          %s550 = ssub.s32 16, 16
          %551 = vsyncadd [#allocation24], %s550
          %s553 = sshll.u32 [#allocation25], 4
          %s554 = int_to_ptr.vmem [resolvable:$true] %s553
          %556 = dma.hbm_to_vmem [thread:$0]  %s14, 16, %s554, [#allocation24]
        $region68: #{tpu_custom_call.1} parent=11 // pred_fallthru
          _
      $region12: #{tpu_custom_call.1} parent=5 // pred_fallthru
        _
      %p557 = scmp.lt.s32.totalorder %s34, 2
      // Predicated region
      $region69: #{tpu_custom_call.1} parent=5 // pred_check
        %p558 = pneg %p557
      $region70: #{tpu_custom_call.1} parent=5 // pred_check_branch
        %560 = sbr.rel (%p558) target = $region72
      $region71: #{tpu_custom_call.1} parent=5 // pred_region
        // Predicated region
        $region73: #{tpu_custom_call.1} parent=71 // pred_check
          %p561 = pneg %p54
        $region74: #{tpu_custom_call.1} parent=71 // pred_check_branch
          %563 = sbr.rel (%p561) target = $region76
        $region75: #{tpu_custom_call.1} parent=71 // pred_region
          %s564 = sand.u32 %s44, 1
          %s565 = scalar_lea.sflag [#allocation3], %s564
          %s566 = sand.u32 %s44, 1
          %s567 = smul.addr %s566, 64
          %s568 = scalar_lea.vmem [#allocation2], %s567
          %s569 = smul.u32 4, %s34
          %s571 = ssub.s32 1024, 1024
          %572 = vsyncadd %s565, %s571
          %s573 = smul.addr %s569, 2
          %s574 = smul.addr %s573, 128
          %s575 = scalar_lea.hbm %s0, %s574
          %s576 = sshll.u32 %s568, 4
          %s577 = int_to_ptr.vmem [resolvable:$true] %s576
          %582 = dma.hbm_to_vmem [thread:$0]  %s575, 1024, %s577, %s565, 256, 256, 16
        $region76: #{tpu_custom_call.1} parent=71 // pred_fallthru
          _
      $region72: #{tpu_custom_call.1} parent=5 // pred_fallthru
        _
      %p583 = scmp.le.s32.totalorder 1, %s34
      %p584 = scmp.lt.s32.totalorder %s34, 3
      %p585 = pnand %p583, %p584
      %p586 = pneg %p585
      // Predicated region
      $region77: #{tpu_custom_call.1} parent=5 // pred_check
        _
      $region78: #{tpu_custom_call.1} parent=5 // pred_check_branch
        %588 = sbr.rel (%p585) target = $region80
      $region79: #{tpu_custom_call.1} parent=5 // pred_region
        %s589 = ssub.s32 %s34, 1
        %s590 = sand.u32 %s47, 1
        %s591 = scalar_lea.sflag [#allocation3], %s590
        %s592 = sand.u32 %s47, 1
        %s593 = smul.addr %s592, 64
        %s594 = scalar_lea.vmem [#allocation2], %s593
        // Predicated region
        $region81: #{tpu_custom_call.1} parent=79 // pred_check
          %p595 = pneg %p60
        $region82: #{tpu_custom_call.1} parent=79 // pred_check_branch
          %597 = sbr.rel (%p595) target = $region84
        $region83: #{tpu_custom_call.1} parent=79 // pred_region
          %598 = dma.done %s591, 1024
        $region84: #{tpu_custom_call.1} parent=79 // pred_fallthru
          _
        // Predicated region
        $region85: #{tpu_custom_call.1} parent=79 // pred_check
          %p599 = pneg %p81
        $region86: #{tpu_custom_call.1} parent=79 // pred_check_branch
          %601 = sbr.rel (%p599) target = $region88
        $region87: #{tpu_custom_call.1} parent=79 // pred_region
          %602 = dma.done [#allocation6], 32768
        $region88: #{tpu_custom_call.1} parent=79 // pred_fallthru
          _
        // Predicated region
        $region89: #{tpu_custom_call.1} parent=79 // pred_check
          %p603 = pneg %p102
        $region90: #{tpu_custom_call.1} parent=79 // pred_check_branch
          %605 = sbr.rel (%p603) target = $region92
        $region91: #{tpu_custom_call.1} parent=79 // pred_region
          %606 = dma.done [#allocation6], 128
        $region92: #{tpu_custom_call.1} parent=79 // pred_fallthru
          _
        // Predicated region
        $region93: #{tpu_custom_call.1} parent=79 // pred_check
          %p607 = pneg %p123
        $region94: #{tpu_custom_call.1} parent=79 // pred_check_branch
          %609 = sbr.rel (%p607) target = $region96
        $region95: #{tpu_custom_call.1} parent=79 // pred_region
          %610 = dma.done [#allocation9], 128
        $region96: #{tpu_custom_call.1} parent=79 // pred_fallthru
          _
        // Predicated region
        $region97: #{tpu_custom_call.1} parent=79 // pred_check
          %p611 = pneg %p144
        $region98: #{tpu_custom_call.1} parent=79 // pred_check_branch
          %613 = sbr.rel (%p611) target = $region100
        $region99: #{tpu_custom_call.1} parent=79 // pred_region
          %614 = dma.done [#allocation9], 128
        $region100: #{tpu_custom_call.1} parent=79 // pred_fallthru
          _
        // Predicated region
        $region101: #{tpu_custom_call.1} parent=79 // pred_check
          %p615 = pneg %p165
        $region102: #{tpu_custom_call.1} parent=79 // pred_check_branch
          %617 = sbr.rel (%p615) target = $region104
        $region103: #{tpu_custom_call.1} parent=79 // pred_region
          %618 = dma.done [#allocation12], 65536
        $region104: #{tpu_custom_call.1} parent=79 // pred_fallthru
          _
        // Predicated region
        $region105: #{tpu_custom_call.1} parent=79 // pred_check
          %p619 = pneg %p186
        $region106: #{tpu_custom_call.1} parent=79 // pred_check_branch
          %621 = sbr.rel (%p619) target = $region108
        $region107: #{tpu_custom_call.1} parent=79 // pred_region
          %622 = dma.done [#allocation12], 64
        $region108: #{tpu_custom_call.1} parent=79 // pred_fallthru
          _
        // Predicated region
        $region109: #{tpu_custom_call.1} parent=79 // pred_check
          %p623 = pneg %p207
        $region110: #{tpu_custom_call.1} parent=79 // pred_check_branch
          %625 = sbr.rel (%p623) target = $region112
        $region111: #{tpu_custom_call.1} parent=79 // pred_region
          %626 = dma.done [#allocation15], 64
        $region112: #{tpu_custom_call.1} parent=79 // pred_fallthru
          _
        // Predicated region
        $region113: #{tpu_custom_call.1} parent=79 // pred_check
          %p627 = pneg %p228
        $region114: #{tpu_custom_call.1} parent=79 // pred_check_branch
          %629 = sbr.rel (%p627) target = $region116
        $region115: #{tpu_custom_call.1} parent=79 // pred_region
          %630 = dma.done [#allocation15], 64
        $region116: #{tpu_custom_call.1} parent=79 // pred_fallthru
          _
        // Predicated region
        $region117: #{tpu_custom_call.1} parent=79 // pred_check
          %p631 = pneg %p249
        $region118: #{tpu_custom_call.1} parent=79 // pred_check_branch
          %633 = sbr.rel (%p631) target = $region120
        $region119: #{tpu_custom_call.1} parent=79 // pred_region
          %634 = dma.done [#allocation18], 16384
        $region120: #{tpu_custom_call.1} parent=79 // pred_fallthru
          _
        // Predicated region
        $region121: #{tpu_custom_call.1} parent=79 // pred_check
          %p635 = pneg %p270
        $region122: #{tpu_custom_call.1} parent=79 // pred_check_branch
          %637 = sbr.rel (%p635) target = $region124
        $region123: #{tpu_custom_call.1} parent=79 // pred_region
          %638 = dma.done [#allocation18], 32
        $region124: #{tpu_custom_call.1} parent=79 // pred_fallthru
          _
        // Predicated region
        $region125: #{tpu_custom_call.1} parent=79 // pred_check
          %p639 = pneg %p291
        $region126: #{tpu_custom_call.1} parent=79 // pred_check_branch
          %641 = sbr.rel (%p639) target = $region128
        $region127: #{tpu_custom_call.1} parent=79 // pred_region
          %642 = dma.done [#allocation21], 32
        $region128: #{tpu_custom_call.1} parent=79 // pred_fallthru
          _
        // Predicated region
        $region129: #{tpu_custom_call.1} parent=79 // pred_check
          %p643 = pneg %p312
        $region130: #{tpu_custom_call.1} parent=79 // pred_check_branch
          %645 = sbr.rel (%p643) target = $region132
        $region131: #{tpu_custom_call.1} parent=79 // pred_region
          %646 = dma.done [#allocation21], 32
        $region132: #{tpu_custom_call.1} parent=79 // pred_fallthru
          _
        // Predicated region
        $region133: #{tpu_custom_call.1} parent=79 // pred_check
          %p647 = pneg %p333
        $region134: #{tpu_custom_call.1} parent=79 // pred_check_branch
          %649 = sbr.rel (%p647) target = $region136
        $region135: #{tpu_custom_call.1} parent=79 // pred_region
          %650 = dma.done [#allocation24], 4096
        $region136: #{tpu_custom_call.1} parent=79 // pred_fallthru
          _
        // Predicated region
        $region137: #{tpu_custom_call.1} parent=79 // pred_check
          %p651 = pneg %p354
        $region138: #{tpu_custom_call.1} parent=79 // pred_check_branch
          %653 = sbr.rel (%p651) target = $region140
        $region139: #{tpu_custom_call.1} parent=79 // pred_region
          %654 = dma.done [#allocation24], 16
        $region140: #{tpu_custom_call.1} parent=79 // pred_fallthru
          _
        %s655 = sand.u32 %s47, 1
        %s656 = scalar_lea.sflag [#allocation3], %s655
        %s657 = sand.u32 %s47, 1
        %s658 = smul.addr %s657, 64
        %s659 = scalar_lea.vmem [#allocation2], %s658
        %p660 = pneg %p60
        %p661 = pneg %p57
        %p662 = pneg %p81
        %p663 = pneg %p78
        %p664 = pneg %p102
        %p665 = pneg %p99
        %p666 = pneg %p123
        %p667 = pneg %p120
        %p668 = pneg %p144
        %p669 = pneg %p141
        %p670 = pneg %p165
        %p671 = pneg %p162
        %p672 = pneg %p186
        %p673 = pneg %p183
        %p674 = pneg %p207
        %p675 = pneg %p204
        %p676 = pneg %p228
        %p677 = pneg %p225
        %p678 = pneg %p249
        %p679 = pneg %p246
        %p680 = pneg %p270
        %p681 = pneg %p267
        %p682 = pneg %p291
        %p683 = pneg %p288
        %p684 = pneg %p312
        %p685 = pneg %p309
        %p686 = pneg %p333
        %p687 = pneg %p330
        %p688 = pneg %p354
        %p689 = pneg %p351
        %p690 = pneg %p380
        %p691 = pneg %p377
        %s692 = sand.u32 %s367, 1
        %s693 = scalar_lea.sflag [#allocation4], %s692
        %s694 = sand.u32 %s367, 1
        %s695 = smul.addr %s694, 32
        %s696 = scalar_lea.vmem [#allocation26], %s695
        %s697 = smul.u32 4, %s39
        %s698 = smul.u32 4, %s39
        %v699 = vld [vmem:[%s594] sm:$0xff]
        %v700 = vld [vmem:[%s594 + $0x8] sm:$0xff]
        %v701 = vld [vmem:[%s594 + $0x10] sm:$0xff]
        %v702 = vld [vmem:[%s594 + $0x18] sm:$0xff]
        %v703 = vld [vmem:[%s594 + $0x20] sm:$0xff]
        %v704 = vld [vmem:[%s594 + $0x28] sm:$0xff]
        %v705 = vld [vmem:[%s594 + $0x30] sm:$0xff]
        %v706 = vld [vmem:[%s594 + $0x38] sm:$0xff]
        %v707 = vld [vmem:[#allocation5] sm:$0xff]
        %v708 = vld [vmem:[#allocation5 + $0x8] sm:$0xff]
        %v709 = vld [vmem:[#allocation5 + $0x10] sm:$0xff]
        %v710 = vld [vmem:[#allocation5 + $0x18] sm:$0xff]
        %v711 = vld [vmem:[#allocation5 + $0x20] sm:$0xff]
        %v712 = vld [vmem:[#allocation5 + $0x28] sm:$0xff]
        %v713 = vld [vmem:[#allocation5 + $0x30] sm:$0xff]
        %v714 = vld [vmem:[#allocation5 + $0x38] sm:$0xff]
        %v715 = vld [vmem:[#allocation5 + $0x40] sm:$0xff]
        %v716 = vld [vmem:[#allocation5 + $0x48] sm:$0xff]
        %v717 = vld [vmem:[#allocation5 + $0x50] sm:$0xff]
        %v718 = vld [vmem:[#allocation5 + $0x58] sm:$0xff]
        %v719 = vld [vmem:[#allocation5 + $0x60] sm:$0xff]
        %v720 = vld [vmem:[#allocation5 + $0x68] sm:$0xff]
        %v721 = vld [vmem:[#allocation5 + $0x70] sm:$0xff]
        %v722 = vld [vmem:[#allocation5 + $0x78] sm:$0xff]
        %v723 = vld [vmem:[#allocation5 + $0x80] sm:$0xff]
        %v724 = vld [vmem:[#allocation5 + $0x88] sm:$0xff]
        %v725 = vld [vmem:[#allocation5 + $0x90] sm:$0xff]
        %v726 = vld [vmem:[#allocation5 + $0x98] sm:$0xff]
        %v727 = vld [vmem:[#allocation5 + $0xa0] sm:$0xff]
        %v728 = vld [vmem:[#allocation5 + $0xa8] sm:$0xff]
        %v729 = vld [vmem:[#allocation5 + $0xb0] sm:$0xff]
        %v730 = vld [vmem:[#allocation5 + $0xb8] sm:$0xff]
        %v731 = vld [vmem:[#allocation5 + $0xc0] sm:$0xff]
        %v732 = vld [vmem:[#allocation5 + $0xc8] sm:$0xff]
        %v733 = vld [vmem:[#allocation5 + $0xd0] sm:$0xff]
        %v734 = vld [vmem:[#allocation5 + $0xd8] sm:$0xff]
        %v735 = vld [vmem:[#allocation5 + $0xe0] sm:$0xff]
        %v736 = vld [vmem:[#allocation5 + $0xe8] sm:$0xff]
        %v737 = vld [vmem:[#allocation5 + $0xf0] sm:$0xff]
        %v738 = vld [vmem:[#allocation5 + $0xf8] sm:$0xff]
        %v739 = vld [vmem:[#allocation5 + $0x100] sm:$0xff]
        %v740 = vld [vmem:[#allocation5 + $0x108] sm:$0xff]
        %v741 = vld [vmem:[#allocation5 + $0x110] sm:$0xff]
        %v742 = vld [vmem:[#allocation5 + $0x118] sm:$0xff]
        %v743 = vld [vmem:[#allocation5 + $0x120] sm:$0xff]
        %v744 = vld [vmem:[#allocation5 + $0x128] sm:$0xff]
        %v745 = vld [vmem:[#allocation5 + $0x130] sm:$0xff]
        %v746 = vld [vmem:[#allocation5 + $0x138] sm:$0xff]
        %v747 = vld [vmem:[#allocation5 + $0x140] sm:$0xff]
        %v748 = vld [vmem:[#allocation5 + $0x148] sm:$0xff]
        %v749 = vld [vmem:[#allocation5 + $0x150] sm:$0xff]
        %v750 = vld [vmem:[#allocation5 + $0x158] sm:$0xff]
        %v751 = vld [vmem:[#allocation5 + $0x160] sm:$0xff]
        %v752 = vld [vmem:[#allocation5 + $0x168] sm:$0xff]
        %v753 = vld [vmem:[#allocation5 + $0x170] sm:$0xff]
        %v754 = vld [vmem:[#allocation5 + $0x178] sm:$0xff]
        %v755 = vld [vmem:[#allocation5 + $0x180] sm:$0xff]
        %v756 = vld [vmem:[#allocation5 + $0x188] sm:$0xff]
        %v757 = vld [vmem:[#allocation5 + $0x190] sm:$0xff]
        %v758 = vld [vmem:[#allocation5 + $0x198] sm:$0xff]
        %v759 = vld [vmem:[#allocation5 + $0x1a0] sm:$0xff]
        %v760 = vld [vmem:[#allocation5 + $0x1a8] sm:$0xff]
        %v761 = vld [vmem:[#allocation5 + $0x1b0] sm:$0xff]
        %v762 = vld [vmem:[#allocation5 + $0x1b8] sm:$0xff]
        %v763 = vld [vmem:[#allocation5 + $0x1c0] sm:$0xff]
        %v764 = vld [vmem:[#allocation5 + $0x1c8] sm:$0xff]
        %v765 = vld [vmem:[#allocation5 + $0x1d0] sm:$0xff]
        %v766 = vld [vmem:[#allocation5 + $0x1d8] sm:$0xff]
        %v767 = vld [vmem:[#allocation5 + $0x1e0] sm:$0xff]
        %v768 = vld [vmem:[#allocation5 + $0x1e8] sm:$0xff]
        %v769 = vld [vmem:[#allocation5 + $0x1f0] sm:$0xff]
        %v770 = vld [vmem:[#allocation5 + $0x1f8] sm:$0xff]
        %v771 = vld [vmem:[#allocation5 + $0x200] sm:$0xff]
        %v772 = vld [vmem:[#allocation5 + $0x208] sm:$0xff]
        %v773 = vld [vmem:[#allocation5 + $0x210] sm:$0xff]
        %v774 = vld [vmem:[#allocation5 + $0x218] sm:$0xff]
        %v775 = vld [vmem:[#allocation5 + $0x220] sm:$0xff]
        %v776 = vld [vmem:[#allocation5 + $0x228] sm:$0xff]
        %v777 = vld [vmem:[#allocation5 + $0x230] sm:$0xff]
        %v778 = vld [vmem:[#allocation5 + $0x238] sm:$0xff]
        %v779 = vld [vmem:[#allocation5 + $0x240] sm:$0xff]
        %v780 = vld [vmem:[#allocation5 + $0x248] sm:$0xff]
        %v781 = vld [vmem:[#allocation5 + $0x250] sm:$0xff]
        %v782 = vld [vmem:[#allocation5 + $0x258] sm:$0xff]
        %v783 = vld [vmem:[#allocation5 + $0x260] sm:$0xff]
        %v784 = vld [vmem:[#allocation5 + $0x268] sm:$0xff]
        %v785 = vld [vmem:[#allocation5 + $0x270] sm:$0xff]
        %v786 = vld [vmem:[#allocation5 + $0x278] sm:$0xff]
        %v787 = vld [vmem:[#allocation5 + $0x280] sm:$0xff]
        %v788 = vld [vmem:[#allocation5 + $0x288] sm:$0xff]
        %v789 = vld [vmem:[#allocation5 + $0x290] sm:$0xff]
        %v790 = vld [vmem:[#allocation5 + $0x298] sm:$0xff]
        %v791 = vld [vmem:[#allocation5 + $0x2a0] sm:$0xff]
        %v792 = vld [vmem:[#allocation5 + $0x2a8] sm:$0xff]
        %v793 = vld [vmem:[#allocation5 + $0x2b0] sm:$0xff]
        %v794 = vld [vmem:[#allocation5 + $0x2b8] sm:$0xff]
        %v795 = vld [vmem:[#allocation5 + $0x2c0] sm:$0xff]
        %v796 = vld [vmem:[#allocation5 + $0x2c8] sm:$0xff]
        %v797 = vld [vmem:[#allocation5 + $0x2d0] sm:$0xff]
        %v798 = vld [vmem:[#allocation5 + $0x2d8] sm:$0xff]
        %v799 = vld [vmem:[#allocation5 + $0x2e0] sm:$0xff]
        %v800 = vld [vmem:[#allocation5 + $0x2e8] sm:$0xff]
        %v801 = vld [vmem:[#allocation5 + $0x2f0] sm:$0xff]
        %v802 = vld [vmem:[#allocation5 + $0x2f8] sm:$0xff]
        %v803 = vld [vmem:[#allocation5 + $0x300] sm:$0xff]
        %v804 = vld [vmem:[#allocation5 + $0x308] sm:$0xff]
        %v805 = vld [vmem:[#allocation5 + $0x310] sm:$0xff]
        %v806 = vld [vmem:[#allocation5 + $0x318] sm:$0xff]
        %v807 = vld [vmem:[#allocation5 + $0x320] sm:$0xff]
        %v808 = vld [vmem:[#allocation5 + $0x328] sm:$0xff]
        %v809 = vld [vmem:[#allocation5 + $0x330] sm:$0xff]
        %v810 = vld [vmem:[#allocation5 + $0x338] sm:$0xff]
        %v811 = vld [vmem:[#allocation5 + $0x340] sm:$0xff]
        %v812 = vld [vmem:[#allocation5 + $0x348] sm:$0xff]
        %v813 = vld [vmem:[#allocation5 + $0x350] sm:$0xff]
        %v814 = vld [vmem:[#allocation5 + $0x358] sm:$0xff]
        %v815 = vld [vmem:[#allocation5 + $0x360] sm:$0xff]
        %v816 = vld [vmem:[#allocation5 + $0x368] sm:$0xff]
        %v817 = vld [vmem:[#allocation5 + $0x370] sm:$0xff]
        %v818 = vld [vmem:[#allocation5 + $0x378] sm:$0xff]
        %v819 = vld [vmem:[#allocation5 + $0x380] sm:$0xff]
        %v820 = vld [vmem:[#allocation5 + $0x388] sm:$0xff]
        %v821 = vld [vmem:[#allocation5 + $0x390] sm:$0xff]
        %v822 = vld [vmem:[#allocation5 + $0x398] sm:$0xff]
        %v823 = vld [vmem:[#allocation5 + $0x3a0] sm:$0xff]
        %v824 = vld [vmem:[#allocation5 + $0x3a8] sm:$0xff]
        %v825 = vld [vmem:[#allocation5 + $0x3b0] sm:$0xff]
        %v826 = vld [vmem:[#allocation5 + $0x3b8] sm:$0xff]
        %v827 = vld [vmem:[#allocation5 + $0x3c0] sm:$0xff]
        %v828 = vld [vmem:[#allocation5 + $0x3c8] sm:$0xff]
        %v829 = vld [vmem:[#allocation5 + $0x3d0] sm:$0xff]
        %v830 = vld [vmem:[#allocation5 + $0x3d8] sm:$0xff]
        %v831 = vld [vmem:[#allocation5 + $0x3e0] sm:$0xff]
        %v832 = vld [vmem:[#allocation5 + $0x3e8] sm:$0xff]
        %v833 = vld [vmem:[#allocation5 + $0x3f0] sm:$0xff]
        %v834 = vld [vmem:[#allocation5 + $0x3f8] sm:$0xff]
        %v835 = vld [vmem:[#allocation5 + $0x400] sm:$0xff]
        %v836 = vld [vmem:[#allocation5 + $0x408] sm:$0xff]
        %v837 = vld [vmem:[#allocation5 + $0x410] sm:$0xff]
        %v838 = vld [vmem:[#allocation5 + $0x418] sm:$0xff]
        %v839 = vld [vmem:[#allocation5 + $0x420] sm:$0xff]
        %v840 = vld [vmem:[#allocation5 + $0x428] sm:$0xff]
        %v841 = vld [vmem:[#allocation5 + $0x430] sm:$0xff]
        %v842 = vld [vmem:[#allocation5 + $0x438] sm:$0xff]
        %v843 = vld [vmem:[#allocation5 + $0x440] sm:$0xff]
        %v844 = vld [vmem:[#allocation5 + $0x448] sm:$0xff]
        %v845 = vld [vmem:[#allocation5 + $0x450] sm:$0xff]
        %v846 = vld [vmem:[#allocation5 + $0x458] sm:$0xff]
        %v847 = vld [vmem:[#allocation5 + $0x460] sm:$0xff]
        %v848 = vld [vmem:[#allocation5 + $0x468] sm:$0xff]
        %v849 = vld [vmem:[#allocation5 + $0x470] sm:$0xff]
        %v850 = vld [vmem:[#allocation5 + $0x478] sm:$0xff]
        %v851 = vld [vmem:[#allocation5 + $0x480] sm:$0xff]
        %v852 = vld [vmem:[#allocation5 + $0x488] sm:$0xff]
        %v853 = vld [vmem:[#allocation5 + $0x490] sm:$0xff]
        %v854 = vld [vmem:[#allocation5 + $0x498] sm:$0xff]
        %v855 = vld [vmem:[#allocation5 + $0x4a0] sm:$0xff]
        %v856 = vld [vmem:[#allocation5 + $0x4a8] sm:$0xff]
        %v857 = vld [vmem:[#allocation5 + $0x4b0] sm:$0xff]
        %v858 = vld [vmem:[#allocation5 + $0x4b8] sm:$0xff]
        %v859 = vld [vmem:[#allocation5 + $0x4c0] sm:$0xff]
        %v860 = vld [vmem:[#allocation5 + $0x4c8] sm:$0xff]
        %v861 = vld [vmem:[#allocation5 + $0x4d0] sm:$0xff]
        %v862 = vld [vmem:[#allocation5 + $0x4d8] sm:$0xff]
        %v863 = vld [vmem:[#allocation5 + $0x4e0] sm:$0xff]
        %v864 = vld [vmem:[#allocation5 + $0x4e8] sm:$0xff]
        %v865 = vld [vmem:[#allocation5 + $0x4f0] sm:$0xff]
        %v866 = vld [vmem:[#allocation5 + $0x4f8] sm:$0xff]
        %v867 = vld [vmem:[#allocation5 + $0x500] sm:$0xff]
        %v868 = vld [vmem:[#allocation5 + $0x508] sm:$0xff]
        %v869 = vld [vmem:[#allocation5 + $0x510] sm:$0xff]
        %v870 = vld [vmem:[#allocation5 + $0x518] sm:$0xff]
        %v871 = vld [vmem:[#allocation5 + $0x520] sm:$0xff]
        %v872 = vld [vmem:[#allocation5 + $0x528] sm:$0xff]
        %v873 = vld [vmem:[#allocation5 + $0x530] sm:$0xff]
        %v874 = vld [vmem:[#allocation5 + $0x538] sm:$0xff]
        %v875 = vld [vmem:[#allocation5 + $0x540] sm:$0xff]
        %v876 = vld [vmem:[#allocation5 + $0x548] sm:$0xff]
        %v877 = vld [vmem:[#allocation5 + $0x550] sm:$0xff]
        %v878 = vld [vmem:[#allocation5 + $0x558] sm:$0xff]
        %v879 = vld [vmem:[#allocation5 + $0x560] sm:$0xff]
        %v880 = vld [vmem:[#allocation5 + $0x568] sm:$0xff]
        %v881 = vld [vmem:[#allocation5 + $0x570] sm:$0xff]
        %v882 = vld [vmem:[#allocation5 + $0x578] sm:$0xff]
        %v883 = vld [vmem:[#allocation5 + $0x580] sm:$0xff]
        %v884 = vld [vmem:[#allocation5 + $0x588] sm:$0xff]
        %v885 = vld [vmem:[#allocation5 + $0x590] sm:$0xff]
        %v886 = vld [vmem:[#allocation5 + $0x598] sm:$0xff]
        %v887 = vld [vmem:[#allocation5 + $0x5a0] sm:$0xff]
        %v888 = vld [vmem:[#allocation5 + $0x5a8] sm:$0xff]
        %v889 = vld [vmem:[#allocation5 + $0x5b0] sm:$0xff]
        %v890 = vld [vmem:[#allocation5 + $0x5b8] sm:$0xff]
        %v891 = vld [vmem:[#allocation5 + $0x5c0] sm:$0xff]
        %v892 = vld [vmem:[#allocation5 + $0x5c8] sm:$0xff]
        %v893 = vld [vmem:[#allocation5 + $0x5d0] sm:$0xff]
        %v894 = vld [vmem:[#allocation5 + $0x5d8] sm:$0xff]
        %v895 = vld [vmem:[#allocation5 + $0x5e0] sm:$0xff]
        %v896 = vld [vmem:[#allocation5 + $0x5e8] sm:$0xff]
        %v897 = vld [vmem:[#allocation5 + $0x5f0] sm:$0xff]
        %v898 = vld [vmem:[#allocation5 + $0x5f8] sm:$0xff]
        %v899 = vld [vmem:[#allocation5 + $0x600] sm:$0xff]
        %v900 = vld [vmem:[#allocation5 + $0x608] sm:$0xff]
        %v901 = vld [vmem:[#allocation5 + $0x610] sm:$0xff]
        %v902 = vld [vmem:[#allocation5 + $0x618] sm:$0xff]
        %v903 = vld [vmem:[#allocation5 + $0x620] sm:$0xff]
        %v904 = vld [vmem:[#allocation5 + $0x628] sm:$0xff]
        %v905 = vld [vmem:[#allocation5 + $0x630] sm:$0xff]
        %v906 = vld [vmem:[#allocation5 + $0x638] sm:$0xff]
        %v907 = vld [vmem:[#allocation5 + $0x640] sm:$0xff]
        %v908 = vld [vmem:[#allocation5 + $0x648] sm:$0xff]
        %v909 = vld [vmem:[#allocation5 + $0x650] sm:$0xff]
        %v910 = vld [vmem:[#allocation5 + $0x658] sm:$0xff]
        %v911 = vld [vmem:[#allocation5 + $0x660] sm:$0xff]
        %v912 = vld [vmem:[#allocation5 + $0x668] sm:$0xff]
        %v913 = vld [vmem:[#allocation5 + $0x670] sm:$0xff]
        %v914 = vld [vmem:[#allocation5 + $0x678] sm:$0xff]
        %v915 = vld [vmem:[#allocation5 + $0x680] sm:$0xff]
        %v916 = vld [vmem:[#allocation5 + $0x688] sm:$0xff]
        %v917 = vld [vmem:[#allocation5 + $0x690] sm:$0xff]
        %v918 = vld [vmem:[#allocation5 + $0x698] sm:$0xff]
        %v919 = vld [vmem:[#allocation5 + $0x6a0] sm:$0xff]
        %v920 = vld [vmem:[#allocation5 + $0x6a8] sm:$0xff]
        %v921 = vld [vmem:[#allocation5 + $0x6b0] sm:$0xff]
        %v922 = vld [vmem:[#allocation5 + $0x6b8] sm:$0xff]
        %v923 = vld [vmem:[#allocation5 + $0x6c0] sm:$0xff]
        %v924 = vld [vmem:[#allocation5 + $0x6c8] sm:$0xff]
        %v925 = vld [vmem:[#allocation5 + $0x6d0] sm:$0xff]
        %v926 = vld [vmem:[#allocation5 + $0x6d8] sm:$0xff]
        %v927 = vld [vmem:[#allocation5 + $0x6e0] sm:$0xff]
        %v928 = vld [vmem:[#allocation5 + $0x6e8] sm:$0xff]
        %v929 = vld [vmem:[#allocation5 + $0x6f0] sm:$0xff]
        %v930 = vld [vmem:[#allocation5 + $0x6f8] sm:$0xff]
        %v931 = vld [vmem:[#allocation5 + $0x700] sm:$0xff]
        %v932 = vld [vmem:[#allocation5 + $0x708] sm:$0xff]
        %v933 = vld [vmem:[#allocation5 + $0x710] sm:$0xff]
        %v934 = vld [vmem:[#allocation5 + $0x718] sm:$0xff]
        %v935 = vld [vmem:[#allocation5 + $0x720] sm:$0xff]
        %v936 = vld [vmem:[#allocation5 + $0x728] sm:$0xff]
        %v937 = vld [vmem:[#allocation5 + $0x730] sm:$0xff]
        %v938 = vld [vmem:[#allocation5 + $0x738] sm:$0xff]
        %v939 = vld [vmem:[#allocation5 + $0x740] sm:$0xff]
        %v940 = vld [vmem:[#allocation5 + $0x748] sm:$0xff]
        %v941 = vld [vmem:[#allocation5 + $0x750] sm:$0xff]
        %v942 = vld [vmem:[#allocation5 + $0x758] sm:$0xff]
        %v943 = vld [vmem:[#allocation5 + $0x760] sm:$0xff]
        %v944 = vld [vmem:[#allocation5 + $0x768] sm:$0xff]
        %v945 = vld [vmem:[#allocation5 + $0x770] sm:$0xff]
        %v946 = vld [vmem:[#allocation5 + $0x778] sm:$0xff]
        %v947 = vld [vmem:[#allocation5 + $0x780] sm:$0xff]
        %v948 = vld [vmem:[#allocation5 + $0x788] sm:$0xff]
        %v949 = vld [vmem:[#allocation5 + $0x790] sm:$0xff]
        %v950 = vld [vmem:[#allocation5 + $0x798] sm:$0xff]
        %v951 = vld [vmem:[#allocation5 + $0x7a0] sm:$0xff]
        %v952 = vld [vmem:[#allocation5 + $0x7a8] sm:$0xff]
        %v953 = vld [vmem:[#allocation5 + $0x7b0] sm:$0xff]
        %v954 = vld [vmem:[#allocation5 + $0x7b8] sm:$0xff]
        %v955 = vld [vmem:[#allocation5 + $0x7c0] sm:$0xff]
        %v956 = vld [vmem:[#allocation5 + $0x7c8] sm:$0xff]
        %v957 = vld [vmem:[#allocation5 + $0x7d0] sm:$0xff]
        %v958 = vld [vmem:[#allocation5 + $0x7d8] sm:$0xff]
        %v959 = vld [vmem:[#allocation5 + $0x7e0] sm:$0xff]
        %v960 = vld [vmem:[#allocation5 + $0x7e8] sm:$0xff]
        %v961 = vld [vmem:[#allocation5 + $0x7f0] sm:$0xff]
        %v962 = vld [vmem:[#allocation5 + $0x7f8] sm:$0xff]
        %v963 = vld [vmem:[#allocation7] sm:$0xff]
        %v965 = vlaneseq
        %v966 = vshrl.u32 %v965, 7
        %v967 = vsub.s32 0, %v966
        %v968 = vrot.slane %v963, %v967
        %v969 = vlaneseq
        %v970 = vshrl.u32 %v969, 7
        %v971 = vsub.s32 1, %v970
        %v972 = vrot.slane %v963, %v971
        %v973 = vlaneseq
        %v974 = vshrl.u32 %v973, 7
        %v975 = vsub.s32 2, %v974
        %v976 = vrot.slane %v963, %v975
        %v977 = vlaneseq
        %v978 = vshrl.u32 %v977, 7
        %v979 = vsub.s32 3, %v978
        %v980 = vrot.slane %v963, %v979
        %v981 = vlaneseq
        %v982 = vshrl.u32 %v981, 7
        %v983 = vsub.s32 4, %v982
        %v984 = vrot.slane %v963, %v983
        %v985 = vlaneseq
        %v986 = vshrl.u32 %v985, 7
        %v987 = vsub.s32 5, %v986
        %v988 = vrot.slane %v963, %v987
        %v989 = vlaneseq
        %v990 = vshrl.u32 %v989, 7
        %v991 = vsub.s32 6, %v990
        %v992 = vrot.slane %v963, %v991
        %v993 = vlaneseq
        %v994 = vshrl.u32 %v993, 7
        %v995 = vsub.s32 7, %v994
        %v996 = vrot.slane %v963, %v995
        %1005 = vmatprep.subr.mxu0 %v708
        %1006 = vmatpush1.msra.mxu0 %v707
        %1007 = vmatprep.subr.mxu0 %v716
        %1008 = vmatpush1.msra.mxu0 %v715
        %1009 = vmatprep.subr.mxu0 %v724
        %1010 = vmatpush1.msra.mxu0 %v723
        %1011 = vmatprep.subr.mxu0 %v732
        %1012 = vmatpush1.msra.mxu0 %v731
        %1013 = vmatprep.subr.mxu0 %v740
        %1014 = vmatpush1.msra.mxu0 %v739
        %1015 = vmatprep.subr.mxu0 %v748
        %1016 = vmatpush1.msra.mxu0 %v747
        %1017 = vmatprep.subr.mxu0 %v756
        %1018 = vmatpush1.msra.mxu0 %v755
        %1019 = vmatprep.subr.mxu0 %v764
        %1020 = vmatpush1.msra.mxu0 %v763
        %1021 = vmatprep.subr.mxu0 %v772
        %1022 = vmatpush1.msra.mxu0 %v771
        %1023 = vmatprep.subr.mxu0 %v780
        %1024 = vmatpush1.msra.mxu0 %v779
        %1025 = vmatprep.subr.mxu0 %v788
        %1026 = vmatpush1.msra.mxu0 %v787
        %1027 = vmatprep.subr.mxu0 %v796
        %1028 = vmatpush1.msra.mxu0 %v795
        %1029 = vmatprep.subr.mxu0 %v804
        %1030 = vmatpush1.msra.mxu0 %v803
        %1031 = vmatprep.subr.mxu0 %v812
        %1032 = vmatpush1.msra.mxu0 %v811
        %1033 = vmatprep.subr.mxu0 %v820
        %1034 = vmatpush1.msra.mxu0 %v819
        %1035 = vmatprep.subr.mxu0 %v828
        %1036 = vmatpush1.msra.mxu0 %v827
        %1037 = vmatprep.subr.mxu0 %v836
        %1038 = vmatpush1.msra.mxu0 %v835
        %1039 = vmatprep.subr.mxu0 %v844
        %1040 = vmatpush1.msra.mxu0 %v843
        %1041 = vmatprep.subr.mxu0 %v852
        %1042 = vmatpush1.msra.mxu0 %v851
        %1043 = vmatprep.subr.mxu0 %v860
        %1044 = vmatpush1.msra.mxu0 %v859
        %1045 = vmatprep.subr.mxu0 %v868
        %1046 = vmatpush1.msra.mxu0 %v867
        %1047 = vmatprep.subr.mxu0 %v876
        %1048 = vmatpush1.msra.mxu0 %v875
        %1049 = vmatprep.subr.mxu0 %v884
        %1050 = vmatpush1.msra.mxu0 %v883
        %1051 = vmatprep.subr.mxu0 %v892
        %1052 = vmatpush1.msra.mxu0 %v891
        %1053 = vmatprep.subr.mxu0 %v900
        %1054 = vmatpush1.msra.mxu0 %v899
        %1055 = vmatprep.subr.mxu0 %v908
        %1056 = vmatpush1.msra.mxu0 %v907
        %1057 = vmatprep.subr.mxu0 %v916
        %1058 = vmatpush1.msra.mxu0 %v915
        %1059 = vmatprep.subr.mxu0 %v924
        %1060 = vmatpush1.msra.mxu0 %v923
        %1061 = vmatprep.subr.mxu0 %v932
        %1062 = vmatpush1.msra.mxu0 %v931
        %1063 = vmatprep.subr.mxu0 %v940
        %1064 = vmatpush1.msra.mxu0 %v939
        %1065 = vmatprep.subr.mxu0 %v948
        %1066 = vmatpush1.msra.mxu0 %v947
        %1067 = vmatprep.subr.mxu0 %v956
        %1068 = vmatpush1.msra.mxu0 %v955
        %1069 = vmatprep.mubr.f32.mxu0 %v700
        %1070 = vmatmul.mubr.f32.gmra.mrb[0].mxu0 %v699
        %v1071 = vpop.f32.mrb[0].mxu0
        %v1072 = vadd.f32 %v968, %v1071
        %v1073 = vpop.f32.mrb[0].mxu0
        %v1074 = vadd.f32 %v972, %v1073
        %1075 = vmatprep.mubr.f32.mxu0 %v702
        %1076 = vmatmul.mubr.f32.gmra.mrb[0].mxu0 %v701
        %v1077 = vpop.f32.mrb[0].mxu0
        %v1078 = vadd.f32 %v968, %v1077
        %v1079 = vpop.f32.mrb[0].mxu0
        %v1080 = vadd.f32 %v972, %v1079
        %1081 = vmatprep.mubr.f32.mxu0 %v704
        %1082 = vmatmul.mubr.f32.gmra.mrb[0].mxu0 %v703
        %v1083 = vpop.f32.mrb[0].mxu0
        %v1084 = vadd.f32 %v968, %v1083
        %v1085 = vpop.f32.mrb[0].mxu0
        %v1086 = vadd.f32 %v972, %v1085
        %1087 = vmatprep.mubr.f32.mxu0 %v706
        %1088 = vmatmul.mubr.f32.gmra.mrb[0].mxu0 %v705
        %v1089 = vpop.f32.mrb[0].mxu0
        %v1090 = vadd.f32 %v968, %v1089
        %v1091 = vpop.f32.mrb[0].mxu0
        %v1092 = vadd.f32 %v972, %v1091
        %1093 = vdwg.mxu0
        %1094 = vmatprep.subr.mxu0 %v710
        %1095 = vmatpush1.msra.mxu0 %v709
        %1096 = vmatprep.subr.mxu0 %v718
        %1097 = vmatpush1.msra.mxu0 %v717
        %1098 = vmatprep.subr.mxu0 %v726
        %1099 = vmatpush1.msra.mxu0 %v725
        %1100 = vmatprep.subr.mxu0 %v734
        %1101 = vmatpush1.msra.mxu0 %v733
        %1102 = vmatprep.subr.mxu0 %v742
        %1103 = vmatpush1.msra.mxu0 %v741
        %1104 = vmatprep.subr.mxu0 %v750
        %1105 = vmatpush1.msra.mxu0 %v749
        %1106 = vmatprep.subr.mxu0 %v758
        %1107 = vmatpush1.msra.mxu0 %v757
        %1108 = vmatprep.subr.mxu0 %v766
        %1109 = vmatpush1.msra.mxu0 %v765
        %1110 = vmatprep.subr.mxu0 %v774
        %1111 = vmatpush1.msra.mxu0 %v773
        %1112 = vmatprep.subr.mxu0 %v782
        %1113 = vmatpush1.msra.mxu0 %v781
        %1114 = vmatprep.subr.mxu0 %v790
        %1115 = vmatpush1.msra.mxu0 %v789
        %1116 = vmatprep.subr.mxu0 %v798
        %1117 = vmatpush1.msra.mxu0 %v797
        %1118 = vmatprep.subr.mxu0 %v806
        %1119 = vmatpush1.msra.mxu0 %v805
        %1120 = vmatprep.subr.mxu0 %v814
        %1121 = vmatpush1.msra.mxu0 %v813
        %1122 = vmatprep.subr.mxu0 %v822
        %1123 = vmatpush1.msra.mxu0 %v821
        %1124 = vmatprep.subr.mxu0 %v830
        %1125 = vmatpush1.msra.mxu0 %v829
        %1126 = vmatprep.subr.mxu0 %v838
        %1127 = vmatpush1.msra.mxu0 %v837
        %1128 = vmatprep.subr.mxu0 %v846
        %1129 = vmatpush1.msra.mxu0 %v845
        %1130 = vmatprep.subr.mxu0 %v854
        %1131 = vmatpush1.msra.mxu0 %v853
        %1132 = vmatprep.subr.mxu0 %v862
        %1133 = vmatpush1.msra.mxu0 %v861
        %1134 = vmatprep.subr.mxu0 %v870
        %1135 = vmatpush1.msra.mxu0 %v869
        %1136 = vmatprep.subr.mxu0 %v878
        %1137 = vmatpush1.msra.mxu0 %v877
        %1138 = vmatprep.subr.mxu0 %v886
        %1139 = vmatpush1.msra.mxu0 %v885
        %1140 = vmatprep.subr.mxu0 %v894
        %1141 = vmatpush1.msra.mxu0 %v893
        %1142 = vmatprep.subr.mxu0 %v902
        %1143 = vmatpush1.msra.mxu0 %v901
        %1144 = vmatprep.subr.mxu0 %v910
        %1145 = vmatpush1.msra.mxu0 %v909
        %1146 = vmatprep.subr.mxu0 %v918
        %1147 = vmatpush1.msra.mxu0 %v917
        %1148 = vmatprep.subr.mxu0 %v926
        %1149 = vmatpush1.msra.mxu0 %v925
        %1150 = vmatprep.subr.mxu0 %v934
        %1151 = vmatpush1.msra.mxu0 %v933
        %1152 = vmatprep.subr.mxu0 %v942
        %1153 = vmatpush1.msra.mxu0 %v941
        %1154 = vmatprep.subr.mxu0 %v950
        %1155 = vmatpush1.msra.mxu0 %v949
        %1156 = vmatprep.subr.mxu0 %v958
        %1157 = vmatpush1.msra.mxu0 %v957
        %1158 = vmatprep.mubr.f32.mxu0 %v700
        %1159 = vmatmul.mubr.f32.gmra.mrb[0].mxu0 %v699
        %v1160 = vpop.f32.mrb[0].mxu0
        %v1161 = vadd.f32 %v976, %v1160
        %v1162 = vpop.f32.mrb[0].mxu0
        %v1163 = vadd.f32 %v980, %v1162
        %1164 = vmatprep.mubr.f32.mxu0 %v702
        %1165 = vmatmul.mubr.f32.gmra.mrb[0].mxu0 %v701
        %v1166 = vpop.f32.mrb[0].mxu0
        %v1167 = vadd.f32 %v976, %v1166
        %v1168 = vpop.f32.mrb[0].mxu0
        %v1169 = vadd.f32 %v980, %v1168
        %1170 = vmatprep.mubr.f32.mxu0 %v704
        %1171 = vmatmul.mubr.f32.gmra.mrb[0].mxu0 %v703
        %v1172 = vpop.f32.mrb[0].mxu0
        %v1173 = vadd.f32 %v976, %v1172
        %v1174 = vpop.f32.mrb[0].mxu0
        %v1175 = vadd.f32 %v980, %v1174
        %1176 = vmatprep.mubr.f32.mxu0 %v706
        %1177 = vmatmul.mubr.f32.gmra.mrb[0].mxu0 %v705
        %v1178 = vpop.f32.mrb[0].mxu0
        %v1179 = vadd.f32 %v976, %v1178
        %v1180 = vpop.f32.mrb[0].mxu0
        %v1181 = vadd.f32 %v980, %v1180
        %1182 = vdwg.mxu0
        %1183 = vmatprep.subr.mxu0 %v712
        %1184 = vmatpush1.msra.mxu0 %v711
        %1185 = vmatprep.subr.mxu0 %v720
        %1186 = vmatpush1.msra.mxu0 %v719
        %1187 = vmatprep.subr.mxu0 %v728
        %1188 = vmatpush1.msra.mxu0 %v727
        %1189 = vmatprep.subr.mxu0 %v736
        %1190 = vmatpush1.msra.mxu0 %v735
        %1191 = vmatprep.subr.mxu0 %v744
        %1192 = vmatpush1.msra.mxu0 %v743
        %1193 = vmatprep.subr.mxu0 %v752
        %1194 = vmatpush1.msra.mxu0 %v751
        %1195 = vmatprep.subr.mxu0 %v760
        %1196 = vmatpush1.msra.mxu0 %v759
        %1197 = vmatprep.subr.mxu0 %v768
        %1198 = vmatpush1.msra.mxu0 %v767
        %1199 = vmatprep.subr.mxu0 %v776
        %1200 = vmatpush1.msra.mxu0 %v775
        %1201 = vmatprep.subr.mxu0 %v784
        %1202 = vmatpush1.msra.mxu0 %v783
        %1203 = vmatprep.subr.mxu0 %v792
        %1204 = vmatpush1.msra.mxu0 %v791
        %1205 = vmatprep.subr.mxu0 %v800
        %1206 = vmatpush1.msra.mxu0 %v799
        %1207 = vmatprep.subr.mxu0 %v808
        %1208 = vmatpush1.msra.mxu0 %v807
        %1209 = vmatprep.subr.mxu0 %v816
        %1210 = vmatpush1.msra.mxu0 %v815
        %1211 = vmatprep.subr.mxu0 %v824
        %1212 = vmatpush1.msra.mxu0 %v823
        %1213 = vmatprep.subr.mxu0 %v832
        %1214 = vmatpush1.msra.mxu0 %v831
        %1215 = vmatprep.subr.mxu0 %v840
        %1216 = vmatpush1.msra.mxu0 %v839
        %1217 = vmatprep.subr.mxu0 %v848
        %1218 = vmatpush1.msra.mxu0 %v847
        %1219 = vmatprep.subr.mxu0 %v856
        %1220 = vmatpush1.msra.mxu0 %v855
        %1221 = vmatprep.subr.mxu0 %v864
        %1222 = vmatpush1.msra.mxu0 %v863
        %1223 = vmatprep.subr.mxu0 %v872
        %1224 = vmatpush1.msra.mxu0 %v871
        %1225 = vmatprep.subr.mxu0 %v880
        %1226 = vmatpush1.msra.mxu0 %v879
        %1227 = vmatprep.subr.mxu0 %v888
        %1228 = vmatpush1.msra.mxu0 %v887
        %1229 = vmatprep.subr.mxu0 %v896
        %1230 = vmatpush1.msra.mxu0 %v895
        %1231 = vmatprep.subr.mxu0 %v904
        %1232 = vmatpush1.msra.mxu0 %v903
        %1233 = vmatprep.subr.mxu0 %v912
        %1234 = vmatpush1.msra.mxu0 %v911
        %1235 = vmatprep.subr.mxu0 %v920
        %1236 = vmatpush1.msra.mxu0 %v919
        %1237 = vmatprep.subr.mxu0 %v928
        %1238 = vmatpush1.msra.mxu0 %v927
        %1239 = vmatprep.subr.mxu0 %v936
        %1240 = vmatpush1.msra.mxu0 %v935
        %1241 = vmatprep.subr.mxu0 %v944
        %1242 = vmatpush1.msra.mxu0 %v943
        %1243 = vmatprep.subr.mxu0 %v952
        %1244 = vmatpush1.msra.mxu0 %v951
        %1245 = vmatprep.subr.mxu0 %v960
        %1246 = vmatpush1.msra.mxu0 %v959
        %1247 = vmatprep.mubr.f32.mxu0 %v700
        %1248 = vmatmul.mubr.f32.gmra.mrb[0].mxu0 %v699
        %v1249 = vpop.f32.mrb[0].mxu0
        %v1250 = vadd.f32 %v984, %v1249
        %v1251 = vpop.f32.mrb[0].mxu0
        %v1252 = vadd.f32 %v988, %v1251
        %1253 = vmatprep.mubr.f32.mxu0 %v702
        %1254 = vmatmul.mubr.f32.gmra.mrb[0].mxu0 %v701
        %v1255 = vpop.f32.mrb[0].mxu0
        %v1256 = vadd.f32 %v984, %v1255
        %v1257 = vpop.f32.mrb[0].mxu0
        %v1258 = vadd.f32 %v988, %v1257
        %1259 = vmatprep.mubr.f32.mxu0 %v704
        %1260 = vmatmul.mubr.f32.gmra.mrb[0].mxu0 %v703
        %v1261 = vpop.f32.mrb[0].mxu0
        %v1262 = vadd.f32 %v984, %v1261
        %v1263 = vpop.f32.mrb[0].mxu0
        %v1264 = vadd.f32 %v988, %v1263
        %1265 = vmatprep.mubr.f32.mxu0 %v706
        %1266 = vmatmul.mubr.f32.gmra.mrb[0].mxu0 %v705
        %v1267 = vpop.f32.mrb[0].mxu0
        %v1268 = vadd.f32 %v984, %v1267
        %v1269 = vpop.f32.mrb[0].mxu0
        %v1270 = vadd.f32 %v988, %v1269
        %1271 = vdwg.mxu0
        %1272 = vmatprep.subr.mxu0 %v714
        %1273 = vmatpush1.msra.mxu0 %v713
        %1274 = vmatprep.subr.mxu0 %v722
        %1275 = vmatpush1.msra.mxu0 %v721
        %1276 = vmatprep.subr.mxu0 %v730
        %1277 = vmatpush1.msra.mxu0 %v729
        %1278 = vmatprep.subr.mxu0 %v738
        %1279 = vmatpush1.msra.mxu0 %v737
        %1280 = vmatprep.subr.mxu0 %v746
        %1281 = vmatpush1.msra.mxu0 %v745
        %1282 = vmatprep.subr.mxu0 %v754
        %1283 = vmatpush1.msra.mxu0 %v753
        %1284 = vmatprep.subr.mxu0 %v762
        %1285 = vmatpush1.msra.mxu0 %v761
        %1286 = vmatprep.subr.mxu0 %v770
        %1287 = vmatpush1.msra.mxu0 %v769
        %1288 = vmatprep.subr.mxu0 %v778
        %1289 = vmatpush1.msra.mxu0 %v777
        %1290 = vmatprep.subr.mxu0 %v786
        %1291 = vmatpush1.msra.mxu0 %v785
        %1292 = vmatprep.subr.mxu0 %v794
        %1293 = vmatpush1.msra.mxu0 %v793
        %1294 = vmatprep.subr.mxu0 %v802
        %1295 = vmatpush1.msra.mxu0 %v801
        %1296 = vmatprep.subr.mxu0 %v810
        %1297 = vmatpush1.msra.mxu0 %v809
        %1298 = vmatprep.subr.mxu0 %v818
        %1299 = vmatpush1.msra.mxu0 %v817
        %1300 = vmatprep.subr.mxu0 %v826
        %1301 = vmatpush1.msra.mxu0 %v825
        %1302 = vmatprep.subr.mxu0 %v834
        %1303 = vmatpush1.msra.mxu0 %v833
        %1304 = vmatprep.subr.mxu0 %v842
        %1305 = vmatpush1.msra.mxu0 %v841
        %1306 = vmatprep.subr.mxu0 %v850
        %1307 = vmatpush1.msra.mxu0 %v849
        %1308 = vmatprep.subr.mxu0 %v858
        %1309 = vmatpush1.msra.mxu0 %v857
        %1310 = vmatprep.subr.mxu0 %v866
        %1311 = vmatpush1.msra.mxu0 %v865
        %1312 = vmatprep.subr.mxu0 %v874
        %1313 = vmatpush1.msra.mxu0 %v873
        %1314 = vmatprep.subr.mxu0 %v882
        %1315 = vmatpush1.msra.mxu0 %v881
        %1316 = vmatprep.subr.mxu0 %v890
        %1317 = vmatpush1.msra.mxu0 %v889
        %1318 = vmatprep.subr.mxu0 %v898
        %1319 = vmatpush1.msra.mxu0 %v897
        %1320 = vmatprep.subr.mxu0 %v906
        %1321 = vmatpush1.msra.mxu0 %v905
        %1322 = vmatprep.subr.mxu0 %v914
        %1323 = vmatpush1.msra.mxu0 %v913
        %1324 = vmatprep.subr.mxu0 %v922
        %1325 = vmatpush1.msra.mxu0 %v921
        %1326 = vmatprep.subr.mxu0 %v930
        %1327 = vmatpush1.msra.mxu0 %v929
        %1328 = vmatprep.subr.mxu0 %v938
        %1329 = vmatpush1.msra.mxu0 %v937
        %1330 = vmatprep.subr.mxu0 %v946
        %1331 = vmatpush1.msra.mxu0 %v945
        %1332 = vmatprep.subr.mxu0 %v954
        %1333 = vmatpush1.msra.mxu0 %v953
        %1334 = vmatprep.subr.mxu0 %v962
        %1335 = vmatpush1.msra.mxu0 %v961
        %1336 = vmatprep.mubr.f32.mxu0 %v700
        %1337 = vmatmul.mubr.f32.gmra.mrb[0].mxu0 %v699
        %v1338 = vpop.f32.mrb[0].mxu0
        %v1339 = vadd.f32 %v992, %v1338
        %v1340 = vpop.f32.mrb[0].mxu0
        %v1341 = vadd.f32 %v996, %v1340
        %1342 = vmatprep.mubr.f32.mxu0 %v702
        %1343 = vmatmul.mubr.f32.gmra.mrb[0].mxu0 %v701
        %v1344 = vpop.f32.mrb[0].mxu0
        %v1345 = vadd.f32 %v992, %v1344
        %v1346 = vpop.f32.mrb[0].mxu0
        %v1347 = vadd.f32 %v996, %v1346
        %1348 = vmatprep.mubr.f32.mxu0 %v704
        %1349 = vmatmul.mubr.f32.gmra.mrb[0].mxu0 %v703
        %v1350 = vpop.f32.mrb[0].mxu0
        %v1351 = vadd.f32 %v992, %v1350
        %v1352 = vpop.f32.mrb[0].mxu0
        %v1353 = vadd.f32 %v996, %v1352
        %1354 = vmatprep.mubr.f32.mxu0 %v706
        %1355 = vmatmul.mubr.f32.gmra.mrb[0].mxu0 %v705
        %v1356 = vpop.f32.mrb[0].mxu0
        %v1357 = vadd.f32 %v992, %v1356
        %v1358 = vpop.f32.mrb[0].mxu0
        %v1359 = vadd.f32 %v996, %v1358
        %1360 = vdwg.mxu0
        %v1361 = vld [vmem:[#allocation8] sm:$0xff]
        %v1362 = vld [vmem:[#allocation10] sm:$0xff]
        %v1363 = vadd.f32 %v1072, %v1074
        %v1364 = vadd.f32 %v1363, %v1161
        %v1365 = vadd.f32 %v1364, %v1163
        %v1366 = vadd.f32 %v1365, %v1250
        %v1367 = vadd.f32 %v1366, %v1252
        %v1368 = vadd.f32 %v1367, %v1339
        %v1369 = vadd.f32 %v1368, %v1341
        %1370 = vadd.xlane.f32.xlu0 %v1369
        %v1371 = vpop.xlane.xlu0 %1370
        %v1372 = vadd.f32 %v1078, %v1080
        %v1373 = vadd.f32 %v1372, %v1167
        %v1374 = vadd.f32 %v1373, %v1169
        %v1375 = vadd.f32 %v1374, %v1256
        %v1376 = vadd.f32 %v1375, %v1258
        %v1377 = vadd.f32 %v1376, %v1345
        %v1378 = vadd.f32 %v1377, %v1347
        %1379 = vadd.xlane.f32.xlu0 %v1378
        %v1380 = vpop.xlane.xlu0 %1379
        %v1381 = vadd.f32 %v1084, %v1086
        %v1382 = vadd.f32 %v1381, %v1173
        %v1383 = vadd.f32 %v1382, %v1175
        %v1384 = vadd.f32 %v1383, %v1262
        %v1385 = vadd.f32 %v1384, %v1264
        %v1386 = vadd.f32 %v1385, %v1351
        %v1387 = vadd.f32 %v1386, %v1353
        %1388 = vadd.xlane.f32.xlu0 %v1387
        %v1389 = vpop.xlane.xlu0 %1388
        %v1390 = vadd.f32 %v1090, %v1092
        %v1391 = vadd.f32 %v1390, %v1179
        %v1392 = vadd.f32 %v1391, %v1181
        %v1393 = vadd.f32 %v1392, %v1268
        %v1394 = vadd.f32 %v1393, %v1270
        %v1395 = vadd.f32 %v1394, %v1357
        %v1396 = vadd.f32 %v1395, %v1359
        %1397 = vadd.xlane.f32.xlu0 %v1396
        %v1398 = vpop.xlane.xlu0 %1397
        %v1399 = vrcp.pop 1024.0
        %v1400 = vmul.f32 %v1371, %v1399
        %v1401 = vmul.f32 %v1380, %v1399
        %v1402 = vmul.f32 %v1389, %v1399
        %v1403 = vmul.f32 %v1398, %v1399
        %v1404 = vsub.f32 %v1072, %v1400
        %v1405 = vsub.f32 %v1074, %v1400
        %v1406 = vsub.f32 %v1161, %v1400
        %v1407 = vsub.f32 %v1163, %v1400
        %v1408 = vsub.f32 %v1250, %v1400
        %v1409 = vsub.f32 %v1252, %v1400
        %v1410 = vsub.f32 %v1339, %v1400
        %v1411 = vsub.f32 %v1341, %v1400
        %v1412 = vsub.f32 %v1078, %v1401
        %v1413 = vsub.f32 %v1080, %v1401
        %v1414 = vsub.f32 %v1167, %v1401
        %v1415 = vsub.f32 %v1169, %v1401
        %v1416 = vsub.f32 %v1256, %v1401
        %v1417 = vsub.f32 %v1258, %v1401
        %v1418 = vsub.f32 %v1345, %v1401
        %v1419 = vsub.f32 %v1347, %v1401
        %v1420 = vsub.f32 %v1084, %v1402
        %v1421 = vsub.f32 %v1086, %v1402
        %v1422 = vsub.f32 %v1173, %v1402
        %v1423 = vsub.f32 %v1175, %v1402
        %v1424 = vsub.f32 %v1262, %v1402
        %v1425 = vsub.f32 %v1264, %v1402
        %v1426 = vsub.f32 %v1351, %v1402
        %v1427 = vsub.f32 %v1353, %v1402
        %v1428 = vsub.f32 %v1090, %v1403
        %v1429 = vsub.f32 %v1092, %v1403
        %v1430 = vsub.f32 %v1179, %v1403
        %v1431 = vsub.f32 %v1181, %v1403
        %v1432 = vsub.f32 %v1268, %v1403
        %v1433 = vsub.f32 %v1270, %v1403
        %v1434 = vsub.f32 %v1357, %v1403
        %v1435 = vsub.f32 %v1359, %v1403
        %v1436 = vmul.f32 %v1404, %v1404
        %v1437 = vmul.f32 %v1405, %v1405
        %v1438 = vmul.f32 %v1406, %v1406
        %v1439 = vmul.f32 %v1407, %v1407
        %v1440 = vmul.f32 %v1408, %v1408
        %v1441 = vmul.f32 %v1409, %v1409
        %v1442 = vmul.f32 %v1410, %v1410
        %v1443 = vmul.f32 %v1411, %v1411
        %v1444 = vmul.f32 %v1412, %v1412
        %v1445 = vmul.f32 %v1413, %v1413
        %v1446 = vmul.f32 %v1414, %v1414
        %v1447 = vmul.f32 %v1415, %v1415
        %v1448 = vmul.f32 %v1416, %v1416
        %v1449 = vmul.f32 %v1417, %v1417
        %v1450 = vmul.f32 %v1418, %v1418
        %v1451 = vmul.f32 %v1419, %v1419
        %v1452 = vmul.f32 %v1420, %v1420
        %v1453 = vmul.f32 %v1421, %v1421
        %v1454 = vmul.f32 %v1422, %v1422
        %v1455 = vmul.f32 %v1423, %v1423
        %v1456 = vmul.f32 %v1424, %v1424
        %v1457 = vmul.f32 %v1425, %v1425
        %v1458 = vmul.f32 %v1426, %v1426
        %v1459 = vmul.f32 %v1427, %v1427
        %v1460 = vmul.f32 %v1428, %v1428
        %v1461 = vmul.f32 %v1429, %v1429
        %v1462 = vmul.f32 %v1430, %v1430
        %v1463 = vmul.f32 %v1431, %v1431
        %v1464 = vmul.f32 %v1432, %v1432
        %v1465 = vmul.f32 %v1433, %v1433
        %v1466 = vmul.f32 %v1434, %v1434
        %v1467 = vmul.f32 %v1435, %v1435
        %v1468 = vadd.f32 %v1436, %v1437
        %v1469 = vadd.f32 %v1468, %v1438
        %v1470 = vadd.f32 %v1469, %v1439
        %v1471 = vadd.f32 %v1470, %v1440
        %v1472 = vadd.f32 %v1471, %v1441
        %v1473 = vadd.f32 %v1472, %v1442
        %v1474 = vadd.f32 %v1473, %v1443
        %1475 = vadd.xlane.f32.xlu0 %v1474
        %v1476 = vpop.xlane.xlu0 %1475
        %v1477 = vadd.f32 %v1444, %v1445
        %v1478 = vadd.f32 %v1477, %v1446
        %v1479 = vadd.f32 %v1478, %v1447
        %v1480 = vadd.f32 %v1479, %v1448
        %v1481 = vadd.f32 %v1480, %v1449
        %v1482 = vadd.f32 %v1481, %v1450
        %v1483 = vadd.f32 %v1482, %v1451
        %1484 = vadd.xlane.f32.xlu0 %v1483
        %v1485 = vpop.xlane.xlu0 %1484
        %v1486 = vadd.f32 %v1452, %v1453
        %v1487 = vadd.f32 %v1486, %v1454
        %v1488 = vadd.f32 %v1487, %v1455
        %v1489 = vadd.f32 %v1488, %v1456
        %v1490 = vadd.f32 %v1489, %v1457
        %v1491 = vadd.f32 %v1490, %v1458
        %v1492 = vadd.f32 %v1491, %v1459
        %1493 = vadd.xlane.f32.xlu0 %v1492
        %v1494 = vpop.xlane.xlu0 %1493
        %v1495 = vadd.f32 %v1460, %v1461
        %v1496 = vadd.f32 %v1495, %v1462
        %v1497 = vadd.f32 %v1496, %v1463
        %v1498 = vadd.f32 %v1497, %v1464
        %v1499 = vadd.f32 %v1498, %v1465
        %v1500 = vadd.f32 %v1499, %v1466
        %v1501 = vadd.f32 %v1500, %v1467
        %1502 = vadd.xlane.f32.xlu0 %v1501
        %v1503 = vpop.xlane.xlu0 %1502
        %v1504 = vmul.f32 %v1476, %v1399
        %v1505 = vmul.f32 %v1485, %v1399
        %v1506 = vmul.f32 %v1494, %v1399
        %v1507 = vmul.f32 %v1503, %v1399
        %v1508 = vadd.f32 %v1504, 1e-05
        %v1509 = vadd.f32 %v1505, 1e-05
        %v1510 = vadd.f32 %v1506, 1e-05
        %v1511 = vadd.f32 %v1507, 1e-05
        %v1512 = vrsqrt.pop %v1508
        %v1513 = vrsqrt.pop %v1509
        %v1514 = vrsqrt.pop %v1510
        %v1515 = vrsqrt.pop %v1511
        %v1517 = vlaneseq
        %v1518 = vshrl.u32 %v1517, 7
        %v1519 = vsub.s32 0, %v1518
        %v1520 = vrot.slane %v1361, %v1519
        %v1521 = vlaneseq
        %v1522 = vshrl.u32 %v1521, 7
        %v1523 = vsub.s32 1, %v1522
        %v1524 = vrot.slane %v1361, %v1523
        %v1525 = vlaneseq
        %v1526 = vshrl.u32 %v1525, 7
        %v1527 = vsub.s32 2, %v1526
        %v1528 = vrot.slane %v1361, %v1527
        %v1529 = vlaneseq
        %v1530 = vshrl.u32 %v1529, 7
        %v1531 = vsub.s32 3, %v1530
        %v1532 = vrot.slane %v1361, %v1531
        %v1533 = vlaneseq
        %v1534 = vshrl.u32 %v1533, 7
        %v1535 = vsub.s32 4, %v1534
        %v1536 = vrot.slane %v1361, %v1535
        %v1537 = vlaneseq
        %v1538 = vshrl.u32 %v1537, 7
        %v1539 = vsub.s32 5, %v1538
        %v1540 = vrot.slane %v1361, %v1539
        %v1541 = vlaneseq
        %v1542 = vshrl.u32 %v1541, 7
        %v1543 = vsub.s32 6, %v1542
        %v1544 = vrot.slane %v1361, %v1543
        %v1545 = vlaneseq
        %v1546 = vshrl.u32 %v1545, 7
        %v1547 = vsub.s32 7, %v1546
        %v1548 = vrot.slane %v1361, %v1547
        %v1557 = vmul.f32 %v1520, %v1512
        %v1558 = vmul.f32 %v1524, %v1512
        %v1559 = vmul.f32 %v1528, %v1512
        %v1560 = vmul.f32 %v1532, %v1512
        %v1561 = vmul.f32 %v1536, %v1512
        %v1562 = vmul.f32 %v1540, %v1512
        %v1563 = vmul.f32 %v1544, %v1512
        %v1564 = vmul.f32 %v1548, %v1512
        %v1565 = vmul.f32 %v1520, %v1513
        %v1566 = vmul.f32 %v1524, %v1513
        %v1567 = vmul.f32 %v1528, %v1513
        %v1568 = vmul.f32 %v1532, %v1513
        %v1569 = vmul.f32 %v1536, %v1513
        %v1570 = vmul.f32 %v1540, %v1513
        %v1571 = vmul.f32 %v1544, %v1513
        %v1572 = vmul.f32 %v1548, %v1513
        %v1573 = vmul.f32 %v1520, %v1514
        %v1574 = vmul.f32 %v1524, %v1514
        %v1575 = vmul.f32 %v1528, %v1514
        %v1576 = vmul.f32 %v1532, %v1514
        %v1577 = vmul.f32 %v1536, %v1514
        %v1578 = vmul.f32 %v1540, %v1514
        %v1579 = vmul.f32 %v1544, %v1514
        %v1580 = vmul.f32 %v1548, %v1514
        %v1581 = vmul.f32 %v1520, %v1515
        %v1582 = vmul.f32 %v1524, %v1515
        %v1583 = vmul.f32 %v1528, %v1515
        %v1584 = vmul.f32 %v1532, %v1515
        %v1585 = vmul.f32 %v1536, %v1515
        %v1586 = vmul.f32 %v1540, %v1515
        %v1587 = vmul.f32 %v1544, %v1515
        %v1588 = vmul.f32 %v1548, %v1515
        %v1589 = vmul.f32 %v1404, %v1557
        %v1590 = vmul.f32 %v1405, %v1558
        %v1591 = vmul.f32 %v1406, %v1559
        %v1592 = vmul.f32 %v1407, %v1560
        %v1593 = vmul.f32 %v1408, %v1561
        %v1594 = vmul.f32 %v1409, %v1562
        %v1595 = vmul.f32 %v1410, %v1563
        %v1596 = vmul.f32 %v1411, %v1564
        %v1597 = vmul.f32 %v1412, %v1565
        %v1598 = vmul.f32 %v1413, %v1566
        %v1599 = vmul.f32 %v1414, %v1567
        %v1600 = vmul.f32 %v1415, %v1568
        %v1601 = vmul.f32 %v1416, %v1569
        %v1602 = vmul.f32 %v1417, %v1570
        %v1603 = vmul.f32 %v1418, %v1571
        %v1604 = vmul.f32 %v1419, %v1572
        %v1605 = vmul.f32 %v1420, %v1573
        %v1606 = vmul.f32 %v1421, %v1574
        %v1607 = vmul.f32 %v1422, %v1575
        %v1608 = vmul.f32 %v1423, %v1576
        %v1609 = vmul.f32 %v1424, %v1577
        %v1610 = vmul.f32 %v1425, %v1578
        %v1611 = vmul.f32 %v1426, %v1579
        %v1612 = vmul.f32 %v1427, %v1580
        %v1613 = vmul.f32 %v1428, %v1581
        %v1614 = vmul.f32 %v1429, %v1582
        %v1615 = vmul.f32 %v1430, %v1583
        %v1616 = vmul.f32 %v1431, %v1584
        %v1617 = vmul.f32 %v1432, %v1585
        %v1618 = vmul.f32 %v1433, %v1586
        %v1619 = vmul.f32 %v1434, %v1587
        %v1620 = vmul.f32 %v1435, %v1588
        %v1622 = vlaneseq
        %v1623 = vshrl.u32 %v1622, 7
        %v1624 = vsub.s32 0, %v1623
        %v1625 = vrot.slane %v1362, %v1624
        %v1626 = vlaneseq
        %v1627 = vshrl.u32 %v1626, 7
        %v1628 = vsub.s32 1, %v1627
        %v1629 = vrot.slane %v1362, %v1628
        %v1630 = vlaneseq
        %v1631 = vshrl.u32 %v1630, 7
        %v1632 = vsub.s32 2, %v1631
        %v1633 = vrot.slane %v1362, %v1632
        %v1634 = vlaneseq
        %v1635 = vshrl.u32 %v1634, 7
        %v1636 = vsub.s32 3, %v1635
        %v1637 = vrot.slane %v1362, %v1636
        %v1638 = vlaneseq
        %v1639 = vshrl.u32 %v1638, 7
        %v1640 = vsub.s32 4, %v1639
        %v1641 = vrot.slane %v1362, %v1640
        %v1642 = vlaneseq
        %v1643 = vshrl.u32 %v1642, 7
        %v1644 = vsub.s32 5, %v1643
        %v1645 = vrot.slane %v1362, %v1644
        %v1646 = vlaneseq
        %v1647 = vshrl.u32 %v1646, 7
        %v1648 = vsub.s32 6, %v1647
        %v1649 = vrot.slane %v1362, %v1648
        %v1650 = vlaneseq
        %v1651 = vshrl.u32 %v1650, 7
        %v1652 = vsub.s32 7, %v1651
        %v1653 = vrot.slane %v1362, %v1652
        %v1662 = vadd.f32 %v1589, %v1625
        %v1663 = vadd.f32 %v1590, %v1629
        %v1664 = vadd.f32 %v1591, %v1633
        %v1665 = vadd.f32 %v1592, %v1637
        %v1666 = vadd.f32 %v1593, %v1641
        %v1667 = vadd.f32 %v1594, %v1645
        %v1668 = vadd.f32 %v1595, %v1649
        %v1669 = vadd.f32 %v1596, %v1653
        %v1670 = vadd.f32 %v1597, %v1625
        %v1671 = vadd.f32 %v1598, %v1629
        %v1672 = vadd.f32 %v1599, %v1633
        %v1673 = vadd.f32 %v1600, %v1637
        %v1674 = vadd.f32 %v1601, %v1641
        %v1675 = vadd.f32 %v1602, %v1645
        %v1676 = vadd.f32 %v1603, %v1649
        %v1677 = vadd.f32 %v1604, %v1653
        %v1678 = vadd.f32 %v1605, %v1625
        %v1679 = vadd.f32 %v1606, %v1629
        %v1680 = vadd.f32 %v1607, %v1633
        %v1681 = vadd.f32 %v1608, %v1637
        %v1682 = vadd.f32 %v1609, %v1641
        %v1683 = vadd.f32 %v1610, %v1645
        %v1684 = vadd.f32 %v1611, %v1649
        %v1685 = vadd.f32 %v1612, %v1653
        %v1686 = vadd.f32 %v1613, %v1625
        %v1687 = vadd.f32 %v1614, %v1629
        %v1688 = vadd.f32 %v1615, %v1633
        %v1689 = vadd.f32 %v1616, %v1637
        %v1690 = vadd.f32 %v1617, %v1641
        %v1691 = vadd.f32 %v1618, %v1645
        %v1692 = vadd.f32 %v1619, %v1649
        %v1693 = vadd.f32 %v1620, %v1653
        %v1694 = vmax.f32 %v1662, 0.0
        %v1695 = vmax.f32 %v1663, 0.0
        %v1696 = vmax.f32 %v1664, 0.0
        %v1697 = vmax.f32 %v1665, 0.0
        %v1698 = vmax.f32 %v1666, 0.0
        %v1699 = vmax.f32 %v1667, 0.0
        %v1700 = vmax.f32 %v1668, 0.0
        %v1701 = vmax.f32 %v1669, 0.0
        %v1702 = vmax.f32 %v1670, 0.0
        %v1703 = vmax.f32 %v1671, 0.0
        %v1704 = vmax.f32 %v1672, 0.0
        %v1705 = vmax.f32 %v1673, 0.0
        %v1706 = vmax.f32 %v1674, 0.0
        %v1707 = vmax.f32 %v1675, 0.0
        %v1708 = vmax.f32 %v1676, 0.0
        %v1709 = vmax.f32 %v1677, 0.0
        %v1710 = vmax.f32 %v1678, 0.0
        %v1711 = vmax.f32 %v1679, 0.0
        %v1712 = vmax.f32 %v1680, 0.0
        %v1713 = vmax.f32 %v1681, 0.0
        %v1714 = vmax.f32 %v1682, 0.0
        %v1715 = vmax.f32 %v1683, 0.0
        %v1716 = vmax.f32 %v1684, 0.0
        %v1717 = vmax.f32 %v1685, 0.0
        %v1718 = vmax.f32 %v1686, 0.0
        %v1719 = vmax.f32 %v1687, 0.0
        %v1720 = vmax.f32 %v1688, 0.0
        %v1721 = vmax.f32 %v1689, 0.0
        %v1722 = vmax.f32 %v1690, 0.0
        %v1723 = vmax.f32 %v1691, 0.0
        %v1724 = vmax.f32 %v1692, 0.0
        %v1725 = vmax.f32 %v1693, 0.0
        %v1726 = vld [vmem:[#allocation11] sm:$0xff]
        %v1727 = vld [vmem:[#allocation11 + $0x8] sm:$0xff]
        %v1728 = vld [vmem:[#allocation11 + $0x10] sm:$0xff]
        %v1729 = vld [vmem:[#allocation11 + $0x18] sm:$0xff]
        %v1730 = vld [vmem:[#allocation11 + $0x20] sm:$0xff]
        %v1731 = vld [vmem:[#allocation11 + $0x28] sm:$0xff]
        %v1732 = vld [vmem:[#allocation11 + $0x30] sm:$0xff]
        %v1733 = vld [vmem:[#allocation11 + $0x38] sm:$0xff]
        %v1734 = vld [vmem:[#allocation11 + $0x40] sm:$0xff]
        %v1735 = vld [vmem:[#allocation11 + $0x48] sm:$0xff]
        %v1736 = vld [vmem:[#allocation11 + $0x50] sm:$0xff]
        %v1737 = vld [vmem:[#allocation11 + $0x58] sm:$0xff]
        %v1738 = vld [vmem:[#allocation11 + $0x60] sm:$0xff]
        %v1739 = vld [vmem:[#allocation11 + $0x68] sm:$0xff]
        %v1740 = vld [vmem:[#allocation11 + $0x70] sm:$0xff]
        %v1741 = vld [vmem:[#allocation11 + $0x78] sm:$0xff]
        %v1742 = vld [vmem:[#allocation11 + $0x80] sm:$0xff]
        %v1743 = vld [vmem:[#allocation11 + $0x88] sm:$0xff]
        %v1744 = vld [vmem:[#allocation11 + $0x90] sm:$0xff]
        %v1745 = vld [vmem:[#allocation11 + $0x98] sm:$0xff]
        %v1746 = vld [vmem:[#allocation11 + $0xa0] sm:$0xff]
        %v1747 = vld [vmem:[#allocation11 + $0xa8] sm:$0xff]
        %v1748 = vld [vmem:[#allocation11 + $0xb0] sm:$0xff]
        %v1749 = vld [vmem:[#allocation11 + $0xb8] sm:$0xff]
        %v1750 = vld [vmem:[#allocation11 + $0xc0] sm:$0xff]
        %v1751 = vld [vmem:[#allocation11 + $0xc8] sm:$0xff]
        %v1752 = vld [vmem:[#allocation11 + $0xd0] sm:$0xff]
        %v1753 = vld [vmem:[#allocation11 + $0xd8] sm:$0xff]
        %v1754 = vld [vmem:[#allocation11 + $0xe0] sm:$0xff]
        %v1755 = vld [vmem:[#allocation11 + $0xe8] sm:$0xff]
        %v1756 = vld [vmem:[#allocation11 + $0xf0] sm:$0xff]
        %v1757 = vld [vmem:[#allocation11 + $0xf8] sm:$0xff]
        %v1758 = vld [vmem:[#allocation11 + $0x100] sm:$0xff]
        %v1759 = vld [vmem:[#allocation11 + $0x108] sm:$0xff]
        %v1760 = vld [vmem:[#allocation11 + $0x110] sm:$0xff]
        %v1761 = vld [vmem:[#allocation11 + $0x118] sm:$0xff]
        %v1762 = vld [vmem:[#allocation11 + $0x120] sm:$0xff]
        %v1763 = vld [vmem:[#allocation11 + $0x128] sm:$0xff]
        %v1764 = vld [vmem:[#allocation11 + $0x130] sm:$0xff]
        %v1765 = vld [vmem:[#allocation11 + $0x138] sm:$0xff]
        %v1766 = vld [vmem:[#allocation11 + $0x140] sm:$0xff]
        %v1767 = vld [vmem:[#allocation11 + $0x148] sm:$0xff]
        %v1768 = vld [vmem:[#allocation11 + $0x150] sm:$0xff]
        %v1769 = vld [vmem:[#allocation11 + $0x158] sm:$0xff]
        %v1770 = vld [vmem:[#allocation11 + $0x160] sm:$0xff]
        %v1771 = vld [vmem:[#allocation11 + $0x168] sm:$0xff]
        %v1772 = vld [vmem:[#allocation11 + $0x170] sm:$0xff]
        %v1773 = vld [vmem:[#allocation11 + $0x178] sm:$0xff]
        %v1774 = vld [vmem:[#allocation11 + $0x180] sm:$0xff]
        %v1775 = vld [vmem:[#allocation11 + $0x188] sm:$0xff]
        %v1776 = vld [vmem:[#allocation11 + $0x190] sm:$0xff]
        %v1777 = vld [vmem:[#allocation11 + $0x198] sm:$0xff]
        %v1778 = vld [vmem:[#allocation11 + $0x1a0] sm:$0xff]
        %v1779 = vld [vmem:[#allocation11 + $0x1a8] sm:$0xff]
        %v1780 = vld [vmem:[#allocation11 + $0x1b0] sm:$0xff]
        %v1781 = vld [vmem:[#allocation11 + $0x1b8] sm:$0xff]
        %v1782 = vld [vmem:[#allocation11 + $0x1c0] sm:$0xff]
        %v1783 = vld [vmem:[#allocation11 + $0x1c8] sm:$0xff]
        %v1784 = vld [vmem:[#allocation11 + $0x1d0] sm:$0xff]
        %v1785 = vld [vmem:[#allocation11 + $0x1d8] sm:$0xff]
        %v1786 = vld [vmem:[#allocation11 + $0x1e0] sm:$0xff]
        %v1787 = vld [vmem:[#allocation11 + $0x1e8] sm:$0xff]
        %v1788 = vld [vmem:[#allocation11 + $0x1f0] sm:$0xff]
        %v1789 = vld [vmem:[#allocation11 + $0x1f8] sm:$0xff]
        %v1790 = vld [vmem:[#allocation11 + $0x200] sm:$0xff]
        %v1791 = vld [vmem:[#allocation11 + $0x208] sm:$0xff]
        %v1792 = vld [vmem:[#allocation11 + $0x210] sm:$0xff]
        %v1793 = vld [vmem:[#allocation11 + $0x218] sm:$0xff]
        %v1794 = vld [vmem:[#allocation11 + $0x220] sm:$0xff]
        %v1795 = vld [vmem:[#allocation11 + $0x228] sm:$0xff]
        %v1796 = vld [vmem:[#allocation11 + $0x230] sm:$0xff]
        %v1797 = vld [vmem:[#allocation11 + $0x238] sm:$0xff]
        %v1798 = vld [vmem:[#allocation11 + $0x240] sm:$0xff]
        %v1799 = vld [vmem:[#allocation11 + $0x248] sm:$0xff]
        %v1800 = vld [vmem:[#allocation11 + $0x250] sm:$0xff]
        %v1801 = vld [vmem:[#allocation11 + $0x258] sm:$0xff]
        %v1802 = vld [vmem:[#allocation11 + $0x260] sm:$0xff]
        %v1803 = vld [vmem:[#allocation11 + $0x268] sm:$0xff]
        %v1804 = vld [vmem:[#allocation11 + $0x270] sm:$0xff]
        %v1805 = vld [vmem:[#allocation11 + $0x278] sm:$0xff]
        %v1806 = vld [vmem:[#allocation11 + $0x280] sm:$0xff]
        %v1807 = vld [vmem:[#allocation11 + $0x288] sm:$0xff]
        %v1808 = vld [vmem:[#allocation11 + $0x290] sm:$0xff]
        %v1809 = vld [vmem:[#allocation11 + $0x298] sm:$0xff]
        %v1810 = vld [vmem:[#allocation11 + $0x2a0] sm:$0xff]
        %v1811 = vld [vmem:[#allocation11 + $0x2a8] sm:$0xff]
        %v1812 = vld [vmem:[#allocation11 + $0x2b0] sm:$0xff]
        %v1813 = vld [vmem:[#allocation11 + $0x2b8] sm:$0xff]
        %v1814 = vld [vmem:[#allocation11 + $0x2c0] sm:$0xff]
        %v1815 = vld [vmem:[#allocation11 + $0x2c8] sm:$0xff]
        %v1816 = vld [vmem:[#allocation11 + $0x2d0] sm:$0xff]
        %v1817 = vld [vmem:[#allocation11 + $0x2d8] sm:$0xff]
        %v1818 = vld [vmem:[#allocation11 + $0x2e0] sm:$0xff]
        %v1819 = vld [vmem:[#allocation11 + $0x2e8] sm:$0xff]
        %v1820 = vld [vmem:[#allocation11 + $0x2f0] sm:$0xff]
        %v1821 = vld [vmem:[#allocation11 + $0x2f8] sm:$0xff]
        %v1822 = vld [vmem:[#allocation11 + $0x300] sm:$0xff]
        %v1823 = vld [vmem:[#allocation11 + $0x308] sm:$0xff]
        %v1824 = vld [vmem:[#allocation11 + $0x310] sm:$0xff]
        %v1825 = vld [vmem:[#allocation11 + $0x318] sm:$0xff]
        %v1826 = vld [vmem:[#allocation11 + $0x320] sm:$0xff]
        %v1827 = vld [vmem:[#allocation11 + $0x328] sm:$0xff]
        %v1828 = vld [vmem:[#allocation11 + $0x330] sm:$0xff]
        %v1829 = vld [vmem:[#allocation11 + $0x338] sm:$0xff]
        %v1830 = vld [vmem:[#allocation11 + $0x340] sm:$0xff]
        %v1831 = vld [vmem:[#allocation11 + $0x348] sm:$0xff]
        %v1832 = vld [vmem:[#allocation11 + $0x350] sm:$0xff]
        %v1833 = vld [vmem:[#allocation11 + $0x358] sm:$0xff]
        %v1834 = vld [vmem:[#allocation11 + $0x360] sm:$0xff]
        %v1835 = vld [vmem:[#allocation11 + $0x368] sm:$0xff]
        %v1836 = vld [vmem:[#allocation11 + $0x370] sm:$0xff]
        %v1837 = vld [vmem:[#allocation11 + $0x378] sm:$0xff]
        %v1838 = vld [vmem:[#allocation11 + $0x380] sm:$0xff]
        %v1839 = vld [vmem:[#allocation11 + $0x388] sm:$0xff]
        %v1840 = vld [vmem:[#allocation11 + $0x390] sm:$0xff]
        %v1841 = vld [vmem:[#allocation11 + $0x398] sm:$0xff]
        %v1842 = vld [vmem:[#allocation11 + $0x3a0] sm:$0xff]
        %v1843 = vld [vmem:[#allocation11 + $0x3a8] sm:$0xff]
        %v1844 = vld [vmem:[#allocation11 + $0x3b0] sm:$0xff]
        %v1845 = vld [vmem:[#allocation11 + $0x3b8] sm:$0xff]
        %v1846 = vld [vmem:[#allocation11 + $0x3c0] sm:$0xff]
        %v1847 = vld [vmem:[#allocation11 + $0x3c8] sm:$0xff]
        %v1848 = vld [vmem:[#allocation11 + $0x3d0] sm:$0xff]
        %v1849 = vld [vmem:[#allocation11 + $0x3d8] sm:$0xff]
        %v1850 = vld [vmem:[#allocation11 + $0x3e0] sm:$0xff]
        %v1851 = vld [vmem:[#allocation11 + $0x3e8] sm:$0xff]
        %v1852 = vld [vmem:[#allocation11 + $0x3f0] sm:$0xff]
        %v1853 = vld [vmem:[#allocation11 + $0x3f8] sm:$0xff]
        %v1854 = vld [vmem:[#allocation11 + $0x400] sm:$0xff]
        %v1855 = vld [vmem:[#allocation11 + $0x408] sm:$0xff]
        %v1856 = vld [vmem:[#allocation11 + $0x410] sm:$0xff]
        %v1857 = vld [vmem:[#allocation11 + $0x418] sm:$0xff]
        %v1858 = vld [vmem:[#allocation11 + $0x420] sm:$0xff]
        %v1859 = vld [vmem:[#allocation11 + $0x428] sm:$0xff]
        %v1860 = vld [vmem:[#allocation11 + $0x430] sm:$0xff]
        %v1861 = vld [vmem:[#allocation11 + $0x438] sm:$0xff]
        %v1862 = vld [vmem:[#allocation11 + $0x440] sm:$0xff]
        %v1863 = vld [vmem:[#allocation11 + $0x448] sm:$0xff]
        %v1864 = vld [vmem:[#allocation11 + $0x450] sm:$0xff]
        %v1865 = vld [vmem:[#allocation11 + $0x458] sm:$0xff]
        %v1866 = vld [vmem:[#allocation11 + $0x460] sm:$0xff]
        %v1867 = vld [vmem:[#allocation11 + $0x468] sm:$0xff]
        %v1868 = vld [vmem:[#allocation11 + $0x470] sm:$0xff]
        %v1869 = vld [vmem:[#allocation11 + $0x478] sm:$0xff]
        %v1870 = vld [vmem:[#allocation11 + $0x480] sm:$0xff]
        %v1871 = vld [vmem:[#allocation11 + $0x488] sm:$0xff]
        %v1872 = vld [vmem:[#allocation11 + $0x490] sm:$0xff]
        %v1873 = vld [vmem:[#allocation11 + $0x498] sm:$0xff]
        %v1874 = vld [vmem:[#allocation11 + $0x4a0] sm:$0xff]
        %v1875 = vld [vmem:[#allocation11 + $0x4a8] sm:$0xff]
        %v1876 = vld [vmem:[#allocation11 + $0x4b0] sm:$0xff]
        %v1877 = vld [vmem:[#allocation11 + $0x4b8] sm:$0xff]
        %v1878 = vld [vmem:[#allocation11 + $0x4c0] sm:$0xff]
        %v1879 = vld [vmem:[#allocation11 + $0x4c8] sm:$0xff]
        %v1880 = vld [vmem:[#allocation11 + $0x4d0] sm:$0xff]
        %v1881 = vld [vmem:[#allocation11 + $0x4d8] sm:$0xff]
        %v1882 = vld [vmem:[#allocation11 + $0x4e0] sm:$0xff]
        %v1883 = vld [vmem:[#allocation11 + $0x4e8] sm:$0xff]
        %v1884 = vld [vmem:[#allocation11 + $0x4f0] sm:$0xff]
        %v1885 = vld [vmem:[#allocation11 + $0x4f8] sm:$0xff]
        %v1886 = vld [vmem:[#allocation11 + $0x500] sm:$0xff]
        %v1887 = vld [vmem:[#allocation11 + $0x508] sm:$0xff]
        %v1888 = vld [vmem:[#allocation11 + $0x510] sm:$0xff]
        %v1889 = vld [vmem:[#allocation11 + $0x518] sm:$0xff]
        %v1890 = vld [vmem:[#allocation11 + $0x520] sm:$0xff]
        %v1891 = vld [vmem:[#allocation11 + $0x528] sm:$0xff]
        %v1892 = vld [vmem:[#allocation11 + $0x530] sm:$0xff]
        %v1893 = vld [vmem:[#allocation11 + $0x538] sm:$0xff]
        %v1894 = vld [vmem:[#allocation11 + $0x540] sm:$0xff]
        %v1895 = vld [vmem:[#allocation11 + $0x548] sm:$0xff]
        %v1896 = vld [vmem:[#allocation11 + $0x550] sm:$0xff]
        %v1897 = vld [vmem:[#allocation11 + $0x558] sm:$0xff]
        %v1898 = vld [vmem:[#allocation11 + $0x560] sm:$0xff]
        %v1899 = vld [vmem:[#allocation11 + $0x568] sm:$0xff]
        %v1900 = vld [vmem:[#allocation11 + $0x570] sm:$0xff]
        %v1901 = vld [vmem:[#allocation11 + $0x578] sm:$0xff]
        %v1902 = vld [vmem:[#allocation11 + $0x580] sm:$0xff]
        %v1903 = vld [vmem:[#allocation11 + $0x588] sm:$0xff]
        %v1904 = vld [vmem:[#allocation11 + $0x590] sm:$0xff]
        %v1905 = vld [vmem:[#allocation11 + $0x598] sm:$0xff]
        %v1906 = vld [vmem:[#allocation11 + $0x5a0] sm:$0xff]
        %v1907 = vld [vmem:[#allocation11 + $0x5a8] sm:$0xff]
        %v1908 = vld [vmem:[#allocation11 + $0x5b0] sm:$0xff]
        %v1909 = vld [vmem:[#allocation11 + $0x5b8] sm:$0xff]
        %v1910 = vld [vmem:[#allocation11 + $0x5c0] sm:$0xff]
        %v1911 = vld [vmem:[#allocation11 + $0x5c8] sm:$0xff]
        %v1912 = vld [vmem:[#allocation11 + $0x5d0] sm:$0xff]
        %v1913 = vld [vmem:[#allocation11 + $0x5d8] sm:$0xff]
        %v1914 = vld [vmem:[#allocation11 + $0x5e0] sm:$0xff]
        %v1915 = vld [vmem:[#allocation11 + $0x5e8] sm:$0xff]
        %v1916 = vld [vmem:[#allocation11 + $0x5f0] sm:$0xff]
        %v1917 = vld [vmem:[#allocation11 + $0x5f8] sm:$0xff]
        %v1918 = vld [vmem:[#allocation11 + $0x600] sm:$0xff]
        %v1919 = vld [vmem:[#allocation11 + $0x608] sm:$0xff]
        %v1920 = vld [vmem:[#allocation11 + $0x610] sm:$0xff]
        %v1921 = vld [vmem:[#allocation11 + $0x618] sm:$0xff]
        %v1922 = vld [vmem:[#allocation11 + $0x620] sm:$0xff]
        %v1923 = vld [vmem:[#allocation11 + $0x628] sm:$0xff]
        %v1924 = vld [vmem:[#allocation11 + $0x630] sm:$0xff]
        %v1925 = vld [vmem:[#allocation11 + $0x638] sm:$0xff]
        %v1926 = vld [vmem:[#allocation11 + $0x640] sm:$0xff]
        %v1927 = vld [vmem:[#allocation11 + $0x648] sm:$0xff]
        %v1928 = vld [vmem:[#allocation11 + $0x650] sm:$0xff]
        %v1929 = vld [vmem:[#allocation11 + $0x658] sm:$0xff]
        %v1930 = vld [vmem:[#allocation11 + $0x660] sm:$0xff]
        %v1931 = vld [vmem:[#allocation11 + $0x668] sm:$0xff]
        %v1932 = vld [vmem:[#allocation11 + $0x670] sm:$0xff]
        %v1933 = vld [vmem:[#allocation11 + $0x678] sm:$0xff]
        %v1934 = vld [vmem:[#allocation11 + $0x680] sm:$0xff]
        %v1935 = vld [vmem:[#allocation11 + $0x688] sm:$0xff]
        %v1936 = vld [vmem:[#allocation11 + $0x690] sm:$0xff]
        %v1937 = vld [vmem:[#allocation11 + $0x698] sm:$0xff]
        %v1938 = vld [vmem:[#allocation11 + $0x6a0] sm:$0xff]
        %v1939 = vld [vmem:[#allocation11 + $0x6a8] sm:$0xff]
        %v1940 = vld [vmem:[#allocation11 + $0x6b0] sm:$0xff]
        %v1941 = vld [vmem:[#allocation11 + $0x6b8] sm:$0xff]
        %v1942 = vld [vmem:[#allocation11 + $0x6c0] sm:$0xff]
        %v1943 = vld [vmem:[#allocation11 + $0x6c8] sm:$0xff]
        %v1944 = vld [vmem:[#allocation11 + $0x6d0] sm:$0xff]
        %v1945 = vld [vmem:[#allocation11 + $0x6d8] sm:$0xff]
        %v1946 = vld [vmem:[#allocation11 + $0x6e0] sm:$0xff]
        %v1947 = vld [vmem:[#allocation11 + $0x6e8] sm:$0xff]
        %v1948 = vld [vmem:[#allocation11 + $0x6f0] sm:$0xff]
        %v1949 = vld [vmem:[#allocation11 + $0x6f8] sm:$0xff]
        %v1950 = vld [vmem:[#allocation11 + $0x700] sm:$0xff]
        %v1951 = vld [vmem:[#allocation11 + $0x708] sm:$0xff]
        %v1952 = vld [vmem:[#allocation11 + $0x710] sm:$0xff]
        %v1953 = vld [vmem:[#allocation11 + $0x718] sm:$0xff]
        %v1954 = vld [vmem:[#allocation11 + $0x720] sm:$0xff]
        %v1955 = vld [vmem:[#allocation11 + $0x728] sm:$0xff]
        %v1956 = vld [vmem:[#allocation11 + $0x730] sm:$0xff]
        %v1957 = vld [vmem:[#allocation11 + $0x738] sm:$0xff]
        %v1958 = vld [vmem:[#allocation11 + $0x740] sm:$0xff]
        %v1959 = vld [vmem:[#allocation11 + $0x748] sm:$0xff]
        %v1960 = vld [vmem:[#allocation11 + $0x750] sm:$0xff]
        %v1961 = vld [vmem:[#allocation11 + $0x758] sm:$0xff]
        %v1962 = vld [vmem:[#allocation11 + $0x760] sm:$0xff]
        %v1963 = vld [vmem:[#allocation11 + $0x768] sm:$0xff]
        %v1964 = vld [vmem:[#allocation11 + $0x770] sm:$0xff]
        %v1965 = vld [vmem:[#allocation11 + $0x778] sm:$0xff]
        %v1966 = vld [vmem:[#allocation11 + $0x780] sm:$0xff]
        %v1967 = vld [vmem:[#allocation11 + $0x788] sm:$0xff]
        %v1968 = vld [vmem:[#allocation11 + $0x790] sm:$0xff]
        %v1969 = vld [vmem:[#allocation11 + $0x798] sm:$0xff]
        %v1970 = vld [vmem:[#allocation11 + $0x7a0] sm:$0xff]
        %v1971 = vld [vmem:[#allocation11 + $0x7a8] sm:$0xff]
        %v1972 = vld [vmem:[#allocation11 + $0x7b0] sm:$0xff]
        %v1973 = vld [vmem:[#allocation11 + $0x7b8] sm:$0xff]
        %v1974 = vld [vmem:[#allocation11 + $0x7c0] sm:$0xff]
        %v1975 = vld [vmem:[#allocation11 + $0x7c8] sm:$0xff]
        %v1976 = vld [vmem:[#allocation11 + $0x7d0] sm:$0xff]
        %v1977 = vld [vmem:[#allocation11 + $0x7d8] sm:$0xff]
        %v1978 = vld [vmem:[#allocation11 + $0x7e0] sm:$0xff]
        %v1979 = vld [vmem:[#allocation11 + $0x7e8] sm:$0xff]
        %v1980 = vld [vmem:[#allocation11 + $0x7f0] sm:$0xff]
        %v1981 = vld [vmem:[#allocation11 + $0x7f8] sm:$0xff]
        %v1982 = vld [vmem:[#allocation11 + $0x800] sm:$0xff]
        %v1983 = vld [vmem:[#allocation11 + $0x808] sm:$0xff]
        %v1984 = vld [vmem:[#allocation11 + $0x810] sm:$0xff]
        %v1985 = vld [vmem:[#allocation11 + $0x818] sm:$0xff]
        %v1986 = vld [vmem:[#allocation11 + $0x820] sm:$0xff]
        %v1987 = vld [vmem:[#allocation11 + $0x828] sm:$0xff]
        %v1988 = vld [vmem:[#allocation11 + $0x830] sm:$0xff]
        %v1989 = vld [vmem:[#allocation11 + $0x838] sm:$0xff]
        %v1990 = vld [vmem:[#allocation11 + $0x840] sm:$0xff]
        %v1991 = vld [vmem:[#allocation11 + $0x848] sm:$0xff]
        %v1992 = vld [vmem:[#allocation11 + $0x850] sm:$0xff]
        %v1993 = vld [vmem:[#allocation11 + $0x858] sm:$0xff]
        %v1994 = vld [vmem:[#allocation11 + $0x860] sm:$0xff]
        %v1995 = vld [vmem:[#allocation11 + $0x868] sm:$0xff]
        %v1996 = vld [vmem:[#allocation11 + $0x870] sm:$0xff]
        %v1997 = vld [vmem:[#allocation11 + $0x878] sm:$0xff]
        %v1998 = vld [vmem:[#allocation11 + $0x880] sm:$0xff]
        %v1999 = vld [vmem:[#allocation11 + $0x888] sm:$0xff]
        %v2000 = vld [vmem:[#allocation11 + $0x890] sm:$0xff]
        %v2001 = vld [vmem:[#allocation11 + $0x898] sm:$0xff]
        %v2002 = vld [vmem:[#allocation11 + $0x8a0] sm:$0xff]
        %v2003 = vld [vmem:[#allocation11 + $0x8a8] sm:$0xff]
        %v2004 = vld [vmem:[#allocation11 + $0x8b0] sm:$0xff]
        %v2005 = vld [vmem:[#allocation11 + $0x8b8] sm:$0xff]
        %v2006 = vld [vmem:[#allocation11 + $0x8c0] sm:$0xff]
        %v2007 = vld [vmem:[#allocation11 + $0x8c8] sm:$0xff]
        %v2008 = vld [vmem:[#allocation11 + $0x8d0] sm:$0xff]
        %v2009 = vld [vmem:[#allocation11 + $0x8d8] sm:$0xff]
        %v2010 = vld [vmem:[#allocation11 + $0x8e0] sm:$0xff]
        %v2011 = vld [vmem:[#allocation11 + $0x8e8] sm:$0xff]
        %v2012 = vld [vmem:[#allocation11 + $0x8f0] sm:$0xff]
        %v2013 = vld [vmem:[#allocation11 + $0x8f8] sm:$0xff]
        %v2014 = vld [vmem:[#allocation11 + $0x900] sm:$0xff]
        %v2015 = vld [vmem:[#allocation11 + $0x908] sm:$0xff]
        %v2016 = vld [vmem:[#allocation11 + $0x910] sm:$0xff]
        %v2017 = vld [vmem:[#allocation11 + $0x918] sm:$0xff]
        %v2018 = vld [vmem:[#allocation11 + $0x920] sm:$0xff]
        %v2019 = vld [vmem:[#allocation11 + $0x928] sm:$0xff]
        %v2020 = vld [vmem:[#allocation11 + $0x930] sm:$0xff]
        %v2021 = vld [vmem:[#allocation11 + $0x938] sm:$0xff]
        %v2022 = vld [vmem:[#allocation11 + $0x940] sm:$0xff]
        %v2023 = vld [vmem:[#allocation11 + $0x948] sm:$0xff]
        %v2024 = vld [vmem:[#allocation11 + $0x950] sm:$0xff]
        %v2025 = vld [vmem:[#allocation11 + $0x958] sm:$0xff]
        %v2026 = vld [vmem:[#allocation11 + $0x960] sm:$0xff]
        %v2027 = vld [vmem:[#allocation11 + $0x968] sm:$0xff]
        %v2028 = vld [vmem:[#allocation11 + $0x970] sm:$0xff]
        %v2029 = vld [vmem:[#allocation11 + $0x978] sm:$0xff]
        %v2030 = vld [vmem:[#allocation11 + $0x980] sm:$0xff]
        %v2031 = vld [vmem:[#allocation11 + $0x988] sm:$0xff]
        %v2032 = vld [vmem:[#allocation11 + $0x990] sm:$0xff]
        %v2033 = vld [vmem:[#allocation11 + $0x998] sm:$0xff]
        %v2034 = vld [vmem:[#allocation11 + $0x9a0] sm:$0xff]
        %v2035 = vld [vmem:[#allocation11 + $0x9a8] sm:$0xff]
        %v2036 = vld [vmem:[#allocation11 + $0x9b0] sm:$0xff]
        %v2037 = vld [vmem:[#allocation11 + $0x9b8] sm:$0xff]
        %v2038 = vld [vmem:[#allocation11 + $0x9c0] sm:$0xff]
        %v2039 = vld [vmem:[#allocation11 + $0x9c8] sm:$0xff]
        %v2040 = vld [vmem:[#allocation11 + $0x9d0] sm:$0xff]
        %v2041 = vld [vmem:[#allocation11 + $0x9d8] sm:$0xff]
        %v2042 = vld [vmem:[#allocation11 + $0x9e0] sm:$0xff]
        %v2043 = vld [vmem:[#allocation11 + $0x9e8] sm:$0xff]
        %v2044 = vld [vmem:[#allocation11 + $0x9f0] sm:$0xff]
        %v2045 = vld [vmem:[#allocation11 + $0x9f8] sm:$0xff]
        %v2046 = vld [vmem:[#allocation11 + $0xa00] sm:$0xff]
        %v2047 = vld [vmem:[#allocation11 + $0xa08] sm:$0xff]
        %v2048 = vld [vmem:[#allocation11 + $0xa10] sm:$0xff]
        %v2049 = vld [vmem:[#allocation11 + $0xa18] sm:$0xff]
        %v2050 = vld [vmem:[#allocation11 + $0xa20] sm:$0xff]
        %v2051 = vld [vmem:[#allocation11 + $0xa28] sm:$0xff]
        %v2052 = vld [vmem:[#allocation11 + $0xa30] sm:$0xff]
        %v2053 = vld [vmem:[#allocation11 + $0xa38] sm:$0xff]
        %v2054 = vld [vmem:[#allocation11 + $0xa40] sm:$0xff]
        %v2055 = vld [vmem:[#allocation11 + $0xa48] sm:$0xff]
        %v2056 = vld [vmem:[#allocation11 + $0xa50] sm:$0xff]
        %v2057 = vld [vmem:[#allocation11 + $0xa58] sm:$0xff]
        %v2058 = vld [vmem:[#allocation11 + $0xa60] sm:$0xff]
        %v2059 = vld [vmem:[#allocation11 + $0xa68] sm:$0xff]
        %v2060 = vld [vmem:[#allocation11 + $0xa70] sm:$0xff]
        %v2061 = vld [vmem:[#allocation11 + $0xa78] sm:$0xff]
        %v2062 = vld [vmem:[#allocation11 + $0xa80] sm:$0xff]
        %v2063 = vld [vmem:[#allocation11 + $0xa88] sm:$0xff]
        %v2064 = vld [vmem:[#allocation11 + $0xa90] sm:$0xff]
        %v2065 = vld [vmem:[#allocation11 + $0xa98] sm:$0xff]
        %v2066 = vld [vmem:[#allocation11 + $0xaa0] sm:$0xff]
        %v2067 = vld [vmem:[#allocation11 + $0xaa8] sm:$0xff]
        %v2068 = vld [vmem:[#allocation11 + $0xab0] sm:$0xff]
        %v2069 = vld [vmem:[#allocation11 + $0xab8] sm:$0xff]
        %v2070 = vld [vmem:[#allocation11 + $0xac0] sm:$0xff]
        %v2071 = vld [vmem:[#allocation11 + $0xac8] sm:$0xff]
        %v2072 = vld [vmem:[#allocation11 + $0xad0] sm:$0xff]
        %v2073 = vld [vmem:[#allocation11 + $0xad8] sm:$0xff]
        %v2074 = vld [vmem:[#allocation11 + $0xae0] sm:$0xff]
        %v2075 = vld [vmem:[#allocation11 + $0xae8] sm:$0xff]
        %v2076 = vld [vmem:[#allocation11 + $0xaf0] sm:$0xff]
        %v2077 = vld [vmem:[#allocation11 + $0xaf8] sm:$0xff]
        %v2078 = vld [vmem:[#allocation11 + $0xb00] sm:$0xff]
        %v2079 = vld [vmem:[#allocation11 + $0xb08] sm:$0xff]
        %v2080 = vld [vmem:[#allocation11 + $0xb10] sm:$0xff]
        %v2081 = vld [vmem:[#allocation11 + $0xb18] sm:$0xff]
        %v2082 = vld [vmem:[#allocation11 + $0xb20] sm:$0xff]
        %v2083 = vld [vmem:[#allocation11 + $0xb28] sm:$0xff]
        %v2084 = vld [vmem:[#allocation11 + $0xb30] sm:$0xff]
        %v2085 = vld [vmem:[#allocation11 + $0xb38] sm:$0xff]
        %v2086 = vld [vmem:[#allocation11 + $0xb40] sm:$0xff]
        %v2087 = vld [vmem:[#allocation11 + $0xb48] sm:$0xff]
        %v2088 = vld [vmem:[#allocation11 + $0xb50] sm:$0xff]
        %v2089 = vld [vmem:[#allocation11 + $0xb58] sm:$0xff]
        %v2090 = vld [vmem:[#allocation11 + $0xb60] sm:$0xff]
        %v2091 = vld [vmem:[#allocation11 + $0xb68] sm:$0xff]
        %v2092 = vld [vmem:[#allocation11 + $0xb70] sm:$0xff]
        %v2093 = vld [vmem:[#allocation11 + $0xb78] sm:$0xff]
        %v2094 = vld [vmem:[#allocation11 + $0xb80] sm:$0xff]
        %v2095 = vld [vmem:[#allocation11 + $0xb88] sm:$0xff]
        %v2096 = vld [vmem:[#allocation11 + $0xb90] sm:$0xff]
        %v2097 = vld [vmem:[#allocation11 + $0xb98] sm:$0xff]
        %v2098 = vld [vmem:[#allocation11 + $0xba0] sm:$0xff]
        %v2099 = vld [vmem:[#allocation11 + $0xba8] sm:$0xff]
        %v2100 = vld [vmem:[#allocation11 + $0xbb0] sm:$0xff]
        %v2101 = vld [vmem:[#allocation11 + $0xbb8] sm:$0xff]
        %v2102 = vld [vmem:[#allocation11 + $0xbc0] sm:$0xff]
        %v2103 = vld [vmem:[#allocation11 + $0xbc8] sm:$0xff]
        %v2104 = vld [vmem:[#allocation11 + $0xbd0] sm:$0xff]
        %v2105 = vld [vmem:[#allocation11 + $0xbd8] sm:$0xff]
        %v2106 = vld [vmem:[#allocation11 + $0xbe0] sm:$0xff]
        %v2107 = vld [vmem:[#allocation11 + $0xbe8] sm:$0xff]
        %v2108 = vld [vmem:[#allocation11 + $0xbf0] sm:$0xff]
        %v2109 = vld [vmem:[#allocation11 + $0xbf8] sm:$0xff]
        %v2110 = vld [vmem:[#allocation11 + $0xc00] sm:$0xff]
        %v2111 = vld [vmem:[#allocation11 + $0xc08] sm:$0xff]
        %v2112 = vld [vmem:[#allocation11 + $0xc10] sm:$0xff]
        %v2113 = vld [vmem:[#allocation11 + $0xc18] sm:$0xff]
        %v2114 = vld [vmem:[#allocation11 + $0xc20] sm:$0xff]
        %v2115 = vld [vmem:[#allocation11 + $0xc28] sm:$0xff]
        %v2116 = vld [vmem:[#allocation11 + $0xc30] sm:$0xff]
        %v2117 = vld [vmem:[#allocation11 + $0xc38] sm:$0xff]
        %v2118 = vld [vmem:[#allocation11 + $0xc40] sm:$0xff]
        %v2119 = vld [vmem:[#allocation11 + $0xc48] sm:$0xff]
        %v2120 = vld [vmem:[#allocation11 + $0xc50] sm:$0xff]
        %v2121 = vld [vmem:[#allocation11 + $0xc58] sm:$0xff]
        %v2122 = vld [vmem:[#allocation11 + $0xc60] sm:$0xff]
        %v2123 = vld [vmem:[#allocation11 + $0xc68] sm:$0xff]
        %v2124 = vld [vmem:[#allocation11 + $0xc70] sm:$0xff]
        %v2125 = vld [vmem:[#allocation11 + $0xc78] sm:$0xff]
        %v2126 = vld [vmem:[#allocation11 + $0xc80] sm:$0xff]
        %v2127 = vld [vmem:[#allocation11 + $0xc88] sm:$0xff]
        %v2128 = vld [vmem:[#allocation11 + $0xc90] sm:$0xff]
        %v2129 = vld [vmem:[#allocation11 + $0xc98] sm:$0xff]
        %v2130 = vld [vmem:[#allocation11 + $0xca0] sm:$0xff]
        %v2131 = vld [vmem:[#allocation11 + $0xca8] sm:$0xff]
        %v2132 = vld [vmem:[#allocation11 + $0xcb0] sm:$0xff]
        %v2133 = vld [vmem:[#allocation11 + $0xcb8] sm:$0xff]
        %v2134 = vld [vmem:[#allocation11 + $0xcc0] sm:$0xff]
        %v2135 = vld [vmem:[#allocation11 + $0xcc8] sm:$0xff]
        %v2136 = vld [vmem:[#allocation11 + $0xcd0] sm:$0xff]
        %v2137 = vld [vmem:[#allocation11 + $0xcd8] sm:$0xff]
        %v2138 = vld [vmem:[#allocation11 + $0xce0] sm:$0xff]
        %v2139 = vld [vmem:[#allocation11 + $0xce8] sm:$0xff]
        %v2140 = vld [vmem:[#allocation11 + $0xcf0] sm:$0xff]
        %v2141 = vld [vmem:[#allocation11 + $0xcf8] sm:$0xff]
        %v2142 = vld [vmem:[#allocation11 + $0xd00] sm:$0xff]
        %v2143 = vld [vmem:[#allocation11 + $0xd08] sm:$0xff]
        %v2144 = vld [vmem:[#allocation11 + $0xd10] sm:$0xff]
        %v2145 = vld [vmem:[#allocation11 + $0xd18] sm:$0xff]
        %v2146 = vld [vmem:[#allocation11 + $0xd20] sm:$0xff]
        %v2147 = vld [vmem:[#allocation11 + $0xd28] sm:$0xff]
        %v2148 = vld [vmem:[#allocation11 + $0xd30] sm:$0xff]
        %v2149 = vld [vmem:[#allocation11 + $0xd38] sm:$0xff]
        %v2150 = vld [vmem:[#allocation11 + $0xd40] sm:$0xff]
        %v2151 = vld [vmem:[#allocation11 + $0xd48] sm:$0xff]
        %v2152 = vld [vmem:[#allocation11 + $0xd50] sm:$0xff]
        %v2153 = vld [vmem:[#allocation11 + $0xd58] sm:$0xff]
        %v2154 = vld [vmem:[#allocation11 + $0xd60] sm:$0xff]
        %v2155 = vld [vmem:[#allocation11 + $0xd68] sm:$0xff]
        %v2156 = vld [vmem:[#allocation11 + $0xd70] sm:$0xff]
        %v2157 = vld [vmem:[#allocation11 + $0xd78] sm:$0xff]
        %v2158 = vld [vmem:[#allocation11 + $0xd80] sm:$0xff]
        %v2159 = vld [vmem:[#allocation11 + $0xd88] sm:$0xff]
        %v2160 = vld [vmem:[#allocation11 + $0xd90] sm:$0xff]
        %v2161 = vld [vmem:[#allocation11 + $0xd98] sm:$0xff]
        %v2162 = vld [vmem:[#allocation11 + $0xda0] sm:$0xff]
        %v2163 = vld [vmem:[#allocation11 + $0xda8] sm:$0xff]
        %v2164 = vld [vmem:[#allocation11 + $0xdb0] sm:$0xff]
        %v2165 = vld [vmem:[#allocation11 + $0xdb8] sm:$0xff]
        %v2166 = vld [vmem:[#allocation11 + $0xdc0] sm:$0xff]
        %v2167 = vld [vmem:[#allocation11 + $0xdc8] sm:$0xff]
        %v2168 = vld [vmem:[#allocation11 + $0xdd0] sm:$0xff]
        %v2169 = vld [vmem:[#allocation11 + $0xdd8] sm:$0xff]
        %v2170 = vld [vmem:[#allocation11 + $0xde0] sm:$0xff]
        %v2171 = vld [vmem:[#allocation11 + $0xde8] sm:$0xff]
        %v2172 = vld [vmem:[#allocation11 + $0xdf0] sm:$0xff]
        %v2173 = vld [vmem:[#allocation11 + $0xdf8] sm:$0xff]
        %v2174 = vld [vmem:[#allocation11 + $0xe00] sm:$0xff]
        %v2175 = vld [vmem:[#allocation11 + $0xe08] sm:$0xff]
        %v2176 = vld [vmem:[#allocation11 + $0xe10] sm:$0xff]
        %v2177 = vld [vmem:[#allocation11 + $0xe18] sm:$0xff]
        %v2178 = vld [vmem:[#allocation11 + $0xe20] sm:$0xff]
        %v2179 = vld [vmem:[#allocation11 + $0xe28] sm:$0xff]
        %v2180 = vld [vmem:[#allocation11 + $0xe30] sm:$0xff]
        %v2181 = vld [vmem:[#allocation11 + $0xe38] sm:$0xff]
        %v2182 = vld [vmem:[#allocation11 + $0xe40] sm:$0xff]
        %v2183 = vld [vmem:[#allocation11 + $0xe48] sm:$0xff]
        %v2184 = vld [vmem:[#allocation11 + $0xe50] sm:$0xff]
        %v2185 = vld [vmem:[#allocation11 + $0xe58] sm:$0xff]
        %v2186 = vld [vmem:[#allocation11 + $0xe60] sm:$0xff]
        %v2187 = vld [vmem:[#allocation11 + $0xe68] sm:$0xff]
        %v2188 = vld [vmem:[#allocation11 + $0xe70] sm:$0xff]
        %v2189 = vld [vmem:[#allocation11 + $0xe78] sm:$0xff]
        %v2190 = vld [vmem:[#allocation11 + $0xe80] sm:$0xff]
        %v2191 = vld [vmem:[#allocation11 + $0xe88] sm:$0xff]
        %v2192 = vld [vmem:[#allocation11 + $0xe90] sm:$0xff]
        %v2193 = vld [vmem:[#allocation11 + $0xe98] sm:$0xff]
        %v2194 = vld [vmem:[#allocation11 + $0xea0] sm:$0xff]
        %v2195 = vld [vmem:[#allocation11 + $0xea8] sm:$0xff]
        %v2196 = vld [vmem:[#allocation11 + $0xeb0] sm:$0xff]
        %v2197 = vld [vmem:[#allocation11 + $0xeb8] sm:$0xff]
        %v2198 = vld [vmem:[#allocation11 + $0xec0] sm:$0xff]
        %v2199 = vld [vmem:[#allocation11 + $0xec8] sm:$0xff]
        %v2200 = vld [vmem:[#allocation11 + $0xed0] sm:$0xff]
        %v2201 = vld [vmem:[#allocation11 + $0xed8] sm:$0xff]
        %v2202 = vld [vmem:[#allocation11 + $0xee0] sm:$0xff]
        %v2203 = vld [vmem:[#allocation11 + $0xee8] sm:$0xff]
        %v2204 = vld [vmem:[#allocation11 + $0xef0] sm:$0xff]
        %v2205 = vld [vmem:[#allocation11 + $0xef8] sm:$0xff]
        %v2206 = vld [vmem:[#allocation11 + $0xf00] sm:$0xff]
        %v2207 = vld [vmem:[#allocation11 + $0xf08] sm:$0xff]
        %v2208 = vld [vmem:[#allocation11 + $0xf10] sm:$0xff]
        %v2209 = vld [vmem:[#allocation11 + $0xf18] sm:$0xff]
        %v2210 = vld [vmem:[#allocation11 + $0xf20] sm:$0xff]
        %v2211 = vld [vmem:[#allocation11 + $0xf28] sm:$0xff]
        %v2212 = vld [vmem:[#allocation11 + $0xf30] sm:$0xff]
        %v2213 = vld [vmem:[#allocation11 + $0xf38] sm:$0xff]
        %v2214 = vld [vmem:[#allocation11 + $0xf40] sm:$0xff]
        %v2215 = vld [vmem:[#allocation11 + $0xf48] sm:$0xff]
        %v2216 = vld [vmem:[#allocation11 + $0xf50] sm:$0xff]
        %v2217 = vld [vmem:[#allocation11 + $0xf58] sm:$0xff]
        %v2218 = vld [vmem:[#allocation11 + $0xf60] sm:$0xff]
        %v2219 = vld [vmem:[#allocation11 + $0xf68] sm:$0xff]
        %v2220 = vld [vmem:[#allocation11 + $0xf70] sm:$0xff]
        %v2221 = vld [vmem:[#allocation11 + $0xf78] sm:$0xff]
        %v2222 = vld [vmem:[#allocation11 + $0xf80] sm:$0xff]
        %v2223 = vld [vmem:[#allocation11 + $0xf88] sm:$0xff]
        %v2224 = vld [vmem:[#allocation11 + $0xf90] sm:$0xff]
        %v2225 = vld [vmem:[#allocation11 + $0xf98] sm:$0xff]
        %v2226 = vld [vmem:[#allocation11 + $0xfa0] sm:$0xff]
        %v2227 = vld [vmem:[#allocation11 + $0xfa8] sm:$0xff]
        %v2228 = vld [vmem:[#allocation11 + $0xfb0] sm:$0xff]
        %v2229 = vld [vmem:[#allocation11 + $0xfb8] sm:$0xff]
        %v2230 = vld [vmem:[#allocation11 + $0xfc0] sm:$0xff]
        %v2231 = vld [vmem:[#allocation11 + $0xfc8] sm:$0xff]
        %v2232 = vld [vmem:[#allocation11 + $0xfd0] sm:$0xff]
        %v2233 = vld [vmem:[#allocation11 + $0xfd8] sm:$0xff]
        %v2234 = vld [vmem:[#allocation11 + $0xfe0] sm:$0xff]
        %v2235 = vld [vmem:[#allocation11 + $0xfe8] sm:$0xff]
        %v2236 = vld [vmem:[#allocation11 + $0xff0] sm:$0xff]
        %v2237 = vld [vmem:[#allocation11 + $0xff8] sm:$0xff]
        %v2238 = vld [vmem:[#allocation13] sm:$0xf]
        %v2240 = vlaneseq
        %v2241 = vshrl.u32 %v2240, 7
        %v2242 = vsub.s32 0, %v2241
        %v2243 = vrot.slane %v2238, %v2242
        %v2244 = vlaneseq
        %v2245 = vshrl.u32 %v2244, 7
        %v2246 = vsub.s32 1, %v2245
        %v2247 = vrot.slane %v2238, %v2246
        %v2248 = vlaneseq
        %v2249 = vshrl.u32 %v2248, 7
        %v2250 = vsub.s32 2, %v2249
        %v2251 = vrot.slane %v2238, %v2250
        %v2252 = vlaneseq
        %v2253 = vshrl.u32 %v2252, 7
        %v2254 = vsub.s32 3, %v2253
        %v2255 = vrot.slane %v2238, %v2254
        %2260 = vmatprep.subr.mxu0 %v1727
        %2261 = vmatpush1.msra.mxu0 %v1726
        %2262 = vmatprep.subr.mxu0 %v1731
        %2263 = vmatpush1.msra.mxu0 %v1730
        %2264 = vmatprep.subr.mxu0 %v1735
        %2265 = vmatpush1.msra.mxu0 %v1734
        %2266 = vmatprep.subr.mxu0 %v1739
        %2267 = vmatpush1.msra.mxu0 %v1738
        %2268 = vmatprep.subr.mxu0 %v1743
        %2269 = vmatpush1.msra.mxu0 %v1742
        %2270 = vmatprep.subr.mxu0 %v1747
        %2271 = vmatpush1.msra.mxu0 %v1746
        %2272 = vmatprep.subr.mxu0 %v1751
        %2273 = vmatpush1.msra.mxu0 %v1750
        %2274 = vmatprep.subr.mxu0 %v1755
        %2275 = vmatpush1.msra.mxu0 %v1754
        %2276 = vmatprep.subr.mxu0 %v1759
        %2277 = vmatpush1.msra.mxu0 %v1758
        %2278 = vmatprep.subr.mxu0 %v1763
        %2279 = vmatpush1.msra.mxu0 %v1762
        %2280 = vmatprep.subr.mxu0 %v1767
        %2281 = vmatpush1.msra.mxu0 %v1766
        %2282 = vmatprep.subr.mxu0 %v1771
        %2283 = vmatpush1.msra.mxu0 %v1770
        %2284 = vmatprep.subr.mxu0 %v1775
        %2285 = vmatpush1.msra.mxu0 %v1774
        %2286 = vmatprep.subr.mxu0 %v1779
        %2287 = vmatpush1.msra.mxu0 %v1778
        %2288 = vmatprep.subr.mxu0 %v1783
        %2289 = vmatpush1.msra.mxu0 %v1782
        %2290 = vmatprep.subr.mxu0 %v1787
        %2291 = vmatpush1.msra.mxu0 %v1786
        %2292 = vmatprep.subr.mxu0 %v1791
        %2293 = vmatpush1.msra.mxu0 %v1790
        %2294 = vmatprep.subr.mxu0 %v1795
        %2295 = vmatpush1.msra.mxu0 %v1794
        %2296 = vmatprep.subr.mxu0 %v1799
        %2297 = vmatpush1.msra.mxu0 %v1798
        %2298 = vmatprep.subr.mxu0 %v1803
        %2299 = vmatpush1.msra.mxu0 %v1802
        %2300 = vmatprep.subr.mxu0 %v1807
        %2301 = vmatpush1.msra.mxu0 %v1806
        %2302 = vmatprep.subr.mxu0 %v1811
        %2303 = vmatpush1.msra.mxu0 %v1810
        %2304 = vmatprep.subr.mxu0 %v1815
        %2305 = vmatpush1.msra.mxu0 %v1814
        %2306 = vmatprep.subr.mxu0 %v1819
        %2307 = vmatpush1.msra.mxu0 %v1818
        %2308 = vmatprep.subr.mxu0 %v1823
        %2309 = vmatpush1.msra.mxu0 %v1822
        %2310 = vmatprep.subr.mxu0 %v1827
        %2311 = vmatpush1.msra.mxu0 %v1826
        %2312 = vmatprep.subr.mxu0 %v1831
        %2313 = vmatpush1.msra.mxu0 %v1830
        %2314 = vmatprep.subr.mxu0 %v1835
        %2315 = vmatpush1.msra.mxu0 %v1834
        %2316 = vmatprep.subr.mxu0 %v1839
        %2317 = vmatpush1.msra.mxu0 %v1838
        %2318 = vmatprep.subr.mxu0 %v1843
        %2319 = vmatpush1.msra.mxu0 %v1842
        %2320 = vmatprep.subr.mxu0 %v1847
        %2321 = vmatpush1.msra.mxu0 %v1846
        %2322 = vmatprep.subr.mxu0 %v1851
        %2323 = vmatpush1.msra.mxu0 %v1850
        %2324 = vmatprep.mubr.f32.mxu0 %v1695
        %2325 = vmatmul.mubr.f32.gmra.mrb[0].mxu0 %v1694
        %v2326 = vpop.f32.mrb[0].mxu0
        %v2327 = vadd.f32 %v2243, %v2326
        %v2328 = vpop.f32.mrb[0].mxu0
        %v2329 = vadd.f32 %v2247, %v2328
        %2330 = vmatprep.mubr.f32.mxu0 %v1703
        %2331 = vmatmul.mubr.f32.gmra.mrb[0].mxu0 %v1702
        %v2332 = vpop.f32.mrb[0].mxu0
        %v2333 = vadd.f32 %v2243, %v2332
        %v2334 = vpop.f32.mrb[0].mxu0
        %v2335 = vadd.f32 %v2247, %v2334
        %2336 = vmatprep.mubr.f32.mxu0 %v1711
        %2337 = vmatmul.mubr.f32.gmra.mrb[0].mxu0 %v1710
        %v2338 = vpop.f32.mrb[0].mxu0
        %v2339 = vadd.f32 %v2243, %v2338
        %v2340 = vpop.f32.mrb[0].mxu0
        %v2341 = vadd.f32 %v2247, %v2340
        %2342 = vmatprep.mubr.f32.mxu0 %v1719
        %2343 = vmatmul.mubr.f32.gmra.mrb[0].mxu0 %v1718
        %v2344 = vpop.f32.mrb[0].mxu0
        %v2345 = vadd.f32 %v2243, %v2344
        %v2346 = vpop.f32.mrb[0].mxu0
        %v2347 = vadd.f32 %v2247, %v2346
        %2348 = vdwg.mxu0
        %2349 = vmatprep.subr.mxu0 %v1855
        %2350 = vmatpush1.msra.mxu0 %v1854
        %2351 = vmatprep.subr.mxu0 %v1859
        %2352 = vmatpush1.msra.mxu0 %v1858
        %2353 = vmatprep.subr.mxu0 %v1863
        %2354 = vmatpush1.msra.mxu0 %v1862
        %2355 = vmatprep.subr.mxu0 %v1867
        %2356 = vmatpush1.msra.mxu0 %v1866
        %2357 = vmatprep.subr.mxu0 %v1871
        %2358 = vmatpush1.msra.mxu0 %v1870
        %2359 = vmatprep.subr.mxu0 %v1875
        %2360 = vmatpush1.msra.mxu0 %v1874
        %2361 = vmatprep.subr.mxu0 %v1879
        %2362 = vmatpush1.msra.mxu0 %v1878
        %2363 = vmatprep.subr.mxu0 %v1883
        %2364 = vmatpush1.msra.mxu0 %v1882
        %2365 = vmatprep.subr.mxu0 %v1887
        %2366 = vmatpush1.msra.mxu0 %v1886
        %2367 = vmatprep.subr.mxu0 %v1891
        %2368 = vmatpush1.msra.mxu0 %v1890
        %2369 = vmatprep.subr.mxu0 %v1895
        %2370 = vmatpush1.msra.mxu0 %v1894
        %2371 = vmatprep.subr.mxu0 %v1899
        %2372 = vmatpush1.msra.mxu0 %v1898
        %2373 = vmatprep.subr.mxu0 %v1903
        %2374 = vmatpush1.msra.mxu0 %v1902
        %2375 = vmatprep.subr.mxu0 %v1907
        %2376 = vmatpush1.msra.mxu0 %v1906
        %2377 = vmatprep.subr.mxu0 %v1911
        %2378 = vmatpush1.msra.mxu0 %v1910
        %2379 = vmatprep.subr.mxu0 %v1915
        %2380 = vmatpush1.msra.mxu0 %v1914
        %2381 = vmatprep.subr.mxu0 %v1919
        %2382 = vmatpush1.msra.mxu0 %v1918
        %2383 = vmatprep.subr.mxu0 %v1923
        %2384 = vmatpush1.msra.mxu0 %v1922
        %2385 = vmatprep.subr.mxu0 %v1927
        %2386 = vmatpush1.msra.mxu0 %v1926
        %2387 = vmatprep.subr.mxu0 %v1931
        %2388 = vmatpush1.msra.mxu0 %v1930
        %2389 = vmatprep.subr.mxu0 %v1935
        %2390 = vmatpush1.msra.mxu0 %v1934
        %2391 = vmatprep.subr.mxu0 %v1939
        %2392 = vmatpush1.msra.mxu0 %v1938
        %2393 = vmatprep.subr.mxu0 %v1943
        %2394 = vmatpush1.msra.mxu0 %v1942
        %2395 = vmatprep.subr.mxu0 %v1947
        %2396 = vmatpush1.msra.mxu0 %v1946
        %2397 = vmatprep.subr.mxu0 %v1951
        %2398 = vmatpush1.msra.mxu0 %v1950
        %2399 = vmatprep.subr.mxu0 %v1955
        %2400 = vmatpush1.msra.mxu0 %v1954
        %2401 = vmatprep.subr.mxu0 %v1959
        %2402 = vmatpush1.msra.mxu0 %v1958
        %2403 = vmatprep.subr.mxu0 %v1963
        %2404 = vmatpush1.msra.mxu0 %v1962
        %2405 = vmatprep.subr.mxu0 %v1967
        %2406 = vmatpush1.msra.mxu0 %v1966
        %2407 = vmatprep.subr.mxu0 %v1971
        %2408 = vmatpush1.msra.mxu0 %v1970
        %2409 = vmatprep.subr.mxu0 %v1975
        %2410 = vmatpush1.msra.mxu0 %v1974
        %2411 = vmatprep.subr.mxu0 %v1979
        %2412 = vmatpush1.msra.mxu0 %v1978
        %2413 = vmatprep.mubr.f32.mxu0 %v1697
        %2414 = vmatmul.mubr.f32.gmra.mrb[0].mxu0 %v1696
        %v2415 = vpop.f32.mrb[0].mxu0
        %v2416 = vadd.f32 %v2327, %v2415
        %v2417 = vpop.f32.mrb[0].mxu0
        %v2418 = vadd.f32 %v2329, %v2417
        %2419 = vmatprep.mubr.f32.mxu0 %v1705
        %2420 = vmatmul.mubr.f32.gmra.mrb[0].mxu0 %v1704
        %v2421 = vpop.f32.mrb[0].mxu0
        %v2422 = vadd.f32 %v2333, %v2421
        %v2423 = vpop.f32.mrb[0].mxu0
        %v2424 = vadd.f32 %v2335, %v2423
        %2425 = vmatprep.mubr.f32.mxu0 %v1713
        %2426 = vmatmul.mubr.f32.gmra.mrb[0].mxu0 %v1712
        %v2427 = vpop.f32.mrb[0].mxu0
        %v2428 = vadd.f32 %v2339, %v2427
        %v2429 = vpop.f32.mrb[0].mxu0
        %v2430 = vadd.f32 %v2341, %v2429
        %2431 = vmatprep.mubr.f32.mxu0 %v1721
        %2432 = vmatmul.mubr.f32.gmra.mrb[0].mxu0 %v1720
        %v2433 = vpop.f32.mrb[0].mxu0
        %v2434 = vadd.f32 %v2345, %v2433
        %v2435 = vpop.f32.mrb[0].mxu0
        %v2436 = vadd.f32 %v2347, %v2435
        %2437 = vdwg.mxu0
        %2438 = vmatprep.subr.mxu0 %v1983
        %2439 = vmatpush1.msra.mxu0 %v1982
        %2440 = vmatprep.subr.mxu0 %v1987
        %2441 = vmatpush1.msra.mxu0 %v1986
        %2442 = vmatprep.subr.mxu0 %v1991
        %2443 = vmatpush1.msra.mxu0 %v1990
        %2444 = vmatprep.subr.mxu0 %v1995
        %2445 = vmatpush1.msra.mxu0 %v1994
        %2446 = vmatprep.subr.mxu0 %v1999
        %2447 = vmatpush1.msra.mxu0 %v1998
        %2448 = vmatprep.subr.mxu0 %v2003
        %2449 = vmatpush1.msra.mxu0 %v2002
        %2450 = vmatprep.subr.mxu0 %v2007
        %2451 = vmatpush1.msra.mxu0 %v2006
        %2452 = vmatprep.subr.mxu0 %v2011
        %2453 = vmatpush1.msra.mxu0 %v2010
        %2454 = vmatprep.subr.mxu0 %v2015
        %2455 = vmatpush1.msra.mxu0 %v2014
        %2456 = vmatprep.subr.mxu0 %v2019
        %2457 = vmatpush1.msra.mxu0 %v2018
        %2458 = vmatprep.subr.mxu0 %v2023
        %2459 = vmatpush1.msra.mxu0 %v2022
        %2460 = vmatprep.subr.mxu0 %v2027
        %2461 = vmatpush1.msra.mxu0 %v2026
        %2462 = vmatprep.subr.mxu0 %v2031
        %2463 = vmatpush1.msra.mxu0 %v2030
        %2464 = vmatprep.subr.mxu0 %v2035
        %2465 = vmatpush1.msra.mxu0 %v2034
        %2466 = vmatprep.subr.mxu0 %v2039
        %2467 = vmatpush1.msra.mxu0 %v2038
        %2468 = vmatprep.subr.mxu0 %v2043
        %2469 = vmatpush1.msra.mxu0 %v2042
        %2470 = vmatprep.subr.mxu0 %v2047
        %2471 = vmatpush1.msra.mxu0 %v2046
        %2472 = vmatprep.subr.mxu0 %v2051
        %2473 = vmatpush1.msra.mxu0 %v2050
        %2474 = vmatprep.subr.mxu0 %v2055
        %2475 = vmatpush1.msra.mxu0 %v2054
        %2476 = vmatprep.subr.mxu0 %v2059
        %2477 = vmatpush1.msra.mxu0 %v2058
        %2478 = vmatprep.subr.mxu0 %v2063
        %2479 = vmatpush1.msra.mxu0 %v2062
        %2480 = vmatprep.subr.mxu0 %v2067
        %2481 = vmatpush1.msra.mxu0 %v2066
        %2482 = vmatprep.subr.mxu0 %v2071
        %2483 = vmatpush1.msra.mxu0 %v2070
        %2484 = vmatprep.subr.mxu0 %v2075
        %2485 = vmatpush1.msra.mxu0 %v2074
        %2486 = vmatprep.subr.mxu0 %v2079
        %2487 = vmatpush1.msra.mxu0 %v2078
        %2488 = vmatprep.subr.mxu0 %v2083
        %2489 = vmatpush1.msra.mxu0 %v2082
        %2490 = vmatprep.subr.mxu0 %v2087
        %2491 = vmatpush1.msra.mxu0 %v2086
        %2492 = vmatprep.subr.mxu0 %v2091
        %2493 = vmatpush1.msra.mxu0 %v2090
        %2494 = vmatprep.subr.mxu0 %v2095
        %2495 = vmatpush1.msra.mxu0 %v2094
        %2496 = vmatprep.subr.mxu0 %v2099
        %2497 = vmatpush1.msra.mxu0 %v2098
        %2498 = vmatprep.subr.mxu0 %v2103
        %2499 = vmatpush1.msra.mxu0 %v2102
        %2500 = vmatprep.subr.mxu0 %v2107
        %2501 = vmatpush1.msra.mxu0 %v2106
        %2502 = vmatprep.mubr.f32.mxu0 %v1699
        %2503 = vmatmul.mubr.f32.gmra.mrb[0].mxu0 %v1698
        %v2504 = vpop.f32.mrb[0].mxu0
        %v2505 = vadd.f32 %v2416, %v2504
        %v2506 = vpop.f32.mrb[0].mxu0
        %v2507 = vadd.f32 %v2418, %v2506
        %2508 = vmatprep.mubr.f32.mxu0 %v1707
        %2509 = vmatmul.mubr.f32.gmra.mrb[0].mxu0 %v1706
        %v2510 = vpop.f32.mrb[0].mxu0
        %v2511 = vadd.f32 %v2422, %v2510
        %v2512 = vpop.f32.mrb[0].mxu0
        %v2513 = vadd.f32 %v2424, %v2512
        %2514 = vmatprep.mubr.f32.mxu0 %v1715
        %2515 = vmatmul.mubr.f32.gmra.mrb[0].mxu0 %v1714
        %v2516 = vpop.f32.mrb[0].mxu0
        %v2517 = vadd.f32 %v2428, %v2516
        %v2518 = vpop.f32.mrb[0].mxu0
        %v2519 = vadd.f32 %v2430, %v2518
        %2520 = vmatprep.mubr.f32.mxu0 %v1723
        %2521 = vmatmul.mubr.f32.gmra.mrb[0].mxu0 %v1722
        %v2522 = vpop.f32.mrb[0].mxu0
        %v2523 = vadd.f32 %v2434, %v2522
        %v2524 = vpop.f32.mrb[0].mxu0
        %v2525 = vadd.f32 %v2436, %v2524
        %2526 = vdwg.mxu0
        %2527 = vmatprep.subr.mxu0 %v2111
        %2528 = vmatpush1.msra.mxu0 %v2110
        %2529 = vmatprep.subr.mxu0 %v2115
        %2530 = vmatpush1.msra.mxu0 %v2114
        %2531 = vmatprep.subr.mxu0 %v2119
        %2532 = vmatpush1.msra.mxu0 %v2118
        %2533 = vmatprep.subr.mxu0 %v2123
        %2534 = vmatpush1.msra.mxu0 %v2122
        %2535 = vmatprep.subr.mxu0 %v2127
        %2536 = vmatpush1.msra.mxu0 %v2126
        %2537 = vmatprep.subr.mxu0 %v2131
        %2538 = vmatpush1.msra.mxu0 %v2130
        %2539 = vmatprep.subr.mxu0 %v2135
        %2540 = vmatpush1.msra.mxu0 %v2134
        %2541 = vmatprep.subr.mxu0 %v2139
        %2542 = vmatpush1.msra.mxu0 %v2138
        %2543 = vmatprep.subr.mxu0 %v2143
        %2544 = vmatpush1.msra.mxu0 %v2142
        %2545 = vmatprep.subr.mxu0 %v2147
        %2546 = vmatpush1.msra.mxu0 %v2146
        %2547 = vmatprep.subr.mxu0 %v2151
        %2548 = vmatpush1.msra.mxu0 %v2150
        %2549 = vmatprep.subr.mxu0 %v2155
        %2550 = vmatpush1.msra.mxu0 %v2154
        %2551 = vmatprep.subr.mxu0 %v2159
        %2552 = vmatpush1.msra.mxu0 %v2158
        %2553 = vmatprep.subr.mxu0 %v2163
        %2554 = vmatpush1.msra.mxu0 %v2162
        %2555 = vmatprep.subr.mxu0 %v2167
        %2556 = vmatpush1.msra.mxu0 %v2166
        %2557 = vmatprep.subr.mxu0 %v2171
        %2558 = vmatpush1.msra.mxu0 %v2170
        %2559 = vmatprep.subr.mxu0 %v2175
        %2560 = vmatpush1.msra.mxu0 %v2174
        %2561 = vmatprep.subr.mxu0 %v2179
        %2562 = vmatpush1.msra.mxu0 %v2178
        %2563 = vmatprep.subr.mxu0 %v2183
        %2564 = vmatpush1.msra.mxu0 %v2182
        %2565 = vmatprep.subr.mxu0 %v2187
        %2566 = vmatpush1.msra.mxu0 %v2186
        %2567 = vmatprep.subr.mxu0 %v2191
        %2568 = vmatpush1.msra.mxu0 %v2190
        %2569 = vmatprep.subr.mxu0 %v2195
        %2570 = vmatpush1.msra.mxu0 %v2194
        %2571 = vmatprep.subr.mxu0 %v2199
        %2572 = vmatpush1.msra.mxu0 %v2198
        %2573 = vmatprep.subr.mxu0 %v2203
        %2574 = vmatpush1.msra.mxu0 %v2202
        %2575 = vmatprep.subr.mxu0 %v2207
        %2576 = vmatpush1.msra.mxu0 %v2206
        %2577 = vmatprep.subr.mxu0 %v2211
        %2578 = vmatpush1.msra.mxu0 %v2210
        %2579 = vmatprep.subr.mxu0 %v2215
        %2580 = vmatpush1.msra.mxu0 %v2214
        %2581 = vmatprep.subr.mxu0 %v2219
        %2582 = vmatpush1.msra.mxu0 %v2218
        %2583 = vmatprep.subr.mxu0 %v2223
        %2584 = vmatpush1.msra.mxu0 %v2222
        %2585 = vmatprep.subr.mxu0 %v2227
        %2586 = vmatpush1.msra.mxu0 %v2226
        %2587 = vmatprep.subr.mxu0 %v2231
        %2588 = vmatpush1.msra.mxu0 %v2230
        %2589 = vmatprep.subr.mxu0 %v2235
        %2590 = vmatpush1.msra.mxu0 %v2234
        %2591 = vmatprep.mubr.f32.mxu0 %v1701
        %2592 = vmatmul.mubr.f32.gmra.mrb[0].mxu0 %v1700
        %v2593 = vpop.f32.mrb[0].mxu0
        %v2594 = vadd.f32 %v2505, %v2593
        %v2595 = vpop.f32.mrb[0].mxu0
        %v2596 = vadd.f32 %v2507, %v2595
        %2597 = vmatprep.mubr.f32.mxu0 %v1709
        %2598 = vmatmul.mubr.f32.gmra.mrb[0].mxu0 %v1708
        %v2599 = vpop.f32.mrb[0].mxu0
        %v2600 = vadd.f32 %v2511, %v2599
        %v2601 = vpop.f32.mrb[0].mxu0
        %v2602 = vadd.f32 %v2513, %v2601
        %2603 = vmatprep.mubr.f32.mxu0 %v1717
        %2604 = vmatmul.mubr.f32.gmra.mrb[0].mxu0 %v1716
        %v2605 = vpop.f32.mrb[0].mxu0
        %v2606 = vadd.f32 %v2517, %v2605
        %v2607 = vpop.f32.mrb[0].mxu0
        %v2608 = vadd.f32 %v2519, %v2607
        %2609 = vmatprep.mubr.f32.mxu0 %v1725
        %2610 = vmatmul.mubr.f32.gmra.mrb[0].mxu0 %v1724
        %v2611 = vpop.f32.mrb[0].mxu0
        %v2612 = vadd.f32 %v2523, %v2611
        %v2613 = vpop.f32.mrb[0].mxu0
        %v2614 = vadd.f32 %v2525, %v2613
        %2615 = vdwg.mxu0
        %2616 = vmatprep.subr.mxu0 %v1729
        %2617 = vmatpush1.msra.mxu0 %v1728
        %2618 = vmatprep.subr.mxu0 %v1733
        %2619 = vmatpush1.msra.mxu0 %v1732
        %2620 = vmatprep.subr.mxu0 %v1737
        %2621 = vmatpush1.msra.mxu0 %v1736
        %2622 = vmatprep.subr.mxu0 %v1741
        %2623 = vmatpush1.msra.mxu0 %v1740
        %2624 = vmatprep.subr.mxu0 %v1745
        %2625 = vmatpush1.msra.mxu0 %v1744
        %2626 = vmatprep.subr.mxu0 %v1749
        %2627 = vmatpush1.msra.mxu0 %v1748
        %2628 = vmatprep.subr.mxu0 %v1753
        %2629 = vmatpush1.msra.mxu0 %v1752
        %2630 = vmatprep.subr.mxu0 %v1757
        %2631 = vmatpush1.msra.mxu0 %v1756
        %2632 = vmatprep.subr.mxu0 %v1761
        %2633 = vmatpush1.msra.mxu0 %v1760
        %2634 = vmatprep.subr.mxu0 %v1765
        %2635 = vmatpush1.msra.mxu0 %v1764
        %2636 = vmatprep.subr.mxu0 %v1769
        %2637 = vmatpush1.msra.mxu0 %v1768
        %2638 = vmatprep.subr.mxu0 %v1773
        %2639 = vmatpush1.msra.mxu0 %v1772
        %2640 = vmatprep.subr.mxu0 %v1777
        %2641 = vmatpush1.msra.mxu0 %v1776
        %2642 = vmatprep.subr.mxu0 %v1781
        %2643 = vmatpush1.msra.mxu0 %v1780
        %2644 = vmatprep.subr.mxu0 %v1785
        %2645 = vmatpush1.msra.mxu0 %v1784
        %2646 = vmatprep.subr.mxu0 %v1789
        %2647 = vmatpush1.msra.mxu0 %v1788
        %2648 = vmatprep.subr.mxu0 %v1793
        %2649 = vmatpush1.msra.mxu0 %v1792
        %2650 = vmatprep.subr.mxu0 %v1797
        %2651 = vmatpush1.msra.mxu0 %v1796
        %2652 = vmatprep.subr.mxu0 %v1801
        %2653 = vmatpush1.msra.mxu0 %v1800
        %2654 = vmatprep.subr.mxu0 %v1805
        %2655 = vmatpush1.msra.mxu0 %v1804
        %2656 = vmatprep.subr.mxu0 %v1809
        %2657 = vmatpush1.msra.mxu0 %v1808
        %2658 = vmatprep.subr.mxu0 %v1813
        %2659 = vmatpush1.msra.mxu0 %v1812
        %2660 = vmatprep.subr.mxu0 %v1817
        %2661 = vmatpush1.msra.mxu0 %v1816
        %2662 = vmatprep.subr.mxu0 %v1821
        %2663 = vmatpush1.msra.mxu0 %v1820
        %2664 = vmatprep.subr.mxu0 %v1825
        %2665 = vmatpush1.msra.mxu0 %v1824
        %2666 = vmatprep.subr.mxu0 %v1829
        %2667 = vmatpush1.msra.mxu0 %v1828
        %2668 = vmatprep.subr.mxu0 %v1833
        %2669 = vmatpush1.msra.mxu0 %v1832
        %2670 = vmatprep.subr.mxu0 %v1837
        %2671 = vmatpush1.msra.mxu0 %v1836
        %2672 = vmatprep.subr.mxu0 %v1841
        %2673 = vmatpush1.msra.mxu0 %v1840
        %2674 = vmatprep.subr.mxu0 %v1845
        %2675 = vmatpush1.msra.mxu0 %v1844
        %2676 = vmatprep.subr.mxu0 %v1849
        %2677 = vmatpush1.msra.mxu0 %v1848
        %2678 = vmatprep.subr.mxu0 %v1853
        %2679 = vmatpush1.msra.mxu0 %v1852
        %2680 = vmatprep.mubr.f32.mxu0 %v1695
        %2681 = vmatmul.mubr.f32.gmra.mrb[0].mxu0 %v1694
        %v2682 = vpop.f32.mrb[0].mxu0
        %v2683 = vadd.f32 %v2251, %v2682
        %v2684 = vpop.f32.mrb[0].mxu0
        %v2685 = vadd.f32 %v2255, %v2684
        %2686 = vmatprep.mubr.f32.mxu0 %v1703
        %2687 = vmatmul.mubr.f32.gmra.mrb[0].mxu0 %v1702
        %v2688 = vpop.f32.mrb[0].mxu0
        %v2689 = vadd.f32 %v2251, %v2688
        %v2690 = vpop.f32.mrb[0].mxu0
        %v2691 = vadd.f32 %v2255, %v2690
        %2692 = vmatprep.mubr.f32.mxu0 %v1711
        %2693 = vmatmul.mubr.f32.gmra.mrb[0].mxu0 %v1710
        %v2694 = vpop.f32.mrb[0].mxu0
        %v2695 = vadd.f32 %v2251, %v2694
        %v2696 = vpop.f32.mrb[0].mxu0
        %v2697 = vadd.f32 %v2255, %v2696
        %2698 = vmatprep.mubr.f32.mxu0 %v1719
        %2699 = vmatmul.mubr.f32.gmra.mrb[0].mxu0 %v1718
        %v2700 = vpop.f32.mrb[0].mxu0
        %v2701 = vadd.f32 %v2251, %v2700
        %v2702 = vpop.f32.mrb[0].mxu0
        %v2703 = vadd.f32 %v2255, %v2702
        %2704 = vdwg.mxu0
        %2705 = vmatprep.subr.mxu0 %v1857
        %2706 = vmatpush1.msra.mxu0 %v1856
        %2707 = vmatprep.subr.mxu0 %v1861
        %2708 = vmatpush1.msra.mxu0 %v1860
        %2709 = vmatprep.subr.mxu0 %v1865
        %2710 = vmatpush1.msra.mxu0 %v1864
        %2711 = vmatprep.subr.mxu0 %v1869
        %2712 = vmatpush1.msra.mxu0 %v1868
        %2713 = vmatprep.subr.mxu0 %v1873
        %2714 = vmatpush1.msra.mxu0 %v1872
        %2715 = vmatprep.subr.mxu0 %v1877
        %2716 = vmatpush1.msra.mxu0 %v1876
        %2717 = vmatprep.subr.mxu0 %v1881
        %2718 = vmatpush1.msra.mxu0 %v1880
        %2719 = vmatprep.subr.mxu0 %v1885
        %2720 = vmatpush1.msra.mxu0 %v1884
        %2721 = vmatprep.subr.mxu0 %v1889
        %2722 = vmatpush1.msra.mxu0 %v1888
        %2723 = vmatprep.subr.mxu0 %v1893
        %2724 = vmatpush1.msra.mxu0 %v1892
        %2725 = vmatprep.subr.mxu0 %v1897
        %2726 = vmatpush1.msra.mxu0 %v1896
        %2727 = vmatprep.subr.mxu0 %v1901
        %2728 = vmatpush1.msra.mxu0 %v1900
        %2729 = vmatprep.subr.mxu0 %v1905
        %2730 = vmatpush1.msra.mxu0 %v1904
        %2731 = vmatprep.subr.mxu0 %v1909
        %2732 = vmatpush1.msra.mxu0 %v1908
        %2733 = vmatprep.subr.mxu0 %v1913
        %2734 = vmatpush1.msra.mxu0 %v1912
        %2735 = vmatprep.subr.mxu0 %v1917
        %2736 = vmatpush1.msra.mxu0 %v1916
        %2737 = vmatprep.subr.mxu0 %v1921
        %2738 = vmatpush1.msra.mxu0 %v1920
        %2739 = vmatprep.subr.mxu0 %v1925
        %2740 = vmatpush1.msra.mxu0 %v1924
        %2741 = vmatprep.subr.mxu0 %v1929
        %2742 = vmatpush1.msra.mxu0 %v1928
        %2743 = vmatprep.subr.mxu0 %v1933
        %2744 = vmatpush1.msra.mxu0 %v1932
        %2745 = vmatprep.subr.mxu0 %v1937
        %2746 = vmatpush1.msra.mxu0 %v1936
        %2747 = vmatprep.subr.mxu0 %v1941
        %2748 = vmatpush1.msra.mxu0 %v1940
        %2749 = vmatprep.subr.mxu0 %v1945
        %2750 = vmatpush1.msra.mxu0 %v1944
        %2751 = vmatprep.subr.mxu0 %v1949
        %2752 = vmatpush1.msra.mxu0 %v1948
        %2753 = vmatprep.subr.mxu0 %v1953
        %2754 = vmatpush1.msra.mxu0 %v1952
        %2755 = vmatprep.subr.mxu0 %v1957
        %2756 = vmatpush1.msra.mxu0 %v1956
        %2757 = vmatprep.subr.mxu0 %v1961
        %2758 = vmatpush1.msra.mxu0 %v1960
        %2759 = vmatprep.subr.mxu0 %v1965
        %2760 = vmatpush1.msra.mxu0 %v1964
        %2761 = vmatprep.subr.mxu0 %v1969
        %2762 = vmatpush1.msra.mxu0 %v1968
        %2763 = vmatprep.subr.mxu0 %v1973
        %2764 = vmatpush1.msra.mxu0 %v1972
        %2765 = vmatprep.subr.mxu0 %v1977
        %2766 = vmatpush1.msra.mxu0 %v1976
        %2767 = vmatprep.subr.mxu0 %v1981
        %2768 = vmatpush1.msra.mxu0 %v1980
        %2769 = vmatprep.mubr.f32.mxu0 %v1697
        %2770 = vmatmul.mubr.f32.gmra.mrb[0].mxu0 %v1696
        %v2771 = vpop.f32.mrb[0].mxu0
        %v2772 = vadd.f32 %v2683, %v2771
        %v2773 = vpop.f32.mrb[0].mxu0
        %v2774 = vadd.f32 %v2685, %v2773
        %2775 = vmatprep.mubr.f32.mxu0 %v1705
        %2776 = vmatmul.mubr.f32.gmra.mrb[0].mxu0 %v1704
        %v2777 = vpop.f32.mrb[0].mxu0
        %v2778 = vadd.f32 %v2689, %v2777
        %v2779 = vpop.f32.mrb[0].mxu0
        %v2780 = vadd.f32 %v2691, %v2779
        %2781 = vmatprep.mubr.f32.mxu0 %v1713
        %2782 = vmatmul.mubr.f32.gmra.mrb[0].mxu0 %v1712
        %v2783 = vpop.f32.mrb[0].mxu0
        %v2784 = vadd.f32 %v2695, %v2783
        %v2785 = vpop.f32.mrb[0].mxu0
        %v2786 = vadd.f32 %v2697, %v2785
        %2787 = vmatprep.mubr.f32.mxu0 %v1721
        %2788 = vmatmul.mubr.f32.gmra.mrb[0].mxu0 %v1720
        %v2789 = vpop.f32.mrb[0].mxu0
        %v2790 = vadd.f32 %v2701, %v2789
        %v2791 = vpop.f32.mrb[0].mxu0
        %v2792 = vadd.f32 %v2703, %v2791
        %2793 = vdwg.mxu0
        %2794 = vmatprep.subr.mxu0 %v1985
        %2795 = vmatpush1.msra.mxu0 %v1984
        %2796 = vmatprep.subr.mxu0 %v1989
        %2797 = vmatpush1.msra.mxu0 %v1988
        %2798 = vmatprep.subr.mxu0 %v1993
        %2799 = vmatpush1.msra.mxu0 %v1992
        %2800 = vmatprep.subr.mxu0 %v1997
        %2801 = vmatpush1.msra.mxu0 %v1996
        %2802 = vmatprep.subr.mxu0 %v2001
        %2803 = vmatpush1.msra.mxu0 %v2000
        %2804 = vmatprep.subr.mxu0 %v2005
        %2805 = vmatpush1.msra.mxu0 %v2004
        %2806 = vmatprep.subr.mxu0 %v2009
        %2807 = vmatpush1.msra.mxu0 %v2008
        %2808 = vmatprep.subr.mxu0 %v2013
        %2809 = vmatpush1.msra.mxu0 %v2012
        %2810 = vmatprep.subr.mxu0 %v2017
        %2811 = vmatpush1.msra.mxu0 %v2016
        %2812 = vmatprep.subr.mxu0 %v2021
        %2813 = vmatpush1.msra.mxu0 %v2020
        %2814 = vmatprep.subr.mxu0 %v2025
        %2815 = vmatpush1.msra.mxu0 %v2024
        %2816 = vmatprep.subr.mxu0 %v2029
        %2817 = vmatpush1.msra.mxu0 %v2028
        %2818 = vmatprep.subr.mxu0 %v2033
        %2819 = vmatpush1.msra.mxu0 %v2032
        %2820 = vmatprep.subr.mxu0 %v2037
        %2821 = vmatpush1.msra.mxu0 %v2036
        %2822 = vmatprep.subr.mxu0 %v2041
        %2823 = vmatpush1.msra.mxu0 %v2040
        %2824 = vmatprep.subr.mxu0 %v2045
        %2825 = vmatpush1.msra.mxu0 %v2044
        %2826 = vmatprep.subr.mxu0 %v2049
        %2827 = vmatpush1.msra.mxu0 %v2048
        %2828 = vmatprep.subr.mxu0 %v2053
        %2829 = vmatpush1.msra.mxu0 %v2052
        %2830 = vmatprep.subr.mxu0 %v2057
        %2831 = vmatpush1.msra.mxu0 %v2056
        %2832 = vmatprep.subr.mxu0 %v2061
        %2833 = vmatpush1.msra.mxu0 %v2060
        %2834 = vmatprep.subr.mxu0 %v2065
        %2835 = vmatpush1.msra.mxu0 %v2064
        %2836 = vmatprep.subr.mxu0 %v2069
        %2837 = vmatpush1.msra.mxu0 %v2068
        %2838 = vmatprep.subr.mxu0 %v2073
        %2839 = vmatpush1.msra.mxu0 %v2072
        %2840 = vmatprep.subr.mxu0 %v2077
        %2841 = vmatpush1.msra.mxu0 %v2076
        %2842 = vmatprep.subr.mxu0 %v2081
        %2843 = vmatpush1.msra.mxu0 %v2080
        %2844 = vmatprep.subr.mxu0 %v2085
        %2845 = vmatpush1.msra.mxu0 %v2084
        %2846 = vmatprep.subr.mxu0 %v2089
        %2847 = vmatpush1.msra.mxu0 %v2088
        %2848 = vmatprep.subr.mxu0 %v2093
        %2849 = vmatpush1.msra.mxu0 %v2092
        %2850 = vmatprep.subr.mxu0 %v2097
        %2851 = vmatpush1.msra.mxu0 %v2096
        %2852 = vmatprep.subr.mxu0 %v2101
        %2853 = vmatpush1.msra.mxu0 %v2100
        %2854 = vmatprep.subr.mxu0 %v2105
        %2855 = vmatpush1.msra.mxu0 %v2104
        %2856 = vmatprep.subr.mxu0 %v2109
        %2857 = vmatpush1.msra.mxu0 %v2108
        %2858 = vmatprep.mubr.f32.mxu0 %v1699
        %2859 = vmatmul.mubr.f32.gmra.mrb[0].mxu0 %v1698
        %v2860 = vpop.f32.mrb[0].mxu0
        %v2861 = vadd.f32 %v2772, %v2860
        %v2862 = vpop.f32.mrb[0].mxu0
        %v2863 = vadd.f32 %v2774, %v2862
        %2864 = vmatprep.mubr.f32.mxu0 %v1707
        %2865 = vmatmul.mubr.f32.gmra.mrb[0].mxu0 %v1706
        %v2866 = vpop.f32.mrb[0].mxu0
        %v2867 = vadd.f32 %v2778, %v2866
        %v2868 = vpop.f32.mrb[0].mxu0
        %v2869 = vadd.f32 %v2780, %v2868
        %2870 = vmatprep.mubr.f32.mxu0 %v1715
        %2871 = vmatmul.mubr.f32.gmra.mrb[0].mxu0 %v1714
        %v2872 = vpop.f32.mrb[0].mxu0
        %v2873 = vadd.f32 %v2784, %v2872
        %v2874 = vpop.f32.mrb[0].mxu0
        %v2875 = vadd.f32 %v2786, %v2874
        %2876 = vmatprep.mubr.f32.mxu0 %v1723
        %2877 = vmatmul.mubr.f32.gmra.mrb[0].mxu0 %v1722
        %v2878 = vpop.f32.mrb[0].mxu0
        %v2879 = vadd.f32 %v2790, %v2878
        %v2880 = vpop.f32.mrb[0].mxu0
        %v2881 = vadd.f32 %v2792, %v2880
        %2882 = vdwg.mxu0
        %2883 = vmatprep.subr.mxu0 %v2113
        %2884 = vmatpush1.msra.mxu0 %v2112
        %2885 = vmatprep.subr.mxu0 %v2117
        %2886 = vmatpush1.msra.mxu0 %v2116
        %2887 = vmatprep.subr.mxu0 %v2121
        %2888 = vmatpush1.msra.mxu0 %v2120
        %2889 = vmatprep.subr.mxu0 %v2125
        %2890 = vmatpush1.msra.mxu0 %v2124
        %2891 = vmatprep.subr.mxu0 %v2129
        %2892 = vmatpush1.msra.mxu0 %v2128
        %2893 = vmatprep.subr.mxu0 %v2133
        %2894 = vmatpush1.msra.mxu0 %v2132
        %2895 = vmatprep.subr.mxu0 %v2137
        %2896 = vmatpush1.msra.mxu0 %v2136
        %2897 = vmatprep.subr.mxu0 %v2141
        %2898 = vmatpush1.msra.mxu0 %v2140
        %2899 = vmatprep.subr.mxu0 %v2145
        %2900 = vmatpush1.msra.mxu0 %v2144
        %2901 = vmatprep.subr.mxu0 %v2149
        %2902 = vmatpush1.msra.mxu0 %v2148
        %2903 = vmatprep.subr.mxu0 %v2153
        %2904 = vmatpush1.msra.mxu0 %v2152
        %2905 = vmatprep.subr.mxu0 %v2157
        %2906 = vmatpush1.msra.mxu0 %v2156
        %2907 = vmatprep.subr.mxu0 %v2161
        %2908 = vmatpush1.msra.mxu0 %v2160
        %2909 = vmatprep.subr.mxu0 %v2165
        %2910 = vmatpush1.msra.mxu0 %v2164
        %2911 = vmatprep.subr.mxu0 %v2169
        %2912 = vmatpush1.msra.mxu0 %v2168
        %2913 = vmatprep.subr.mxu0 %v2173
        %2914 = vmatpush1.msra.mxu0 %v2172
        %2915 = vmatprep.subr.mxu0 %v2177
        %2916 = vmatpush1.msra.mxu0 %v2176
        %2917 = vmatprep.subr.mxu0 %v2181
        %2918 = vmatpush1.msra.mxu0 %v2180
        %2919 = vmatprep.subr.mxu0 %v2185
        %2920 = vmatpush1.msra.mxu0 %v2184
        %2921 = vmatprep.subr.mxu0 %v2189
        %2922 = vmatpush1.msra.mxu0 %v2188
        %2923 = vmatprep.subr.mxu0 %v2193
        %2924 = vmatpush1.msra.mxu0 %v2192
        %2925 = vmatprep.subr.mxu0 %v2197
        %2926 = vmatpush1.msra.mxu0 %v2196
        %2927 = vmatprep.subr.mxu0 %v2201
        %2928 = vmatpush1.msra.mxu0 %v2200
        %2929 = vmatprep.subr.mxu0 %v2205
        %2930 = vmatpush1.msra.mxu0 %v2204
        %2931 = vmatprep.subr.mxu0 %v2209
        %2932 = vmatpush1.msra.mxu0 %v2208
        %2933 = vmatprep.subr.mxu0 %v2213
        %2934 = vmatpush1.msra.mxu0 %v2212
        %2935 = vmatprep.subr.mxu0 %v2217
        %2936 = vmatpush1.msra.mxu0 %v2216
        %2937 = vmatprep.subr.mxu0 %v2221
        %2938 = vmatpush1.msra.mxu0 %v2220
        %2939 = vmatprep.subr.mxu0 %v2225
        %2940 = vmatpush1.msra.mxu0 %v2224
        %2941 = vmatprep.subr.mxu0 %v2229
        %2942 = vmatpush1.msra.mxu0 %v2228
        %2943 = vmatprep.subr.mxu0 %v2233
        %2944 = vmatpush1.msra.mxu0 %v2232
        %2945 = vmatprep.subr.mxu0 %v2237
        %2946 = vmatpush1.msra.mxu0 %v2236
        %2947 = vmatprep.mubr.f32.mxu0 %v1701
        %2948 = vmatmul.mubr.f32.gmra.mrb[0].mxu0 %v1700
        %v2949 = vpop.f32.mrb[0].mxu0
        %v2950 = vadd.f32 %v2861, %v2949
        %v2951 = vpop.f32.mrb[0].mxu0
        %v2952 = vadd.f32 %v2863, %v2951
        %2953 = vmatprep.mubr.f32.mxu0 %v1709
        %2954 = vmatmul.mubr.f32.gmra.mrb[0].mxu0 %v1708
        %v2955 = vpop.f32.mrb[0].mxu0
        %v2956 = vadd.f32 %v2867, %v2955
        %v2957 = vpop.f32.mrb[0].mxu0
        %v2958 = vadd.f32 %v2869, %v2957
        %2959 = vmatprep.mubr.f32.mxu0 %v1717
        %2960 = vmatmul.mubr.f32.gmra.mrb[0].mxu0 %v1716
        %v2961 = vpop.f32.mrb[0].mxu0
        %v2962 = vadd.f32 %v2873, %v2961
        %v2963 = vpop.f32.mrb[0].mxu0
        %v2964 = vadd.f32 %v2875, %v2963
        %2965 = vmatprep.mubr.f32.mxu0 %v1725
        %2966 = vmatmul.mubr.f32.gmra.mrb[0].mxu0 %v1724
        %v2967 = vpop.f32.mrb[0].mxu0
        %v2968 = vadd.f32 %v2879, %v2967
        %v2969 = vpop.f32.mrb[0].mxu0
        %v2970 = vadd.f32 %v2881, %v2969
        %2971 = vdwg.mxu0
        %v2972 = vld [vmem:[#allocation14] sm:$0xf]
        %v2973 = vld [vmem:[#allocation16] sm:$0xf]
        %v2974 = vadd.f32 %v2594, %v2596
        %v2975 = vadd.f32 %v2974, %v2950
        %v2976 = vadd.f32 %v2975, %v2952
        %2977 = vadd.xlane.f32.xlu0 %v2976
        %v2978 = vpop.xlane.xlu0 %2977
        %v2979 = vadd.f32 %v2600, %v2602
        %v2980 = vadd.f32 %v2979, %v2956
        %v2981 = vadd.f32 %v2980, %v2958
        %2982 = vadd.xlane.f32.xlu0 %v2981
        %v2983 = vpop.xlane.xlu0 %2982
        %v2984 = vadd.f32 %v2606, %v2608
        %v2985 = vadd.f32 %v2984, %v2962
        %v2986 = vadd.f32 %v2985, %v2964
        %2987 = vadd.xlane.f32.xlu0 %v2986
        %v2988 = vpop.xlane.xlu0 %2987
        %v2989 = vadd.f32 %v2612, %v2614
        %v2990 = vadd.f32 %v2989, %v2968
        %v2991 = vadd.f32 %v2990, %v2970
        %2992 = vadd.xlane.f32.xlu0 %v2991
        %v2993 = vpop.xlane.xlu0 %2992
        %v2994 = vrcp.pop 512.0
        %v2995 = vmul.f32 %v2978, %v2994
        %v2996 = vmul.f32 %v2983, %v2994
        %v2997 = vmul.f32 %v2988, %v2994
        %v2998 = vmul.f32 %v2993, %v2994
        %v2999 = vsub.f32 %v2594, %v2995
        %v3000 = vsub.f32 %v2596, %v2995
        %v3001 = vsub.f32 %v2950, %v2995
        %v3002 = vsub.f32 %v2952, %v2995
        %v3003 = vsub.f32 %v2600, %v2996
        %v3004 = vsub.f32 %v2602, %v2996
        %v3005 = vsub.f32 %v2956, %v2996
        %v3006 = vsub.f32 %v2958, %v2996
        %v3007 = vsub.f32 %v2606, %v2997
        %v3008 = vsub.f32 %v2608, %v2997
        %v3009 = vsub.f32 %v2962, %v2997
        %v3010 = vsub.f32 %v2964, %v2997
        %v3011 = vsub.f32 %v2612, %v2998
        %v3012 = vsub.f32 %v2614, %v2998
        %v3013 = vsub.f32 %v2968, %v2998
        %v3014 = vsub.f32 %v2970, %v2998
        %v3015 = vmul.f32 %v2999, %v2999
        %v3016 = vmul.f32 %v3000, %v3000
        %v3017 = vmul.f32 %v3001, %v3001
        %v3018 = vmul.f32 %v3002, %v3002
        %v3019 = vmul.f32 %v3003, %v3003
        %v3020 = vmul.f32 %v3004, %v3004
        %v3021 = vmul.f32 %v3005, %v3005
        %v3022 = vmul.f32 %v3006, %v3006
        %v3023 = vmul.f32 %v3007, %v3007
        %v3024 = vmul.f32 %v3008, %v3008
        %v3025 = vmul.f32 %v3009, %v3009
        %v3026 = vmul.f32 %v3010, %v3010
        %v3027 = vmul.f32 %v3011, %v3011
        %v3028 = vmul.f32 %v3012, %v3012
        %v3029 = vmul.f32 %v3013, %v3013
        %v3030 = vmul.f32 %v3014, %v3014
        %v3031 = vadd.f32 %v3015, %v3016
        %v3032 = vadd.f32 %v3031, %v3017
        %v3033 = vadd.f32 %v3032, %v3018
        %3034 = vadd.xlane.f32.xlu0 %v3033
        %v3035 = vpop.xlane.xlu0 %3034
        %v3036 = vadd.f32 %v3019, %v3020
        %v3037 = vadd.f32 %v3036, %v3021
        %v3038 = vadd.f32 %v3037, %v3022
        %3039 = vadd.xlane.f32.xlu0 %v3038
        %v3040 = vpop.xlane.xlu0 %3039
        %v3041 = vadd.f32 %v3023, %v3024
        %v3042 = vadd.f32 %v3041, %v3025
        %v3043 = vadd.f32 %v3042, %v3026
        %3044 = vadd.xlane.f32.xlu0 %v3043
        %v3045 = vpop.xlane.xlu0 %3044
        %v3046 = vadd.f32 %v3027, %v3028
        %v3047 = vadd.f32 %v3046, %v3029
        %v3048 = vadd.f32 %v3047, %v3030
        %3049 = vadd.xlane.f32.xlu0 %v3048
        %v3050 = vpop.xlane.xlu0 %3049
        %v3051 = vmul.f32 %v3035, %v2994
        %v3052 = vmul.f32 %v3040, %v2994
        %v3053 = vmul.f32 %v3045, %v2994
        %v3054 = vmul.f32 %v3050, %v2994
        %v3055 = vadd.f32 %v3051, 1e-05
        %v3056 = vadd.f32 %v3052, 1e-05
        %v3057 = vadd.f32 %v3053, 1e-05
        %v3058 = vadd.f32 %v3054, 1e-05
        %v3059 = vrsqrt.pop %v3055
        %v3060 = vrsqrt.pop %v3056
        %v3061 = vrsqrt.pop %v3057
        %v3062 = vrsqrt.pop %v3058
        %v3064 = vlaneseq
        %v3065 = vshrl.u32 %v3064, 7
        %v3066 = vsub.s32 0, %v3065
        %v3067 = vrot.slane %v2972, %v3066
        %v3068 = vlaneseq
        %v3069 = vshrl.u32 %v3068, 7
        %v3070 = vsub.s32 1, %v3069
        %v3071 = vrot.slane %v2972, %v3070
        %v3072 = vlaneseq
        %v3073 = vshrl.u32 %v3072, 7
        %v3074 = vsub.s32 2, %v3073
        %v3075 = vrot.slane %v2972, %v3074
        %v3076 = vlaneseq
        %v3077 = vshrl.u32 %v3076, 7
        %v3078 = vsub.s32 3, %v3077
        %v3079 = vrot.slane %v2972, %v3078
        %v3084 = vmul.f32 %v3067, %v3059
        %v3085 = vmul.f32 %v3071, %v3059
        %v3086 = vmul.f32 %v3075, %v3059
        %v3087 = vmul.f32 %v3079, %v3059
        %v3088 = vmul.f32 %v3067, %v3060
        %v3089 = vmul.f32 %v3071, %v3060
        %v3090 = vmul.f32 %v3075, %v3060
        %v3091 = vmul.f32 %v3079, %v3060
        %v3092 = vmul.f32 %v3067, %v3061
        %v3093 = vmul.f32 %v3071, %v3061
        %v3094 = vmul.f32 %v3075, %v3061
        %v3095 = vmul.f32 %v3079, %v3061
        %v3096 = vmul.f32 %v3067, %v3062
        %v3097 = vmul.f32 %v3071, %v3062
        %v3098 = vmul.f32 %v3075, %v3062
        %v3099 = vmul.f32 %v3079, %v3062
        %v3100 = vmul.f32 %v2999, %v3084
        %v3101 = vmul.f32 %v3000, %v3085
        %v3102 = vmul.f32 %v3001, %v3086
        %v3103 = vmul.f32 %v3002, %v3087
        %v3104 = vmul.f32 %v3003, %v3088
        %v3105 = vmul.f32 %v3004, %v3089
        %v3106 = vmul.f32 %v3005, %v3090
        %v3107 = vmul.f32 %v3006, %v3091
        %v3108 = vmul.f32 %v3007, %v3092
        %v3109 = vmul.f32 %v3008, %v3093
        %v3110 = vmul.f32 %v3009, %v3094
        %v3111 = vmul.f32 %v3010, %v3095
        %v3112 = vmul.f32 %v3011, %v3096
        %v3113 = vmul.f32 %v3012, %v3097
        %v3114 = vmul.f32 %v3013, %v3098
        %v3115 = vmul.f32 %v3014, %v3099
        %v3117 = vlaneseq
        %v3118 = vshrl.u32 %v3117, 7
        %v3119 = vsub.s32 0, %v3118
        %v3120 = vrot.slane %v2973, %v3119
        %v3121 = vlaneseq
        %v3122 = vshrl.u32 %v3121, 7
        %v3123 = vsub.s32 1, %v3122
        %v3124 = vrot.slane %v2973, %v3123
        %v3125 = vlaneseq
        %v3126 = vshrl.u32 %v3125, 7
        %v3127 = vsub.s32 2, %v3126
        %v3128 = vrot.slane %v2973, %v3127
        %v3129 = vlaneseq
        %v3130 = vshrl.u32 %v3129, 7
        %v3131 = vsub.s32 3, %v3130
        %v3132 = vrot.slane %v2973, %v3131
        %v3137 = vadd.f32 %v3100, %v3120
        %v3138 = vadd.f32 %v3101, %v3124
        %v3139 = vadd.f32 %v3102, %v3128
        %v3140 = vadd.f32 %v3103, %v3132
        %v3141 = vadd.f32 %v3104, %v3120
        %v3142 = vadd.f32 %v3105, %v3124
        %v3143 = vadd.f32 %v3106, %v3128
        %v3144 = vadd.f32 %v3107, %v3132
        %v3145 = vadd.f32 %v3108, %v3120
        %v3146 = vadd.f32 %v3109, %v3124
        %v3147 = vadd.f32 %v3110, %v3128
        %v3148 = vadd.f32 %v3111, %v3132
        %v3149 = vadd.f32 %v3112, %v3120
        %v3150 = vadd.f32 %v3113, %v3124
        %v3151 = vadd.f32 %v3114, %v3128
        %v3152 = vadd.f32 %v3115, %v3132
        %v3153 = vmax.f32 %v3137, 0.0
        %v3154 = vmax.f32 %v3138, 0.0
        %v3155 = vmax.f32 %v3139, 0.0
        %v3156 = vmax.f32 %v3140, 0.0
        %v3157 = vmax.f32 %v3141, 0.0
        %v3158 = vmax.f32 %v3142, 0.0
        %v3159 = vmax.f32 %v3143, 0.0
        %v3160 = vmax.f32 %v3144, 0.0
        %v3161 = vmax.f32 %v3145, 0.0
        %v3162 = vmax.f32 %v3146, 0.0
        %v3163 = vmax.f32 %v3147, 0.0
        %v3164 = vmax.f32 %v3148, 0.0
        %v3165 = vmax.f32 %v3149, 0.0
        %v3166 = vmax.f32 %v3150, 0.0
        %v3167 = vmax.f32 %v3151, 0.0
        %v3168 = vmax.f32 %v3152, 0.0
        %v3169 = vld [vmem:[#allocation17] sm:$0xff]
        %v3170 = vld [vmem:[#allocation17 + $0x8] sm:$0xff]
        %v3171 = vld [vmem:[#allocation17 + $0x10] sm:$0xff]
        %v3172 = vld [vmem:[#allocation17 + $0x18] sm:$0xff]
        %v3173 = vld [vmem:[#allocation17 + $0x20] sm:$0xff]
        %v3174 = vld [vmem:[#allocation17 + $0x28] sm:$0xff]
        %v3175 = vld [vmem:[#allocation17 + $0x30] sm:$0xff]
        %v3176 = vld [vmem:[#allocation17 + $0x38] sm:$0xff]
        %v3177 = vld [vmem:[#allocation17 + $0x40] sm:$0xff]
        %v3178 = vld [vmem:[#allocation17 + $0x48] sm:$0xff]
        %v3179 = vld [vmem:[#allocation17 + $0x50] sm:$0xff]
        %v3180 = vld [vmem:[#allocation17 + $0x58] sm:$0xff]
        %v3181 = vld [vmem:[#allocation17 + $0x60] sm:$0xff]
        %v3182 = vld [vmem:[#allocation17 + $0x68] sm:$0xff]
        %v3183 = vld [vmem:[#allocation17 + $0x70] sm:$0xff]
        %v3184 = vld [vmem:[#allocation17 + $0x78] sm:$0xff]
        %v3185 = vld [vmem:[#allocation17 + $0x80] sm:$0xff]
        %v3186 = vld [vmem:[#allocation17 + $0x88] sm:$0xff]
        %v3187 = vld [vmem:[#allocation17 + $0x90] sm:$0xff]
        %v3188 = vld [vmem:[#allocation17 + $0x98] sm:$0xff]
        %v3189 = vld [vmem:[#allocation17 + $0xa0] sm:$0xff]
        %v3190 = vld [vmem:[#allocation17 + $0xa8] sm:$0xff]
        %v3191 = vld [vmem:[#allocation17 + $0xb0] sm:$0xff]
        %v3192 = vld [vmem:[#allocation17 + $0xb8] sm:$0xff]
        %v3193 = vld [vmem:[#allocation17 + $0xc0] sm:$0xff]
        %v3194 = vld [vmem:[#allocation17 + $0xc8] sm:$0xff]
        %v3195 = vld [vmem:[#allocation17 + $0xd0] sm:$0xff]
        %v3196 = vld [vmem:[#allocation17 + $0xd8] sm:$0xff]
        %v3197 = vld [vmem:[#allocation17 + $0xe0] sm:$0xff]
        %v3198 = vld [vmem:[#allocation17 + $0xe8] sm:$0xff]
        %v3199 = vld [vmem:[#allocation17 + $0xf0] sm:$0xff]
        %v3200 = vld [vmem:[#allocation17 + $0xf8] sm:$0xff]
        %v3201 = vld [vmem:[#allocation17 + $0x100] sm:$0xff]
        %v3202 = vld [vmem:[#allocation17 + $0x108] sm:$0xff]
        %v3203 = vld [vmem:[#allocation17 + $0x110] sm:$0xff]
        %v3204 = vld [vmem:[#allocation17 + $0x118] sm:$0xff]
        %v3205 = vld [vmem:[#allocation17 + $0x120] sm:$0xff]
        %v3206 = vld [vmem:[#allocation17 + $0x128] sm:$0xff]
        %v3207 = vld [vmem:[#allocation17 + $0x130] sm:$0xff]
        %v3208 = vld [vmem:[#allocation17 + $0x138] sm:$0xff]
        %v3209 = vld [vmem:[#allocation17 + $0x140] sm:$0xff]
        %v3210 = vld [vmem:[#allocation17 + $0x148] sm:$0xff]
        %v3211 = vld [vmem:[#allocation17 + $0x150] sm:$0xff]
        %v3212 = vld [vmem:[#allocation17 + $0x158] sm:$0xff]
        %v3213 = vld [vmem:[#allocation17 + $0x160] sm:$0xff]
        %v3214 = vld [vmem:[#allocation17 + $0x168] sm:$0xff]
        %v3215 = vld [vmem:[#allocation17 + $0x170] sm:$0xff]
        %v3216 = vld [vmem:[#allocation17 + $0x178] sm:$0xff]
        %v3217 = vld [vmem:[#allocation17 + $0x180] sm:$0xff]
        %v3218 = vld [vmem:[#allocation17 + $0x188] sm:$0xff]
        %v3219 = vld [vmem:[#allocation17 + $0x190] sm:$0xff]
        %v3220 = vld [vmem:[#allocation17 + $0x198] sm:$0xff]
        %v3221 = vld [vmem:[#allocation17 + $0x1a0] sm:$0xff]
        %v3222 = vld [vmem:[#allocation17 + $0x1a8] sm:$0xff]
        %v3223 = vld [vmem:[#allocation17 + $0x1b0] sm:$0xff]
        %v3224 = vld [vmem:[#allocation17 + $0x1b8] sm:$0xff]
        %v3225 = vld [vmem:[#allocation17 + $0x1c0] sm:$0xff]
        %v3226 = vld [vmem:[#allocation17 + $0x1c8] sm:$0xff]
        %v3227 = vld [vmem:[#allocation17 + $0x1d0] sm:$0xff]
        %v3228 = vld [vmem:[#allocation17 + $0x1d8] sm:$0xff]
        %v3229 = vld [vmem:[#allocation17 + $0x1e0] sm:$0xff]
        %v3230 = vld [vmem:[#allocation17 + $0x1e8] sm:$0xff]
        %v3231 = vld [vmem:[#allocation17 + $0x1f0] sm:$0xff]
        %v3232 = vld [vmem:[#allocation17 + $0x1f8] sm:$0xff]
        %v3233 = vld [vmem:[#allocation17 + $0x200] sm:$0xff]
        %v3234 = vld [vmem:[#allocation17 + $0x208] sm:$0xff]
        %v3235 = vld [vmem:[#allocation17 + $0x210] sm:$0xff]
        %v3236 = vld [vmem:[#allocation17 + $0x218] sm:$0xff]
        %v3237 = vld [vmem:[#allocation17 + $0x220] sm:$0xff]
        %v3238 = vld [vmem:[#allocation17 + $0x228] sm:$0xff]
        %v3239 = vld [vmem:[#allocation17 + $0x230] sm:$0xff]
        %v3240 = vld [vmem:[#allocation17 + $0x238] sm:$0xff]
        %v3241 = vld [vmem:[#allocation17 + $0x240] sm:$0xff]
        %v3242 = vld [vmem:[#allocation17 + $0x248] sm:$0xff]
        %v3243 = vld [vmem:[#allocation17 + $0x250] sm:$0xff]
        %v3244 = vld [vmem:[#allocation17 + $0x258] sm:$0xff]
        %v3245 = vld [vmem:[#allocation17 + $0x260] sm:$0xff]
        %v3246 = vld [vmem:[#allocation17 + $0x268] sm:$0xff]
        %v3247 = vld [vmem:[#allocation17 + $0x270] sm:$0xff]
        %v3248 = vld [vmem:[#allocation17 + $0x278] sm:$0xff]
        %v3249 = vld [vmem:[#allocation17 + $0x280] sm:$0xff]
        %v3250 = vld [vmem:[#allocation17 + $0x288] sm:$0xff]
        %v3251 = vld [vmem:[#allocation17 + $0x290] sm:$0xff]
        %v3252 = vld [vmem:[#allocation17 + $0x298] sm:$0xff]
        %v3253 = vld [vmem:[#allocation17 + $0x2a0] sm:$0xff]
        %v3254 = vld [vmem:[#allocation17 + $0x2a8] sm:$0xff]
        %v3255 = vld [vmem:[#allocation17 + $0x2b0] sm:$0xff]
        %v3256 = vld [vmem:[#allocation17 + $0x2b8] sm:$0xff]
        %v3257 = vld [vmem:[#allocation17 + $0x2c0] sm:$0xff]
        %v3258 = vld [vmem:[#allocation17 + $0x2c8] sm:$0xff]
        %v3259 = vld [vmem:[#allocation17 + $0x2d0] sm:$0xff]
        %v3260 = vld [vmem:[#allocation17 + $0x2d8] sm:$0xff]
        %v3261 = vld [vmem:[#allocation17 + $0x2e0] sm:$0xff]
        %v3262 = vld [vmem:[#allocation17 + $0x2e8] sm:$0xff]
        %v3263 = vld [vmem:[#allocation17 + $0x2f0] sm:$0xff]
        %v3264 = vld [vmem:[#allocation17 + $0x2f8] sm:$0xff]
        %v3265 = vld [vmem:[#allocation17 + $0x300] sm:$0xff]
        %v3266 = vld [vmem:[#allocation17 + $0x308] sm:$0xff]
        %v3267 = vld [vmem:[#allocation17 + $0x310] sm:$0xff]
        %v3268 = vld [vmem:[#allocation17 + $0x318] sm:$0xff]
        %v3269 = vld [vmem:[#allocation17 + $0x320] sm:$0xff]
        %v3270 = vld [vmem:[#allocation17 + $0x328] sm:$0xff]
        %v3271 = vld [vmem:[#allocation17 + $0x330] sm:$0xff]
        %v3272 = vld [vmem:[#allocation17 + $0x338] sm:$0xff]
        %v3273 = vld [vmem:[#allocation17 + $0x340] sm:$0xff]
        %v3274 = vld [vmem:[#allocation17 + $0x348] sm:$0xff]
        %v3275 = vld [vmem:[#allocation17 + $0x350] sm:$0xff]
        %v3276 = vld [vmem:[#allocation17 + $0x358] sm:$0xff]
        %v3277 = vld [vmem:[#allocation17 + $0x360] sm:$0xff]
        %v3278 = vld [vmem:[#allocation17 + $0x368] sm:$0xff]
        %v3279 = vld [vmem:[#allocation17 + $0x370] sm:$0xff]
        %v3280 = vld [vmem:[#allocation17 + $0x378] sm:$0xff]
        %v3281 = vld [vmem:[#allocation17 + $0x380] sm:$0xff]
        %v3282 = vld [vmem:[#allocation17 + $0x388] sm:$0xff]
        %v3283 = vld [vmem:[#allocation17 + $0x390] sm:$0xff]
        %v3284 = vld [vmem:[#allocation17 + $0x398] sm:$0xff]
        %v3285 = vld [vmem:[#allocation17 + $0x3a0] sm:$0xff]
        %v3286 = vld [vmem:[#allocation17 + $0x3a8] sm:$0xff]
        %v3287 = vld [vmem:[#allocation17 + $0x3b0] sm:$0xff]
        %v3288 = vld [vmem:[#allocation17 + $0x3b8] sm:$0xff]
        %v3289 = vld [vmem:[#allocation17 + $0x3c0] sm:$0xff]
        %v3290 = vld [vmem:[#allocation17 + $0x3c8] sm:$0xff]
        %v3291 = vld [vmem:[#allocation17 + $0x3d0] sm:$0xff]
        %v3292 = vld [vmem:[#allocation17 + $0x3d8] sm:$0xff]
        %v3293 = vld [vmem:[#allocation17 + $0x3e0] sm:$0xff]
        %v3294 = vld [vmem:[#allocation17 + $0x3e8] sm:$0xff]
        %v3295 = vld [vmem:[#allocation17 + $0x3f0] sm:$0xff]
        %v3296 = vld [vmem:[#allocation17 + $0x3f8] sm:$0xff]
        %v3297 = vld [vmem:[#allocation19] sm:$0x3]
        %v3299 = vlaneseq
        %v3300 = vshrl.u32 %v3299, 7
        %v3301 = vsub.s32 0, %v3300
        %v3302 = vrot.slane %v3297, %v3301
        %v3303 = vlaneseq
        %v3304 = vshrl.u32 %v3303, 7
        %v3305 = vsub.s32 1, %v3304
        %v3306 = vrot.slane %v3297, %v3305
        %3309 = vmatprep.subr.mxu0 %v3170
        %3310 = vmatpush1.msra.mxu0 %v3169
        %3311 = vmatprep.subr.mxu0 %v3172
        %3312 = vmatpush1.msra.mxu0 %v3171
        %3313 = vmatprep.subr.mxu0 %v3174
        %3314 = vmatpush1.msra.mxu0 %v3173
        %3315 = vmatprep.subr.mxu0 %v3176
        %3316 = vmatpush1.msra.mxu0 %v3175
        %3317 = vmatprep.subr.mxu0 %v3178
        %3318 = vmatpush1.msra.mxu0 %v3177
        %3319 = vmatprep.subr.mxu0 %v3180
        %3320 = vmatpush1.msra.mxu0 %v3179
        %3321 = vmatprep.subr.mxu0 %v3182
        %3322 = vmatpush1.msra.mxu0 %v3181
        %3323 = vmatprep.subr.mxu0 %v3184
        %3324 = vmatpush1.msra.mxu0 %v3183
        %3325 = vmatprep.subr.mxu0 %v3186
        %3326 = vmatpush1.msra.mxu0 %v3185
        %3327 = vmatprep.subr.mxu0 %v3188
        %3328 = vmatpush1.msra.mxu0 %v3187
        %3329 = vmatprep.subr.mxu0 %v3190
        %3330 = vmatpush1.msra.mxu0 %v3189
        %3331 = vmatprep.subr.mxu0 %v3192
        %3332 = vmatpush1.msra.mxu0 %v3191
        %3333 = vmatprep.subr.mxu0 %v3194
        %3334 = vmatpush1.msra.mxu0 %v3193
        %3335 = vmatprep.subr.mxu0 %v3196
        %3336 = vmatpush1.msra.mxu0 %v3195
        %3337 = vmatprep.subr.mxu0 %v3198
        %3338 = vmatpush1.msra.mxu0 %v3197
        %3339 = vmatprep.subr.mxu0 %v3200
        %3340 = vmatpush1.msra.mxu0 %v3199
        %3341 = vmatprep.subr.mxu0 %v3202
        %3342 = vmatpush1.msra.mxu0 %v3201
        %3343 = vmatprep.subr.mxu0 %v3204
        %3344 = vmatpush1.msra.mxu0 %v3203
        %3345 = vmatprep.subr.mxu0 %v3206
        %3346 = vmatpush1.msra.mxu0 %v3205
        %3347 = vmatprep.subr.mxu0 %v3208
        %3348 = vmatpush1.msra.mxu0 %v3207
        %3349 = vmatprep.subr.mxu0 %v3210
        %3350 = vmatpush1.msra.mxu0 %v3209
        %3351 = vmatprep.subr.mxu0 %v3212
        %3352 = vmatpush1.msra.mxu0 %v3211
        %3353 = vmatprep.subr.mxu0 %v3214
        %3354 = vmatpush1.msra.mxu0 %v3213
        %3355 = vmatprep.subr.mxu0 %v3216
        %3356 = vmatpush1.msra.mxu0 %v3215
        %3357 = vmatprep.subr.mxu0 %v3218
        %3358 = vmatpush1.msra.mxu0 %v3217
        %3359 = vmatprep.subr.mxu0 %v3220
        %3360 = vmatpush1.msra.mxu0 %v3219
        %3361 = vmatprep.subr.mxu0 %v3222
        %3362 = vmatpush1.msra.mxu0 %v3221
        %3363 = vmatprep.subr.mxu0 %v3224
        %3364 = vmatpush1.msra.mxu0 %v3223
        %3365 = vmatprep.subr.mxu0 %v3226
        %3366 = vmatpush1.msra.mxu0 %v3225
        %3367 = vmatprep.subr.mxu0 %v3228
        %3368 = vmatpush1.msra.mxu0 %v3227
        %3369 = vmatprep.subr.mxu0 %v3230
        %3370 = vmatpush1.msra.mxu0 %v3229
        %3371 = vmatprep.subr.mxu0 %v3232
        %3372 = vmatpush1.msra.mxu0 %v3231
        %3373 = vmatprep.mubr.f32.mxu0 %v3154
        %3374 = vmatmul.mubr.f32.gmra.mrb[0].mxu0 %v3153
        %v3375 = vpop.f32.mrb[0].mxu0
        %v3376 = vadd.f32 %v3302, %v3375
        %v3377 = vpop.f32.mrb[0].mxu0
        %v3378 = vadd.f32 %v3306, %v3377
        %3379 = vmatprep.mubr.f32.mxu0 %v3158
        %3380 = vmatmul.mubr.f32.gmra.mrb[0].mxu0 %v3157
        %v3381 = vpop.f32.mrb[0].mxu0
        %v3382 = vadd.f32 %v3302, %v3381
        %v3383 = vpop.f32.mrb[0].mxu0
        %v3384 = vadd.f32 %v3306, %v3383
        %3385 = vmatprep.mubr.f32.mxu0 %v3162
        %3386 = vmatmul.mubr.f32.gmra.mrb[0].mxu0 %v3161
        %v3387 = vpop.f32.mrb[0].mxu0
        %v3388 = vadd.f32 %v3302, %v3387
        %v3389 = vpop.f32.mrb[0].mxu0
        %v3390 = vadd.f32 %v3306, %v3389
        %3391 = vmatprep.mubr.f32.mxu0 %v3166
        %3392 = vmatmul.mubr.f32.gmra.mrb[0].mxu0 %v3165
        %v3393 = vpop.f32.mrb[0].mxu0
        %v3394 = vadd.f32 %v3302, %v3393
        %v3395 = vpop.f32.mrb[0].mxu0
        %v3396 = vadd.f32 %v3306, %v3395
        %3397 = vdwg.mxu0
        %3398 = vmatprep.subr.mxu0 %v3234
        %3399 = vmatpush1.msra.mxu0 %v3233
        %3400 = vmatprep.subr.mxu0 %v3236
        %3401 = vmatpush1.msra.mxu0 %v3235
        %3402 = vmatprep.subr.mxu0 %v3238
        %3403 = vmatpush1.msra.mxu0 %v3237
        %3404 = vmatprep.subr.mxu0 %v3240
        %3405 = vmatpush1.msra.mxu0 %v3239
        %3406 = vmatprep.subr.mxu0 %v3242
        %3407 = vmatpush1.msra.mxu0 %v3241
        %3408 = vmatprep.subr.mxu0 %v3244
        %3409 = vmatpush1.msra.mxu0 %v3243
        %3410 = vmatprep.subr.mxu0 %v3246
        %3411 = vmatpush1.msra.mxu0 %v3245
        %3412 = vmatprep.subr.mxu0 %v3248
        %3413 = vmatpush1.msra.mxu0 %v3247
        %3414 = vmatprep.subr.mxu0 %v3250
        %3415 = vmatpush1.msra.mxu0 %v3249
        %3416 = vmatprep.subr.mxu0 %v3252
        %3417 = vmatpush1.msra.mxu0 %v3251
        %3418 = vmatprep.subr.mxu0 %v3254
        %3419 = vmatpush1.msra.mxu0 %v3253
        %3420 = vmatprep.subr.mxu0 %v3256
        %3421 = vmatpush1.msra.mxu0 %v3255
        %3422 = vmatprep.subr.mxu0 %v3258
        %3423 = vmatpush1.msra.mxu0 %v3257
        %3424 = vmatprep.subr.mxu0 %v3260
        %3425 = vmatpush1.msra.mxu0 %v3259
        %3426 = vmatprep.subr.mxu0 %v3262
        %3427 = vmatpush1.msra.mxu0 %v3261
        %3428 = vmatprep.subr.mxu0 %v3264
        %3429 = vmatpush1.msra.mxu0 %v3263
        %3430 = vmatprep.subr.mxu0 %v3266
        %3431 = vmatpush1.msra.mxu0 %v3265
        %3432 = vmatprep.subr.mxu0 %v3268
        %3433 = vmatpush1.msra.mxu0 %v3267
        %3434 = vmatprep.subr.mxu0 %v3270
        %3435 = vmatpush1.msra.mxu0 %v3269
        %3436 = vmatprep.subr.mxu0 %v3272
        %3437 = vmatpush1.msra.mxu0 %v3271
        %3438 = vmatprep.subr.mxu0 %v3274
        %3439 = vmatpush1.msra.mxu0 %v3273
        %3440 = vmatprep.subr.mxu0 %v3276
        %3441 = vmatpush1.msra.mxu0 %v3275
        %3442 = vmatprep.subr.mxu0 %v3278
        %3443 = vmatpush1.msra.mxu0 %v3277
        %3444 = vmatprep.subr.mxu0 %v3280
        %3445 = vmatpush1.msra.mxu0 %v3279
        %3446 = vmatprep.subr.mxu0 %v3282
        %3447 = vmatpush1.msra.mxu0 %v3281
        %3448 = vmatprep.subr.mxu0 %v3284
        %3449 = vmatpush1.msra.mxu0 %v3283
        %3450 = vmatprep.subr.mxu0 %v3286
        %3451 = vmatpush1.msra.mxu0 %v3285
        %3452 = vmatprep.subr.mxu0 %v3288
        %3453 = vmatpush1.msra.mxu0 %v3287
        %3454 = vmatprep.subr.mxu0 %v3290
        %3455 = vmatpush1.msra.mxu0 %v3289
        %3456 = vmatprep.subr.mxu0 %v3292
        %3457 = vmatpush1.msra.mxu0 %v3291
        %3458 = vmatprep.subr.mxu0 %v3294
        %3459 = vmatpush1.msra.mxu0 %v3293
        %3460 = vmatprep.subr.mxu0 %v3296
        %3461 = vmatpush1.msra.mxu0 %v3295
        %3462 = vmatprep.mubr.f32.mxu0 %v3156
        %3463 = vmatmul.mubr.f32.gmra.mrb[0].mxu0 %v3155
        %v3464 = vpop.f32.mrb[0].mxu0
        %v3465 = vadd.f32 %v3376, %v3464
        %v3466 = vpop.f32.mrb[0].mxu0
        %v3467 = vadd.f32 %v3378, %v3466
        %3468 = vmatprep.mubr.f32.mxu0 %v3160
        %3469 = vmatmul.mubr.f32.gmra.mrb[0].mxu0 %v3159
        %v3470 = vpop.f32.mrb[0].mxu0
        %v3471 = vadd.f32 %v3382, %v3470
        %v3472 = vpop.f32.mrb[0].mxu0
        %v3473 = vadd.f32 %v3384, %v3472
        %3474 = vmatprep.mubr.f32.mxu0 %v3164
        %3475 = vmatmul.mubr.f32.gmra.mrb[0].mxu0 %v3163
        %v3476 = vpop.f32.mrb[0].mxu0
        %v3477 = vadd.f32 %v3388, %v3476
        %v3478 = vpop.f32.mrb[0].mxu0
        %v3479 = vadd.f32 %v3390, %v3478
        %3480 = vmatprep.mubr.f32.mxu0 %v3168
        %3481 = vmatmul.mubr.f32.gmra.mrb[0].mxu0 %v3167
        %v3482 = vpop.f32.mrb[0].mxu0
        %v3483 = vadd.f32 %v3394, %v3482
        %v3484 = vpop.f32.mrb[0].mxu0
        %v3485 = vadd.f32 %v3396, %v3484
        %3486 = vdwg.mxu0
        %v3487 = vld [vmem:[#allocation20] sm:$0x3]
        %v3488 = vld [vmem:[#allocation22] sm:$0x3]
        %v3489 = vadd.f32 %v3465, %v3467
        %3490 = vadd.xlane.f32.xlu0 %v3489
        %v3491 = vpop.xlane.xlu0 %3490
        %v3492 = vadd.f32 %v3471, %v3473
        %3493 = vadd.xlane.f32.xlu0 %v3492
        %v3494 = vpop.xlane.xlu0 %3493
        %v3495 = vadd.f32 %v3477, %v3479
        %3496 = vadd.xlane.f32.xlu0 %v3495
        %v3497 = vpop.xlane.xlu0 %3496
        %v3498 = vadd.f32 %v3483, %v3485
        %3499 = vadd.xlane.f32.xlu0 %v3498
        %v3500 = vpop.xlane.xlu0 %3499
        %v3501 = vrcp.pop 256.0
        %v3502 = vmul.f32 %v3491, %v3501
        %v3503 = vmul.f32 %v3494, %v3501
        %v3504 = vmul.f32 %v3497, %v3501
        %v3505 = vmul.f32 %v3500, %v3501
        %v3506 = vsub.f32 %v3465, %v3502
        %v3507 = vsub.f32 %v3467, %v3502
        %v3508 = vsub.f32 %v3471, %v3503
        %v3509 = vsub.f32 %v3473, %v3503
        %v3510 = vsub.f32 %v3477, %v3504
        %v3511 = vsub.f32 %v3479, %v3504
        %v3512 = vsub.f32 %v3483, %v3505
        %v3513 = vsub.f32 %v3485, %v3505
        %v3514 = vmul.f32 %v3506, %v3506
        %v3515 = vmul.f32 %v3507, %v3507
        %v3516 = vmul.f32 %v3508, %v3508
        %v3517 = vmul.f32 %v3509, %v3509
        %v3518 = vmul.f32 %v3510, %v3510
        %v3519 = vmul.f32 %v3511, %v3511
        %v3520 = vmul.f32 %v3512, %v3512
        %v3521 = vmul.f32 %v3513, %v3513
        %v3522 = vadd.f32 %v3514, %v3515
        %3523 = vadd.xlane.f32.xlu0 %v3522
        %v3524 = vpop.xlane.xlu0 %3523
        %v3525 = vadd.f32 %v3516, %v3517
        %3526 = vadd.xlane.f32.xlu0 %v3525
        %v3527 = vpop.xlane.xlu0 %3526
        %v3528 = vadd.f32 %v3518, %v3519
        %3529 = vadd.xlane.f32.xlu0 %v3528
        %v3530 = vpop.xlane.xlu0 %3529
        %v3531 = vadd.f32 %v3520, %v3521
        %3532 = vadd.xlane.f32.xlu0 %v3531
        %v3533 = vpop.xlane.xlu0 %3532
        %v3534 = vmul.f32 %v3524, %v3501
        %v3535 = vmul.f32 %v3527, %v3501
        %v3536 = vmul.f32 %v3530, %v3501
        %v3537 = vmul.f32 %v3533, %v3501
        %v3538 = vadd.f32 %v3534, 1e-05
        %v3539 = vadd.f32 %v3535, 1e-05
        %v3540 = vadd.f32 %v3536, 1e-05
        %v3541 = vadd.f32 %v3537, 1e-05
        %v3542 = vrsqrt.pop %v3538
        %v3543 = vrsqrt.pop %v3539
        %v3544 = vrsqrt.pop %v3540
        %v3545 = vrsqrt.pop %v3541
        %v3547 = vlaneseq
        %v3548 = vshrl.u32 %v3547, 7
        %v3549 = vsub.s32 0, %v3548
        %v3550 = vrot.slane %v3487, %v3549
        %v3551 = vlaneseq
        %v3552 = vshrl.u32 %v3551, 7
        %v3553 = vsub.s32 1, %v3552
        %v3554 = vrot.slane %v3487, %v3553
        %v3557 = vmul.f32 %v3550, %v3542
        %v3558 = vmul.f32 %v3554, %v3542
        %v3559 = vmul.f32 %v3550, %v3543
        %v3560 = vmul.f32 %v3554, %v3543
        %v3561 = vmul.f32 %v3550, %v3544
        %v3562 = vmul.f32 %v3554, %v3544
        %v3563 = vmul.f32 %v3550, %v3545
        %v3564 = vmul.f32 %v3554, %v3545
        %v3565 = vmul.f32 %v3506, %v3557
        %v3566 = vmul.f32 %v3507, %v3558
        %v3567 = vmul.f32 %v3508, %v3559
        %v3568 = vmul.f32 %v3509, %v3560
        %v3569 = vmul.f32 %v3510, %v3561
        %v3570 = vmul.f32 %v3511, %v3562
        %v3571 = vmul.f32 %v3512, %v3563
        %v3572 = vmul.f32 %v3513, %v3564
        %v3574 = vlaneseq
        %v3575 = vshrl.u32 %v3574, 7
        %v3576 = vsub.s32 0, %v3575
        %v3577 = vrot.slane %v3488, %v3576
        %v3578 = vlaneseq
        %v3579 = vshrl.u32 %v3578, 7
        %v3580 = vsub.s32 1, %v3579
        %v3581 = vrot.slane %v3488, %v3580
        %v3584 = vadd.f32 %v3565, %v3577
        %v3585 = vadd.f32 %v3566, %v3581
        %v3586 = vadd.f32 %v3567, %v3577
        %v3587 = vadd.f32 %v3568, %v3581
        %v3588 = vadd.f32 %v3569, %v3577
        %v3589 = vadd.f32 %v3570, %v3581
        %v3590 = vadd.f32 %v3571, %v3577
        %v3591 = vadd.f32 %v3572, %v3581
        %v3592 = vmax.f32 %v3584, 0.0
        %v3593 = vmax.f32 %v3585, 0.0
        %v3594 = vmax.f32 %v3586, 0.0
        %v3595 = vmax.f32 %v3587, 0.0
        %v3596 = vmax.f32 %v3588, 0.0
        %v3597 = vmax.f32 %v3589, 0.0
        %v3598 = vmax.f32 %v3590, 0.0
        %v3599 = vmax.f32 %v3591, 0.0
        %v3600 = vld [vmem:[#allocation23] sm:$0xff]
        %v3601 = vld [vmem:[#allocation23 + $0x8] sm:$0xff]
        %v3602 = vld [vmem:[#allocation23 + $0x10] sm:$0xff]
        %v3603 = vld [vmem:[#allocation23 + $0x18] sm:$0xff]
        %v3604 = vld [vmem:[#allocation23 + $0x20] sm:$0xff]
        %v3605 = vld [vmem:[#allocation23 + $0x28] sm:$0xff]
        %v3606 = vld [vmem:[#allocation23 + $0x30] sm:$0xff]
        %v3607 = vld [vmem:[#allocation23 + $0x38] sm:$0xff]
        %v3608 = vld [vmem:[#allocation23 + $0x40] sm:$0xff]
        %v3609 = vld [vmem:[#allocation23 + $0x48] sm:$0xff]
        %v3610 = vld [vmem:[#allocation23 + $0x50] sm:$0xff]
        %v3611 = vld [vmem:[#allocation23 + $0x58] sm:$0xff]
        %v3612 = vld [vmem:[#allocation23 + $0x60] sm:$0xff]
        %v3613 = vld [vmem:[#allocation23 + $0x68] sm:$0xff]
        %v3614 = vld [vmem:[#allocation23 + $0x70] sm:$0xff]
        %v3615 = vld [vmem:[#allocation23 + $0x78] sm:$0xff]
        %v3616 = vld [vmem:[#allocation23 + $0x80] sm:$0xff]
        %v3617 = vld [vmem:[#allocation23 + $0x88] sm:$0xff]
        %v3618 = vld [vmem:[#allocation23 + $0x90] sm:$0xff]
        %v3619 = vld [vmem:[#allocation23 + $0x98] sm:$0xff]
        %v3620 = vld [vmem:[#allocation23 + $0xa0] sm:$0xff]
        %v3621 = vld [vmem:[#allocation23 + $0xa8] sm:$0xff]
        %v3622 = vld [vmem:[#allocation23 + $0xb0] sm:$0xff]
        %v3623 = vld [vmem:[#allocation23 + $0xb8] sm:$0xff]
        %v3624 = vld [vmem:[#allocation23 + $0xc0] sm:$0xff]
        %v3625 = vld [vmem:[#allocation23 + $0xc8] sm:$0xff]
        %v3626 = vld [vmem:[#allocation23 + $0xd0] sm:$0xff]
        %v3627 = vld [vmem:[#allocation23 + $0xd8] sm:$0xff]
        %v3628 = vld [vmem:[#allocation23 + $0xe0] sm:$0xff]
        %v3629 = vld [vmem:[#allocation23 + $0xe8] sm:$0xff]
        %v3630 = vld [vmem:[#allocation23 + $0xf0] sm:$0xff]
        %v3631 = vld [vmem:[#allocation23 + $0xf8] sm:$0xff]
        %v3632 = vld [vmem:[#allocation25] sm:$0x1]
        %v3634 = vlaneseq
        %v3635 = vshrl.u32 %v3634, 7
        %v3636 = vsub.s32 0, %v3635
        %v3637 = vrot.slane %v3632, %v3636
        %3639 = vmatprep.subr.mxu0 0.0
        %3640 = vmatpush1.msra.mxu0 %v3600
        %3641 = vmatprep.subr.mxu0 0.0
        %3642 = vmatpush1.msra.mxu0 %v3601
        %3643 = vmatprep.subr.mxu0 0.0
        %3644 = vmatpush1.msra.mxu0 %v3602
        %3645 = vmatprep.subr.mxu0 0.0
        %3646 = vmatpush1.msra.mxu0 %v3603
        %3647 = vmatprep.subr.mxu0 0.0
        %3648 = vmatpush1.msra.mxu0 %v3604
        %3649 = vmatprep.subr.mxu0 0.0
        %3650 = vmatpush1.msra.mxu0 %v3605
        %3651 = vmatprep.subr.mxu0 0.0
        %3652 = vmatpush1.msra.mxu0 %v3606
        %3653 = vmatprep.subr.mxu0 0.0
        %3654 = vmatpush1.msra.mxu0 %v3607
        %3655 = vmatprep.subr.mxu0 0.0
        %3656 = vmatpush1.msra.mxu0 %v3608
        %3657 = vmatprep.subr.mxu0 0.0
        %3658 = vmatpush1.msra.mxu0 %v3609
        %3659 = vmatprep.subr.mxu0 0.0
        %3660 = vmatpush1.msra.mxu0 %v3610
        %3661 = vmatprep.subr.mxu0 0.0
        %3662 = vmatpush1.msra.mxu0 %v3611
        %3663 = vmatprep.subr.mxu0 0.0
        %3664 = vmatpush1.msra.mxu0 %v3612
        %3665 = vmatprep.subr.mxu0 0.0
        %3666 = vmatpush1.msra.mxu0 %v3613
        %3667 = vmatprep.subr.mxu0 0.0
        %3668 = vmatpush1.msra.mxu0 %v3614
        %3669 = vmatprep.subr.mxu0 0.0
        %3670 = vmatpush1.msra.mxu0 %v3615
        %3671 = vmatprep.subr.mxu0 0.0
        %3672 = vmatpush1.msra.mxu0 %v3616
        %3673 = vmatprep.subr.mxu0 0.0
        %3674 = vmatpush1.msra.mxu0 %v3617
        %3675 = vmatprep.subr.mxu0 0.0
        %3676 = vmatpush1.msra.mxu0 %v3618
        %3677 = vmatprep.subr.mxu0 0.0
        %3678 = vmatpush1.msra.mxu0 %v3619
        %3679 = vmatprep.subr.mxu0 0.0
        %3680 = vmatpush1.msra.mxu0 %v3620
        %3681 = vmatprep.subr.mxu0 0.0
        %3682 = vmatpush1.msra.mxu0 %v3621
        %3683 = vmatprep.subr.mxu0 0.0
        %3684 = vmatpush1.msra.mxu0 %v3622
        %3685 = vmatprep.subr.mxu0 0.0
        %3686 = vmatpush1.msra.mxu0 %v3623
        %3687 = vmatprep.subr.mxu0 0.0
        %3688 = vmatpush1.msra.mxu0 %v3624
        %3689 = vmatprep.subr.mxu0 0.0
        %3690 = vmatpush1.msra.mxu0 %v3625
        %3691 = vmatprep.subr.mxu0 0.0
        %3692 = vmatpush1.msra.mxu0 %v3626
        %3693 = vmatprep.subr.mxu0 0.0
        %3694 = vmatpush1.msra.mxu0 %v3627
        %3695 = vmatprep.subr.mxu0 0.0
        %3696 = vmatpush1.msra.mxu0 %v3628
        %3697 = vmatprep.subr.mxu0 0.0
        %3698 = vmatpush1.msra.mxu0 %v3629
        %3699 = vmatprep.subr.mxu0 0.0
        %3700 = vmatpush1.msra.mxu0 %v3630
        %3701 = vmatprep.subr.mxu0 0.0
        %3702 = vmatpush1.msra.mxu0 %v3631
        %3703 = vmatprep.mubr.f32.mxu0 %v3593
        %3704 = vmatmul.mubr.f32.gmra.mrb[0].mxu0 %v3592
        %v3705 = vpop.f32.mrb[0].mxu0
        %v3706 = vadd.f32 %v3637, %v3705
        %v3707 = vpop.f32.mrb[0].mxu0
        %3708 = vmatprep.mubr.f32.mxu0 %v3595
        %3709 = vmatmul.mubr.f32.gmra.mrb[0].mxu0 %v3594
        %v3710 = vpop.f32.mrb[0].mxu0
        %v3711 = vadd.f32 %v3637, %v3710
        %v3712 = vpop.f32.mrb[0].mxu0
        %3713 = vmatprep.mubr.f32.mxu0 %v3597
        %3714 = vmatmul.mubr.f32.gmra.mrb[0].mxu0 %v3596
        %v3715 = vpop.f32.mrb[0].mxu0
        %v3716 = vadd.f32 %v3637, %v3715
        %v3717 = vpop.f32.mrb[0].mxu0
        %3718 = vmatprep.mubr.f32.mxu0 %v3599
        %3719 = vmatmul.mubr.f32.gmra.mrb[0].mxu0 %v3598
        %v3720 = vpop.f32.mrb[0].mxu0
        %v3721 = vadd.f32 %v3637, %v3720
        %v3722 = vpop.f32.mrb[0].mxu0
        %3723 = vdwg.mxu0
        %3724 = vst [vmem:[%s696] sm:$0xff] %v3706
        %3725 = vst [vmem:[%s696 + $0x8] sm:$0xff] %v3711
        %3726 = vst [vmem:[%s696 + $0x10] sm:$0xff] %v3716
        %3727 = vst [vmem:[%s696 + $0x18] sm:$0xff] %v3721
        %s3728 = sand.u32 %s367, 1
        %s3729 = scalar_lea.sflag [#allocation4], %s3728
        %s3730 = sand.u32 %s367, 1
        %s3731 = smul.addr %s3730, 32
        %s3732 = scalar_lea.vmem [#allocation26], %s3731
        // Predicated region
        $region141: #{tpu_custom_call.1} parent=79 // pred_check
          %p3733 = pneg %p377
        $region142: #{tpu_custom_call.1} parent=79 // pred_check_branch
          %3735 = sbr.rel (%p3733) target = $region144
        $region143: #{tpu_custom_call.1} parent=79 // pred_region
          %s3736 = smul.u32 4, %s39
          %s3738 = ssub.s32 512, 512
          %3739 = vsyncadd %s3729, %s3738
          %s3740 = smul.addr %s3736, 128
          %s3741 = scalar_lea.hbm %s15, %s3740
          %s3742 = sshll.u32 %s3732, 4
          %s3743 = int_to_ptr.vmem [resolvable:$true] %s3742
          %3748 = dma.vmem_to_hbm [thread:$0]  %s3743, 512, %s3741, %s3729, 128, 128, 8
        $region144: #{tpu_custom_call.1} parent=79 // pred_fallthru
          _
      $region80: #{tpu_custom_call.1} parent=5 // pred_fallthru
        _
      %p3749 = scmp.le.s32.totalorder 2, %s34
      // Predicated region
      $region145: #{tpu_custom_call.1} parent=5 // pred_check
        %p3750 = pneg %p3749
      $region146: #{tpu_custom_call.1} parent=5 // pred_check_branch
        %3752 = sbr.rel (%p3750) target = $region148
      $region147: #{tpu_custom_call.1} parent=5 // pred_region
        %s3753 = ssub.s32 %s34, 2
        // Predicated region
        $region149: #{tpu_custom_call.1} parent=147 // pred_check
          %p3754 = pneg %p383
        $region150: #{tpu_custom_call.1} parent=147 // pred_check_branch
          %3756 = sbr.rel (%p3754) target = $region152
        $region151: #{tpu_custom_call.1} parent=147 // pred_region
          %s3757 = sand.u32 %s368, 1
          %s3758 = scalar_lea.sflag [#allocation4], %s3757
          %s3759 = sand.u32 %s368, 1
          %s3760 = smul.addr %s3759, 32
          %s3761 = scalar_lea.vmem [#allocation26], %s3760
          %3762 = dma.done %s3758, 512
        $region152: #{tpu_custom_call.1} parent=147 // pred_fallthru
          _
      $region148: #{tpu_custom_call.1} parent=5 // pred_fallthru
        _
    $region6: #{tpu_custom_call.1} parent=1 // loop_footer
      %s38 = sadd.s32 1, %s34
    $region7: #{tpu_custom_call.1} parent=1 // loop_footer_branch
      %33 = sbr.rel target = $region3
    $region8: #{tpu_custom_call.1} parent=1 // loop_exit
      _
    %3763 = vsyncpa [#allocation3], 1
    %s3764 = scalar_lea.sflag [#allocation3], 1
    %3765 = vsyncpa %s3764, 1
    %3766 = vsyncpa [#allocation6], 1
    %3767 = vsyncpa [#allocation9], 1
    %3768 = vsyncpa [#allocation12], 1
    %3769 = vsyncpa [#allocation15], 1
    %3770 = vsyncpa [#allocation18], 1
    %3771 = vsyncpa [#allocation21], 1
    %3772 = vsyncpa [#allocation24], 1
    %3773 = vsyncpa [#allocation4], 1
    %s3774 = scalar_lea.sflag [#allocation4], 1
    %3775 = vsyncpa %s3774, 1

// kernel: tpu_custom_call.1
$region0: #{tpu_custom_call.1}
  #allocation0 [shape = 'u32[]', space=smem, size = 0x4, offset = 0x4, fixed_abs, tag = 'smem constant byte address 0x4 - core index']
  #allocation1 [shape = 'u32[144,128]{1,0:T(1,128)}', space=vmem, size = 0x12000, scoped, tag = 'internal scratch']
  %s0 = inlined_call_operand.hbm [shape: f32[64,256], index: 0, kind: input, shape index: {}]
  %s1 = inlined_call_operand.hbm [shape: f32[256,1024], index: 1, kind: input, shape index: {}]
  %s2 = inlined_call_operand.hbm [shape: f32[1,1024], index: 2, kind: input, shape index: {}]
  %s3 = inlined_call_operand.hbm [shape: f32[1,1024], index: 3, kind: input, shape index: {}]
  %s4 = inlined_call_operand.hbm [shape: f32[1,1024], index: 4, kind: input, shape index: {}]
  %s5 = inlined_call_operand.hbm [shape: f32[1024,512], index: 5, kind: input, shape index: {}]
  %s6 = inlined_call_operand.hbm [shape: f32[1,512], index: 6, kind: input, shape index: {}]
  %s7 = inlined_call_operand.hbm [shape: f32[1,512], index: 7, kind: input, shape index: {}]
  %s8 = inlined_call_operand.hbm [shape: f32[1,512], index: 8, kind: input, shape index: {}]
  %s9 = inlined_call_operand.hbm [shape: f32[512,256], index: 9, kind: input, shape index: {}]
  %s10 = inlined_call_operand.hbm [shape: f32[1,256], index: 10, kind: input, shape index: {}]
  %s11 = inlined_call_operand.hbm [shape: f32[1,256], index: 11, kind: input, shape index: {}]
  %s12 = inlined_call_operand.hbm [shape: f32[1,256], index: 12, kind: input, shape index: {}]
  %s13 = inlined_call_operand.hbm [shape: f32[256,128], index: 13, kind: input, shape index: {}]
  %s14 = inlined_call_operand.hbm [shape: f32[1,128], index: 14, kind: input, shape index: {}]
  %s15 = inlined_call_operand.hbm [shape: f32[64,128], index: 15, kind: output, shape index: {}]
  %s16 = sld [smem:[#allocation0]]
  $region153: #{tpu_custom_call.1} parent=0
    _
  %s18 = ssub.s32 1, %s16
  %s19 = scalar_select 0, %s18, %s16
  $region1: #{tpu_custom_call.1} parent=0
    #allocation2 [shape = 'u8[65536]{0}', space=vmem, size = 0x10000, scoped, tag = 'input window, operand 0']
    #allocation3 [shape = 's32[2]{0}', space=sflag, size = 0x8, scoped, tag = 'scoped memory for tpu_custom_call.1']
    #allocation4 [shape = 's32[2]{0}', space=sflag, size = 0x8, scoped, tag = 'scoped memory for tpu_custom_call.1']
    #allocation5 [shape = 'u8[1048576]{0}', space=vmem, size = 0x100000, scoped, tag = 'input window, operand 1, single buffered']
    #allocation6 [shape = 's32[1]{0}', space=sflag, size = 0x4, scoped, tag = 'scoped memory for tpu_custom_call.1']
    #allocation7 [shape = 'u8[4096]{0}', space=vmem, size = 0x1000, scoped, tag = 'input window, operand 2, single buffered']
    #allocation8 [shape = 'u8[4096]{0}', space=vmem, size = 0x1000, scoped, tag = 'input window, operand 3, single buffered']
    #allocation9 [shape = 's32[1]{0}', space=sflag, size = 0x4, scoped, tag = 'scoped memory for tpu_custom_call.1']
    #allocation10 [shape = 'u8[4096]{0}', space=vmem, size = 0x1000, scoped, tag = 'input window, operand 4, single buffered']
    #allocation11 [shape = 'u8[2097152]{0}', space=vmem, size = 0x200000, scoped, tag = 'input window, operand 5, single buffered']
    #allocation12 [shape = 's32[1]{0}', space=sflag, size = 0x4, scoped, tag = 'scoped memory for tpu_custom_call.1']
    #allocation13 [shape = 'u8[2048]{0}', space=vmem, size = 0x800, scoped, tag = 'input window, operand 6, single buffered']
    #allocation14 [shape = 'u8[2048]{0}', space=vmem, size = 0x800, scoped, tag = 'input window, operand 7, single buffered']
    #allocation15 [shape = 's32[1]{0}', space=sflag, size = 0x4, scoped, tag = 'scoped memory for tpu_custom_call.1']
    #allocation16 [shape = 'u8[2048]{0}', space=vmem, size = 0x800, scoped, tag = 'input window, operand 8, single buffered']
    #allocation17 [shape = 'u8[524288]{0}', space=vmem, size = 0x80000, scoped, tag = 'input window, operand 9, single buffered']
    #allocation18 [shape = 's32[1]{0}', space=sflag, size = 0x4, scoped, tag = 'scoped memory for tpu_custom_call.1']
    #allocation19 [shape = 'u8[1024]{0}', space=vmem, size = 0x400, scoped, tag = 'input window, operand 10, single buffered']
    #allocation20 [shape = 'u8[1024]{0}', space=vmem, size = 0x400, scoped, tag = 'input window, operand 11, single buffered']
    #allocation21 [shape = 's32[1]{0}', space=sflag, size = 0x4, scoped, tag = 'scoped memory for tpu_custom_call.1']
    #allocation22 [shape = 'u8[1024]{0}', space=vmem, size = 0x400, scoped, tag = 'input window, operand 12, single buffered']
    #allocation23 [shape = 'u8[131072]{0}', space=vmem, size = 0x20000, scoped, tag = 'input window, operand 13, single buffered']
    #allocation24 [shape = 's32[1]{0}', space=sflag, size = 0x4, scoped, tag = 'scoped memory for tpu_custom_call.1']
    #allocation25 [shape = 'u8[512]{0}', space=vmem, size = 0x400, scoped, tag = 'input window, operand 14, single buffered']
    #allocation26 [shape = 'u8[32768]{0}', space=vmem, size = 0x8000, scoped, tag = 'output window, operand 0']
    %20 = vsyncpa [#allocation3], 0
    %s21 = scalar_lea.sflag [#allocation3], 1
    %22 = vsyncpa %s21, 0
    %23 = vsyncpa [#allocation6], 0
    %24 = vsyncpa [#allocation9], 0
    %25 = vsyncpa [#allocation12], 0
    %26 = vsyncpa [#allocation15], 0
    %27 = vsyncpa [#allocation18], 0
    %28 = vsyncpa [#allocation21], 0
    %29 = vsyncpa [#allocation24], 0
    %30 = vsyncpa [#allocation4], 0
    %s31 = scalar_lea.sflag [#allocation4], 1
    %32 = vsyncpa %s31, 0
    loop: start=0, step=1, limit=4
    $region2: #{tpu_custom_call.1} parent=1 // loop_pre_header
      _
    $region3: #{tpu_custom_call.1} parent=1 // loop_header
      %s34 = sphi 0, %s38
      %p35 = scmp.ge.s32.totalorder %s34, 4
      %s44 = sphi 0, %s46
      %s47 = sphi 0, %s44
      %s48 = sphi 0, %s47
      %s64 = sphi 0, %s48
      %s68 = sphi 0, %s68
      %s70 = sphi 0, %s68
      %s71 = sphi 0, %s70
      %s85 = sphi 0, %s71
      %s89 = sphi 0, %s89
      %s91 = sphi 0, %s89
      %s92 = sphi 0, %s91
      %s106 = sphi 0, %s92
      %s110 = sphi 0, %s110
      %s112 = sphi 0, %s110
      %s113 = sphi 0, %s112
      %s127 = sphi 0, %s113
      %s131 = sphi 0, %s131
      %s133 = sphi 0, %s131
      %s134 = sphi 0, %s133
      %s148 = sphi 0, %s134
      %s152 = sphi 0, %s152
      %s154 = sphi 0, %s152
      %s155 = sphi 0, %s154
      %s169 = sphi 0, %s155
      %s173 = sphi 0, %s173
      %s175 = sphi 0, %s173
      %s176 = sphi 0, %s175
      %s190 = sphi 0, %s176
      %s194 = sphi 0, %s194
      %s196 = sphi 0, %s194
      %s197 = sphi 0, %s196
      %s211 = sphi 0, %s197
      %s215 = sphi 0, %s215
      %s217 = sphi 0, %s215
      %s218 = sphi 0, %s217
      %s232 = sphi 0, %s218
      %s236 = sphi 0, %s236
      %s238 = sphi 0, %s236
      %s239 = sphi 0, %s238
      %s253 = sphi 0, %s239
      %s257 = sphi 0, %s257
      %s259 = sphi 0, %s257
      %s260 = sphi 0, %s259
      %s274 = sphi 0, %s260
      %s278 = sphi 0, %s278
      %s280 = sphi 0, %s278
      %s281 = sphi 0, %s280
      %s295 = sphi 0, %s281
      %s299 = sphi 0, %s299
      %s301 = sphi 0, %s299
      %s302 = sphi 0, %s301
      %s316 = sphi 0, %s302
      %s320 = sphi 0, %s320
      %s322 = sphi 0, %s320
      %s323 = sphi 0, %s322
      %s337 = sphi 0, %s323
      %s341 = sphi 0, %s341
      %s343 = sphi 0, %s341
      %s344 = sphi 0, %s343
      %s358 = sphi 0, %s344
      %s364 = sphi 0, %s366
      %s367 = sphi 0, %s364
      %s368 = sphi 0, %s367
      %s384 = sphi 0, %s368
    $region4: #{tpu_custom_call.1} parent=1 // loop_header_branch
      %37 = sbr.rel (%p35) target = $region8
    $region5: #{tpu_custom_call.1} parent=1 // loop_body
      %s39 = ssub.s32 %s34, 1
      %s40 = ssub.s32 %s34, 2
      %s41 = sadd.s32 %s34, 1
      %s42 = ssub.s32 %s34, %s41
      %p43 = scmp.eq.s32.totalorder %s42, 0
      %s45 = sadd.s32 %s44, 1
      %s46 = scalar_select %p43, %s44, %s45
      %p49 = pneg %p43
      %p50 = scmp.eq.s32.totalorder %s34, 1
      %p51 = por %p49, %p50
      %p52 = scmp.ne.s32.totalorder %s44, %s47
      %p53 = scmp.eq.s32.totalorder %s34, 0
      %p54 = por %p52, %p53
      %p55 = scmp.ne.s32.totalorder %s44, %s47
      %p56 = scmp.eq.s32.totalorder %s39, 1
      %p57 = por %p55, %p56
      %p58 = scmp.ne.s32.totalorder %s47, %s48
      %p59 = scmp.eq.s32.totalorder %s39, 0
      %p60 = por %p58, %p59
      %p61 = scmp.ne.s32.totalorder %s47, %s48
      %p62 = scmp.eq.s32.totalorder %s40, 1
      %p63 = por %p61, %p62
      %p65 = scmp.ne.s32.totalorder %s48, %s64
      %p66 = scmp.eq.s32.totalorder %s40, 0
      %p67 = por %p65, %p66
      %s69 = sadd.s32 %s68, 1
      %p72 = scmp.eq.s32.totalorder %s34, 1
      %p73 = scmp.ne.s32.totalorder %s68, %s70
      %p74 = scmp.eq.s32.totalorder %s34, 0
      %p75 = por %p73, %p74
      %p76 = scmp.ne.s32.totalorder %s68, %s70
      %p77 = scmp.eq.s32.totalorder %s39, 1
      %p78 = por %p76, %p77
      %p79 = scmp.ne.s32.totalorder %s70, %s71
      %p80 = scmp.eq.s32.totalorder %s39, 0
      %p81 = por %p79, %p80
      %p82 = scmp.ne.s32.totalorder %s70, %s71
      %p83 = scmp.eq.s32.totalorder %s40, 1
      %p84 = por %p82, %p83
      %p86 = scmp.ne.s32.totalorder %s71, %s85
      %p87 = scmp.eq.s32.totalorder %s40, 0
      %p88 = por %p86, %p87
      %s90 = sadd.s32 %s89, 1
      %p93 = scmp.eq.s32.totalorder %s34, 1
      %p94 = scmp.ne.s32.totalorder %s89, %s91
      %p95 = scmp.eq.s32.totalorder %s34, 0
      %p96 = por %p94, %p95
      %p97 = scmp.ne.s32.totalorder %s89, %s91
      %p98 = scmp.eq.s32.totalorder %s39, 1
      %p99 = por %p97, %p98
      %p100 = scmp.ne.s32.totalorder %s91, %s92
      %p101 = scmp.eq.s32.totalorder %s39, 0
      %p102 = por %p100, %p101
      %p103 = scmp.ne.s32.totalorder %s91, %s92
      %p104 = scmp.eq.s32.totalorder %s40, 1
      %p105 = por %p103, %p104
      %p107 = scmp.ne.s32.totalorder %s92, %s106
      %p108 = scmp.eq.s32.totalorder %s40, 0
      %p109 = por %p107, %p108
      %s111 = sadd.s32 %s110, 1
      %p114 = scmp.eq.s32.totalorder %s34, 1
      %p115 = scmp.ne.s32.totalorder %s110, %s112
      %p116 = scmp.eq.s32.totalorder %s34, 0
      %p117 = por %p115, %p116
      %p118 = scmp.ne.s32.totalorder %s110, %s112
      %p119 = scmp.eq.s32.totalorder %s39, 1
      %p120 = por %p118, %p119
      %p121 = scmp.ne.s32.totalorder %s112, %s113
      %p122 = scmp.eq.s32.totalorder %s39, 0
      %p123 = por %p121, %p122
      %p124 = scmp.ne.s32.totalorder %s112, %s113
      %p125 = scmp.eq.s32.totalorder %s40, 1
      %p126 = por %p124, %p125
      %p128 = scmp.ne.s32.totalorder %s113, %s127
      %p129 = scmp.eq.s32.totalorder %s40, 0
      %p130 = por %p128, %p129
      %s132 = sadd.s32 %s131, 1
      %p135 = scmp.eq.s32.totalorder %s34, 1
      %p136 = scmp.ne.s32.totalorder %s131, %s133
      %p137 = scmp.eq.s32.totalorder %s34, 0
      %p138 = por %p136, %p137
      %p139 = scmp.ne.s32.totalorder %s131, %s133
      %p140 = scmp.eq.s32.totalorder %s39, 1
      %p141 = por %p139, %p140
      %p142 = scmp.ne.s32.totalorder %s133, %s134
      %p143 = scmp.eq.s32.totalorder %s39, 0
      %p144 = por %p142, %p143
      %p145 = scmp.ne.s32.totalorder %s133, %s134
      %p146 = scmp.eq.s32.totalorder %s40, 1
      %p147 = por %p145, %p146
      %p149 = scmp.ne.s32.totalorder %s134, %s148
      %p150 = scmp.eq.s32.totalorder %s40, 0
      %p151 = por %p149, %p150
      %s153 = sadd.s32 %s152, 1
      %p156 = scmp.eq.s32.totalorder %s34, 1
      %p157 = scmp.ne.s32.totalorder %s152, %s154
      %p158 = scmp.eq.s32.totalorder %s34, 0
      %p159 = por %p157, %p158
      %p160 = scmp.ne.s32.totalorder %s152, %s154
      %p161 = scmp.eq.s32.totalorder %s39, 1
      %p162 = por %p160, %p161
      %p163 = scmp.ne.s32.totalorder %s154, %s155
      %p164 = scmp.eq.s32.totalorder %s39, 0
      %p165 = por %p163, %p164
      %p166 = scmp.ne.s32.totalorder %s154, %s155
      %p167 = scmp.eq.s32.totalorder %s40, 1
      %p168 = por %p166, %p167
      %p170 = scmp.ne.s32.totalorder %s155, %s169
      %p171 = scmp.eq.s32.totalorder %s40, 0
      %p172 = por %p170, %p171
      %s174 = sadd.s32 %s173, 1
      %p177 = scmp.eq.s32.totalorder %s34, 1
      %p178 = scmp.ne.s32.totalorder %s173, %s175
      %p179 = scmp.eq.s32.totalorder %s34, 0
      %p180 = por %p178, %p179
      %p181 = scmp.ne.s32.totalorder %s173, %s175
      %p182 = scmp.eq.s32.totalorder %s39, 1
      %p183 = por %p181, %p182
      %p184 = scmp.ne.s32.totalorder %s175, %s176
      %p185 = scmp.eq.s32.totalorder %s39, 0
      %p186 = por %p184, %p185
      %p187 = scmp.ne.s32.totalorder %s175, %s176
      %p188 = scmp.eq.s32.totalorder %s40, 1
      %p189 = por %p187, %p188
      %p191 = scmp.ne.s32.totalorder %s176, %s190
      %p192 = scmp.eq.s32.totalorder %s40, 0
      %p193 = por %p191, %p192
      %s195 = sadd.s32 %s194, 1
      %p198 = scmp.eq.s32.totalorder %s34, 1
      %p199 = scmp.ne.s32.totalorder %s194, %s196
      %p200 = scmp.eq.s32.totalorder %s34, 0
      %p201 = por %p199, %p200
      %p202 = scmp.ne.s32.totalorder %s194, %s196
      %p203 = scmp.eq.s32.totalorder %s39, 1
      %p204 = por %p202, %p203
      %p205 = scmp.ne.s32.totalorder %s196, %s197
      %p206 = scmp.eq.s32.totalorder %s39, 0
      %p207 = por %p205, %p206
      %p208 = scmp.ne.s32.totalorder %s196, %s197
      %p209 = scmp.eq.s32.totalorder %s40, 1
      %p210 = por %p208, %p209
      %p212 = scmp.ne.s32.totalorder %s197, %s211
      %p213 = scmp.eq.s32.totalorder %s40, 0
      %p214 = por %p212, %p213
      %s216 = sadd.s32 %s215, 1
      %p219 = scmp.eq.s32.totalorder %s34, 1
      %p220 = scmp.ne.s32.totalorder %s215, %s217
      %p221 = scmp.eq.s32.totalorder %s34, 0
      %p222 = por %p220, %p221
      %p223 = scmp.ne.s32.totalorder %s215, %s217
      %p224 = scmp.eq.s32.totalorder %s39, 1
      %p225 = por %p223, %p224
      %p226 = scmp.ne.s32.totalorder %s217, %s218
      %p227 = scmp.eq.s32.totalorder %s39, 0
      %p228 = por %p226, %p227
      %p229 = scmp.ne.s32.totalorder %s217, %s218
      %p230 = scmp.eq.s32.totalorder %s40, 1
      %p231 = por %p229, %p230
      %p233 = scmp.ne.s32.totalorder %s218, %s232
      %p234 = scmp.eq.s32.totalorder %s40, 0
      %p235 = por %p233, %p234
      %s237 = sadd.s32 %s236, 1
      %p240 = scmp.eq.s32.totalorder %s34, 1
      %p241 = scmp.ne.s32.totalorder %s236, %s238
      %p242 = scmp.eq.s32.totalorder %s34, 0
      %p243 = por %p241, %p242
      %p244 = scmp.ne.s32.totalorder %s236, %s238
      %p245 = scmp.eq.s32.totalorder %s39, 1
      %p246 = por %p244, %p245
      %p247 = scmp.ne.s32.totalorder %s238, %s239
      %p248 = scmp.eq.s32.totalorder %s39, 0
      %p249 = por %p247, %p248
      %p250 = scmp.ne.s32.totalorder %s238, %s239
      %p251 = scmp.eq.s32.totalorder %s40, 1
      %p252 = por %p250, %p251
      %p254 = scmp.ne.s32.totalorder %s239, %s253
      %p255 = scmp.eq.s32.totalorder %s40, 0
      %p256 = por %p254, %p255
      %s258 = sadd.s32 %s257, 1
      %p261 = scmp.eq.s32.totalorder %s34, 1
      %p262 = scmp.ne.s32.totalorder %s257, %s259
      %p263 = scmp.eq.s32.totalorder %s34, 0
      %p264 = por %p262, %p263
      %p265 = scmp.ne.s32.totalorder %s257, %s259
      %p266 = scmp.eq.s32.totalorder %s39, 1
      %p267 = por %p265, %p266
      %p268 = scmp.ne.s32.totalorder %s259, %s260
      %p269 = scmp.eq.s32.totalorder %s39, 0
      %p270 = por %p268, %p269
      %p271 = scmp.ne.s32.totalorder %s259, %s260
      %p272 = scmp.eq.s32.totalorder %s40, 1
      %p273 = por %p271, %p272
      %p275 = scmp.ne.s32.totalorder %s260, %s274
      %p276 = scmp.eq.s32.totalorder %s40, 0
      %p277 = por %p275, %p276
      %s279 = sadd.s32 %s278, 1
      %p282 = scmp.eq.s32.totalorder %s34, 1
      %p283 = scmp.ne.s32.totalorder %s278, %s280
      %p284 = scmp.eq.s32.totalorder %s34, 0
      %p285 = por %p283, %p284
      %p286 = scmp.ne.s32.totalorder %s278, %s280
      %p287 = scmp.eq.s32.totalorder %s39, 1
      %p288 = por %p286, %p287
      %p289 = scmp.ne.s32.totalorder %s280, %s281
      %p290 = scmp.eq.s32.totalorder %s39, 0
      %p291 = por %p289, %p290
      %p292 = scmp.ne.s32.totalorder %s280, %s281
      %p293 = scmp.eq.s32.totalorder %s40, 1
      %p294 = por %p292, %p293
      %p296 = scmp.ne.s32.totalorder %s281, %s295
      %p297 = scmp.eq.s32.totalorder %s40, 0
      %p298 = por %p296, %p297
      %s300 = sadd.s32 %s299, 1
      %p303 = scmp.eq.s32.totalorder %s34, 1
      %p304 = scmp.ne.s32.totalorder %s299, %s301
      %p305 = scmp.eq.s32.totalorder %s34, 0
      %p306 = por %p304, %p305
      %p307 = scmp.ne.s32.totalorder %s299, %s301
      %p308 = scmp.eq.s32.totalorder %s39, 1
      %p309 = por %p307, %p308
      %p310 = scmp.ne.s32.totalorder %s301, %s302
      %p311 = scmp.eq.s32.totalorder %s39, 0
      %p312 = por %p310, %p311
      %p313 = scmp.ne.s32.totalorder %s301, %s302
      %p314 = scmp.eq.s32.totalorder %s40, 1
      %p315 = por %p313, %p314
      %p317 = scmp.ne.s32.totalorder %s302, %s316
      %p318 = scmp.eq.s32.totalorder %s40, 0
      %p319 = por %p317, %p318
      %s321 = sadd.s32 %s320, 1
      %p324 = scmp.eq.s32.totalorder %s34, 1
      %p325 = scmp.ne.s32.totalorder %s320, %s322
      %p326 = scmp.eq.s32.totalorder %s34, 0
      %p327 = por %p325, %p326
      %p328 = scmp.ne.s32.totalorder %s320, %s322
      %p329 = scmp.eq.s32.totalorder %s39, 1
      %p330 = por %p328, %p329
      %p331 = scmp.ne.s32.totalorder %s322, %s323
      %p332 = scmp.eq.s32.totalorder %s39, 0
      %p333 = por %p331, %p332
      %p334 = scmp.ne.s32.totalorder %s322, %s323
      %p335 = scmp.eq.s32.totalorder %s40, 1
      %p336 = por %p334, %p335
      %p338 = scmp.ne.s32.totalorder %s323, %s337
      %p339 = scmp.eq.s32.totalorder %s40, 0
      %p340 = por %p338, %p339
      %s342 = sadd.s32 %s341, 1
      %p345 = scmp.eq.s32.totalorder %s34, 1
      %p346 = scmp.ne.s32.totalorder %s341, %s343
      %p347 = scmp.eq.s32.totalorder %s34, 0
      %p348 = por %p346, %p347
      %p349 = scmp.ne.s32.totalorder %s341, %s343
      %p350 = scmp.eq.s32.totalorder %s39, 1
      %p351 = por %p349, %p350
      %p352 = scmp.ne.s32.totalorder %s343, %s344
      %p353 = scmp.eq.s32.totalorder %s39, 0
      %p354 = por %p352, %p353
      %p355 = scmp.ne.s32.totalorder %s343, %s344
      %p356 = scmp.eq.s32.totalorder %s40, 1
      %p357 = por %p355, %p356
      %p359 = scmp.ne.s32.totalorder %s344, %s358
      %p360 = scmp.eq.s32.totalorder %s40, 0
      %p361 = por %p359, %p360
      %s362 = ssub.s32 %s34, %s41
      %p363 = scmp.eq.s32.totalorder %s362, 0
      %s365 = sadd.s32 %s364, 1
      %s366 = scalar_select %p363, %s364, %s365
      %p369 = pneg %p363
      %p370 = scmp.eq.s32.totalorder %s34, 1
      %p371 = por %p369, %p370
      %p372 = scmp.ne.s32.totalorder %s364, %s367
      %p373 = scmp.eq.s32.totalorder %s34, 0
      %p374 = por %p372, %p373
      %p375 = scmp.ne.s32.totalorder %s364, %s367
      %p376 = scmp.eq.s32.totalorder %s39, 1
      %p377 = por %p375, %p376
      %p378 = scmp.ne.s32.totalorder %s367, %s368
      %p379 = scmp.eq.s32.totalorder %s39, 0
      %p380 = por %p378, %p379
      %p381 = scmp.ne.s32.totalorder %s367, %s368
      %p382 = scmp.eq.s32.totalorder %s40, 1
      %p383 = por %p381, %p382
      %p385 = scmp.ne.s32.totalorder %s368, %s384
      %p386 = scmp.eq.s32.totalorder %s40, 0
      %p387 = por %p385, %p386
      %p388 = scmp.le.s32.totalorder 1, %s34
      %p389 = scmp.lt.s32.totalorder %s34, 3
      %p390 = pnand %p388, %p389
      %p391 = pneg %p390
      // Predicated region
      $region9: #{tpu_custom_call.1} parent=5 // pred_check
        _
      $region10: #{tpu_custom_call.1} parent=5 // pred_check_branch
        %393 = sbr.rel (%p390) target = $region12
      $region11: #{tpu_custom_call.1} parent=5 // pred_region
        %s394 = ssub.s32 %s34, 1
        // Predicated region
        $region13: #{tpu_custom_call.1} parent=11 // pred_check
          %p395 = pneg %p81
        $region14: #{tpu_custom_call.1} parent=11 // pred_check_branch
          %397 = sbr.rel (%p395) target = $region16
        $region15: #{tpu_custom_call.1} parent=11 // pred_region
          %s399 = ssub.s32 32768, 32768
          %400 = vsyncadd [#allocation6], %s399
          %s401 = sshll.u32 [#allocation5], 4
          %s402 = int_to_ptr.vmem [resolvable:$true] %s401
          %407 = dma.hbm_to_vmem [thread:$0]  %s1, 32768, %s402, [#allocation6], 1024, 1024, 64
        $region16: #{tpu_custom_call.1} parent=11 // pred_fallthru
          _
        // Predicated region
        $region17: #{tpu_custom_call.1} parent=11 // pred_check
          %p408 = pneg %p102
        $region18: #{tpu_custom_call.1} parent=11 // pred_check_branch
          %410 = sbr.rel (%p408) target = $region20
        $region19: #{tpu_custom_call.1} parent=11 // pred_region
          %s412 = ssub.s32 128, 128
          %413 = vsyncadd [#allocation6], %s412
          %s415 = sshll.u32 [#allocation7], 4
          %s416 = int_to_ptr.vmem [resolvable:$true] %s415
          %418 = dma.hbm_to_vmem [thread:$0]  %s2, 128, %s416, [#allocation6]
        $region20: #{tpu_custom_call.1} parent=11 // pred_fallthru
          _
        // Predicated region
        $region21: #{tpu_custom_call.1} parent=11 // pred_check
          %p419 = pneg %p123
        $region22: #{tpu_custom_call.1} parent=11 // pred_check_branch
          %421 = sbr.rel (%p419) target = $region24
        $region23: #{tpu_custom_call.1} parent=11 // pred_region
          %s423 = ssub.s32 128, 128
          %424 = vsyncadd [#allocation9], %s423
          %s426 = sshll.u32 [#allocation8], 4
          %s427 = int_to_ptr.vmem [resolvable:$true] %s426
          %429 = dma.hbm_to_vmem [thread:$0]  %s3, 128, %s427, [#allocation9]
        $region24: #{tpu_custom_call.1} parent=11 // pred_fallthru
          _
        // Predicated region
        $region25: #{tpu_custom_call.1} parent=11 // pred_check
          %p430 = pneg %p144
        $region26: #{tpu_custom_call.1} parent=11 // pred_check_branch
          %432 = sbr.rel (%p430) target = $region28
        $region27: #{tpu_custom_call.1} parent=11 // pred_region
          %s434 = ssub.s32 128, 128
          %435 = vsyncadd [#allocation9], %s434
          %s437 = sshll.u32 [#allocation10], 4
          %s438 = int_to_ptr.vmem [resolvable:$true] %s437
          %440 = dma.hbm_to_vmem [thread:$0]  %s4, 128, %s438, [#allocation9]
        $region28: #{tpu_custom_call.1} parent=11 // pred_fallthru
          _
        // Predicated region
        $region29: #{tpu_custom_call.1} parent=11 // pred_check
          %p441 = pneg %p165
        $region30: #{tpu_custom_call.1} parent=11 // pred_check_branch
          %443 = sbr.rel (%p441) target = $region32
        $region31: #{tpu_custom_call.1} parent=11 // pred_region
          %s445 = ssub.s32 65536, 65536
          %446 = vsyncadd [#allocation12], %s445
          %s447 = sshll.u32 [#allocation11], 4
          %s448 = int_to_ptr.vmem [resolvable:$true] %s447
          %453 = dma.hbm_to_vmem [thread:$0]  %s5, 65536, %s448, [#allocation12], 512, 512, 32
        $region32: #{tpu_custom_call.1} parent=11 // pred_fallthru
          _
        // Predicated region
        $region33: #{tpu_custom_call.1} parent=11 // pred_check
          %p454 = pneg %p186
        $region34: #{tpu_custom_call.1} parent=11 // pred_check_branch
          %456 = sbr.rel (%p454) target = $region36
        $region35: #{tpu_custom_call.1} parent=11 // pred_region
          %s458 = ssub.s32 64, 64
          %459 = vsyncadd [#allocation12], %s458
          %s461 = sshll.u32 [#allocation13], 4
          %s462 = int_to_ptr.vmem [resolvable:$true] %s461
          %464 = dma.hbm_to_vmem [thread:$0]  %s6, 64, %s462, [#allocation12]
        $region36: #{tpu_custom_call.1} parent=11 // pred_fallthru
          _
        // Predicated region
        $region37: #{tpu_custom_call.1} parent=11 // pred_check
          %p465 = pneg %p207
        $region38: #{tpu_custom_call.1} parent=11 // pred_check_branch
          %467 = sbr.rel (%p465) target = $region40
        $region39: #{tpu_custom_call.1} parent=11 // pred_region
          %s469 = ssub.s32 64, 64
          %470 = vsyncadd [#allocation15], %s469
          %s472 = sshll.u32 [#allocation14], 4
          %s473 = int_to_ptr.vmem [resolvable:$true] %s472
          %475 = dma.hbm_to_vmem [thread:$0]  %s7, 64, %s473, [#allocation15]
        $region40: #{tpu_custom_call.1} parent=11 // pred_fallthru
          _
        // Predicated region
        $region41: #{tpu_custom_call.1} parent=11 // pred_check
          %p476 = pneg %p228
        $region42: #{tpu_custom_call.1} parent=11 // pred_check_branch
          %478 = sbr.rel (%p476) target = $region44
        $region43: #{tpu_custom_call.1} parent=11 // pred_region
          %s480 = ssub.s32 64, 64
          %481 = vsyncadd [#allocation15], %s480
          %s483 = sshll.u32 [#allocation16], 4
          %s484 = int_to_ptr.vmem [resolvable:$true] %s483
          %486 = dma.hbm_to_vmem [thread:$0]  %s8, 64, %s484, [#allocation15]
        $region44: #{tpu_custom_call.1} parent=11 // pred_fallthru
          _
        // Predicated region
        $region45: #{tpu_custom_call.1} parent=11 // pred_check
          %p487 = pneg %p249
        $region46: #{tpu_custom_call.1} parent=11 // pred_check_branch
          %489 = sbr.rel (%p487) target = $region48
        $region47: #{tpu_custom_call.1} parent=11 // pred_region
          %s491 = ssub.s32 16384, 16384
          %492 = vsyncadd [#allocation18], %s491
          %s493 = sshll.u32 [#allocation17], 4
          %s494 = int_to_ptr.vmem [resolvable:$true] %s493
          %499 = dma.hbm_to_vmem [thread:$0]  %s9, 16384, %s494, [#allocation18], 256, 256, 16
        $region48: #{tpu_custom_call.1} parent=11 // pred_fallthru
          _
        // Predicated region
        $region49: #{tpu_custom_call.1} parent=11 // pred_check
          %p500 = pneg %p270
        $region50: #{tpu_custom_call.1} parent=11 // pred_check_branch
          %502 = sbr.rel (%p500) target = $region52
        $region51: #{tpu_custom_call.1} parent=11 // pred_region
          %s504 = ssub.s32 32, 32
          %505 = vsyncadd [#allocation18], %s504
          %s507 = sshll.u32 [#allocation19], 4
          %s508 = int_to_ptr.vmem [resolvable:$true] %s507
          %510 = dma.hbm_to_vmem [thread:$0]  %s10, 32, %s508, [#allocation18]
        $region52: #{tpu_custom_call.1} parent=11 // pred_fallthru
          _
        // Predicated region
        $region53: #{tpu_custom_call.1} parent=11 // pred_check
          %p511 = pneg %p291
        $region54: #{tpu_custom_call.1} parent=11 // pred_check_branch
          %513 = sbr.rel (%p511) target = $region56
        $region55: #{tpu_custom_call.1} parent=11 // pred_region
          %s515 = ssub.s32 32, 32
          %516 = vsyncadd [#allocation21], %s515
          %s518 = sshll.u32 [#allocation20], 4
          %s519 = int_to_ptr.vmem [resolvable:$true] %s518
          %521 = dma.hbm_to_vmem [thread:$0]  %s11, 32, %s519, [#allocation21]
        $region56: #{tpu_custom_call.1} parent=11 // pred_fallthru
          _
        // Predicated region
        $region57: #{tpu_custom_call.1} parent=11 // pred_check
          %p522 = pneg %p312
        $region58: #{tpu_custom_call.1} parent=11 // pred_check_branch
          %524 = sbr.rel (%p522) target = $region60
        $region59: #{tpu_custom_call.1} parent=11 // pred_region
          %s526 = ssub.s32 32, 32
          %527 = vsyncadd [#allocation21], %s526
          %s529 = sshll.u32 [#allocation22], 4
          %s530 = int_to_ptr.vmem [resolvable:$true] %s529
          %532 = dma.hbm_to_vmem [thread:$0]  %s12, 32, %s530, [#allocation21]
        $region60: #{tpu_custom_call.1} parent=11 // pred_fallthru
          _
        // Predicated region
        $region61: #{tpu_custom_call.1} parent=11 // pred_check
          %p533 = pneg %p333
        $region62: #{tpu_custom_call.1} parent=11 // pred_check_branch
          %535 = sbr.rel (%p533) target = $region64
        $region63: #{tpu_custom_call.1} parent=11 // pred_region
          %s537 = ssub.s32 4096, 4096
          %538 = vsyncadd [#allocation24], %s537
          %s539 = sshll.u32 [#allocation23], 4
          %s540 = int_to_ptr.vmem [resolvable:$true] %s539
          %545 = dma.hbm_to_vmem [thread:$0]  %s13, 4096, %s540, [#allocation24], 128, 128, 8
        $region64: #{tpu_custom_call.1} parent=11 // pred_fallthru
          _
        // Predicated region
        $region65: #{tpu_custom_call.1} parent=11 // pred_check
          %p546 = pneg %p354
        $region66: #{tpu_custom_call.1} parent=11 // pred_check_branch
          %548 = sbr.rel (%p546) target = $region68
        $region67: #{tpu_custom_call.1} parent=11 // pred_region
          %s550 = ssub.s32 16, 16
          %551 = vsyncadd [#allocation24], %s550
          %s553 = sshll.u32 [#allocation25], 4
          %s554 = int_to_ptr.vmem [resolvable:$true] %s553
          %556 = dma.hbm_to_vmem [thread:$0]  %s14, 16, %s554, [#allocation24]
        $region68: #{tpu_custom_call.1} parent=11 // pred_fallthru
          _
      $region12: #{tpu_custom_call.1} parent=5 // pred_fallthru
        _
      %p557 = scmp.lt.s32.totalorder %s34, 2
      // Predicated region
      $region69: #{tpu_custom_call.1} parent=5 // pred_check
        %p558 = pneg %p557
      $region70: #{tpu_custom_call.1} parent=5 // pred_check_branch
        %560 = sbr.rel (%p558) target = $region72
      $region71: #{tpu_custom_call.1} parent=5 // pred_region
        // Predicated region
        $region73: #{tpu_custom_call.1} parent=71 // pred_check
          %p561 = pneg %p54
        $region74: #{tpu_custom_call.1} parent=71 // pred_check_branch
          %563 = sbr.rel (%p561) target = $region76
        $region75: #{tpu_custom_call.1} parent=71 // pred_region
          %s564 = sand.u32 %s44, 1
          %s565 = scalar_lea.sflag [#allocation3], %s564
          %s566 = sand.u32 %s44, 1
          %s567 = smul.addr %s566, 64
          %s568 = scalar_lea.vmem [#allocation2], %s567
          %s569 = smul.u32 4, %s34
          %s571 = ssub.s32 1024, 1024
          %572 = vsyncadd %s565, %s571
          %s573 = smul.addr %s569, 2
          %s574 = smul.addr %s573, 128
          %s575 = scalar_lea.hbm %s0, %s574
          %s576 = sshll.u32 %s568, 4
          %s577 = int_to_ptr.vmem [resolvable:$true] %s576
          %582 = dma.hbm_to_vmem [thread:$0]  %s575, 1024, %s577, %s565, 256, 256, 16
        $region76: #{tpu_custom_call.1} parent=71 // pred_fallthru
          _
      $region72: #{tpu_custom_call.1} parent=5 // pred_fallthru
        _
      %p583 = scmp.le.s32.totalorder 1, %s34
      %p584 = scmp.lt.s32.totalorder %s34, 3
      %p585 = pnand %p583, %p584
      %p586 = pneg %p585
      // Predicated region
      $region77: #{tpu_custom_call.1} parent=5 // pred_check
        _
      $region78: #{tpu_custom_call.1} parent=5 // pred_check_branch
        %588 = sbr.rel (%p585) target = $region80
      $region79: #{tpu_custom_call.1} parent=5 // pred_region
        %s589 = ssub.s32 %s34, 1
        %s590 = sand.u32 %s47, 1
        %s591 = scalar_lea.sflag [#allocation3], %s590
        %s592 = sand.u32 %s47, 1
        %s593 = smul.addr %s592, 64
        %s594 = scalar_lea.vmem [#allocation2], %s593
        // Predicated region
        $region81: #{tpu_custom_call.1} parent=79 // pred_check
          %p595 = pneg %p60
        $region82: #{tpu_custom_call.1} parent=79 // pred_check_branch
          %597 = sbr.rel (%p595) target = $region84
        $region83: #{tpu_custom_call.1} parent=79 // pred_region
          %598 = dma.done %s591, 1024
        $region84: #{tpu_custom_call.1} parent=79 // pred_fallthru
          _
        // Predicated region
        $region85: #{tpu_custom_call.1} parent=79 // pred_check
          %p599 = pneg %p81
        $region86: #{tpu_custom_call.1} parent=79 // pred_check_branch
          %601 = sbr.rel (%p599) target = $region88
        $region87: #{tpu_custom_call.1} parent=79 // pred_region
          %602 = dma.done [#allocation6], 32768
        $region88: #{tpu_custom_call.1} parent=79 // pred_fallthru
          _
        // Predicated region
        $region89: #{tpu_custom_call.1} parent=79 // pred_check
          %p603 = pneg %p102
        $region90: #{tpu_custom_call.1} parent=79 // pred_check_branch
          %605 = sbr.rel (%p603) target = $region92
        $region91: #{tpu_custom_call.1} parent=79 // pred_region
          %606 = dma.done [#allocation6], 128
        $region92: #{tpu_custom_call.1} parent=79 // pred_fallthru
          _
        // Predicated region
        $region93: #{tpu_custom_call.1} parent=79 // pred_check
          %p607 = pneg %p123
        $region94: #{tpu_custom_call.1} parent=79 // pred_check_branch
          %609 = sbr.rel (%p607) target = $region96
        $region95: #{tpu_custom_call.1} parent=79 // pred_region
          %610 = dma.done [#allocation9], 128
        $region96: #{tpu_custom_call.1} parent=79 // pred_fallthru
          _
        // Predicated region
        $region97: #{tpu_custom_call.1} parent=79 // pred_check
          %p611 = pneg %p144
        $region98: #{tpu_custom_call.1} parent=79 // pred_check_branch
          %613 = sbr.rel (%p611) target = $region100
        $region99: #{tpu_custom_call.1} parent=79 // pred_region
          %614 = dma.done [#allocation9], 128
        $region100: #{tpu_custom_call.1} parent=79 // pred_fallthru
          _
        // Predicated region
        $region101: #{tpu_custom_call.1} parent=79 // pred_check
          %p615 = pneg %p165
        $region102: #{tpu_custom_call.1} parent=79 // pred_check_branch
          %617 = sbr.rel (%p615) target = $region104
        $region103: #{tpu_custom_call.1} parent=79 // pred_region
          %618 = dma.done [#allocation12], 65536
        $region104: #{tpu_custom_call.1} parent=79 // pred_fallthru
          _
        // Predicated region
        $region105: #{tpu_custom_call.1} parent=79 // pred_check
          %p619 = pneg %p186
        $region106: #{tpu_custom_call.1} parent=79 // pred_check_branch
          %621 = sbr.rel (%p619) target = $region108
        $region107: #{tpu_custom_call.1} parent=79 // pred_region
          %622 = dma.done [#allocation12], 64
        $region108: #{tpu_custom_call.1} parent=79 // pred_fallthru
          _
        // Predicated region
        $region109: #{tpu_custom_call.1} parent=79 // pred_check
          %p623 = pneg %p207
        $region110: #{tpu_custom_call.1} parent=79 // pred_check_branch
          %625 = sbr.rel (%p623) target = $region112
        $region111: #{tpu_custom_call.1} parent=79 // pred_region
          %626 = dma.done [#allocation15], 64
        $region112: #{tpu_custom_call.1} parent=79 // pred_fallthru
          _
        // Predicated region
        $region113: #{tpu_custom_call.1} parent=79 // pred_check
          %p627 = pneg %p228
        $region114: #{tpu_custom_call.1} parent=79 // pred_check_branch
          %629 = sbr.rel (%p627) target = $region116
        $region115: #{tpu_custom_call.1} parent=79 // pred_region
          %630 = dma.done [#allocation15], 64
        $region116: #{tpu_custom_call.1} parent=79 // pred_fallthru
          _
        // Predicated region
        $region117: #{tpu_custom_call.1} parent=79 // pred_check
          %p631 = pneg %p249
        $region118: #{tpu_custom_call.1} parent=79 // pred_check_branch
          %633 = sbr.rel (%p631) target = $region120
        $region119: #{tpu_custom_call.1} parent=79 // pred_region
          %634 = dma.done [#allocation18], 16384
        $region120: #{tpu_custom_call.1} parent=79 // pred_fallthru
          _
        // Predicated region
        $region121: #{tpu_custom_call.1} parent=79 // pred_check
          %p635 = pneg %p270
        $region122: #{tpu_custom_call.1} parent=79 // pred_check_branch
          %637 = sbr.rel (%p635) target = $region124
        $region123: #{tpu_custom_call.1} parent=79 // pred_region
          %638 = dma.done [#allocation18], 32
        $region124: #{tpu_custom_call.1} parent=79 // pred_fallthru
          _
        // Predicated region
        $region125: #{tpu_custom_call.1} parent=79 // pred_check
          %p639 = pneg %p291
        $region126: #{tpu_custom_call.1} parent=79 // pred_check_branch
          %641 = sbr.rel (%p639) target = $region128
        $region127: #{tpu_custom_call.1} parent=79 // pred_region
          %642 = dma.done [#allocation21], 32
        $region128: #{tpu_custom_call.1} parent=79 // pred_fallthru
          _
        // Predicated region
        $region129: #{tpu_custom_call.1} parent=79 // pred_check
          %p643 = pneg %p312
        $region130: #{tpu_custom_call.1} parent=79 // pred_check_branch
          %645 = sbr.rel (%p643) target = $region132
        $region131: #{tpu_custom_call.1} parent=79 // pred_region
          %646 = dma.done [#allocation21], 32
        $region132: #{tpu_custom_call.1} parent=79 // pred_fallthru
          _
        // Predicated region
        $region133: #{tpu_custom_call.1} parent=79 // pred_check
          %p647 = pneg %p333
        $region134: #{tpu_custom_call.1} parent=79 // pred_check_branch
          %649 = sbr.rel (%p647) target = $region136
        $region135: #{tpu_custom_call.1} parent=79 // pred_region
          %650 = dma.done [#allocation24], 4096
        $region136: #{tpu_custom_call.1} parent=79 // pred_fallthru
          _
        // Predicated region
        $region137: #{tpu_custom_call.1} parent=79 // pred_check
          %p651 = pneg %p354
        $region138: #{tpu_custom_call.1} parent=79 // pred_check_branch
          %653 = sbr.rel (%p651) target = $region140
        $region139: #{tpu_custom_call.1} parent=79 // pred_region
          %654 = dma.done [#allocation24], 16
        $region140: #{tpu_custom_call.1} parent=79 // pred_fallthru
          _
        %s655 = sand.u32 %s47, 1
        %s656 = scalar_lea.sflag [#allocation3], %s655
        %s657 = sand.u32 %s47, 1
        %s658 = smul.addr %s657, 64
        %s659 = scalar_lea.vmem [#allocation2], %s658
        %p660 = pneg %p60
        %p661 = pneg %p57
        %p662 = pneg %p81
        %p663 = pneg %p78
        %p664 = pneg %p102
        %p665 = pneg %p99
        %p666 = pneg %p123
        %p667 = pneg %p120
        %p668 = pneg %p144
        %p669 = pneg %p141
        %p670 = pneg %p165
        %p671 = pneg %p162
        %p672 = pneg %p186
        %p673 = pneg %p183
        %p674 = pneg %p207
        %p675 = pneg %p204
        %p676 = pneg %p228
        %p677 = pneg %p225
        %p678 = pneg %p249
        %p679 = pneg %p246
        %p680 = pneg %p270
        %p681 = pneg %p267
        %p682 = pneg %p291
        %p683 = pneg %p288
        %p684 = pneg %p312
        %p685 = pneg %p309
        %p686 = pneg %p333
        %p687 = pneg %p330
        %p688 = pneg %p354
        %p689 = pneg %p351
        %p690 = pneg %p380
        %p691 = pneg %p377
        %s692 = sand.u32 %s367, 1
        %s693 = scalar_lea.sflag [#allocation4], %s692
        %s694 = sand.u32 %s367, 1
        %s695 = smul.addr %s694, 32
        %s696 = scalar_lea.vmem [#allocation26], %s695
        %s697 = smul.u32 4, %s39
        %s698 = smul.u32 4, %s39
        %v699 = vld [vmem:[%s594] sm:$0xff]
        %v700 = vld [vmem:[%s594 + $0x8] sm:$0xff]
        %v701 = vld [vmem:[%s594 + $0x10] sm:$0xff]
        %v702 = vld [vmem:[%s594 + $0x18] sm:$0xff]
        %v703 = vld [vmem:[%s594 + $0x20] sm:$0xff]
        %v704 = vld [vmem:[%s594 + $0x28] sm:$0xff]
        %v705 = vld [vmem:[%s594 + $0x30] sm:$0xff]
        %v706 = vld [vmem:[%s594 + $0x38] sm:$0xff]
        %v707 = vld [vmem:[#allocation5] sm:$0xff]
        %v708 = vld [vmem:[#allocation5 + $0x8] sm:$0xff]
        %v709 = vld [vmem:[#allocation5 + $0x10] sm:$0xff]
        %v710 = vld [vmem:[#allocation5 + $0x18] sm:$0xff]
        %v711 = vld [vmem:[#allocation5 + $0x20] sm:$0xff]
        %v712 = vld [vmem:[#allocation5 + $0x28] sm:$0xff]
        %v713 = vld [vmem:[#allocation5 + $0x30] sm:$0xff]
        %v714 = vld [vmem:[#allocation5 + $0x38] sm:$0xff]
        %v715 = vld [vmem:[#allocation5 + $0x40] sm:$0xff]
        %v716 = vld [vmem:[#allocation5 + $0x48] sm:$0xff]
        %v717 = vld [vmem:[#allocation5 + $0x50] sm:$0xff]
        %v718 = vld [vmem:[#allocation5 + $0x58] sm:$0xff]
        %v719 = vld [vmem:[#allocation5 + $0x60] sm:$0xff]
        %v720 = vld [vmem:[#allocation5 + $0x68] sm:$0xff]
        %v721 = vld [vmem:[#allocation5 + $0x70] sm:$0xff]
        %v722 = vld [vmem:[#allocation5 + $0x78] sm:$0xff]
        %v723 = vld [vmem:[#allocation5 + $0x80] sm:$0xff]
        %v724 = vld [vmem:[#allocation5 + $0x88] sm:$0xff]
        %v725 = vld [vmem:[#allocation5 + $0x90] sm:$0xff]
        %v726 = vld [vmem:[#allocation5 + $0x98] sm:$0xff]
        %v727 = vld [vmem:[#allocation5 + $0xa0] sm:$0xff]
        %v728 = vld [vmem:[#allocation5 + $0xa8] sm:$0xff]
        %v729 = vld [vmem:[#allocation5 + $0xb0] sm:$0xff]
        %v730 = vld [vmem:[#allocation5 + $0xb8] sm:$0xff]
        %v731 = vld [vmem:[#allocation5 + $0xc0] sm:$0xff]
        %v732 = vld [vmem:[#allocation5 + $0xc8] sm:$0xff]
        %v733 = vld [vmem:[#allocation5 + $0xd0] sm:$0xff]
        %v734 = vld [vmem:[#allocation5 + $0xd8] sm:$0xff]
        %v735 = vld [vmem:[#allocation5 + $0xe0] sm:$0xff]
        %v736 = vld [vmem:[#allocation5 + $0xe8] sm:$0xff]
        %v737 = vld [vmem:[#allocation5 + $0xf0] sm:$0xff]
        %v738 = vld [vmem:[#allocation5 + $0xf8] sm:$0xff]
        %v739 = vld [vmem:[#allocation5 + $0x100] sm:$0xff]
        %v740 = vld [vmem:[#allocation5 + $0x108] sm:$0xff]
        %v741 = vld [vmem:[#allocation5 + $0x110] sm:$0xff]
        %v742 = vld [vmem:[#allocation5 + $0x118] sm:$0xff]
        %v743 = vld [vmem:[#allocation5 + $0x120] sm:$0xff]
        %v744 = vld [vmem:[#allocation5 + $0x128] sm:$0xff]
        %v745 = vld [vmem:[#allocation5 + $0x130] sm:$0xff]
        %v746 = vld [vmem:[#allocation5 + $0x138] sm:$0xff]
        %v747 = vld [vmem:[#allocation5 + $0x140] sm:$0xff]
        %v748 = vld [vmem:[#allocation5 + $0x148] sm:$0xff]
        %v749 = vld [vmem:[#allocation5 + $0x150] sm:$0xff]
        %v750 = vld [vmem:[#allocation5 + $0x158] sm:$0xff]
        %v751 = vld [vmem:[#allocation5 + $0x160] sm:$0xff]
        %v752 = vld [vmem:[#allocation5 + $0x168] sm:$0xff]
        %v753 = vld [vmem:[#allocation5 + $0x170] sm:$0xff]
        %v754 = vld [vmem:[#allocation5 + $0x178] sm:$0xff]
        %v755 = vld [vmem:[#allocation5 + $0x180] sm:$0xff]
        %v756 = vld [vmem:[#allocation5 + $0x188] sm:$0xff]
        %v757 = vld [vmem:[#allocation5 + $0x190] sm:$0xff]
        %v758 = vld [vmem:[#allocation5 + $0x198] sm:$0xff]
        %v759 = vld [vmem:[#allocation5 + $0x1a0] sm:$0xff]
        %v760 = vld [vmem:[#allocation5 + $0x1a8] sm:$0xff]
        %v761 = vld [vmem:[#allocation5 + $0x1b0] sm:$0xff]
        %v762 = vld [vmem:[#allocation5 + $0x1b8] sm:$0xff]
        %v763 = vld [vmem:[#allocation5 + $0x1c0] sm:$0xff]
        %v764 = vld [vmem:[#allocation5 + $0x1c8] sm:$0xff]
        %v765 = vld [vmem:[#allocation5 + $0x1d0] sm:$0xff]
        %v766 = vld [vmem:[#allocation5 + $0x1d8] sm:$0xff]
        %v767 = vld [vmem:[#allocation5 + $0x1e0] sm:$0xff]
        %v768 = vld [vmem:[#allocation5 + $0x1e8] sm:$0xff]
        %v769 = vld [vmem:[#allocation5 + $0x1f0] sm:$0xff]
        %v770 = vld [vmem:[#allocation5 + $0x1f8] sm:$0xff]
        %v771 = vld [vmem:[#allocation5 + $0x200] sm:$0xff]
        %v772 = vld [vmem:[#allocation5 + $0x208] sm:$0xff]
        %v773 = vld [vmem:[#allocation5 + $0x210] sm:$0xff]
        %v774 = vld [vmem:[#allocation5 + $0x218] sm:$0xff]
        %v775 = vld [vmem:[#allocation5 + $0x220] sm:$0xff]
        %v776 = vld [vmem:[#allocation5 + $0x228] sm:$0xff]
        %v777 = vld [vmem:[#allocation5 + $0x230] sm:$0xff]
        %v778 = vld [vmem:[#allocation5 + $0x238] sm:$0xff]
        %v779 = vld [vmem:[#allocation5 + $0x240] sm:$0xff]
        %v780 = vld [vmem:[#allocation5 + $0x248] sm:$0xff]
        %v781 = vld [vmem:[#allocation5 + $0x250] sm:$0xff]
        %v782 = vld [vmem:[#allocation5 + $0x258] sm:$0xff]
        %v783 = vld [vmem:[#allocation5 + $0x260] sm:$0xff]
        %v784 = vld [vmem:[#allocation5 + $0x268] sm:$0xff]
        %v785 = vld [vmem:[#allocation5 + $0x270] sm:$0xff]
        %v786 = vld [vmem:[#allocation5 + $0x278] sm:$0xff]
        %v787 = vld [vmem:[#allocation5 + $0x280] sm:$0xff]
        %v788 = vld [vmem:[#allocation5 + $0x288] sm:$0xff]
        %v789 = vld [vmem:[#allocation5 + $0x290] sm:$0xff]
        %v790 = vld [vmem:[#allocation5 + $0x298] sm:$0xff]
        %v791 = vld [vmem:[#allocation5 + $0x2a0] sm:$0xff]
        %v792 = vld [vmem:[#allocation5 + $0x2a8] sm:$0xff]
        %v793 = vld [vmem:[#allocation5 + $0x2b0] sm:$0xff]
        %v794 = vld [vmem:[#allocation5 + $0x2b8] sm:$0xff]
        %v795 = vld [vmem:[#allocation5 + $0x2c0] sm:$0xff]
        %v796 = vld [vmem:[#allocation5 + $0x2c8] sm:$0xff]
        %v797 = vld [vmem:[#allocation5 + $0x2d0] sm:$0xff]
        %v798 = vld [vmem:[#allocation5 + $0x2d8] sm:$0xff]
        %v799 = vld [vmem:[#allocation5 + $0x2e0] sm:$0xff]
        %v800 = vld [vmem:[#allocation5 + $0x2e8] sm:$0xff]
        %v801 = vld [vmem:[#allocation5 + $0x2f0] sm:$0xff]
        %v802 = vld [vmem:[#allocation5 + $0x2f8] sm:$0xff]
        %v803 = vld [vmem:[#allocation5 + $0x300] sm:$0xff]
        %v804 = vld [vmem:[#allocation5 + $0x308] sm:$0xff]
        %v805 = vld [vmem:[#allocation5 + $0x310] sm:$0xff]
        %v806 = vld [vmem:[#allocation5 + $0x318] sm:$0xff]
        %v807 = vld [vmem:[#allocation5 + $0x320] sm:$0xff]
        %v808 = vld [vmem:[#allocation5 + $0x328] sm:$0xff]
        %v809 = vld [vmem:[#allocation5 + $0x330] sm:$0xff]
        %v810 = vld [vmem:[#allocation5 + $0x338] sm:$0xff]
        %v811 = vld [vmem:[#allocation5 + $0x340] sm:$0xff]
        %v812 = vld [vmem:[#allocation5 + $0x348] sm:$0xff]
        %v813 = vld [vmem:[#allocation5 + $0x350] sm:$0xff]
        %v814 = vld [vmem:[#allocation5 + $0x358] sm:$0xff]
        %v815 = vld [vmem:[#allocation5 + $0x360] sm:$0xff]
        %v816 = vld [vmem:[#allocation5 + $0x368] sm:$0xff]
        %v817 = vld [vmem:[#allocation5 + $0x370] sm:$0xff]
        %v818 = vld [vmem:[#allocation5 + $0x378] sm:$0xff]
        %v819 = vld [vmem:[#allocation5 + $0x380] sm:$0xff]
        %v820 = vld [vmem:[#allocation5 + $0x388] sm:$0xff]
        %v821 = vld [vmem:[#allocation5 + $0x390] sm:$0xff]
        %v822 = vld [vmem:[#allocation5 + $0x398] sm:$0xff]
        %v823 = vld [vmem:[#allocation5 + $0x3a0] sm:$0xff]
        %v824 = vld [vmem:[#allocation5 + $0x3a8] sm:$0xff]
        %v825 = vld [vmem:[#allocation5 + $0x3b0] sm:$0xff]
        %v826 = vld [vmem:[#allocation5 + $0x3b8] sm:$0xff]
        %v827 = vld [vmem:[#allocation5 + $0x3c0] sm:$0xff]
        %v828 = vld [vmem:[#allocation5 + $0x3c8] sm:$0xff]
        %v829 = vld [vmem:[#allocation5 + $0x3d0] sm:$0xff]
        %v830 = vld [vmem:[#allocation5 + $0x3d8] sm:$0xff]
        %v831 = vld [vmem:[#allocation5 + $0x3e0] sm:$0xff]
        %v832 = vld [vmem:[#allocation5 + $0x3e8] sm:$0xff]
        %v833 = vld [vmem:[#allocation5 + $0x3f0] sm:$0xff]
        %v834 = vld [vmem:[#allocation5 + $0x3f8] sm:$0xff]
        %v835 = vld [vmem:[#allocation5 + $0x400] sm:$0xff]
        %v836 = vld [vmem:[#allocation5 + $0x408] sm:$0xff]
        %v837 = vld [vmem:[#allocation5 + $0x410] sm:$0xff]
        %v838 = vld [vmem:[#allocation5 + $0x418] sm:$0xff]
        %v839 = vld [vmem:[#allocation5 + $0x420] sm:$0xff]
        %v840 = vld [vmem:[#allocation5 + $0x428] sm:$0xff]
        %v841 = vld [vmem:[#allocation5 + $0x430] sm:$0xff]
        %v842 = vld [vmem:[#allocation5 + $0x438] sm:$0xff]
        %v843 = vld [vmem:[#allocation5 + $0x440] sm:$0xff]
        %v844 = vld [vmem:[#allocation5 + $0x448] sm:$0xff]
        %v845 = vld [vmem:[#allocation5 + $0x450] sm:$0xff]
        %v846 = vld [vmem:[#allocation5 + $0x458] sm:$0xff]
        %v847 = vld [vmem:[#allocation5 + $0x460] sm:$0xff]
        %v848 = vld [vmem:[#allocation5 + $0x468] sm:$0xff]
        %v849 = vld [vmem:[#allocation5 + $0x470] sm:$0xff]
        %v850 = vld [vmem:[#allocation5 + $0x478] sm:$0xff]
        %v851 = vld [vmem:[#allocation5 + $0x480] sm:$0xff]
        %v852 = vld [vmem:[#allocation5 + $0x488] sm:$0xff]
        %v853 = vld [vmem:[#allocation5 + $0x490] sm:$0xff]
        %v854 = vld [vmem:[#allocation5 + $0x498] sm:$0xff]
        %v855 = vld [vmem:[#allocation5 + $0x4a0] sm:$0xff]
        %v856 = vld [vmem:[#allocation5 + $0x4a8] sm:$0xff]
        %v857 = vld [vmem:[#allocation5 + $0x4b0] sm:$0xff]
        %v858 = vld [vmem:[#allocation5 + $0x4b8] sm:$0xff]
        %v859 = vld [vmem:[#allocation5 + $0x4c0] sm:$0xff]
        %v860 = vld [vmem:[#allocation5 + $0x4c8] sm:$0xff]
        %v861 = vld [vmem:[#allocation5 + $0x4d0] sm:$0xff]
        %v862 = vld [vmem:[#allocation5 + $0x4d8] sm:$0xff]
        %v863 = vld [vmem:[#allocation5 + $0x4e0] sm:$0xff]
        %v864 = vld [vmem:[#allocation5 + $0x4e8] sm:$0xff]
        %v865 = vld [vmem:[#allocation5 + $0x4f0] sm:$0xff]
        %v866 = vld [vmem:[#allocation5 + $0x4f8] sm:$0xff]
        %v867 = vld [vmem:[#allocation5 + $0x500] sm:$0xff]
        %v868 = vld [vmem:[#allocation5 + $0x508] sm:$0xff]
        %v869 = vld [vmem:[#allocation5 + $0x510] sm:$0xff]
        %v870 = vld [vmem:[#allocation5 + $0x518] sm:$0xff]
        %v871 = vld [vmem:[#allocation5 + $0x520] sm:$0xff]
        %v872 = vld [vmem:[#allocation5 + $0x528] sm:$0xff]
        %v873 = vld [vmem:[#allocation5 + $0x530] sm:$0xff]
        %v874 = vld [vmem:[#allocation5 + $0x538] sm:$0xff]
        %v875 = vld [vmem:[#allocation5 + $0x540] sm:$0xff]
        %v876 = vld [vmem:[#allocation5 + $0x548] sm:$0xff]
        %v877 = vld [vmem:[#allocation5 + $0x550] sm:$0xff]
        %v878 = vld [vmem:[#allocation5 + $0x558] sm:$0xff]
        %v879 = vld [vmem:[#allocation5 + $0x560] sm:$0xff]
        %v880 = vld [vmem:[#allocation5 + $0x568] sm:$0xff]
        %v881 = vld [vmem:[#allocation5 + $0x570] sm:$0xff]
        %v882 = vld [vmem:[#allocation5 + $0x578] sm:$0xff]
        %v883 = vld [vmem:[#allocation5 + $0x580] sm:$0xff]
        %v884 = vld [vmem:[#allocation5 + $0x588] sm:$0xff]
        %v885 = vld [vmem:[#allocation5 + $0x590] sm:$0xff]
        %v886 = vld [vmem:[#allocation5 + $0x598] sm:$0xff]
        %v887 = vld [vmem:[#allocation5 + $0x5a0] sm:$0xff]
        %v888 = vld [vmem:[#allocation5 + $0x5a8] sm:$0xff]
        %v889 = vld [vmem:[#allocation5 + $0x5b0] sm:$0xff]
        %v890 = vld [vmem:[#allocation5 + $0x5b8] sm:$0xff]
        %v891 = vld [vmem:[#allocation5 + $0x5c0] sm:$0xff]
        %v892 = vld [vmem:[#allocation5 + $0x5c8] sm:$0xff]
        %v893 = vld [vmem:[#allocation5 + $0x5d0] sm:$0xff]
        %v894 = vld [vmem:[#allocation5 + $0x5d8] sm:$0xff]
        %v895 = vld [vmem:[#allocation5 + $0x5e0] sm:$0xff]
        %v896 = vld [vmem:[#allocation5 + $0x5e8] sm:$0xff]
        %v897 = vld [vmem:[#allocation5 + $0x5f0] sm:$0xff]
        %v898 = vld [vmem:[#allocation5 + $0x5f8] sm:$0xff]
        %v899 = vld [vmem:[#allocation5 + $0x600] sm:$0xff]
        %v900 = vld [vmem:[#allocation5 + $0x608] sm:$0xff]
        %v901 = vld [vmem:[#allocation5 + $0x610] sm:$0xff]
        %v902 = vld [vmem:[#allocation5 + $0x618] sm:$0xff]
        %v903 = vld [vmem:[#allocation5 + $0x620] sm:$0xff]
        %v904 = vld [vmem:[#allocation5 + $0x628] sm:$0xff]
        %v905 = vld [vmem:[#allocation5 + $0x630] sm:$0xff]
        %v906 = vld [vmem:[#allocation5 + $0x638] sm:$0xff]
        %v907 = vld [vmem:[#allocation5 + $0x640] sm:$0xff]
        %v908 = vld [vmem:[#allocation5 + $0x648] sm:$0xff]
        %v909 = vld [vmem:[#allocation5 + $0x650] sm:$0xff]
        %v910 = vld [vmem:[#allocation5 + $0x658] sm:$0xff]
        %v911 = vld [vmem:[#allocation5 + $0x660] sm:$0xff]
        %v912 = vld [vmem:[#allocation5 + $0x668] sm:$0xff]
        %v913 = vld [vmem:[#allocation5 + $0x670] sm:$0xff]
        %v914 = vld [vmem:[#allocation5 + $0x678] sm:$0xff]
        %v915 = vld [vmem:[#allocation5 + $0x680] sm:$0xff]
        %v916 = vld [vmem:[#allocation5 + $0x688] sm:$0xff]
        %v917 = vld [vmem:[#allocation5 + $0x690] sm:$0xff]
        %v918 = vld [vmem:[#allocation5 + $0x698] sm:$0xff]
        %v919 = vld [vmem:[#allocation5 + $0x6a0] sm:$0xff]
        %v920 = vld [vmem:[#allocation5 + $0x6a8] sm:$0xff]
        %v921 = vld [vmem:[#allocation5 + $0x6b0] sm:$0xff]
        %v922 = vld [vmem:[#allocation5 + $0x6b8] sm:$0xff]
        %v923 = vld [vmem:[#allocation5 + $0x6c0] sm:$0xff]
        %v924 = vld [vmem:[#allocation5 + $0x6c8] sm:$0xff]
        %v925 = vld [vmem:[#allocation5 + $0x6d0] sm:$0xff]
        %v926 = vld [vmem:[#allocation5 + $0x6d8] sm:$0xff]
        %v927 = vld [vmem:[#allocation5 + $0x6e0] sm:$0xff]
        %v928 = vld [vmem:[#allocation5 + $0x6e8] sm:$0xff]
        %v929 = vld [vmem:[#allocation5 + $0x6f0] sm:$0xff]
        %v930 = vld [vmem:[#allocation5 + $0x6f8] sm:$0xff]
        %v931 = vld [vmem:[#allocation5 + $0x700] sm:$0xff]
        %v932 = vld [vmem:[#allocation5 + $0x708] sm:$0xff]
        %v933 = vld [vmem:[#allocation5 + $0x710] sm:$0xff]
        %v934 = vld [vmem:[#allocation5 + $0x718] sm:$0xff]
        %v935 = vld [vmem:[#allocation5 + $0x720] sm:$0xff]
        %v936 = vld [vmem:[#allocation5 + $0x728] sm:$0xff]
        %v937 = vld [vmem:[#allocation5 + $0x730] sm:$0xff]
        %v938 = vld [vmem:[#allocation5 + $0x738] sm:$0xff]
        %v939 = vld [vmem:[#allocation5 + $0x740] sm:$0xff]
        %v940 = vld [vmem:[#allocation5 + $0x748] sm:$0xff]
        %v941 = vld [vmem:[#allocation5 + $0x750] sm:$0xff]
        %v942 = vld [vmem:[#allocation5 + $0x758] sm:$0xff]
        %v943 = vld [vmem:[#allocation5 + $0x760] sm:$0xff]
        %v944 = vld [vmem:[#allocation5 + $0x768] sm:$0xff]
        %v945 = vld [vmem:[#allocation5 + $0x770] sm:$0xff]
        %v946 = vld [vmem:[#allocation5 + $0x778] sm:$0xff]
        %v947 = vld [vmem:[#allocation5 + $0x780] sm:$0xff]
        %v948 = vld [vmem:[#allocation5 + $0x788] sm:$0xff]
        %v949 = vld [vmem:[#allocation5 + $0x790] sm:$0xff]
        %v950 = vld [vmem:[#allocation5 + $0x798] sm:$0xff]
        %v951 = vld [vmem:[#allocation5 + $0x7a0] sm:$0xff]
        %v952 = vld [vmem:[#allocation5 + $0x7a8] sm:$0xff]
        %v953 = vld [vmem:[#allocation5 + $0x7b0] sm:$0xff]
        %v954 = vld [vmem:[#allocation5 + $0x7b8] sm:$0xff]
        %v955 = vld [vmem:[#allocation5 + $0x7c0] sm:$0xff]
        %v956 = vld [vmem:[#allocation5 + $0x7c8] sm:$0xff]
        %v957 = vld [vmem:[#allocation5 + $0x7d0] sm:$0xff]
        %v958 = vld [vmem:[#allocation5 + $0x7d8] sm:$0xff]
        %v959 = vld [vmem:[#allocation5 + $0x7e0] sm:$0xff]
        %v960 = vld [vmem:[#allocation5 + $0x7e8] sm:$0xff]
        %v961 = vld [vmem:[#allocation5 + $0x7f0] sm:$0xff]
        %v962 = vld [vmem:[#allocation5 + $0x7f8] sm:$0xff]
        %v963 = vld [vmem:[#allocation7] sm:$0xff]
        %v965 = vlaneseq
        %v966 = vshrl.u32 %v965, 7
        %v967 = vsub.s32 0, %v966
        %v968 = vrot.slane %v963, %v967
        %v969 = vlaneseq
        %v970 = vshrl.u32 %v969, 7
        %v971 = vsub.s32 1, %v970
        %v972 = vrot.slane %v963, %v971
        %v973 = vlaneseq
        %v974 = vshrl.u32 %v973, 7
        %v975 = vsub.s32 2, %v974
        %v976 = vrot.slane %v963, %v975
        %v977 = vlaneseq
        %v978 = vshrl.u32 %v977, 7
        %v979 = vsub.s32 3, %v978
        %v980 = vrot.slane %v963, %v979
        %v981 = vlaneseq
        %v982 = vshrl.u32 %v981, 7
        %v983 = vsub.s32 4, %v982
        %v984 = vrot.slane %v963, %v983
        %v985 = vlaneseq
        %v986 = vshrl.u32 %v985, 7
        %v987 = vsub.s32 5, %v986
        %v988 = vrot.slane %v963, %v987
        %v989 = vlaneseq
        %v990 = vshrl.u32 %v989, 7
        %v991 = vsub.s32 6, %v990
        %v992 = vrot.slane %v963, %v991
        %v993 = vlaneseq
        %v994 = vshrl.u32 %v993, 7
        %v995 = vsub.s32 7, %v994
        %v996 = vrot.slane %v963, %v995
        %1005 = vmatprep.subr.mxu0 %v708
        %1006 = vmatpush1.msra.mxu0 %v707
        %1007 = vmatprep.subr.mxu0 %v716
        %1008 = vmatpush1.msra.mxu0 %v715
        %1009 = vmatprep.subr.mxu0 %v724
        %1010 = vmatpush1.msra.mxu0 %v723
        %1011 = vmatprep.subr.mxu0 %v732
        %1012 = vmatpush1.msra.mxu0 %v731
        %1013 = vmatprep.subr.mxu0 %v740
        %1014 = vmatpush1.msra.mxu0 %v739
        %1015 = vmatprep.subr.mxu0 %v748
        %1016 = vmatpush1.msra.mxu0 %v747
        %1017 = vmatprep.subr.mxu0 %v756
        %1018 = vmatpush1.msra.mxu0 %v755
        %1019 = vmatprep.subr.mxu0 %v764
        %1020 = vmatpush1.msra.mxu0 %v763
        %1021 = vmatprep.subr.mxu0 %v772
        %1022 = vmatpush1.msra.mxu0 %v771
        %1023 = vmatprep.subr.mxu0 %v780
        %1024 = vmatpush1.msra.mxu0 %v779
        %1025 = vmatprep.subr.mxu0 %v788
        %1026 = vmatpush1.msra.mxu0 %v787
        %1027 = vmatprep.subr.mxu0 %v796
        %1028 = vmatpush1.msra.mxu0 %v795
        %1029 = vmatprep.subr.mxu0 %v804
        %1030 = vmatpush1.msra.mxu0 %v803
        %1031 = vmatprep.subr.mxu0 %v812
        %1032 = vmatpush1.msra.mxu0 %v811
        %1033 = vmatprep.subr.mxu0 %v820
        %1034 = vmatpush1.msra.mxu0 %v819
        %1035 = vmatprep.subr.mxu0 %v828
        %1036 = vmatpush1.msra.mxu0 %v827
        %1037 = vmatprep.subr.mxu0 %v836
        %1038 = vmatpush1.msra.mxu0 %v835
        %1039 = vmatprep.subr.mxu0 %v844
        %1040 = vmatpush1.msra.mxu0 %v843
        %1041 = vmatprep.subr.mxu0 %v852
        %1042 = vmatpush1.msra.mxu0 %v851
        %1043 = vmatprep.subr.mxu0 %v860
        %1044 = vmatpush1.msra.mxu0 %v859
        %1045 = vmatprep.subr.mxu0 %v868
        %1046 = vmatpush1.msra.mxu0 %v867
        %1047 = vmatprep.subr.mxu0 %v876
        %1048 = vmatpush1.msra.mxu0 %v875
        %1049 = vmatprep.subr.mxu0 %v884
        %1050 = vmatpush1.msra.mxu0 %v883
        %1051 = vmatprep.subr.mxu0 %v892
        %1052 = vmatpush1.msra.mxu0 %v891
        %1053 = vmatprep.subr.mxu0 %v900
        %1054 = vmatpush1.msra.mxu0 %v899
        %1055 = vmatprep.subr.mxu0 %v908
        %1056 = vmatpush1.msra.mxu0 %v907
        %1057 = vmatprep.subr.mxu0 %v916
        %1058 = vmatpush1.msra.mxu0 %v915
        %1059 = vmatprep.subr.mxu0 %v924
        %1060 = vmatpush1.msra.mxu0 %v923
        %1061 = vmatprep.subr.mxu0 %v932
        %1062 = vmatpush1.msra.mxu0 %v931
        %1063 = vmatprep.subr.mxu0 %v940
        %1064 = vmatpush1.msra.mxu0 %v939
        %1065 = vmatprep.subr.mxu0 %v948
        %1066 = vmatpush1.msra.mxu0 %v947
        %1067 = vmatprep.subr.mxu0 %v956
        %1068 = vmatpush1.msra.mxu0 %v955
        %1069 = vmatprep.mubr.f32.mxu0 %v700
        %1070 = vmatmul.mubr.f32.gmra.mrb[0].mxu0 %v699
        %v1071 = vpop.f32.mrb[0].mxu0
        %v1072 = vadd.f32 %v968, %v1071
        %v1073 = vpop.f32.mrb[0].mxu0
        %v1074 = vadd.f32 %v972, %v1073
        %1075 = vmatprep.mubr.f32.mxu0 %v702
        %1076 = vmatmul.mubr.f32.gmra.mrb[0].mxu0 %v701
        %v1077 = vpop.f32.mrb[0].mxu0
        %v1078 = vadd.f32 %v968, %v1077
        %v1079 = vpop.f32.mrb[0].mxu0
        %v1080 = vadd.f32 %v972, %v1079
        %1081 = vmatprep.mubr.f32.mxu0 %v704
        %1082 = vmatmul.mubr.f32.gmra.mrb[0].mxu0 %v703
        %v1083 = vpop.f32.mrb[0].mxu0
        %v1084 = vadd.f32 %v968, %v1083
        %v1085 = vpop.f32.mrb[0].mxu0
        %v1086 = vadd.f32 %v972, %v1085
        %1087 = vmatprep.mubr.f32.mxu0 %v706
        %1088 = vmatmul.mubr.f32.gmra.mrb[0].mxu0 %v705
        %v1089 = vpop.f32.mrb[0].mxu0
        %v1090 = vadd.f32 %v968, %v1089
        %v1091 = vpop.f32.mrb[0].mxu0
        %v1092 = vadd.f32 %v972, %v1091
        %1093 = vdwg.mxu0
        %1094 = vmatprep.subr.mxu0 %v710
        %1095 = vmatpush1.msra.mxu0 %v709
        %1096 = vmatprep.subr.mxu0 %v718
        %1097 = vmatpush1.msra.mxu0 %v717
        %1098 = vmatprep.subr.mxu0 %v726
        %1099 = vmatpush1.msra.mxu0 %v725
        %1100 = vmatprep.subr.mxu0 %v734
        %1101 = vmatpush1.msra.mxu0 %v733
        %1102 = vmatprep.subr.mxu0 %v742
        %1103 = vmatpush1.msra.mxu0 %v741
        %1104 = vmatprep.subr.mxu0 %v750
        %1105 = vmatpush1.msra.mxu0 %v749
        %1106 = vmatprep.subr.mxu0 %v758
        %1107 = vmatpush1.msra.mxu0 %v757
        %1108 = vmatprep.subr.mxu0 %v766
        %1109 = vmatpush1.msra.mxu0 %v765
        %1110 = vmatprep.subr.mxu0 %v774
        %1111 = vmatpush1.msra.mxu0 %v773
        %1112 = vmatprep.subr.mxu0 %v782
        %1113 = vmatpush1.msra.mxu0 %v781
        %1114 = vmatprep.subr.mxu0 %v790
        %1115 = vmatpush1.msra.mxu0 %v789
        %1116 = vmatprep.subr.mxu0 %v798
        %1117 = vmatpush1.msra.mxu0 %v797
        %1118 = vmatprep.subr.mxu0 %v806
        %1119 = vmatpush1.msra.mxu0 %v805
        %1120 = vmatprep.subr.mxu0 %v814
        %1121 = vmatpush1.msra.mxu0 %v813
        %1122 = vmatprep.subr.mxu0 %v822
        %1123 = vmatpush1.msra.mxu0 %v821
        %1124 = vmatprep.subr.mxu0 %v830
        %1125 = vmatpush1.msra.mxu0 %v829
        %1126 = vmatprep.subr.mxu0 %v838
        %1127 = vmatpush1.msra.mxu0 %v837
        %1128 = vmatprep.subr.mxu0 %v846
        %1129 = vmatpush1.msra.mxu0 %v845
        %1130 = vmatprep.subr.mxu0 %v854
        %1131 = vmatpush1.msra.mxu0 %v853
        %1132 = vmatprep.subr.mxu0 %v862
        %1133 = vmatpush1.msra.mxu0 %v861
        %1134 = vmatprep.subr.mxu0 %v870
        %1135 = vmatpush1.msra.mxu0 %v869
        %1136 = vmatprep.subr.mxu0 %v878
        %1137 = vmatpush1.msra.mxu0 %v877
        %1138 = vmatprep.subr.mxu0 %v886
        %1139 = vmatpush1.msra.mxu0 %v885
        %1140 = vmatprep.subr.mxu0 %v894
        %1141 = vmatpush1.msra.mxu0 %v893
        %1142 = vmatprep.subr.mxu0 %v902
        %1143 = vmatpush1.msra.mxu0 %v901
        %1144 = vmatprep.subr.mxu0 %v910
        %1145 = vmatpush1.msra.mxu0 %v909
        %1146 = vmatprep.subr.mxu0 %v918
        %1147 = vmatpush1.msra.mxu0 %v917
        %1148 = vmatprep.subr.mxu0 %v926
        %1149 = vmatpush1.msra.mxu0 %v925
        %1150 = vmatprep.subr.mxu0 %v934
        %1151 = vmatpush1.msra.mxu0 %v933
        %1152 = vmatprep.subr.mxu0 %v942
        %1153 = vmatpush1.msra.mxu0 %v941
        %1154 = vmatprep.subr.mxu0 %v950
        %1155 = vmatpush1.msra.mxu0 %v949
        %1156 = vmatprep.subr.mxu0 %v958
        %1157 = vmatpush1.msra.mxu0 %v957
        %1158 = vmatprep.mubr.f32.mxu0 %v700
        %1159 = vmatmul.mubr.f32.gmra.mrb[0].mxu0 %v699
        %v1160 = vpop.f32.mrb[0].mxu0
        %v1161 = vadd.f32 %v976, %v1160
        %v1162 = vpop.f32.mrb[0].mxu0
        %v1163 = vadd.f32 %v980, %v1162
        %1164 = vmatprep.mubr.f32.mxu0 %v702
        %1165 = vmatmul.mubr.f32.gmra.mrb[0].mxu0 %v701
        %v1166 = vpop.f32.mrb[0].mxu0
        %v1167 = vadd.f32 %v976, %v1166
        %v1168 = vpop.f32.mrb[0].mxu0
        %v1169 = vadd.f32 %v980, %v1168
        %1170 = vmatprep.mubr.f32.mxu0 %v704
        %1171 = vmatmul.mubr.f32.gmra.mrb[0].mxu0 %v703
        %v1172 = vpop.f32.mrb[0].mxu0
        %v1173 = vadd.f32 %v976, %v1172
        %v1174 = vpop.f32.mrb[0].mxu0
        %v1175 = vadd.f32 %v980, %v1174
        %1176 = vmatprep.mubr.f32.mxu0 %v706
        %1177 = vmatmul.mubr.f32.gmra.mrb[0].mxu0 %v705
        %v1178 = vpop.f32.mrb[0].mxu0
        %v1179 = vadd.f32 %v976, %v1178
        %v1180 = vpop.f32.mrb[0].mxu0
        %v1181 = vadd.f32 %v980, %v1180
        %1182 = vdwg.mxu0
        %1183 = vmatprep.subr.mxu0 %v712
        %1184 = vmatpush1.msra.mxu0 %v711
        %1185 = vmatprep.subr.mxu0 %v720
        %1186 = vmatpush1.msra.mxu0 %v719
        %1187 = vmatprep.subr.mxu0 %v728
        %1188 = vmatpush1.msra.mxu0 %v727
        %1189 = vmatprep.subr.mxu0 %v736
        %1190 = vmatpush1.msra.mxu0 %v735
        %1191 = vmatprep.subr.mxu0 %v744
        %1192 = vmatpush1.msra.mxu0 %v743
        %1193 = vmatprep.subr.mxu0 %v752
        %1194 = vmatpush1.msra.mxu0 %v751
        %1195 = vmatprep.subr.mxu0 %v760
        %1196 = vmatpush1.msra.mxu0 %v759
        %1197 = vmatprep.subr.mxu0 %v768
        %1198 = vmatpush1.msra.mxu0 %v767
        %1199 = vmatprep.subr.mxu0 %v776
        %1200 = vmatpush1.msra.mxu0 %v775
        %1201 = vmatprep.subr.mxu0 %v784
        %1202 = vmatpush1.msra.mxu0 %v783
        %1203 = vmatprep.subr.mxu0 %v792
        %1204 = vmatpush1.msra.mxu0 %v791
        %1205 = vmatprep.subr.mxu0 %v800
        %1206 = vmatpush1.msra.mxu0 %v799
        %1207 = vmatprep.subr.mxu0 %v808
        %1208 = vmatpush1.msra.mxu0 %v807
        %1209 = vmatprep.subr.mxu0 %v816
        %1210 = vmatpush1.msra.mxu0 %v815
        %1211 = vmatprep.subr.mxu0 %v824
        %1212 = vmatpush1.msra.mxu0 %v823
        %1213 = vmatprep.subr.mxu0 %v832
        %1214 = vmatpush1.msra.mxu0 %v831
        %1215 = vmatprep.subr.mxu0 %v840
        %1216 = vmatpush1.msra.mxu0 %v839
        %1217 = vmatprep.subr.mxu0 %v848
        %1218 = vmatpush1.msra.mxu0 %v847
        %1219 = vmatprep.subr.mxu0 %v856
        %1220 = vmatpush1.msra.mxu0 %v855
        %1221 = vmatprep.subr.mxu0 %v864
        %1222 = vmatpush1.msra.mxu0 %v863
        %1223 = vmatprep.subr.mxu0 %v872
        %1224 = vmatpush1.msra.mxu0 %v871
        %1225 = vmatprep.subr.mxu0 %v880
        %1226 = vmatpush1.msra.mxu0 %v879
        %1227 = vmatprep.subr.mxu0 %v888
        %1228 = vmatpush1.msra.mxu0 %v887
        %1229 = vmatprep.subr.mxu0 %v896
        %1230 = vmatpush1.msra.mxu0 %v895
        %1231 = vmatprep.subr.mxu0 %v904
        %1232 = vmatpush1.msra.mxu0 %v903
        %1233 = vmatprep.subr.mxu0 %v912
        %1234 = vmatpush1.msra.mxu0 %v911
        %1235 = vmatprep.subr.mxu0 %v920
        %1236 = vmatpush1.msra.mxu0 %v919
        %1237 = vmatprep.subr.mxu0 %v928
        %1238 = vmatpush1.msra.mxu0 %v927
        %1239 = vmatprep.subr.mxu0 %v936
        %1240 = vmatpush1.msra.mxu0 %v935
        %1241 = vmatprep.subr.mxu0 %v944
        %1242 = vmatpush1.msra.mxu0 %v943
        %1243 = vmatprep.subr.mxu0 %v952
        %1244 = vmatpush1.msra.mxu0 %v951
        %1245 = vmatprep.subr.mxu0 %v960
        %1246 = vmatpush1.msra.mxu0 %v959
        %1247 = vmatprep.mubr.f32.mxu0 %v700
        %1248 = vmatmul.mubr.f32.gmra.mrb[0].mxu0 %v699
        %v1249 = vpop.f32.mrb[0].mxu0
        %v1250 = vadd.f32 %v984, %v1249
        %v1251 = vpop.f32.mrb[0].mxu0
        %v1252 = vadd.f32 %v988, %v1251
        %1253 = vmatprep.mubr.f32.mxu0 %v702
        %1254 = vmatmul.mubr.f32.gmra.mrb[0].mxu0 %v701
        %v1255 = vpop.f32.mrb[0].mxu0
        %v1256 = vadd.f32 %v984, %v1255
        %v1257 = vpop.f32.mrb[0].mxu0
        %v1258 = vadd.f32 %v988, %v1257
        %1259 = vmatprep.mubr.f32.mxu0 %v704
        %1260 = vmatmul.mubr.f32.gmra.mrb[0].mxu0 %v703
        %v1261 = vpop.f32.mrb[0].mxu0
        %v1262 = vadd.f32 %v984, %v1261
        %v1263 = vpop.f32.mrb[0].mxu0
        %v1264 = vadd.f32 %v988, %v1263
        %1265 = vmatprep.mubr.f32.mxu0 %v706
        %1266 = vmatmul.mubr.f32.gmra.mrb[0].mxu0 %v705
        %v1267 = vpop.f32.mrb[0].mxu0
        %v1268 = vadd.f32 %v984, %v1267
        %v1269 = vpop.f32.mrb[0].mxu0
        %v1270 = vadd.f32 %v988, %v1269
        %1271 = vdwg.mxu0
        %1272 = vmatprep.subr.mxu0 %v714
        %1273 = vmatpush1.msra.mxu0 %v713
        %1274 = vmatprep.subr.mxu0 %v722
        %1275 = vmatpush1.msra.mxu0 %v721
        %1276 = vmatprep.subr.mxu0 %v730
        %1277 = vmatpush1.msra.mxu0 %v729
        %1278 = vmatprep.subr.mxu0 %v738
        %1279 = vmatpush1.msra.mxu0 %v737
        %1280 = vmatprep.subr.mxu0 %v746
        %1281 = vmatpush1.msra.mxu0 %v745
        %1282 = vmatprep.subr.mxu0 %v754
        %1283 = vmatpush1.msra.mxu0 %v753
        %1284 = vmatprep.subr.mxu0 %v762
        %1285 = vmatpush1.msra.mxu0 %v761
        %1286 = vmatprep.subr.mxu0 %v770
        %1287 = vmatpush1.msra.mxu0 %v769
        %1288 = vmatprep.subr.mxu0 %v778
        %1289 = vmatpush1.msra.mxu0 %v777
        %1290 = vmatprep.subr.mxu0 %v786
        %1291 = vmatpush1.msra.mxu0 %v785
        %1292 = vmatprep.subr.mxu0 %v794
        %1293 = vmatpush1.msra.mxu0 %v793
        %1294 = vmatprep.subr.mxu0 %v802
        %1295 = vmatpush1.msra.mxu0 %v801
        %1296 = vmatprep.subr.mxu0 %v810
        %1297 = vmatpush1.msra.mxu0 %v809
        %1298 = vmatprep.subr.mxu0 %v818
        %1299 = vmatpush1.msra.mxu0 %v817
        %1300 = vmatprep.subr.mxu0 %v826
        %1301 = vmatpush1.msra.mxu0 %v825
        %1302 = vmatprep.subr.mxu0 %v834
        %1303 = vmatpush1.msra.mxu0 %v833
        %1304 = vmatprep.subr.mxu0 %v842
        %1305 = vmatpush1.msra.mxu0 %v841
        %1306 = vmatprep.subr.mxu0 %v850
        %1307 = vmatpush1.msra.mxu0 %v849
        %1308 = vmatprep.subr.mxu0 %v858
        %1309 = vmatpush1.msra.mxu0 %v857
        %1310 = vmatprep.subr.mxu0 %v866
        %1311 = vmatpush1.msra.mxu0 %v865
        %1312 = vmatprep.subr.mxu0 %v874
        %1313 = vmatpush1.msra.mxu0 %v873
        %1314 = vmatprep.subr.mxu0 %v882
        %1315 = vmatpush1.msra.mxu0 %v881
        %1316 = vmatprep.subr.mxu0 %v890
        %1317 = vmatpush1.msra.mxu0 %v889
        %1318 = vmatprep.subr.mxu0 %v898
        %1319 = vmatpush1.msra.mxu0 %v897
        %1320 = vmatprep.subr.mxu0 %v906
        %1321 = vmatpush1.msra.mxu0 %v905
        %1322 = vmatprep.subr.mxu0 %v914
        %1323 = vmatpush1.msra.mxu0 %v913
        %1324 = vmatprep.subr.mxu0 %v922
        %1325 = vmatpush1.msra.mxu0 %v921
        %1326 = vmatprep.subr.mxu0 %v930
        %1327 = vmatpush1.msra.mxu0 %v929
        %1328 = vmatprep.subr.mxu0 %v938
        %1329 = vmatpush1.msra.mxu0 %v937
        %1330 = vmatprep.subr.mxu0 %v946
        %1331 = vmatpush1.msra.mxu0 %v945
        %1332 = vmatprep.subr.mxu0 %v954
        %1333 = vmatpush1.msra.mxu0 %v953
        %1334 = vmatprep.subr.mxu0 %v962
        %1335 = vmatpush1.msra.mxu0 %v961
        %1336 = vmatprep.mubr.f32.mxu0 %v700
        %1337 = vmatmul.mubr.f32.gmra.mrb[0].mxu0 %v699
        %v1338 = vpop.f32.mrb[0].mxu0
        %v1339 = vadd.f32 %v992, %v1338
        %v1340 = vpop.f32.mrb[0].mxu0
        %v1341 = vadd.f32 %v996, %v1340
        %1342 = vmatprep.mubr.f32.mxu0 %v702
        %1343 = vmatmul.mubr.f32.gmra.mrb[0].mxu0 %v701
        %v1344 = vpop.f32.mrb[0].mxu0
        %v1345 = vadd.f32 %v992, %v1344
        %v1346 = vpop.f32.mrb[0].mxu0
        %v1347 = vadd.f32 %v996, %v1346
        %1348 = vmatprep.mubr.f32.mxu0 %v704
        %1349 = vmatmul.mubr.f32.gmra.mrb[0].mxu0 %v703
        %v1350 = vpop.f32.mrb[0].mxu0
        %v1351 = vadd.f32 %v992, %v1350
        %v1352 = vpop.f32.mrb[0].mxu0
        %v1353 = vadd.f32 %v996, %v1352
        %1354 = vmatprep.mubr.f32.mxu0 %v706
        %1355 = vmatmul.mubr.f32.gmra.mrb[0].mxu0 %v705
        %v1356 = vpop.f32.mrb[0].mxu0
        %v1357 = vadd.f32 %v992, %v1356
        %v1358 = vpop.f32.mrb[0].mxu0
        %v1359 = vadd.f32 %v996, %v1358
        %1360 = vdwg.mxu0
        %v1361 = vld [vmem:[#allocation8] sm:$0xff]
        %v1362 = vld [vmem:[#allocation10] sm:$0xff]
        %v1363 = vadd.f32 %v1072, %v1074
        %v1364 = vadd.f32 %v1363, %v1161
        %v1365 = vadd.f32 %v1364, %v1163
        %v1366 = vadd.f32 %v1365, %v1250
        %v1367 = vadd.f32 %v1366, %v1252
        %v1368 = vadd.f32 %v1367, %v1339
        %v1369 = vadd.f32 %v1368, %v1341
        %1370 = vadd.xlane.f32.xlu0 %v1369
        %v1371 = vpop.xlane.xlu0 %1370
        %v1372 = vadd.f32 %v1078, %v1080
        %v1373 = vadd.f32 %v1372, %v1167
        %v1374 = vadd.f32 %v1373, %v1169
        %v1375 = vadd.f32 %v1374, %v1256
        %v1376 = vadd.f32 %v1375, %v1258
        %v1377 = vadd.f32 %v1376, %v1345
        %v1378 = vadd.f32 %v1377, %v1347
        %1379 = vadd.xlane.f32.xlu0 %v1378
        %v1380 = vpop.xlane.xlu0 %1379
        %v1381 = vadd.f32 %v1084, %v1086
        %v1382 = vadd.f32 %v1381, %v1173
        %v1383 = vadd.f32 %v1382, %v1175
        %v1384 = vadd.f32 %v1383, %v1262
        %v1385 = vadd.f32 %v1384, %v1264
        %v1386 = vadd.f32 %v1385, %v1351
        %v1387 = vadd.f32 %v1386, %v1353
        %1388 = vadd.xlane.f32.xlu0 %v1387
        %v1389 = vpop.xlane.xlu0 %1388
        %v1390 = vadd.f32 %v1090, %v1092
        %v1391 = vadd.f32 %v1390, %v1179
        %v1392 = vadd.f32 %v1391, %v1181
        %v1393 = vadd.f32 %v1392, %v1268
        %v1394 = vadd.f32 %v1393, %v1270
        %v1395 = vadd.f32 %v1394, %v1357
        %v1396 = vadd.f32 %v1395, %v1359
        %1397 = vadd.xlane.f32.xlu0 %v1396
        %v1398 = vpop.xlane.xlu0 %1397
        %v1399 = vrcp.pop 1024.0
        %v1400 = vmul.f32 %v1371, %v1399
        %v1401 = vmul.f32 %v1380, %v1399
        %v1402 = vmul.f32 %v1389, %v1399
        %v1403 = vmul.f32 %v1398, %v1399
        %v1404 = vsub.f32 %v1072, %v1400
        %v1405 = vsub.f32 %v1074, %v1400
        %v1406 = vsub.f32 %v1161, %v1400
        %v1407 = vsub.f32 %v1163, %v1400
        %v1408 = vsub.f32 %v1250, %v1400
        %v1409 = vsub.f32 %v1252, %v1400
        %v1410 = vsub.f32 %v1339, %v1400
        %v1411 = vsub.f32 %v1341, %v1400
        %v1412 = vsub.f32 %v1078, %v1401
        %v1413 = vsub.f32 %v1080, %v1401
        %v1414 = vsub.f32 %v1167, %v1401
        %v1415 = vsub.f32 %v1169, %v1401
        %v1416 = vsub.f32 %v1256, %v1401
        %v1417 = vsub.f32 %v1258, %v1401
        %v1418 = vsub.f32 %v1345, %v1401
        %v1419 = vsub.f32 %v1347, %v1401
        %v1420 = vsub.f32 %v1084, %v1402
        %v1421 = vsub.f32 %v1086, %v1402
        %v1422 = vsub.f32 %v1173, %v1402
        %v1423 = vsub.f32 %v1175, %v1402
        %v1424 = vsub.f32 %v1262, %v1402
        %v1425 = vsub.f32 %v1264, %v1402
        %v1426 = vsub.f32 %v1351, %v1402
        %v1427 = vsub.f32 %v1353, %v1402
        %v1428 = vsub.f32 %v1090, %v1403
        %v1429 = vsub.f32 %v1092, %v1403
        %v1430 = vsub.f32 %v1179, %v1403
        %v1431 = vsub.f32 %v1181, %v1403
        %v1432 = vsub.f32 %v1268, %v1403
        %v1433 = vsub.f32 %v1270, %v1403
        %v1434 = vsub.f32 %v1357, %v1403
        %v1435 = vsub.f32 %v1359, %v1403
        %v1436 = vmul.f32 %v1404, %v1404
        %v1437 = vmul.f32 %v1405, %v1405
        %v1438 = vmul.f32 %v1406, %v1406
        %v1439 = vmul.f32 %v1407, %v1407
        %v1440 = vmul.f32 %v1408, %v1408
        %v1441 = vmul.f32 %v1409, %v1409
        %v1442 = vmul.f32 %v1410, %v1410
        %v1443 = vmul.f32 %v1411, %v1411
        %v1444 = vmul.f32 %v1412, %v1412
        %v1445 = vmul.f32 %v1413, %v1413
        %v1446 = vmul.f32 %v1414, %v1414
        %v1447 = vmul.f32 %v1415, %v1415
        %v1448 = vmul.f32 %v1416, %v1416
        %v1449 = vmul.f32 %v1417, %v1417
        %v1450 = vmul.f32 %v1418, %v1418
        %v1451 = vmul.f32 %v1419, %v1419
        %v1452 = vmul.f32 %v1420, %v1420
        %v1453 = vmul.f32 %v1421, %v1421
        %v1454 = vmul.f32 %v1422, %v1422
        %v1455 = vmul.f32 %v1423, %v1423
        %v1456 = vmul.f32 %v1424, %v1424
        %v1457 = vmul.f32 %v1425, %v1425
        %v1458 = vmul.f32 %v1426, %v1426
        %v1459 = vmul.f32 %v1427, %v1427
        %v1460 = vmul.f32 %v1428, %v1428
        %v1461 = vmul.f32 %v1429, %v1429
        %v1462 = vmul.f32 %v1430, %v1430
        %v1463 = vmul.f32 %v1431, %v1431
        %v1464 = vmul.f32 %v1432, %v1432
        %v1465 = vmul.f32 %v1433, %v1433
        %v1466 = vmul.f32 %v1434, %v1434
        %v1467 = vmul.f32 %v1435, %v1435
        %v1468 = vadd.f32 %v1436, %v1437
        %v1469 = vadd.f32 %v1468, %v1438
        %v1470 = vadd.f32 %v1469, %v1439
        %v1471 = vadd.f32 %v1470, %v1440
        %v1472 = vadd.f32 %v1471, %v1441
        %v1473 = vadd.f32 %v1472, %v1442
        %v1474 = vadd.f32 %v1473, %v1443
        %1475 = vadd.xlane.f32.xlu0 %v1474
        %v1476 = vpop.xlane.xlu0 %1475
        %v1477 = vadd.f32 %v1444, %v1445
        %v1478 = vadd.f32 %v1477, %v1446
        %v1479 = vadd.f32 %v1478, %v1447
        %v1480 = vadd.f32 %v1479, %v1448
        %v1481 = vadd.f32 %v1480, %v1449
        %v1482 = vadd.f32 %v1481, %v1450
        %v1483 = vadd.f32 %v1482, %v1451
        %1484 = vadd.xlane.f32.xlu0 %v1483
        %v1485 = vpop.xlane.xlu0 %1484
        %v1486 = vadd.f32 %v1452, %v1453
        %v1487 = vadd.f32 %v1486, %v1454
        %v1488 = vadd.f32 %v1487, %v1455
        %v1489 = vadd.f32 %v1488, %v1456
        %v1490 = vadd.f32 %v1489, %v1457
        %v1491 = vadd.f32 %v1490, %v1458
        %v1492 = vadd.f32 %v1491, %v1459
        %1493 = vadd.xlane.f32.xlu0 %v1492
        %v1494 = vpop.xlane.xlu0 %1493
        %v1495 = vadd.f32 %v1460, %v1461
        %v1496 = vadd.f32 %v1495, %v1462
        %v1497 = vadd.f32 %v1496, %v1463
        %v1498 = vadd.f32 %v1497, %v1464
        %v1499 = vadd.f32 %v1498, %v1465
        %v1500 = vadd.f32 %v1499, %v1466
        %v1501 = vadd.f32 %v1500, %v1467
        %1502 = vadd.xlane.f32.xlu0 %v1501
        %v1503 = vpop.xlane.xlu0 %1502
        %v1504 = vmul.f32 %v1476, %v1399
        %v1505 = vmul.f32 %v1485, %v1399
        %v1506 = vmul.f32 %v1494, %v1399
        %v1507 = vmul.f32 %v1503, %v1399
        %v1508 = vadd.f32 %v1504, 1e-05
        %v1509 = vadd.f32 %v1505, 1e-05
        %v1510 = vadd.f32 %v1506, 1e-05
        %v1511 = vadd.f32 %v1507, 1e-05
        %v1512 = vrsqrt.pop %v1508
        %v1513 = vrsqrt.pop %v1509
        %v1514 = vrsqrt.pop %v1510
        %v1515 = vrsqrt.pop %v1511
        %v1517 = vlaneseq
        %v1518 = vshrl.u32 %v1517, 7
        %v1519 = vsub.s32 0, %v1518
        %v1520 = vrot.slane %v1361, %v1519
        %v1521 = vlaneseq
        %v1522 = vshrl.u32 %v1521, 7
        %v1523 = vsub.s32 1, %v1522
        %v1524 = vrot.slane %v1361, %v1523
        %v1525 = vlaneseq
        %v1526 = vshrl.u32 %v1525, 7
        %v1527 = vsub.s32 2, %v1526
        %v1528 = vrot.slane %v1361, %v1527
        %v1529 = vlaneseq
        %v1530 = vshrl.u32 %v1529, 7
        %v1531 = vsub.s32 3, %v1530
        %v1532 = vrot.slane %v1361, %v1531
        %v1533 = vlaneseq
        %v1534 = vshrl.u32 %v1533, 7
        %v1535 = vsub.s32 4, %v1534
        %v1536 = vrot.slane %v1361, %v1535
        %v1537 = vlaneseq
        %v1538 = vshrl.u32 %v1537, 7
        %v1539 = vsub.s32 5, %v1538
        %v1540 = vrot.slane %v1361, %v1539
        %v1541 = vlaneseq
        %v1542 = vshrl.u32 %v1541, 7
        %v1543 = vsub.s32 6, %v1542
        %v1544 = vrot.slane %v1361, %v1543
        %v1545 = vlaneseq
        %v1546 = vshrl.u32 %v1545, 7
        %v1547 = vsub.s32 7, %v1546
        %v1548 = vrot.slane %v1361, %v1547
        %v1557 = vmul.f32 %v1520, %v1512
        %v1558 = vmul.f32 %v1524, %v1512
        %v1559 = vmul.f32 %v1528, %v1512
        %v1560 = vmul.f32 %v1532, %v1512
        %v1561 = vmul.f32 %v1536, %v1512
        %v1562 = vmul.f32 %v1540, %v1512
        %v1563 = vmul.f32 %v1544, %v1512
        %v1564 = vmul.f32 %v1548, %v1512
        %v1565 = vmul.f32 %v1520, %v1513
        %v1566 = vmul.f32 %v1524, %v1513
        %v1567 = vmul.f32 %v1528, %v1513
        %v1568 = vmul.f32 %v1532, %v1513
        %v1569 = vmul.f32 %v1536, %v1513
        %v1570 = vmul.f32 %v1540, %v1513
        %v1571 = vmul.f32 %v1544, %v1513
        %v1572 = vmul.f32 %v1548, %v1513
        %v1573 = vmul.f32 %v1520, %v1514
        %v1574 = vmul.f32 %v1524, %v1514
        %v1575 = vmul.f32 %v1528, %v1514
        %v1576 = vmul.f32 %v1532, %v1514
        %v1577 = vmul.f32 %v1536, %v1514
        %v1578 = vmul.f32 %v1540, %v1514
        %v1579 = vmul.f32 %v1544, %v1514
        %v1580 = vmul.f32 %v1548, %v1514
        %v1581 = vmul.f32 %v1520, %v1515
        %v1582 = vmul.f32 %v1524, %v1515
        %v1583 = vmul.f32 %v1528, %v1515
        %v1584 = vmul.f32 %v1532, %v1515
        %v1585 = vmul.f32 %v1536, %v1515
        %v1586 = vmul.f32 %v1540, %v1515
        %v1587 = vmul.f32 %v1544, %v1515
        %v1588 = vmul.f32 %v1548, %v1515
        %v1589 = vmul.f32 %v1404, %v1557
        %v1590 = vmul.f32 %v1405, %v1558
        %v1591 = vmul.f32 %v1406, %v1559
        %v1592 = vmul.f32 %v1407, %v1560
        %v1593 = vmul.f32 %v1408, %v1561
        %v1594 = vmul.f32 %v1409, %v1562
        %v1595 = vmul.f32 %v1410, %v1563
        %v1596 = vmul.f32 %v1411, %v1564
        %v1597 = vmul.f32 %v1412, %v1565
        %v1598 = vmul.f32 %v1413, %v1566
        %v1599 = vmul.f32 %v1414, %v1567
        %v1600 = vmul.f32 %v1415, %v1568
        %v1601 = vmul.f32 %v1416, %v1569
        %v1602 = vmul.f32 %v1417, %v1570
        %v1603 = vmul.f32 %v1418, %v1571
        %v1604 = vmul.f32 %v1419, %v1572
        %v1605 = vmul.f32 %v1420, %v1573
        %v1606 = vmul.f32 %v1421, %v1574
        %v1607 = vmul.f32 %v1422, %v1575
        %v1608 = vmul.f32 %v1423, %v1576
        %v1609 = vmul.f32 %v1424, %v1577
        %v1610 = vmul.f32 %v1425, %v1578
        %v1611 = vmul.f32 %v1426, %v1579
        %v1612 = vmul.f32 %v1427, %v1580
        %v1613 = vmul.f32 %v1428, %v1581
        %v1614 = vmul.f32 %v1429, %v1582
        %v1615 = vmul.f32 %v1430, %v1583
        %v1616 = vmul.f32 %v1431, %v1584
        %v1617 = vmul.f32 %v1432, %v1585
        %v1618 = vmul.f32 %v1433, %v1586
        %v1619 = vmul.f32 %v1434, %v1587
        %v1620 = vmul.f32 %v1435, %v1588
        %v1622 = vlaneseq
        %v1623 = vshrl.u32 %v1622, 7
        %v1624 = vsub.s32 0, %v1623
        %v1625 = vrot.slane %v1362, %v1624
        %v1626 = vlaneseq
        %v1627 = vshrl.u32 %v1626, 7
        %v1628 = vsub.s32 1, %v1627
        %v1629 = vrot.slane %v1362, %v1628
        %v1630 = vlaneseq
        %v1631 = vshrl.u32 %v1630, 7
        %v1632 = vsub.s32 2, %v1631
        %v1633 = vrot.slane %v1362, %v1632
        %v1634 = vlaneseq
        %v1635 = vshrl.u32 %v1634, 7
        %v1636 = vsub.s32 3, %v1635
        %v1637 = vrot.slane %v1362, %v1636
        %v1638 = vlaneseq
        %v1639 = vshrl.u32 %v1638, 7
        %v1640 = vsub.s32 4, %v1639
        %v1641 = vrot.slane %v1362, %v1640
        %v1642 = vlaneseq
        %v1643 = vshrl.u32 %v1642, 7
        %v1644 = vsub.s32 5, %v1643
        %v1645 = vrot.slane %v1362, %v1644
        %v1646 = vlaneseq
        %v1647 = vshrl.u32 %v1646, 7
        %v1648 = vsub.s32 6, %v1647
        %v1649 = vrot.slane %v1362, %v1648
        %v1650 = vlaneseq
        %v1651 = vshrl.u32 %v1650, 7
        %v1652 = vsub.s32 7, %v1651
        %v1653 = vrot.slane %v1362, %v1652
        %v1662 = vadd.f32 %v1589, %v1625
        %v1663 = vadd.f32 %v1590, %v1629
        %v1664 = vadd.f32 %v1591, %v1633
        %v1665 = vadd.f32 %v1592, %v1637
        %v1666 = vadd.f32 %v1593, %v1641
        %v1667 = vadd.f32 %v1594, %v1645
        %v1668 = vadd.f32 %v1595, %v1649
        %v1669 = vadd.f32 %v1596, %v1653
        %v1670 = vadd.f32 %v1597, %v1625
        %v1671 = vadd.f32 %v1598, %v1629
        %v1672 = vadd.f32 %v1599, %v1633
        %v1673 = vadd.f32 %v1600, %v1637
        %v1674 = vadd.f32 %v1601, %v1641
        %v1675 = vadd.f32 %v1602, %v1645
        %v1676 = vadd.f32 %v1603, %v1649
        %v1677 = vadd.f32 %v1604, %v1653
        %v1678 = vadd.f32 %v1605, %v1625
        %v1679 = vadd.f32 %v1606, %v1629
        %v1680 = vadd.f32 %v1607, %v1633
        %v1681 = vadd.f32 %v1608, %v1637
        %v1682 = vadd.f32 %v1609, %v1641
        %v1683 = vadd.f32 %v1610, %v1645
        %v1684 = vadd.f32 %v1611, %v1649
        %v1685 = vadd.f32 %v1612, %v1653
        %v1686 = vadd.f32 %v1613, %v1625
        %v1687 = vadd.f32 %v1614, %v1629
        %v1688 = vadd.f32 %v1615, %v1633
        %v1689 = vadd.f32 %v1616, %v1637
        %v1690 = vadd.f32 %v1617, %v1641
        %v1691 = vadd.f32 %v1618, %v1645
        %v1692 = vadd.f32 %v1619, %v1649
        %v1693 = vadd.f32 %v1620, %v1653
        %v1694 = vmax.f32 %v1662, 0.0
        %v1695 = vmax.f32 %v1663, 0.0
        %v1696 = vmax.f32 %v1664, 0.0
        %v1697 = vmax.f32 %v1665, 0.0
        %v1698 = vmax.f32 %v1666, 0.0
        %v1699 = vmax.f32 %v1667, 0.0
        %v1700 = vmax.f32 %v1668, 0.0
        %v1701 = vmax.f32 %v1669, 0.0
        %v1702 = vmax.f32 %v1670, 0.0
        %v1703 = vmax.f32 %v1671, 0.0
        %v1704 = vmax.f32 %v1672, 0.0
        %v1705 = vmax.f32 %v1673, 0.0
        %v1706 = vmax.f32 %v1674, 0.0
        %v1707 = vmax.f32 %v1675, 0.0
        %v1708 = vmax.f32 %v1676, 0.0
        %v1709 = vmax.f32 %v1677, 0.0
        %v1710 = vmax.f32 %v1678, 0.0
        %v1711 = vmax.f32 %v1679, 0.0
        %v1712 = vmax.f32 %v1680, 0.0
        %v1713 = vmax.f32 %v1681, 0.0
        %v1714 = vmax.f32 %v1682, 0.0
        %v1715 = vmax.f32 %v1683, 0.0
        %v1716 = vmax.f32 %v1684, 0.0
        %v1717 = vmax.f32 %v1685, 0.0
        %v1718 = vmax.f32 %v1686, 0.0
        %v1719 = vmax.f32 %v1687, 0.0
        %v1720 = vmax.f32 %v1688, 0.0
        %v1721 = vmax.f32 %v1689, 0.0
        %v1722 = vmax.f32 %v1690, 0.0
        %v1723 = vmax.f32 %v1691, 0.0
        %v1724 = vmax.f32 %v1692, 0.0
        %v1725 = vmax.f32 %v1693, 0.0
        %v1726 = vld [vmem:[#allocation11] sm:$0xff]
        %v1727 = vld [vmem:[#allocation11 + $0x8] sm:$0xff]
        %v1728 = vld [vmem:[#allocation11 + $0x10] sm:$0xff]
        %v1729 = vld [vmem:[#allocation11 + $0x18] sm:$0xff]
        %v1730 = vld [vmem:[#allocation11 + $0x20] sm:$0xff]
        %v1731 = vld [vmem:[#allocation11 + $0x28] sm:$0xff]
        %v1732 = vld [vmem:[#allocation11 + $0x30] sm:$0xff]
        %v1733 = vld [vmem:[#allocation11 + $0x38] sm:$0xff]
        %v1734 = vld [vmem:[#allocation11 + $0x40] sm:$0xff]
        %v1735 = vld [vmem:[#allocation11 + $0x48] sm:$0xff]
        %v1736 = vld [vmem:[#allocation11 + $0x50] sm:$0xff]
        %v1737 = vld [vmem:[#allocation11 + $0x58] sm:$0xff]
        %v1738 = vld [vmem:[#allocation11 + $0x60] sm:$0xff]
        %v1739 = vld [vmem:[#allocation11 + $0x68] sm:$0xff]
        %v1740 = vld [vmem:[#allocation11 + $0x70] sm:$0xff]
        %v1741 = vld [vmem:[#allocation11 + $0x78] sm:$0xff]
        %v1742 = vld [vmem:[#allocation11 + $0x80] sm:$0xff]
        %v1743 = vld [vmem:[#allocation11 + $0x88] sm:$0xff]
        %v1744 = vld [vmem:[#allocation11 + $0x90] sm:$0xff]
        %v1745 = vld [vmem:[#allocation11 + $0x98] sm:$0xff]
        %v1746 = vld [vmem:[#allocation11 + $0xa0] sm:$0xff]
        %v1747 = vld [vmem:[#allocation11 + $0xa8] sm:$0xff]
        %v1748 = vld [vmem:[#allocation11 + $0xb0] sm:$0xff]
        %v1749 = vld [vmem:[#allocation11 + $0xb8] sm:$0xff]
        %v1750 = vld [vmem:[#allocation11 + $0xc0] sm:$0xff]
        %v1751 = vld [vmem:[#allocation11 + $0xc8] sm:$0xff]
        %v1752 = vld [vmem:[#allocation11 + $0xd0] sm:$0xff]
        %v1753 = vld [vmem:[#allocation11 + $0xd8] sm:$0xff]
        %v1754 = vld [vmem:[#allocation11 + $0xe0] sm:$0xff]
        %v1755 = vld [vmem:[#allocation11 + $0xe8] sm:$0xff]
        %v1756 = vld [vmem:[#allocation11 + $0xf0] sm:$0xff]
        %v1757 = vld [vmem:[#allocation11 + $0xf8] sm:$0xff]
        %v1758 = vld [vmem:[#allocation11 + $0x100] sm:$0xff]
        %v1759 = vld [vmem:[#allocation11 + $0x108] sm:$0xff]
        %v1760 = vld [vmem:[#allocation11 + $0x110] sm:$0xff]
        %v1761 = vld [vmem:[#allocation11 + $0x118] sm:$0xff]
        %v1762 = vld [vmem:[#allocation11 + $0x120] sm:$0xff]
        %v1763 = vld [vmem:[#allocation11 + $0x128] sm:$0xff]
        %v1764 = vld [vmem:[#allocation11 + $0x130] sm:$0xff]
        %v1765 = vld [vmem:[#allocation11 + $0x138] sm:$0xff]
        %v1766 = vld [vmem:[#allocation11 + $0x140] sm:$0xff]
        %v1767 = vld [vmem:[#allocation11 + $0x148] sm:$0xff]
        %v1768 = vld [vmem:[#allocation11 + $0x150] sm:$0xff]
        %v1769 = vld [vmem:[#allocation11 + $0x158] sm:$0xff]
        %v1770 = vld [vmem:[#allocation11 + $0x160] sm:$0xff]
        %v1771 = vld [vmem:[#allocation11 + $0x168] sm:$0xff]
        %v1772 = vld [vmem:[#allocation11 + $0x170] sm:$0xff]
        %v1773 = vld [vmem:[#allocation11 + $0x178] sm:$0xff]
        %v1774 = vld [vmem:[#allocation11 + $0x180] sm:$0xff]
        %v1775 = vld [vmem:[#allocation11 + $0x188] sm:$0xff]
        %v1776 = vld [vmem:[#allocation11 + $0x190] sm:$0xff]
        %v1777 = vld [vmem:[#allocation11 + $0x198] sm:$0xff]
        %v1778 = vld [vmem:[#allocation11 + $0x1a0] sm:$0xff]
        %v1779 = vld [vmem:[#allocation11 + $0x1a8] sm:$0xff]
        %v1780 = vld [vmem:[#allocation11 + $0x1b0] sm:$0xff]
        %v1781 = vld [vmem:[#allocation11 + $0x1b8] sm:$0xff]
        %v1782 = vld [vmem:[#allocation11 + $0x1c0] sm:$0xff]
        %v1783 = vld [vmem:[#allocation11 + $0x1c8] sm:$0xff]
        %v1784 = vld [vmem:[#allocation11 + $0x1d0] sm:$0xff]
        %v1785 = vld [vmem:[#allocation11 + $0x1d8] sm:$0xff]
        %v1786 = vld [vmem:[#allocation11 + $0x1e0] sm:$0xff]
        %v1787 = vld [vmem:[#allocation11 + $0x1e8] sm:$0xff]
        %v1788 = vld [vmem:[#allocation11 + $0x1f0] sm:$0xff]
        %v1789 = vld [vmem:[#allocation11 + $0x1f8] sm:$0xff]
        %v1790 = vld [vmem:[#allocation11 + $0x200] sm:$0xff]
        %v1791 = vld [vmem:[#allocation11 + $0x208] sm:$0xff]
        %v1792 = vld [vmem:[#allocation11 + $0x210] sm:$0xff]
        %v1793 = vld [vmem:[#allocation11 + $0x218] sm:$0xff]
        %v1794 = vld [vmem:[#allocation11 + $0x220] sm:$0xff]
        %v1795 = vld [vmem:[#allocation11 + $0x228] sm:$0xff]
        %v1796 = vld [vmem:[#allocation11 + $0x230] sm:$0xff]
        %v1797 = vld [vmem:[#allocation11 + $0x238] sm:$0xff]
        %v1798 = vld [vmem:[#allocation11 + $0x240] sm:$0xff]
        %v1799 = vld [vmem:[#allocation11 + $0x248] sm:$0xff]
        %v1800 = vld [vmem:[#allocation11 + $0x250] sm:$0xff]
        %v1801 = vld [vmem:[#allocation11 + $0x258] sm:$0xff]
        %v1802 = vld [vmem:[#allocation11 + $0x260] sm:$0xff]
        %v1803 = vld [vmem:[#allocation11 + $0x268] sm:$0xff]
        %v1804 = vld [vmem:[#allocation11 + $0x270] sm:$0xff]
        %v1805 = vld [vmem:[#allocation11 + $0x278] sm:$0xff]
        %v1806 = vld [vmem:[#allocation11 + $0x280] sm:$0xff]
        %v1807 = vld [vmem:[#allocation11 + $0x288] sm:$0xff]
        %v1808 = vld [vmem:[#allocation11 + $0x290] sm:$0xff]
        %v1809 = vld [vmem:[#allocation11 + $0x298] sm:$0xff]
        %v1810 = vld [vmem:[#allocation11 + $0x2a0] sm:$0xff]
        %v1811 = vld [vmem:[#allocation11 + $0x2a8] sm:$0xff]
        %v1812 = vld [vmem:[#allocation11 + $0x2b0] sm:$0xff]
        %v1813 = vld [vmem:[#allocation11 + $0x2b8] sm:$0xff]
        %v1814 = vld [vmem:[#allocation11 + $0x2c0] sm:$0xff]
        %v1815 = vld [vmem:[#allocation11 + $0x2c8] sm:$0xff]
        %v1816 = vld [vmem:[#allocation11 + $0x2d0] sm:$0xff]
        %v1817 = vld [vmem:[#allocation11 + $0x2d8] sm:$0xff]
        %v1818 = vld [vmem:[#allocation11 + $0x2e0] sm:$0xff]
        %v1819 = vld [vmem:[#allocation11 + $0x2e8] sm:$0xff]
        %v1820 = vld [vmem:[#allocation11 + $0x2f0] sm:$0xff]
        %v1821 = vld [vmem:[#allocation11 + $0x2f8] sm:$0xff]
        %v1822 = vld [vmem:[#allocation11 + $0x300] sm:$0xff]
        %v1823 = vld [vmem:[#allocation11 + $0x308] sm:$0xff]
        %v1824 = vld [vmem:[#allocation11 + $0x310] sm:$0xff]
        %v1825 = vld [vmem:[#allocation11 + $0x318] sm:$0xff]
        %v1826 = vld [vmem:[#allocation11 + $0x320] sm:$0xff]
        %v1827 = vld [vmem:[#allocation11 + $0x328] sm:$0xff]
        %v1828 = vld [vmem:[#allocation11 + $0x330] sm:$0xff]
        %v1829 = vld [vmem:[#allocation11 + $0x338] sm:$0xff]
        %v1830 = vld [vmem:[#allocation11 + $0x340] sm:$0xff]
        %v1831 = vld [vmem:[#allocation11 + $0x348] sm:$0xff]
        %v1832 = vld [vmem:[#allocation11 + $0x350] sm:$0xff]
        %v1833 = vld [vmem:[#allocation11 + $0x358] sm:$0xff]
        %v1834 = vld [vmem:[#allocation11 + $0x360] sm:$0xff]
        %v1835 = vld [vmem:[#allocation11 + $0x368] sm:$0xff]
        %v1836 = vld [vmem:[#allocation11 + $0x370] sm:$0xff]
        %v1837 = vld [vmem:[#allocation11 + $0x378] sm:$0xff]
        %v1838 = vld [vmem:[#allocation11 + $0x380] sm:$0xff]
        %v1839 = vld [vmem:[#allocation11 + $0x388] sm:$0xff]
        %v1840 = vld [vmem:[#allocation11 + $0x390] sm:$0xff]
        %v1841 = vld [vmem:[#allocation11 + $0x398] sm:$0xff]
        %v1842 = vld [vmem:[#allocation11 + $0x3a0] sm:$0xff]
        %v1843 = vld [vmem:[#allocation11 + $0x3a8] sm:$0xff]
        %v1844 = vld [vmem:[#allocation11 + $0x3b0] sm:$0xff]
        %v1845 = vld [vmem:[#allocation11 + $0x3b8] sm:$0xff]
        %v1846 = vld [vmem:[#allocation11 + $0x3c0] sm:$0xff]
        %v1847 = vld [vmem:[#allocation11 + $0x3c8] sm:$0xff]
        %v1848 = vld [vmem:[#allocation11 + $0x3d0] sm:$0xff]
        %v1849 = vld [vmem:[#allocation11 + $0x3d8] sm:$0xff]
        %v1850 = vld [vmem:[#allocation11 + $0x3e0] sm:$0xff]
        %v1851 = vld [vmem:[#allocation11 + $0x3e8] sm:$0xff]
        %v1852 = vld [vmem:[#allocation11 + $0x3f0] sm:$0xff]
        %v1853 = vld [vmem:[#allocation11 + $0x3f8] sm:$0xff]
        %v1854 = vld [vmem:[#allocation11 + $0x400] sm:$0xff]
        %v1855 = vld [vmem:[#allocation11 + $0x408] sm:$0xff]
        %v1856 = vld [vmem:[#allocation11 + $0x410] sm:$0xff]
        %v1857 = vld [vmem:[#allocation11 + $0x418] sm:$0xff]
        %v1858 = vld [vmem:[#allocation11 + $0x420] sm:$0xff]
        %v1859 = vld [vmem:[#allocation11 + $0x428] sm:$0xff]
        %v1860 = vld [vmem:[#allocation11 + $0x430] sm:$0xff]
        %v1861 = vld [vmem:[#allocation11 + $0x438] sm:$0xff]
        %v1862 = vld [vmem:[#allocation11 + $0x440] sm:$0xff]
        %v1863 = vld [vmem:[#allocation11 + $0x448] sm:$0xff]
        %v1864 = vld [vmem:[#allocation11 + $0x450] sm:$0xff]
        %v1865 = vld [vmem:[#allocation11 + $0x458] sm:$0xff]
        %v1866 = vld [vmem:[#allocation11 + $0x460] sm:$0xff]
        %v1867 = vld [vmem:[#allocation11 + $0x468] sm:$0xff]
        %v1868 = vld [vmem:[#allocation11 + $0x470] sm:$0xff]
        %v1869 = vld [vmem:[#allocation11 + $0x478] sm:$0xff]
        %v1870 = vld [vmem:[#allocation11 + $0x480] sm:$0xff]
        %v1871 = vld [vmem:[#allocation11 + $0x488] sm:$0xff]
        %v1872 = vld [vmem:[#allocation11 + $0x490] sm:$0xff]
        %v1873 = vld [vmem:[#allocation11 + $0x498] sm:$0xff]
        %v1874 = vld [vmem:[#allocation11 + $0x4a0] sm:$0xff]
        %v1875 = vld [vmem:[#allocation11 + $0x4a8] sm:$0xff]
        %v1876 = vld [vmem:[#allocation11 + $0x4b0] sm:$0xff]
        %v1877 = vld [vmem:[#allocation11 + $0x4b8] sm:$0xff]
        %v1878 = vld [vmem:[#allocation11 + $0x4c0] sm:$0xff]
        %v1879 = vld [vmem:[#allocation11 + $0x4c8] sm:$0xff]
        %v1880 = vld [vmem:[#allocation11 + $0x4d0] sm:$0xff]
        %v1881 = vld [vmem:[#allocation11 + $0x4d8] sm:$0xff]
        %v1882 = vld [vmem:[#allocation11 + $0x4e0] sm:$0xff]
        %v1883 = vld [vmem:[#allocation11 + $0x4e8] sm:$0xff]
        %v1884 = vld [vmem:[#allocation11 + $0x4f0] sm:$0xff]
        %v1885 = vld [vmem:[#allocation11 + $0x4f8] sm:$0xff]
        %v1886 = vld [vmem:[#allocation11 + $0x500] sm:$0xff]
        %v1887 = vld [vmem:[#allocation11 + $0x508] sm:$0xff]
        %v1888 = vld [vmem:[#allocation11 + $0x510] sm:$0xff]
        %v1889 = vld [vmem:[#allocation11 + $0x518] sm:$0xff]
        %v1890 = vld [vmem:[#allocation11 + $0x520] sm:$0xff]
        %v1891 = vld [vmem:[#allocation11 + $0x528] sm:$0xff]
        %v1892 = vld [vmem:[#allocation11 + $0x530] sm:$0xff]
        %v1893 = vld [vmem:[#allocation11 + $0x538] sm:$0xff]
        %v1894 = vld [vmem:[#allocation11 + $0x540] sm:$0xff]
        %v1895 = vld [vmem:[#allocation11 + $0x548] sm:$0xff]
        %v1896 = vld [vmem:[#allocation11 + $0x550] sm:$0xff]
        %v1897 = vld [vmem:[#allocation11 + $0x558] sm:$0xff]
        %v1898 = vld [vmem:[#allocation11 + $0x560] sm:$0xff]
        %v1899 = vld [vmem:[#allocation11 + $0x568] sm:$0xff]
        %v1900 = vld [vmem:[#allocation11 + $0x570] sm:$0xff]
        %v1901 = vld [vmem:[#allocation11 + $0x578] sm:$0xff]
        %v1902 = vld [vmem:[#allocation11 + $0x580] sm:$0xff]
        %v1903 = vld [vmem:[#allocation11 + $0x588] sm:$0xff]
        %v1904 = vld [vmem:[#allocation11 + $0x590] sm:$0xff]
        %v1905 = vld [vmem:[#allocation11 + $0x598] sm:$0xff]
        %v1906 = vld [vmem:[#allocation11 + $0x5a0] sm:$0xff]
        %v1907 = vld [vmem:[#allocation11 + $0x5a8] sm:$0xff]
        %v1908 = vld [vmem:[#allocation11 + $0x5b0] sm:$0xff]
        %v1909 = vld [vmem:[#allocation11 + $0x5b8] sm:$0xff]
        %v1910 = vld [vmem:[#allocation11 + $0x5c0] sm:$0xff]
        %v1911 = vld [vmem:[#allocation11 + $0x5c8] sm:$0xff]
        %v1912 = vld [vmem:[#allocation11 + $0x5d0] sm:$0xff]
        %v1913 = vld [vmem:[#allocation11 + $0x5d8] sm:$0xff]
        %v1914 = vld [vmem:[#allocation11 + $0x5e0] sm:$0xff]
        %v1915 = vld [vmem:[#allocation11 + $0x5e8] sm:$0xff]
        %v1916 = vld [vmem:[#allocation11 + $0x5f0] sm:$0xff]
        %v1917 = vld [vmem:[#allocation11 + $0x5f8] sm:$0xff]
        %v1918 = vld [vmem:[#allocation11 + $0x600] sm:$0xff]
        %v1919 = vld [vmem:[#allocation11 + $0x608] sm:$0xff]
        %v1920 = vld [vmem:[#allocation11 + $0x610] sm:$0xff]
        %v1921 = vld [vmem:[#allocation11 + $0x618] sm:$0xff]
        %v1922 = vld [vmem:[#allocation11 + $0x620] sm:$0xff]
        %v1923 = vld [vmem:[#allocation11 + $0x628] sm:$0xff]
        %v1924 = vld [vmem:[#allocation11 + $0x630] sm:$0xff]
        %v1925 = vld [vmem:[#allocation11 + $0x638] sm:$0xff]
        %v1926 = vld [vmem:[#allocation11 + $0x640] sm:$0xff]
        %v1927 = vld [vmem:[#allocation11 + $0x648] sm:$0xff]
        %v1928 = vld [vmem:[#allocation11 + $0x650] sm:$0xff]
        %v1929 = vld [vmem:[#allocation11 + $0x658] sm:$0xff]
        %v1930 = vld [vmem:[#allocation11 + $0x660] sm:$0xff]
        %v1931 = vld [vmem:[#allocation11 + $0x668] sm:$0xff]
        %v1932 = vld [vmem:[#allocation11 + $0x670] sm:$0xff]
        %v1933 = vld [vmem:[#allocation11 + $0x678] sm:$0xff]
        %v1934 = vld [vmem:[#allocation11 + $0x680] sm:$0xff]
        %v1935 = vld [vmem:[#allocation11 + $0x688] sm:$0xff]
        %v1936 = vld [vmem:[#allocation11 + $0x690] sm:$0xff]
        %v1937 = vld [vmem:[#allocation11 + $0x698] sm:$0xff]
        %v1938 = vld [vmem:[#allocation11 + $0x6a0] sm:$0xff]
        %v1939 = vld [vmem:[#allocation11 + $0x6a8] sm:$0xff]
        %v1940 = vld [vmem:[#allocation11 + $0x6b0] sm:$0xff]
        %v1941 = vld [vmem:[#allocation11 + $0x6b8] sm:$0xff]
        %v1942 = vld [vmem:[#allocation11 + $0x6c0] sm:$0xff]
        %v1943 = vld [vmem:[#allocation11 + $0x6c8] sm:$0xff]
        %v1944 = vld [vmem:[#allocation11 + $0x6d0] sm:$0xff]
        %v1945 = vld [vmem:[#allocation11 + $0x6d8] sm:$0xff]
        %v1946 = vld [vmem:[#allocation11 + $0x6e0] sm:$0xff]
        %v1947 = vld [vmem:[#allocation11 + $0x6e8] sm:$0xff]
        %v1948 = vld [vmem:[#allocation11 + $0x6f0] sm:$0xff]
        %v1949 = vld [vmem:[#allocation11 + $0x6f8] sm:$0xff]
        %v1950 = vld [vmem:[#allocation11 + $0x700] sm:$0xff]
        %v1951 = vld [vmem:[#allocation11 + $0x708] sm:$0xff]
        %v1952 = vld [vmem:[#allocation11 + $0x710] sm:$0xff]
        %v1953 = vld [vmem:[#allocation11 + $0x718] sm:$0xff]
        %v1954 = vld [vmem:[#allocation11 + $0x720] sm:$0xff]
        %v1955 = vld [vmem:[#allocation11 + $0x728] sm:$0xff]
        %v1956 = vld [vmem:[#allocation11 + $0x730] sm:$0xff]
        %v1957 = vld [vmem:[#allocation11 + $0x738] sm:$0xff]
        %v1958 = vld [vmem:[#allocation11 + $0x740] sm:$0xff]
        %v1959 = vld [vmem:[#allocation11 + $0x748] sm:$0xff]
        %v1960 = vld [vmem:[#allocation11 + $0x750] sm:$0xff]
        %v1961 = vld [vmem:[#allocation11 + $0x758] sm:$0xff]
        %v1962 = vld [vmem:[#allocation11 + $0x760] sm:$0xff]
        %v1963 = vld [vmem:[#allocation11 + $0x768] sm:$0xff]
        %v1964 = vld [vmem:[#allocation11 + $0x770] sm:$0xff]
        %v1965 = vld [vmem:[#allocation11 + $0x778] sm:$0xff]
        %v1966 = vld [vmem:[#allocation11 + $0x780] sm:$0xff]
        %v1967 = vld [vmem:[#allocation11 + $0x788] sm:$0xff]
        %v1968 = vld [vmem:[#allocation11 + $0x790] sm:$0xff]
        %v1969 = vld [vmem:[#allocation11 + $0x798] sm:$0xff]
        %v1970 = vld [vmem:[#allocation11 + $0x7a0] sm:$0xff]
        %v1971 = vld [vmem:[#allocation11 + $0x7a8] sm:$0xff]
        %v1972 = vld [vmem:[#allocation11 + $0x7b0] sm:$0xff]
        %v1973 = vld [vmem:[#allocation11 + $0x7b8] sm:$0xff]
        %v1974 = vld [vmem:[#allocation11 + $0x7c0] sm:$0xff]
        %v1975 = vld [vmem:[#allocation11 + $0x7c8] sm:$0xff]
        %v1976 = vld [vmem:[#allocation11 + $0x7d0] sm:$0xff]
        %v1977 = vld [vmem:[#allocation11 + $0x7d8] sm:$0xff]
        %v1978 = vld [vmem:[#allocation11 + $0x7e0] sm:$0xff]
        %v1979 = vld [vmem:[#allocation11 + $0x7e8] sm:$0xff]
        %v1980 = vld [vmem:[#allocation11 + $0x7f0] sm:$0xff]
        %v1981 = vld [vmem:[#allocation11 + $0x7f8] sm:$0xff]
        %v1982 = vld [vmem:[#allocation11 + $0x800] sm:$0xff]
        %v1983 = vld [vmem:[#allocation11 + $0x808] sm:$0xff]
        %v1984 = vld [vmem:[#allocation11 + $0x810] sm:$0xff]
        %v1985 = vld [vmem:[#allocation11 + $0x818] sm:$0xff]
        %v1986 = vld [vmem:[#allocation11 + $0x820] sm:$0xff]
        %v1987 = vld [vmem:[#allocation11 + $0x828] sm:$0xff]
        %v1988 = vld [vmem:[#allocation11 + $0x830] sm:$0xff]
        %v1989 = vld [vmem:[#allocation11 + $0x838] sm:$0xff]
        %v1990 = vld [vmem:[#allocation11 + $0x840] sm:$0xff]
        %v1991 = vld [vmem:[#allocation11 + $0x848] sm:$0xff]
        %v1992 = vld [vmem:[#allocation11 + $0x850] sm:$0xff]
        %v1993 = vld [vmem:[#allocation11 + $0x858] sm:$0xff]
        %v1994 = vld [vmem:[#allocation11 + $0x860] sm:$0xff]
        %v1995 = vld [vmem:[#allocation11 + $0x868] sm:$0xff]
        %v1996 = vld [vmem:[#allocation11 + $0x870] sm:$0xff]
        %v1997 = vld [vmem:[#allocation11 + $0x878] sm:$0xff]
        %v1998 = vld [vmem:[#allocation11 + $0x880] sm:$0xff]
        %v1999 = vld [vmem:[#allocation11 + $0x888] sm:$0xff]
        %v2000 = vld [vmem:[#allocation11 + $0x890] sm:$0xff]
        %v2001 = vld [vmem:[#allocation11 + $0x898] sm:$0xff]
        %v2002 = vld [vmem:[#allocation11 + $0x8a0] sm:$0xff]
        %v2003 = vld [vmem:[#allocation11 + $0x8a8] sm:$0xff]
        %v2004 = vld [vmem:[#allocation11 + $0x8b0] sm:$0xff]
        %v2005 = vld [vmem:[#allocation11 + $0x8b8] sm:$0xff]
        %v2006 = vld [vmem:[#allocation11 + $0x8c0] sm:$0xff]
        %v2007 = vld [vmem:[#allocation11 + $0x8c8] sm:$0xff]
        %v2008 = vld [vmem:[#allocation11 + $0x8d0] sm:$0xff]
        %v2009 = vld [vmem:[#allocation11 + $0x8d8] sm:$0xff]
        %v2010 = vld [vmem:[#allocation11 + $0x8e0] sm:$0xff]
        %v2011 = vld [vmem:[#allocation11 + $0x8e8] sm:$0xff]
        %v2012 = vld [vmem:[#allocation11 + $0x8f0] sm:$0xff]
        %v2013 = vld [vmem:[#allocation11 + $0x8f8] sm:$0xff]
        %v2014 = vld [vmem:[#allocation11 + $0x900] sm:$0xff]
        %v2015 = vld [vmem:[#allocation11 + $0x908] sm:$0xff]
        %v2016 = vld [vmem:[#allocation11 + $0x910] sm:$0xff]
        %v2017 = vld [vmem:[#allocation11 + $0x918] sm:$0xff]
        %v2018 = vld [vmem:[#allocation11 + $0x920] sm:$0xff]
        %v2019 = vld [vmem:[#allocation11 + $0x928] sm:$0xff]
        %v2020 = vld [vmem:[#allocation11 + $0x930] sm:$0xff]
        %v2021 = vld [vmem:[#allocation11 + $0x938] sm:$0xff]
        %v2022 = vld [vmem:[#allocation11 + $0x940] sm:$0xff]
        %v2023 = vld [vmem:[#allocation11 + $0x948] sm:$0xff]
        %v2024 = vld [vmem:[#allocation11 + $0x950] sm:$0xff]
        %v2025 = vld [vmem:[#allocation11 + $0x958] sm:$0xff]
        %v2026 = vld [vmem:[#allocation11 + $0x960] sm:$0xff]
        %v2027 = vld [vmem:[#allocation11 + $0x968] sm:$0xff]
        %v2028 = vld [vmem:[#allocation11 + $0x970] sm:$0xff]
        %v2029 = vld [vmem:[#allocation11 + $0x978] sm:$0xff]
        %v2030 = vld [vmem:[#allocation11 + $0x980] sm:$0xff]
        %v2031 = vld [vmem:[#allocation11 + $0x988] sm:$0xff]
        %v2032 = vld [vmem:[#allocation11 + $0x990] sm:$0xff]
        %v2033 = vld [vmem:[#allocation11 + $0x998] sm:$0xff]
        %v2034 = vld [vmem:[#allocation11 + $0x9a0] sm:$0xff]
        %v2035 = vld [vmem:[#allocation11 + $0x9a8] sm:$0xff]
        %v2036 = vld [vmem:[#allocation11 + $0x9b0] sm:$0xff]
        %v2037 = vld [vmem:[#allocation11 + $0x9b8] sm:$0xff]
        %v2038 = vld [vmem:[#allocation11 + $0x9c0] sm:$0xff]
        %v2039 = vld [vmem:[#allocation11 + $0x9c8] sm:$0xff]
        %v2040 = vld [vmem:[#allocation11 + $0x9d0] sm:$0xff]
        %v2041 = vld [vmem:[#allocation11 + $0x9d8] sm:$0xff]
        %v2042 = vld [vmem:[#allocation11 + $0x9e0] sm:$0xff]
        %v2043 = vld [vmem:[#allocation11 + $0x9e8] sm:$0xff]
        %v2044 = vld [vmem:[#allocation11 + $0x9f0] sm:$0xff]
        %v2045 = vld [vmem:[#allocation11 + $0x9f8] sm:$0xff]
        %v2046 = vld [vmem:[#allocation11 + $0xa00] sm:$0xff]
        %v2047 = vld [vmem:[#allocation11 + $0xa08] sm:$0xff]
        %v2048 = vld [vmem:[#allocation11 + $0xa10] sm:$0xff]
        %v2049 = vld [vmem:[#allocation11 + $0xa18] sm:$0xff]
        %v2050 = vld [vmem:[#allocation11 + $0xa20] sm:$0xff]
        %v2051 = vld [vmem:[#allocation11 + $0xa28] sm:$0xff]
        %v2052 = vld [vmem:[#allocation11 + $0xa30] sm:$0xff]
        %v2053 = vld [vmem:[#allocation11 + $0xa38] sm:$0xff]
        %v2054 = vld [vmem:[#allocation11 + $0xa40] sm:$0xff]
        %v2055 = vld [vmem:[#allocation11 + $0xa48] sm:$0xff]
        %v2056 = vld [vmem:[#allocation11 + $0xa50] sm:$0xff]
        %v2057 = vld [vmem:[#allocation11 + $0xa58] sm:$0xff]
        %v2058 = vld [vmem:[#allocation11 + $0xa60] sm:$0xff]
        %v2059 = vld [vmem:[#allocation11 + $0xa68] sm:$0xff]
        %v2060 = vld [vmem:[#allocation11 + $0xa70] sm:$0xff]
        %v2061 = vld [vmem:[#allocation11 + $0xa78] sm:$0xff]
        %v2062 = vld [vmem:[#allocation11 + $0xa80] sm:$0xff]
        %v2063 = vld [vmem:[#allocation11 + $0xa88] sm:$0xff]
        %v2064 = vld [vmem:[#allocation11 + $0xa90] sm:$0xff]
        %v2065 = vld [vmem:[#allocation11 + $0xa98] sm:$0xff]
        %v2066 = vld [vmem:[#allocation11 + $0xaa0] sm:$0xff]
        %v2067 = vld [vmem:[#allocation11 + $0xaa8] sm:$0xff]
        %v2068 = vld [vmem:[#allocation11 + $0xab0] sm:$0xff]
        %v2069 = vld [vmem:[#allocation11 + $0xab8] sm:$0xff]
        %v2070 = vld [vmem:[#allocation11 + $0xac0] sm:$0xff]
        %v2071 = vld [vmem:[#allocation11 + $0xac8] sm:$0xff]
        %v2072 = vld [vmem:[#allocation11 + $0xad0] sm:$0xff]
        %v2073 = vld [vmem:[#allocation11 + $0xad8] sm:$0xff]
        %v2074 = vld [vmem:[#allocation11 + $0xae0] sm:$0xff]
        %v2075 = vld [vmem:[#allocation11 + $0xae8] sm:$0xff]
        %v2076 = vld [vmem:[#allocation11 + $0xaf0] sm:$0xff]
        %v2077 = vld [vmem:[#allocation11 + $0xaf8] sm:$0xff]
        %v2078 = vld [vmem:[#allocation11 + $0xb00] sm:$0xff]
        %v2079 = vld [vmem:[#allocation11 + $0xb08] sm:$0xff]
        %v2080 = vld [vmem:[#allocation11 + $0xb10] sm:$0xff]
        %v2081 = vld [vmem:[#allocation11 + $0xb18] sm:$0xff]
        %v2082 = vld [vmem:[#allocation11 + $0xb20] sm:$0xff]
        %v2083 = vld [vmem:[#allocation11 + $0xb28] sm:$0xff]
        %v2084 = vld [vmem:[#allocation11 + $0xb30] sm:$0xff]
        %v2085 = vld [vmem:[#allocation11 + $0xb38] sm:$0xff]
        %v2086 = vld [vmem:[#allocation11 + $0xb40] sm:$0xff]
        %v2087 = vld [vmem:[#allocation11 + $0xb48] sm:$0xff]
        %v2088 = vld [vmem:[#allocation11 + $0xb50] sm:$0xff]
        %v2089 = vld [vmem:[#allocation11 + $0xb58] sm:$0xff]
        %v2090 = vld [vmem:[#allocation11 + $0xb60] sm:$0xff]
        %v2091 = vld [vmem:[#allocation11 + $0xb68] sm:$0xff]
        %v2092 = vld [vmem:[#allocation11 + $0xb70] sm:$0xff]
        %v2093 = vld [vmem:[#allocation11 + $0xb78] sm:$0xff]
        %v2094 = vld [vmem:[#allocation11 + $0xb80] sm:$0xff]
        %v2095 = vld [vmem:[#allocation11 + $0xb88] sm:$0xff]
        %v2096 = vld [vmem:[#allocation11 + $0xb90] sm:$0xff]
        %v2097 = vld [vmem:[#allocation11 + $0xb98] sm:$0xff]
        %v2098 = vld [vmem:[#allocation11 + $0xba0] sm:$0xff]
        %v2099 = vld [vmem:[#allocation11 + $0xba8] sm:$0xff]
        %v2100 = vld [vmem:[#allocation11 + $0xbb0] sm:$0xff]
        %v2101 = vld [vmem:[#allocation11 + $0xbb8] sm:$0xff]
        %v2102 = vld [vmem:[#allocation11 + $0xbc0] sm:$0xff]
        %v2103 = vld [vmem:[#allocation11 + $0xbc8] sm:$0xff]
        %v2104 = vld [vmem:[#allocation11 + $0xbd0] sm:$0xff]
        %v2105 = vld [vmem:[#allocation11 + $0xbd8] sm:$0xff]
        %v2106 = vld [vmem:[#allocation11 + $0xbe0] sm:$0xff]
        %v2107 = vld [vmem:[#allocation11 + $0xbe8] sm:$0xff]
        %v2108 = vld [vmem:[#allocation11 + $0xbf0] sm:$0xff]
        %v2109 = vld [vmem:[#allocation11 + $0xbf8] sm:$0xff]
        %v2110 = vld [vmem:[#allocation11 + $0xc00] sm:$0xff]
        %v2111 = vld [vmem:[#allocation11 + $0xc08] sm:$0xff]
        %v2112 = vld [vmem:[#allocation11 + $0xc10] sm:$0xff]
        %v2113 = vld [vmem:[#allocation11 + $0xc18] sm:$0xff]
        %v2114 = vld [vmem:[#allocation11 + $0xc20] sm:$0xff]
        %v2115 = vld [vmem:[#allocation11 + $0xc28] sm:$0xff]
        %v2116 = vld [vmem:[#allocation11 + $0xc30] sm:$0xff]
        %v2117 = vld [vmem:[#allocation11 + $0xc38] sm:$0xff]
        %v2118 = vld [vmem:[#allocation11 + $0xc40] sm:$0xff]
        %v2119 = vld [vmem:[#allocation11 + $0xc48] sm:$0xff]
        %v2120 = vld [vmem:[#allocation11 + $0xc50] sm:$0xff]
        %v2121 = vld [vmem:[#allocation11 + $0xc58] sm:$0xff]
        %v2122 = vld [vmem:[#allocation11 + $0xc60] sm:$0xff]
        %v2123 = vld [vmem:[#allocation11 + $0xc68] sm:$0xff]
        %v2124 = vld [vmem:[#allocation11 + $0xc70] sm:$0xff]
        %v2125 = vld [vmem:[#allocation11 + $0xc78] sm:$0xff]
        %v2126 = vld [vmem:[#allocation11 + $0xc80] sm:$0xff]
        %v2127 = vld [vmem:[#allocation11 + $0xc88] sm:$0xff]
        %v2128 = vld [vmem:[#allocation11 + $0xc90] sm:$0xff]
        %v2129 = vld [vmem:[#allocation11 + $0xc98] sm:$0xff]
        %v2130 = vld [vmem:[#allocation11 + $0xca0] sm:$0xff]
        %v2131 = vld [vmem:[#allocation11 + $0xca8] sm:$0xff]
        %v2132 = vld [vmem:[#allocation11 + $0xcb0] sm:$0xff]
        %v2133 = vld [vmem:[#allocation11 + $0xcb8] sm:$0xff]
        %v2134 = vld [vmem:[#allocation11 + $0xcc0] sm:$0xff]
        %v2135 = vld [vmem:[#allocation11 + $0xcc8] sm:$0xff]
        %v2136 = vld [vmem:[#allocation11 + $0xcd0] sm:$0xff]
        %v2137 = vld [vmem:[#allocation11 + $0xcd8] sm:$0xff]
        %v2138 = vld [vmem:[#allocation11 + $0xce0] sm:$0xff]
        %v2139 = vld [vmem:[#allocation11 + $0xce8] sm:$0xff]
        %v2140 = vld [vmem:[#allocation11 + $0xcf0] sm:$0xff]
        %v2141 = vld [vmem:[#allocation11 + $0xcf8] sm:$0xff]
        %v2142 = vld [vmem:[#allocation11 + $0xd00] sm:$0xff]
        %v2143 = vld [vmem:[#allocation11 + $0xd08] sm:$0xff]
        %v2144 = vld [vmem:[#allocation11 + $0xd10] sm:$0xff]
        %v2145 = vld [vmem:[#allocation11 + $0xd18] sm:$0xff]
        %v2146 = vld [vmem:[#allocation11 + $0xd20] sm:$0xff]
        %v2147 = vld [vmem:[#allocation11 + $0xd28] sm:$0xff]
        %v2148 = vld [vmem:[#allocation11 + $0xd30] sm:$0xff]
        %v2149 = vld [vmem:[#allocation11 + $0xd38] sm:$0xff]
        %v2150 = vld [vmem:[#allocation11 + $0xd40] sm:$0xff]
        %v2151 = vld [vmem:[#allocation11 + $0xd48] sm:$0xff]
        %v2152 = vld [vmem:[#allocation11 + $0xd50] sm:$0xff]
        %v2153 = vld [vmem:[#allocation11 + $0xd58] sm:$0xff]
        %v2154 = vld [vmem:[#allocation11 + $0xd60] sm:$0xff]
        %v2155 = vld [vmem:[#allocation11 + $0xd68] sm:$0xff]
        %v2156 = vld [vmem:[#allocation11 + $0xd70] sm:$0xff]
        %v2157 = vld [vmem:[#allocation11 + $0xd78] sm:$0xff]
        %v2158 = vld [vmem:[#allocation11 + $0xd80] sm:$0xff]
        %v2159 = vld [vmem:[#allocation11 + $0xd88] sm:$0xff]
        %v2160 = vld [vmem:[#allocation11 + $0xd90] sm:$0xff]
        %v2161 = vld [vmem:[#allocation11 + $0xd98] sm:$0xff]
        %v2162 = vld [vmem:[#allocation11 + $0xda0] sm:$0xff]
        %v2163 = vld [vmem:[#allocation11 + $0xda8] sm:$0xff]
        %v2164 = vld [vmem:[#allocation11 + $0xdb0] sm:$0xff]
        %v2165 = vld [vmem:[#allocation11 + $0xdb8] sm:$0xff]
        %v2166 = vld [vmem:[#allocation11 + $0xdc0] sm:$0xff]
        %v2167 = vld [vmem:[#allocation11 + $0xdc8] sm:$0xff]
        %v2168 = vld [vmem:[#allocation11 + $0xdd0] sm:$0xff]
        %v2169 = vld [vmem:[#allocation11 + $0xdd8] sm:$0xff]
        %v2170 = vld [vmem:[#allocation11 + $0xde0] sm:$0xff]
        %v2171 = vld [vmem:[#allocation11 + $0xde8] sm:$0xff]
        %v2172 = vld [vmem:[#allocation11 + $0xdf0] sm:$0xff]
        %v2173 = vld [vmem:[#allocation11 + $0xdf8] sm:$0xff]
        %v2174 = vld [vmem:[#allocation11 + $0xe00] sm:$0xff]
        %v2175 = vld [vmem:[#allocation11 + $0xe08] sm:$0xff]
        %v2176 = vld [vmem:[#allocation11 + $0xe10] sm:$0xff]
        %v2177 = vld [vmem:[#allocation11 + $0xe18] sm:$0xff]
        %v2178 = vld [vmem:[#allocation11 + $0xe20] sm:$0xff]
        %v2179 = vld [vmem:[#allocation11 + $0xe28] sm:$0xff]
        %v2180 = vld [vmem:[#allocation11 + $0xe30] sm:$0xff]
        %v2181 = vld [vmem:[#allocation11 + $0xe38] sm:$0xff]
        %v2182 = vld [vmem:[#allocation11 + $0xe40] sm:$0xff]
        %v2183 = vld [vmem:[#allocation11 + $0xe48] sm:$0xff]
        %v2184 = vld [vmem:[#allocation11 + $0xe50] sm:$0xff]
        %v2185 = vld [vmem:[#allocation11 + $0xe58] sm:$0xff]
        %v2186 = vld [vmem:[#allocation11 + $0xe60] sm:$0xff]
        %v2187 = vld [vmem:[#allocation11 + $0xe68] sm:$0xff]
        %v2188 = vld [vmem:[#allocation11 + $0xe70] sm:$0xff]
        %v2189 = vld [vmem:[#allocation11 + $0xe78] sm:$0xff]
        %v2190 = vld [vmem:[#allocation11 + $0xe80] sm:$0xff]
        %v2191 = vld [vmem:[#allocation11 + $0xe88] sm:$0xff]
        %v2192 = vld [vmem:[#allocation11 + $0xe90] sm:$0xff]
        %v2193 = vld [vmem:[#allocation11 + $0xe98] sm:$0xff]
        %v2194 = vld [vmem:[#allocation11 + $0xea0] sm:$0xff]
        %v2195 = vld [vmem:[#allocation11 + $0xea8] sm:$0xff]
        %v2196 = vld [vmem:[#allocation11 + $0xeb0] sm:$0xff]
        %v2197 = vld [vmem:[#allocation11 + $0xeb8] sm:$0xff]
        %v2198 = vld [vmem:[#allocation11 + $0xec0] sm:$0xff]
        %v2199 = vld [vmem:[#allocation11 + $0xec8] sm:$0xff]
        %v2200 = vld [vmem:[#allocation11 + $0xed0] sm:$0xff]
        %v2201 = vld [vmem:[#allocation11 + $0xed8] sm:$0xff]
        %v2202 = vld [vmem:[#allocation11 + $0xee0] sm:$0xff]
        %v2203 = vld [vmem:[#allocation11 + $0xee8] sm:$0xff]
        %v2204 = vld [vmem:[#allocation11 + $0xef0] sm:$0xff]
        %v2205 = vld [vmem:[#allocation11 + $0xef8] sm:$0xff]
        %v2206 = vld [vmem:[#allocation11 + $0xf00] sm:$0xff]
        %v2207 = vld [vmem:[#allocation11 + $0xf08] sm:$0xff]
        %v2208 = vld [vmem:[#allocation11 + $0xf10] sm:$0xff]
        %v2209 = vld [vmem:[#allocation11 + $0xf18] sm:$0xff]
        %v2210 = vld [vmem:[#allocation11 + $0xf20] sm:$0xff]
        %v2211 = vld [vmem:[#allocation11 + $0xf28] sm:$0xff]
        %v2212 = vld [vmem:[#allocation11 + $0xf30] sm:$0xff]
        %v2213 = vld [vmem:[#allocation11 + $0xf38] sm:$0xff]
        %v2214 = vld [vmem:[#allocation11 + $0xf40] sm:$0xff]
        %v2215 = vld [vmem:[#allocation11 + $0xf48] sm:$0xff]
        %v2216 = vld [vmem:[#allocation11 + $0xf50] sm:$0xff]
        %v2217 = vld [vmem:[#allocation11 + $0xf58] sm:$0xff]
        %v2218 = vld [vmem:[#allocation11 + $0xf60] sm:$0xff]
        %v2219 = vld [vmem:[#allocation11 + $0xf68] sm:$0xff]
        %v2220 = vld [vmem:[#allocation11 + $0xf70] sm:$0xff]
        %v2221 = vld [vmem:[#allocation11 + $0xf78] sm:$0xff]
        %v2222 = vld [vmem:[#allocation11 + $0xf80] sm:$0xff]
        %v2223 = vld [vmem:[#allocation11 + $0xf88] sm:$0xff]
        %v2224 = vld [vmem:[#allocation11 + $0xf90] sm:$0xff]
        %v2225 = vld [vmem:[#allocation11 + $0xf98] sm:$0xff]
        %v2226 = vld [vmem:[#allocation11 + $0xfa0] sm:$0xff]
        %v2227 = vld [vmem:[#allocation11 + $0xfa8] sm:$0xff]
        %v2228 = vld [vmem:[#allocation11 + $0xfb0] sm:$0xff]
        %v2229 = vld [vmem:[#allocation11 + $0xfb8] sm:$0xff]
        %v2230 = vld [vmem:[#allocation11 + $0xfc0] sm:$0xff]
        %v2231 = vld [vmem:[#allocation11 + $0xfc8] sm:$0xff]
        %v2232 = vld [vmem:[#allocation11 + $0xfd0] sm:$0xff]
        %v2233 = vld [vmem:[#allocation11 + $0xfd8] sm:$0xff]
        %v2234 = vld [vmem:[#allocation11 + $0xfe0] sm:$0xff]
        %v2235 = vld [vmem:[#allocation11 + $0xfe8] sm:$0xff]
        %v2236 = vld [vmem:[#allocation11 + $0xff0] sm:$0xff]
        %v2237 = vld [vmem:[#allocation11 + $0xff8] sm:$0xff]
        %v2238 = vld [vmem:[#allocation13] sm:$0xf]
        %v2240 = vlaneseq
        %v2241 = vshrl.u32 %v2240, 7
        %v2242 = vsub.s32 0, %v2241
        %v2243 = vrot.slane %v2238, %v2242
        %v2244 = vlaneseq
        %v2245 = vshrl.u32 %v2244, 7
        %v2246 = vsub.s32 1, %v2245
        %v2247 = vrot.slane %v2238, %v2246
        %v2248 = vlaneseq
        %v2249 = vshrl.u32 %v2248, 7
        %v2250 = vsub.s32 2, %v2249
        %v2251 = vrot.slane %v2238, %v2250
        %v2252 = vlaneseq
        %v2253 = vshrl.u32 %v2252, 7
        %v2254 = vsub.s32 3, %v2253
        %v2255 = vrot.slane %v2238, %v2254
        %2260 = vmatprep.subr.mxu0 %v1727
        %2261 = vmatpush1.msra.mxu0 %v1726
        %2262 = vmatprep.subr.mxu0 %v1731
        %2263 = vmatpush1.msra.mxu0 %v1730
        %2264 = vmatprep.subr.mxu0 %v1735
        %2265 = vmatpush1.msra.mxu0 %v1734
        %2266 = vmatprep.subr.mxu0 %v1739
        %2267 = vmatpush1.msra.mxu0 %v1738
        %2268 = vmatprep.subr.mxu0 %v1743
        %2269 = vmatpush1.msra.mxu0 %v1742
        %2270 = vmatprep.subr.mxu0 %v1747
        %2271 = vmatpush1.msra.mxu0 %v1746
        %2272 = vmatprep.subr.mxu0 %v1751
        %2273 = vmatpush1.msra.mxu0 %v1750
        %2274 = vmatprep.subr.mxu0 %v1755
        %2275 = vmatpush1.msra.mxu0 %v1754
        %2276 = vmatprep.subr.mxu0 %v1759
        %2277 = vmatpush1.msra.mxu0 %v1758
        %2278 = vmatprep.subr.mxu0 %v1763
        %2279 = vmatpush1.msra.mxu0 %v1762
        %2280 = vmatprep.subr.mxu0 %v1767
        %2281 = vmatpush1.msra.mxu0 %v1766
        %2282 = vmatprep.subr.mxu0 %v1771
        %2283 = vmatpush1.msra.mxu0 %v1770
        %2284 = vmatprep.subr.mxu0 %v1775
        %2285 = vmatpush1.msra.mxu0 %v1774
        %2286 = vmatprep.subr.mxu0 %v1779
        %2287 = vmatpush1.msra.mxu0 %v1778
        %2288 = vmatprep.subr.mxu0 %v1783
        %2289 = vmatpush1.msra.mxu0 %v1782
        %2290 = vmatprep.subr.mxu0 %v1787
        %2291 = vmatpush1.msra.mxu0 %v1786
        %2292 = vmatprep.subr.mxu0 %v1791
        %2293 = vmatpush1.msra.mxu0 %v1790
        %2294 = vmatprep.subr.mxu0 %v1795
        %2295 = vmatpush1.msra.mxu0 %v1794
        %2296 = vmatprep.subr.mxu0 %v1799
        %2297 = vmatpush1.msra.mxu0 %v1798
        %2298 = vmatprep.subr.mxu0 %v1803
        %2299 = vmatpush1.msra.mxu0 %v1802
        %2300 = vmatprep.subr.mxu0 %v1807
        %2301 = vmatpush1.msra.mxu0 %v1806
        %2302 = vmatprep.subr.mxu0 %v1811
        %2303 = vmatpush1.msra.mxu0 %v1810
        %2304 = vmatprep.subr.mxu0 %v1815
        %2305 = vmatpush1.msra.mxu0 %v1814
        %2306 = vmatprep.subr.mxu0 %v1819
        %2307 = vmatpush1.msra.mxu0 %v1818
        %2308 = vmatprep.subr.mxu0 %v1823
        %2309 = vmatpush1.msra.mxu0 %v1822
        %2310 = vmatprep.subr.mxu0 %v1827
        %2311 = vmatpush1.msra.mxu0 %v1826
        %2312 = vmatprep.subr.mxu0 %v1831
        %2313 = vmatpush1.msra.mxu0 %v1830
        %2314 = vmatprep.subr.mxu0 %v1835
        %2315 = vmatpush1.msra.mxu0 %v1834
        %2316 = vmatprep.subr.mxu0 %v1839
        %2317 = vmatpush1.msra.mxu0 %v1838
        %2318 = vmatprep.subr.mxu0 %v1843
        %2319 = vmatpush1.msra.mxu0 %v1842
        %2320 = vmatprep.subr.mxu0 %v1847
        %2321 = vmatpush1.msra.mxu0 %v1846
        %2322 = vmatprep.subr.mxu0 %v1851
        %2323 = vmatpush1.msra.mxu0 %v1850
        %2324 = vmatprep.mubr.f32.mxu0 %v1695
        %2325 = vmatmul.mubr.f32.gmra.mrb[0].mxu0 %v1694
        %v2326 = vpop.f32.mrb[0].mxu0
        %v2327 = vadd.f32 %v2243, %v2326
        %v2328 = vpop.f32.mrb[0].mxu0
        %v2329 = vadd.f32 %v2247, %v2328
        %2330 = vmatprep.mubr.f32.mxu0 %v1703
        %2331 = vmatmul.mubr.f32.gmra.mrb[0].mxu0 %v1702
        %v2332 = vpop.f32.mrb[0].mxu0
        %v2333 = vadd.f32 %v2243, %v2332
        %v2334 = vpop.f32.mrb[0].mxu0
        %v2335 = vadd.f32 %v2247, %v2334
        %2336 = vmatprep.mubr.f32.mxu0 %v1711
        %2337 = vmatmul.mubr.f32.gmra.mrb[0].mxu0 %v1710
        %v2338 = vpop.f32.mrb[0].mxu0
        %v2339 = vadd.f32 %v2243, %v2338
        %v2340 = vpop.f32.mrb[0].mxu0
        %v2341 = vadd.f32 %v2247, %v2340
        %2342 = vmatprep.mubr.f32.mxu0 %v1719
        %2343 = vmatmul.mubr.f32.gmra.mrb[0].mxu0 %v1718
        %v2344 = vpop.f32.mrb[0].mxu0
        %v2345 = vadd.f32 %v2243, %v2344
        %v2346 = vpop.f32.mrb[0].mxu0
        %v2347 = vadd.f32 %v2247, %v2346
        %2348 = vdwg.mxu0
        %2349 = vmatprep.subr.mxu0 %v1855
        %2350 = vmatpush1.msra.mxu0 %v1854
        %2351 = vmatprep.subr.mxu0 %v1859
        %2352 = vmatpush1.msra.mxu0 %v1858
        %2353 = vmatprep.subr.mxu0 %v1863
        %2354 = vmatpush1.msra.mxu0 %v1862
        %2355 = vmatprep.subr.mxu0 %v1867
        %2356 = vmatpush1.msra.mxu0 %v1866
        %2357 = vmatprep.subr.mxu0 %v1871
        %2358 = vmatpush1.msra.mxu0 %v1870
        %2359 = vmatprep.subr.mxu0 %v1875
        %2360 = vmatpush1.msra.mxu0 %v1874
        %2361 = vmatprep.subr.mxu0 %v1879
        %2362 = vmatpush1.msra.mxu0 %v1878
        %2363 = vmatprep.subr.mxu0 %v1883
        %2364 = vmatpush1.msra.mxu0 %v1882
        %2365 = vmatprep.subr.mxu0 %v1887
        %2366 = vmatpush1.msra.mxu0 %v1886
        %2367 = vmatprep.subr.mxu0 %v1891
        %2368 = vmatpush1.msra.mxu0 %v1890
        %2369 = vmatprep.subr.mxu0 %v1895
        %2370 = vmatpush1.msra.mxu0 %v1894
        %2371 = vmatprep.subr.mxu0 %v1899
        %2372 = vmatpush1.msra.mxu0 %v1898
        %2373 = vmatprep.subr.mxu0 %v1903
        %2374 = vmatpush1.msra.mxu0 %v1902
        %2375 = vmatprep.subr.mxu0 %v1907
        %2376 = vmatpush1.msra.mxu0 %v1906
        %2377 = vmatprep.subr.mxu0 %v1911
        %2378 = vmatpush1.msra.mxu0 %v1910
        %2379 = vmatprep.subr.mxu0 %v1915
        %2380 = vmatpush1.msra.mxu0 %v1914
        %2381 = vmatprep.subr.mxu0 %v1919
        %2382 = vmatpush1.msra.mxu0 %v1918
        %2383 = vmatprep.subr.mxu0 %v1923
        %2384 = vmatpush1.msra.mxu0 %v1922
        %2385 = vmatprep.subr.mxu0 %v1927
        %2386 = vmatpush1.msra.mxu0 %v1926
        %2387 = vmatprep.subr.mxu0 %v1931
        %2388 = vmatpush1.msra.mxu0 %v1930
        %2389 = vmatprep.subr.mxu0 %v1935
        %2390 = vmatpush1.msra.mxu0 %v1934
        %2391 = vmatprep.subr.mxu0 %v1939
        %2392 = vmatpush1.msra.mxu0 %v1938
        %2393 = vmatprep.subr.mxu0 %v1943
        %2394 = vmatpush1.msra.mxu0 %v1942
        %2395 = vmatprep.subr.mxu0 %v1947
        %2396 = vmatpush1.msra.mxu0 %v1946
        %2397 = vmatprep.subr.mxu0 %v1951
        %2398 = vmatpush1.msra.mxu0 %v1950
        %2399 = vmatprep.subr.mxu0 %v1955
        %2400 = vmatpush1.msra.mxu0 %v1954
        %2401 = vmatprep.subr.mxu0 %v1959
        %2402 = vmatpush1.msra.mxu0 %v1958
        %2403 = vmatprep.subr.mxu0 %v1963
        %2404 = vmatpush1.msra.mxu0 %v1962
        %2405 = vmatprep.subr.mxu0 %v1967
        %2406 = vmatpush1.msra.mxu0 %v1966
        %2407 = vmatprep.subr.mxu0 %v1971
        %2408 = vmatpush1.msra.mxu0 %v1970
        %2409 = vmatprep.subr.mxu0 %v1975
        %2410 = vmatpush1.msra.mxu0 %v1974
        %2411 = vmatprep.subr.mxu0 %v1979
        %2412 = vmatpush1.msra.mxu0 %v1978
        %2413 = vmatprep.mubr.f32.mxu0 %v1697
        %2414 = vmatmul.mubr.f32.gmra.mrb[0].mxu0 %v1696
        %v2415 = vpop.f32.mrb[0].mxu0
        %v2416 = vadd.f32 %v2327, %v2415
        %v2417 = vpop.f32.mrb[0].mxu0
        %v2418 = vadd.f32 %v2329, %v2417
        %2419 = vmatprep.mubr.f32.mxu0 %v1705
        %2420 = vmatmul.mubr.f32.gmra.mrb[0].mxu0 %v1704
        %v2421 = vpop.f32.mrb[0].mxu0
        %v2422 = vadd.f32 %v2333, %v2421
        %v2423 = vpop.f32.mrb[0].mxu0
        %v2424 = vadd.f32 %v2335, %v2423
        %2425 = vmatprep.mubr.f32.mxu0 %v1713
        %2426 = vmatmul.mubr.f32.gmra.mrb[0].mxu0 %v1712
        %v2427 = vpop.f32.mrb[0].mxu0
        %v2428 = vadd.f32 %v2339, %v2427
        %v2429 = vpop.f32.mrb[0].mxu0
        %v2430 = vadd.f32 %v2341, %v2429
        %2431 = vmatprep.mubr.f32.mxu0 %v1721
        %2432 = vmatmul.mubr.f32.gmra.mrb[0].mxu0 %v1720
        %v2433 = vpop.f32.mrb[0].mxu0
        %v2434 = vadd.f32 %v2345, %v2433
        %v2435 = vpop.f32.mrb[0].mxu0
        %v2436 = vadd.f32 %v2347, %v2435
        %2437 = vdwg.mxu0
        %2438 = vmatprep.subr.mxu0 %v1983
        %2439 = vmatpush1.msra.mxu0 %v1982
        %2440 = vmatprep.subr.mxu0 %v1987
        %2441 = vmatpush1.msra.mxu0 %v1986
        %2442 = vmatprep.subr.mxu0 %v1991
        %2443 = vmatpush1.msra.mxu0 %v1990
        %2444 = vmatprep.subr.mxu0 %v1995
        %2445 = vmatpush1.msra.mxu0 %v1994
        %2446 = vmatprep.subr.mxu0 %v1999
        %2447 = vmatpush1.msra.mxu0 %v1998
        %2448 = vmatprep.subr.mxu0 %v2003
        %2449 = vmatpush1.msra.mxu0 %v2002
        %2450 = vmatprep.subr.mxu0 %v2007
        %2451 = vmatpush1.msra.mxu0 %v2006
        %2452 = vmatprep.subr.mxu0 %v2011
        %2453 = vmatpush1.msra.mxu0 %v2010
        %2454 = vmatprep.subr.mxu0 %v2015
        %2455 = vmatpush1.msra.mxu0 %v2014
        %2456 = vmatprep.subr.mxu0 %v2019
        %2457 = vmatpush1.msra.mxu0 %v2018
        %2458 = vmatprep.subr.mxu0 %v2023
        %2459 = vmatpush1.msra.mxu0 %v2022
        %2460 = vmatprep.subr.mxu0 %v2027
        %2461 = vmatpush1.msra.mxu0 %v2026
        %2462 = vmatprep.subr.mxu0 %v2031
        %2463 = vmatpush1.msra.mxu0 %v2030
        %2464 = vmatprep.subr.mxu0 %v2035
        %2465 = vmatpush1.msra.mxu0 %v2034
        %2466 = vmatprep.subr.mxu0 %v2039
        %2467 = vmatpush1.msra.mxu0 %v2038
        %2468 = vmatprep.subr.mxu0 %v2043
        %2469 = vmatpush1.msra.mxu0 %v2042
        %2470 = vmatprep.subr.mxu0 %v2047
        %2471 = vmatpush1.msra.mxu0 %v2046
        %2472 = vmatprep.subr.mxu0 %v2051
        %2473 = vmatpush1.msra.mxu0 %v2050
        %2474 = vmatprep.subr.mxu0 %v2055
        %2475 = vmatpush1.msra.mxu0 %v2054
        %2476 = vmatprep.subr.mxu0 %v2059
        %2477 = vmatpush1.msra.mxu0 %v2058
        %2478 = vmatprep.subr.mxu0 %v2063
        %2479 = vmatpush1.msra.mxu0 %v2062
        %2480 = vmatprep.subr.mxu0 %v2067
        %2481 = vmatpush1.msra.mxu0 %v2066
        %2482 = vmatprep.subr.mxu0 %v2071
        %2483 = vmatpush1.msra.mxu0 %v2070
        %2484 = vmatprep.subr.mxu0 %v2075
        %2485 = vmatpush1.msra.mxu0 %v2074
        %2486 = vmatprep.subr.mxu0 %v2079
        %2487 = vmatpush1.msra.mxu0 %v2078
        %2488 = vmatprep.subr.mxu0 %v2083
        %2489 = vmatpush1.msra.mxu0 %v2082
        %2490 = vmatprep.subr.mxu0 %v2087
        %2491 = vmatpush1.msra.mxu0 %v2086
        %2492 = vmatprep.subr.mxu0 %v2091
        %2493 = vmatpush1.msra.mxu0 %v2090
        %2494 = vmatprep.subr.mxu0 %v2095
        %2495 = vmatpush1.msra.mxu0 %v2094
        %2496 = vmatprep.subr.mxu0 %v2099
        %2497 = vmatpush1.msra.mxu0 %v2098
        %2498 = vmatprep.subr.mxu0 %v2103
        %2499 = vmatpush1.msra.mxu0 %v2102
        %2500 = vmatprep.subr.mxu0 %v2107
        %2501 = vmatpush1.msra.mxu0 %v2106
        %2502 = vmatprep.mubr.f32.mxu0 %v1699
        %2503 = vmatmul.mubr.f32.gmra.mrb[0].mxu0 %v1698
        %v2504 = vpop.f32.mrb[0].mxu0
        %v2505 = vadd.f32 %v2416, %v2504
        %v2506 = vpop.f32.mrb[0].mxu0
        %v2507 = vadd.f32 %v2418, %v2506
        %2508 = vmatprep.mubr.f32.mxu0 %v1707
        %2509 = vmatmul.mubr.f32.gmra.mrb[0].mxu0 %v1706
        %v2510 = vpop.f32.mrb[0].mxu0
        %v2511 = vadd.f32 %v2422, %v2510
        %v2512 = vpop.f32.mrb[0].mxu0
        %v2513 = vadd.f32 %v2424, %v2512
        %2514 = vmatprep.mubr.f32.mxu0 %v1715
        %2515 = vmatmul.mubr.f32.gmra.mrb[0].mxu0 %v1714
        %v2516 = vpop.f32.mrb[0].mxu0
        %v2517 = vadd.f32 %v2428, %v2516
        %v2518 = vpop.f32.mrb[0].mxu0
        %v2519 = vadd.f32 %v2430, %v2518
        %2520 = vmatprep.mubr.f32.mxu0 %v1723
        %2521 = vmatmul.mubr.f32.gmra.mrb[0].mxu0 %v1722
        %v2522 = vpop.f32.mrb[0].mxu0
        %v2523 = vadd.f32 %v2434, %v2522
        %v2524 = vpop.f32.mrb[0].mxu0
        %v2525 = vadd.f32 %v2436, %v2524
        %2526 = vdwg.mxu0
        %2527 = vmatprep.subr.mxu0 %v2111
        %2528 = vmatpush1.msra.mxu0 %v2110
        %2529 = vmatprep.subr.mxu0 %v2115
        %2530 = vmatpush1.msra.mxu0 %v2114
        %2531 = vmatprep.subr.mxu0 %v2119
        %2532 = vmatpush1.msra.mxu0 %v2118
        %2533 = vmatprep.subr.mxu0 %v2123
        %2534 = vmatpush1.msra.mxu0 %v2122
        %2535 = vmatprep.subr.mxu0 %v2127
        %2536 = vmatpush1.msra.mxu0 %v2126
        %2537 = vmatprep.subr.mxu0 %v2131
        %2538 = vmatpush1.msra.mxu0 %v2130
        %2539 = vmatprep.subr.mxu0 %v2135
        %2540 = vmatpush1.msra.mxu0 %v2134
        %2541 = vmatprep.subr.mxu0 %v2139
        %2542 = vmatpush1.msra.mxu0 %v2138
        %2543 = vmatprep.subr.mxu0 %v2143
        %2544 = vmatpush1.msra.mxu0 %v2142
        %2545 = vmatprep.subr.mxu0 %v2147
        %2546 = vmatpush1.msra.mxu0 %v2146
        %2547 = vmatprep.subr.mxu0 %v2151
        %2548 = vmatpush1.msra.mxu0 %v2150
        %2549 = vmatprep.subr.mxu0 %v2155
        %2550 = vmatpush1.msra.mxu0 %v2154
        %2551 = vmatprep.subr.mxu0 %v2159
        %2552 = vmatpush1.msra.mxu0 %v2158
        %2553 = vmatprep.subr.mxu0 %v2163
        %2554 = vmatpush1.msra.mxu0 %v2162
        %2555 = vmatprep.subr.mxu0 %v2167
        %2556 = vmatpush1.msra.mxu0 %v2166
        %2557 = vmatprep.subr.mxu0 %v2171
        %2558 = vmatpush1.msra.mxu0 %v2170
        %2559 = vmatprep.subr.mxu0 %v2175
        %2560 = vmatpush1.msra.mxu0 %v2174
        %2561 = vmatprep.subr.mxu0 %v2179
        %2562 = vmatpush1.msra.mxu0 %v2178
        %2563 = vmatprep.subr.mxu0 %v2183
        %2564 = vmatpush1.msra.mxu0 %v2182
        %2565 = vmatprep.subr.mxu0 %v2187
        %2566 = vmatpush1.msra.mxu0 %v2186
        %2567 = vmatprep.subr.mxu0 %v2191
        %2568 = vmatpush1.msra.mxu0 %v2190
        %2569 = vmatprep.subr.mxu0 %v2195
        %2570 = vmatpush1.msra.mxu0 %v2194
        %2571 = vmatprep.subr.mxu0 %v2199
        %2572 = vmatpush1.msra.mxu0 %v2198
        %2573 = vmatprep.subr.mxu0 %v2203
        %2574 = vmatpush1.msra.mxu0 %v2202
        %2575 = vmatprep.subr.mxu0 %v2207
        %2576 = vmatpush1.msra.mxu0 %v2206
        %2577 = vmatprep.subr.mxu0 %v2211
        %2578 = vmatpush1.msra.mxu0 %v2210
        %2579 = vmatprep.subr.mxu0 %v2215
        %2580 = vmatpush1.msra.mxu0 %v2214
        %2581 = vmatprep.subr.mxu0 %v2219
        %2582 = vmatpush1.msra.mxu0 %v2218
        %2583 = vmatprep.subr.mxu0 %v2223
        %2584 = vmatpush1.msra.mxu0 %v2222
        %2585 = vmatprep.subr.mxu0 %v2227
        %2586 = vmatpush1.msra.mxu0 %v2226
        %2587 = vmatprep.subr.mxu0 %v2231
        %2588 = vmatpush1.msra.mxu0 %v2230
        %2589 = vmatprep.subr.mxu0 %v2235
        %2590 = vmatpush1.msra.mxu0 %v2234
        %2591 = vmatprep.mubr.f32.mxu0 %v1701
        %2592 = vmatmul.mubr.f32.gmra.mrb[0].mxu0 %v1700
        %v2593 = vpop.f32.mrb[0].mxu0
        %v2594 = vadd.f32 %v2505, %v2593
        %v2595 = vpop.f32.mrb[0].mxu0
        %v2596 = vadd.f32 %v2507, %v2595
        %2597 = vmatprep.mubr.f32.mxu0 %v1709
        %2598 = vmatmul.mubr.f32.gmra.mrb[0].mxu0 %v1708
        %v2599 = vpop.f32.mrb[0].mxu0
        %v2600 = vadd.f32 %v2511, %v2599
        %v2601 = vpop.f32.mrb[0].mxu0
        %v2602 = vadd.f32 %v2513, %v2601
        %2603 = vmatprep.mubr.f32.mxu0 %v1717
        %2604 = vmatmul.mubr.f32.gmra.mrb[0].mxu0 %v1716
        %v2605 = vpop.f32.mrb[0].mxu0
        %v2606 = vadd.f32 %v2517, %v2605
        %v2607 = vpop.f32.mrb[0].mxu0
        %v2608 = vadd.f32 %v2519, %v2607
        %2609 = vmatprep.mubr.f32.mxu0 %v1725
        %2610 = vmatmul.mubr.f32.gmra.mrb[0].mxu0 %v1724
        %v2611 = vpop.f32.mrb[0].mxu0
        %v2612 = vadd.f32 %v2523, %v2611
        %v2613 = vpop.f32.mrb[0].mxu0
        %v2614 = vadd.f32 %v2525, %v2613
        %2615 = vdwg.mxu0
        %2616 = vmatprep.subr.mxu0 %v1729
        %2617 = vmatpush1.msra.mxu0 %v1728
        %2618 = vmatprep.subr.mxu0 %v1733
        %2619 = vmatpush1.msra.mxu0 %v1732
        %2620 = vmatprep.subr.mxu0 %v1737
        %2621 = vmatpush1.msra.mxu0 %v1736
        %2622 = vmatprep.subr.mxu0 %v1741
        %2623 = vmatpush1.msra.mxu0 %v1740
        %2624 = vmatprep.subr.mxu0 %v1745
        %2625 = vmatpush1.msra.mxu0 %v1744
        %2626 = vmatprep.subr.mxu0 %v1749
        %2627 = vmatpush1.msra.mxu0 %v1748
        %2628 = vmatprep.subr.mxu0 %v1753
        %2629 = vmatpush1.msra.mxu0 %v1752
        %2630 = vmatprep.subr.mxu0 %v1757
        %2631 = vmatpush1.msra.mxu0 %v1756
        %2632 = vmatprep.subr.mxu0 %v1761
        %2633 = vmatpush1.msra.mxu0 %v1760
        %2634 = vmatprep.subr.mxu0 %v1765
        %2635 = vmatpush1.msra.mxu0 %v1764
        %2636 = vmatprep.subr.mxu0 %v1769
        %2637 = vmatpush1.msra.mxu0 %v1768
        %2638 = vmatprep.subr.mxu0 %v1773
        %2639 = vmatpush1.msra.mxu0 %v1772
        %2640 = vmatprep.subr.mxu0 %v1777
        %2641 = vmatpush1.msra.mxu0 %v1776
        %2642 = vmatprep.subr.mxu0 %v1781
        %2643 = vmatpush1.msra.mxu0 %v1780
        %2644 = vmatprep.subr.mxu0 %v1785
        %2645 = vmatpush1.msra.mxu0 %v1784
        %2646 = vmatprep.subr.mxu0 %v1789
        %2647 = vmatpush1.msra.mxu0 %v1788
        %2648 = vmatprep.subr.mxu0 %v1793
        %2649 = vmatpush1.msra.mxu0 %v1792
        %2650 = vmatprep.subr.mxu0 %v1797
        %2651 = vmatpush1.msra.mxu0 %v1796
        %2652 = vmatprep.subr.mxu0 %v1801
        %2653 = vmatpush1.msra.mxu0 %v1800
        %2654 = vmatprep.subr.mxu0 %v1805
        %2655 = vmatpush1.msra.mxu0 %v1804
        %2656 = vmatprep.subr.mxu0 %v1809
        %2657 = vmatpush1.msra.mxu0 %v1808
        %2658 = vmatprep.subr.mxu0 %v1813
        %2659 = vmatpush1.msra.mxu0 %v1812
        %2660 = vmatprep.subr.mxu0 %v1817
        %2661 = vmatpush1.msra.mxu0 %v1816
        %2662 = vmatprep.subr.mxu0 %v1821
        %2663 = vmatpush1.msra.mxu0 %v1820
        %2664 = vmatprep.subr.mxu0 %v1825
        %2665 = vmatpush1.msra.mxu0 %v1824
        %2666 = vmatprep.subr.mxu0 %v1829
        %2667 = vmatpush1.msra.mxu0 %v1828
        %2668 = vmatprep.subr.mxu0 %v1833
        %2669 = vmatpush1.msra.mxu0 %v1832
        %2670 = vmatprep.subr.mxu0 %v1837
        %2671 = vmatpush1.msra.mxu0 %v1836
        %2672 = vmatprep.subr.mxu0 %v1841
        %2673 = vmatpush1.msra.mxu0 %v1840
        %2674 = vmatprep.subr.mxu0 %v1845
        %2675 = vmatpush1.msra.mxu0 %v1844
        %2676 = vmatprep.subr.mxu0 %v1849
        %2677 = vmatpush1.msra.mxu0 %v1848
        %2678 = vmatprep.subr.mxu0 %v1853
        %2679 = vmatpush1.msra.mxu0 %v1852
        %2680 = vmatprep.mubr.f32.mxu0 %v1695
        %2681 = vmatmul.mubr.f32.gmra.mrb[0].mxu0 %v1694
        %v2682 = vpop.f32.mrb[0].mxu0
        %v2683 = vadd.f32 %v2251, %v2682
        %v2684 = vpop.f32.mrb[0].mxu0
        %v2685 = vadd.f32 %v2255, %v2684
        %2686 = vmatprep.mubr.f32.mxu0 %v1703
        %2687 = vmatmul.mubr.f32.gmra.mrb[0].mxu0 %v1702
        %v2688 = vpop.f32.mrb[0].mxu0
        %v2689 = vadd.f32 %v2251, %v2688
        %v2690 = vpop.f32.mrb[0].mxu0
        %v2691 = vadd.f32 %v2255, %v2690
        %2692 = vmatprep.mubr.f32.mxu0 %v1711
        %2693 = vmatmul.mubr.f32.gmra.mrb[0].mxu0 %v1710
        %v2694 = vpop.f32.mrb[0].mxu0
        %v2695 = vadd.f32 %v2251, %v2694
        %v2696 = vpop.f32.mrb[0].mxu0
        %v2697 = vadd.f32 %v2255, %v2696
        %2698 = vmatprep.mubr.f32.mxu0 %v1719
        %2699 = vmatmul.mubr.f32.gmra.mrb[0].mxu0 %v1718
        %v2700 = vpop.f32.mrb[0].mxu0
        %v2701 = vadd.f32 %v2251, %v2700
        %v2702 = vpop.f32.mrb[0].mxu0
        %v2703 = vadd.f32 %v2255, %v2702
        %2704 = vdwg.mxu0
        %2705 = vmatprep.subr.mxu0 %v1857
        %2706 = vmatpush1.msra.mxu0 %v1856
        %2707 = vmatprep.subr.mxu0 %v1861
        %2708 = vmatpush1.msra.mxu0 %v1860
        %2709 = vmatprep.subr.mxu0 %v1865
        %2710 = vmatpush1.msra.mxu0 %v1864
        %2711 = vmatprep.subr.mxu0 %v1869
        %2712 = vmatpush1.msra.mxu0 %v1868
        %2713 = vmatprep.subr.mxu0 %v1873
        %2714 = vmatpush1.msra.mxu0 %v1872
        %2715 = vmatprep.subr.mxu0 %v1877
        %2716 = vmatpush1.msra.mxu0 %v1876
        %2717 = vmatprep.subr.mxu0 %v1881
        %2718 = vmatpush1.msra.mxu0 %v1880
        %2719 = vmatprep.subr.mxu0 %v1885
        %2720 = vmatpush1.msra.mxu0 %v1884
        %2721 = vmatprep.subr.mxu0 %v1889
        %2722 = vmatpush1.msra.mxu0 %v1888
        %2723 = vmatprep.subr.mxu0 %v1893
        %2724 = vmatpush1.msra.mxu0 %v1892
        %2725 = vmatprep.subr.mxu0 %v1897
        %2726 = vmatpush1.msra.mxu0 %v1896
        %2727 = vmatprep.subr.mxu0 %v1901
        %2728 = vmatpush1.msra.mxu0 %v1900
        %2729 = vmatprep.subr.mxu0 %v1905
        %2730 = vmatpush1.msra.mxu0 %v1904
        %2731 = vmatprep.subr.mxu0 %v1909
        %2732 = vmatpush1.msra.mxu0 %v1908
        %2733 = vmatprep.subr.mxu0 %v1913
        %2734 = vmatpush1.msra.mxu0 %v1912
        %2735 = vmatprep.subr.mxu0 %v1917
        %2736 = vmatpush1.msra.mxu0 %v1916
        %2737 = vmatprep.subr.mxu0 %v1921
        %2738 = vmatpush1.msra.mxu0 %v1920
        %2739 = vmatprep.subr.mxu0 %v1925
        %2740 = vmatpush1.msra.mxu0 %v1924
        %2741 = vmatprep.subr.mxu0 %v1929
        %2742 = vmatpush1.msra.mxu0 %v1928
        %2743 = vmatprep.subr.mxu0 %v1933
        %2744 = vmatpush1.msra.mxu0 %v1932
        %2745 = vmatprep.subr.mxu0 %v1937
        %2746 = vmatpush1.msra.mxu0 %v1936
        %2747 = vmatprep.subr.mxu0 %v1941
        %2748 = vmatpush1.msra.mxu0 %v1940
        %2749 = vmatprep.subr.mxu0 %v1945
        %2750 = vmatpush1.msra.mxu0 %v1944
        %2751 = vmatprep.subr.mxu0 %v1949
        %2752 = vmatpush1.msra.mxu0 %v1948
        %2753 = vmatprep.subr.mxu0 %v1953
        %2754 = vmatpush1.msra.mxu0 %v1952
        %2755 = vmatprep.subr.mxu0 %v1957
        %2756 = vmatpush1.msra.mxu0 %v1956
        %2757 = vmatprep.subr.mxu0 %v1961
        %2758 = vmatpush1.msra.mxu0 %v1960
        %2759 = vmatprep.subr.mxu0 %v1965
        %2760 = vmatpush1.msra.mxu0 %v1964
        %2761 = vmatprep.subr.mxu0 %v1969
        %2762 = vmatpush1.msra.mxu0 %v1968
        %2763 = vmatprep.subr.mxu0 %v1973
        %2764 = vmatpush1.msra.mxu0 %v1972
        %2765 = vmatprep.subr.mxu0 %v1977
        %2766 = vmatpush1.msra.mxu0 %v1976
        %2767 = vmatprep.subr.mxu0 %v1981
        %2768 = vmatpush1.msra.mxu0 %v1980
        %2769 = vmatprep.mubr.f32.mxu0 %v1697
        %2770 = vmatmul.mubr.f32.gmra.mrb[0].mxu0 %v1696
        %v2771 = vpop.f32.mrb[0].mxu0
        %v2772 = vadd.f32 %v2683, %v2771
        %v2773 = vpop.f32.mrb[0].mxu0
        %v2774 = vadd.f32 %v2685, %v2773
        %2775 = vmatprep.mubr.f32.mxu0 %v1705
        %2776 = vmatmul.mubr.f32.gmra.mrb[0].mxu0 %v1704
        %v2777 = vpop.f32.mrb[0].mxu0
        %v2778 = vadd.f32 %v2689, %v2777
        %v2779 = vpop.f32.mrb[0].mxu0
        %v2780 = vadd.f32 %v2691, %v2779
        %2781 = vmatprep.mubr.f32.mxu0 %v1713
        %2782 = vmatmul.mubr.f32.gmra.mrb[0].mxu0 %v1712
        %v2783 = vpop.f32.mrb[0].mxu0
        %v2784 = vadd.f32 %v2695, %v2783
        %v2785 = vpop.f32.mrb[0].mxu0
        %v2786 = vadd.f32 %v2697, %v2785
        %2787 = vmatprep.mubr.f32.mxu0 %v1721
        %2788 = vmatmul.mubr.f32.gmra.mrb[0].mxu0 %v1720
        %v2789 = vpop.f32.mrb[0].mxu0
        %v2790 = vadd.f32 %v2701, %v2789
        %v2791 = vpop.f32.mrb[0].mxu0
        %v2792 = vadd.f32 %v2703, %v2791
        %2793 = vdwg.mxu0
        %2794 = vmatprep.subr.mxu0 %v1985
        %2795 = vmatpush1.msra.mxu0 %v1984
        %2796 = vmatprep.subr.mxu0 %v1989
        %2797 = vmatpush1.msra.mxu0 %v1988
        %2798 = vmatprep.subr.mxu0 %v1993
        %2799 = vmatpush1.msra.mxu0 %v1992
        %2800 = vmatprep.subr.mxu0 %v1997
        %2801 = vmatpush1.msra.mxu0 %v1996
        %2802 = vmatprep.subr.mxu0 %v2001
        %2803 = vmatpush1.msra.mxu0 %v2000
        %2804 = vmatprep.subr.mxu0 %v2005
        %2805 = vmatpush1.msra.mxu0 %v2004
        %2806 = vmatprep.subr.mxu0 %v2009
        %2807 = vmatpush1.msra.mxu0 %v2008
        %2808 = vmatprep.subr.mxu0 %v2013
        %2809 = vmatpush1.msra.mxu0 %v2012
        %2810 = vmatprep.subr.mxu0 %v2017
        %2811 = vmatpush1.msra.mxu0 %v2016
        %2812 = vmatprep.subr.mxu0 %v2021
        %2813 = vmatpush1.msra.mxu0 %v2020
        %2814 = vmatprep.subr.mxu0 %v2025
        %2815 = vmatpush1.msra.mxu0 %v2024
        %2816 = vmatprep.subr.mxu0 %v2029
        %2817 = vmatpush1.msra.mxu0 %v2028
        %2818 = vmatprep.subr.mxu0 %v2033
        %2819 = vmatpush1.msra.mxu0 %v2032
        %2820 = vmatprep.subr.mxu0 %v2037
        %2821 = vmatpush1.msra.mxu0 %v2036
        %2822 = vmatprep.subr.mxu0 %v2041
        %2823 = vmatpush1.msra.mxu0 %v2040
        %2824 = vmatprep.subr.mxu0 %v2045
        %2825 = vmatpush1.msra.mxu0 %v2044
        %2826 = vmatprep.subr.mxu0 %v2049
        %2827 = vmatpush1.msra.mxu0 %v2048
        %2828 = vmatprep.subr.mxu0 %v2053
        %2829 = vmatpush1.msra.mxu0 %v2052
        %2830 = vmatprep.subr.mxu0 %v2057
        %2831 = vmatpush1.msra.mxu0 %v2056
        %2832 = vmatprep.subr.mxu0 %v2061
        %2833 = vmatpush1.msra.mxu0 %v2060
        %2834 = vmatprep.subr.mxu0 %v2065
        %2835 = vmatpush1.msra.mxu0 %v2064
        %2836 = vmatprep.subr.mxu0 %v2069
        %2837 = vmatpush1.msra.mxu0 %v2068
        %2838 = vmatprep.subr.mxu0 %v2073
        %2839 = vmatpush1.msra.mxu0 %v2072
        %2840 = vmatprep.subr.mxu0 %v2077
        %2841 = vmatpush1.msra.mxu0 %v2076
        %2842 = vmatprep.subr.mxu0 %v2081
        %2843 = vmatpush1.msra.mxu0 %v2080
        %2844 = vmatprep.subr.mxu0 %v2085
        %2845 = vmatpush1.msra.mxu0 %v2084
        %2846 = vmatprep.subr.mxu0 %v2089
        %2847 = vmatpush1.msra.mxu0 %v2088
        %2848 = vmatprep.subr.mxu0 %v2093
        %2849 = vmatpush1.msra.mxu0 %v2092
        %2850 = vmatprep.subr.mxu0 %v2097
        %2851 = vmatpush1.msra.mxu0 %v2096
        %2852 = vmatprep.subr.mxu0 %v2101
        %2853 = vmatpush1.msra.mxu0 %v2100
        %2854 = vmatprep.subr.mxu0 %v2105
        %2855 = vmatpush1.msra.mxu0 %v2104
        %2856 = vmatprep.subr.mxu0 %v2109
        %2857 = vmatpush1.msra.mxu0 %v2108
        %2858 = vmatprep.mubr.f32.mxu0 %v1699
        %2859 = vmatmul.mubr.f32.gmra.mrb[0].mxu0 %v1698
        %v2860 = vpop.f32.mrb[0].mxu0
        %v2861 = vadd.f32 %v2772, %v2860
        %v2862 = vpop.f32.mrb[0].mxu0
        %v2863 = vadd.f32 %v2774, %v2862
        %2864 = vmatprep.mubr.f32.mxu0 %v1707
        %2865 = vmatmul.mubr.f32.gmra.mrb[0].mxu0 %v1706
        %v2866 = vpop.f32.mrb[0].mxu0
        %v2867 = vadd.f32 %v2778, %v2866
        %v2868 = vpop.f32.mrb[0].mxu0
        %v2869 = vadd.f32 %v2780, %v2868
        %2870 = vmatprep.mubr.f32.mxu0 %v1715
        %2871 = vmatmul.mubr.f32.gmra.mrb[0].mxu0 %v1714
        %v2872 = vpop.f32.mrb[0].mxu0
        %v2873 = vadd.f32 %v2784, %v2872
        %v2874 = vpop.f32.mrb[0].mxu0
        %v2875 = vadd.f32 %v2786, %v2874
        %2876 = vmatprep.mubr.f32.mxu0 %v1723
        %2877 = vmatmul.mubr.f32.gmra.mrb[0].mxu0 %v1722
        %v2878 = vpop.f32.mrb[0].mxu0
        %v2879 = vadd.f32 %v2790, %v2878
        %v2880 = vpop.f32.mrb[0].mxu0
        %v2881 = vadd.f32 %v2792, %v2880
        %2882 = vdwg.mxu0
        %2883 = vmatprep.subr.mxu0 %v2113
        %2884 = vmatpush1.msra.mxu0 %v2112
        %2885 = vmatprep.subr.mxu0 %v2117
        %2886 = vmatpush1.msra.mxu0 %v2116
        %2887 = vmatprep.subr.mxu0 %v2121
        %2888 = vmatpush1.msra.mxu0 %v2120
        %2889 = vmatprep.subr.mxu0 %v2125
        %2890 = vmatpush1.msra.mxu0 %v2124
        %2891 = vmatprep.subr.mxu0 %v2129
        %2892 = vmatpush1.msra.mxu0 %v2128
        %2893 = vmatprep.subr.mxu0 %v2133
        %2894 = vmatpush1.msra.mxu0 %v2132
        %2895 = vmatprep.subr.mxu0 %v2137
        %2896 = vmatpush1.msra.mxu0 %v2136
        %2897 = vmatprep.subr.mxu0 %v2141
        %2898 = vmatpush1.msra.mxu0 %v2140
        %2899 = vmatprep.subr.mxu0 %v2145
        %2900 = vmatpush1.msra.mxu0 %v2144
        %2901 = vmatprep.subr.mxu0 %v2149
        %2902 = vmatpush1.msra.mxu0 %v2148
        %2903 = vmatprep.subr.mxu0 %v2153
        %2904 = vmatpush1.msra.mxu0 %v2152
        %2905 = vmatprep.subr.mxu0 %v2157
        %2906 = vmatpush1.msra.mxu0 %v2156
        %2907 = vmatprep.subr.mxu0 %v2161
        %2908 = vmatpush1.msra.mxu0 %v2160
        %2909 = vmatprep.subr.mxu0 %v2165
        %2910 = vmatpush1.msra.mxu0 %v2164
        %2911 = vmatprep.subr.mxu0 %v2169
        %2912 = vmatpush1.msra.mxu0 %v2168
        %2913 = vmatprep.subr.mxu0 %v2173
        %2914 = vmatpush1.msra.mxu0 %v2172
        %2915 = vmatprep.subr.mxu0 %v2177
        %2916 = vmatpush1.msra.mxu0 %v2176
        %2917 = vmatprep.subr.mxu0 %v2181
        %2918 = vmatpush1.msra.mxu0 %v2180
        %2919 = vmatprep.subr.mxu0 %v2185
        %2920 = vmatpush1.msra.mxu0 %v2184
        %2921 = vmatprep.subr.mxu0 %v2189
        %2922 = vmatpush1.msra.mxu0 %v2188
        %2923 = vmatprep.subr.mxu0 %v2193
        %2924 = vmatpush1.msra.mxu0 %v2192
        %2925 = vmatprep.subr.mxu0 %v2197
        %2926 = vmatpush1.msra.mxu0 %v2196
        %2927 = vmatprep.subr.mxu0 %v2201
        %2928 = vmatpush1.msra.mxu0 %v2200
        %2929 = vmatprep.subr.mxu0 %v2205
        %2930 = vmatpush1.msra.mxu0 %v2204
        %2931 = vmatprep.subr.mxu0 %v2209
        %2932 = vmatpush1.msra.mxu0 %v2208
        %2933 = vmatprep.subr.mxu0 %v2213
        %2934 = vmatpush1.msra.mxu0 %v2212
        %2935 = vmatprep.subr.mxu0 %v2217
        %2936 = vmatpush1.msra.mxu0 %v2216
        %2937 = vmatprep.subr.mxu0 %v2221
        %2938 = vmatpush1.msra.mxu0 %v2220
        %2939 = vmatprep.subr.mxu0 %v2225
        %2940 = vmatpush1.msra.mxu0 %v2224
        %2941 = vmatprep.subr.mxu0 %v2229
        %2942 = vmatpush1.msra.mxu0 %v2228
        %2943 = vmatprep.subr.mxu0 %v2233
        %2944 = vmatpush1.msra.mxu0 %v2232
        %2945 = vmatprep.subr.mxu0 %v2237
        %2946 = vmatpush1.msra.mxu0 %v2236
        %2947 = vmatprep.mubr.f32.mxu0 %v1701
        %2948 = vmatmul.mubr.f32.gmra.mrb[0].mxu0 %v1700
        %v2949 = vpop.f32.mrb[0].mxu0
        %v2950 = vadd.f32 %v2861, %v2949
        %v2951 = vpop.f32.mrb[0].mxu0
        %v2952 = vadd.f32 %v2863, %v2951
        %2953 = vmatprep.mubr.f32.mxu0 %v1709
        %2954 = vmatmul.mubr.f32.gmra.mrb[0].mxu0 %v1708
        %v2955 = vpop.f32.mrb[0].mxu0
        %v2956 = vadd.f32 %v2867, %v2955
        %v2957 = vpop.f32.mrb[0].mxu0
        %v2958 = vadd.f32 %v2869, %v2957
        %2959 = vmatprep.mubr.f32.mxu0 %v1717
        %2960 = vmatmul.mubr.f32.gmra.mrb[0].mxu0 %v1716
        %v2961 = vpop.f32.mrb[0].mxu0
        %v2962 = vadd.f32 %v2873, %v2961
        %v2963 = vpop.f32.mrb[0].mxu0
        %v2964 = vadd.f32 %v2875, %v2963
        %2965 = vmatprep.mubr.f32.mxu0 %v1725
        %2966 = vmatmul.mubr.f32.gmra.mrb[0].mxu0 %v1724
        %v2967 = vpop.f32.mrb[0].mxu0
        %v2968 = vadd.f32 %v2879, %v2967
        %v2969 = vpop.f32.mrb[0].mxu0
        %v2970 = vadd.f32 %v2881, %v2969
        %2971 = vdwg.mxu0
        %v2972 = vld [vmem:[#allocation14] sm:$0xf]
        %v2973 = vld [vmem:[#allocation16] sm:$0xf]
        %v2974 = vadd.f32 %v2594, %v2596
        %v2975 = vadd.f32 %v2974, %v2950
        %v2976 = vadd.f32 %v2975, %v2952
        %2977 = vadd.xlane.f32.xlu0 %v2976
        %v2978 = vpop.xlane.xlu0 %2977
        %v2979 = vadd.f32 %v2600, %v2602
        %v2980 = vadd.f32 %v2979, %v2956
        %v2981 = vadd.f32 %v2980, %v2958
        %2982 = vadd.xlane.f32.xlu0 %v2981
        %v2983 = vpop.xlane.xlu0 %2982
        %v2984 = vadd.f32 %v2606, %v2608
        %v2985 = vadd.f32 %v2984, %v2962
        %v2986 = vadd.f32 %v2985, %v2964
        %2987 = vadd.xlane.f32.xlu0 %v2986
        %v2988 = vpop.xlane.xlu0 %2987
        %v2989 = vadd.f32 %v2612, %v2614
        %v2990 = vadd.f32 %v2989, %v2968
        %v2991 = vadd.f32 %v2990, %v2970
        %2992 = vadd.xlane.f32.xlu0 %v2991
        %v2993 = vpop.xlane.xlu0 %2992
        %v2994 = vrcp.pop 512.0
        %v2995 = vmul.f32 %v2978, %v2994
        %v2996 = vmul.f32 %v2983, %v2994
        %v2997 = vmul.f32 %v2988, %v2994
        %v2998 = vmul.f32 %v2993, %v2994
        %v2999 = vsub.f32 %v2594, %v2995
        %v3000 = vsub.f32 %v2596, %v2995
        %v3001 = vsub.f32 %v2950, %v2995
        %v3002 = vsub.f32 %v2952, %v2995
        %v3003 = vsub.f32 %v2600, %v2996
        %v3004 = vsub.f32 %v2602, %v2996
        %v3005 = vsub.f32 %v2956, %v2996
        %v3006 = vsub.f32 %v2958, %v2996
        %v3007 = vsub.f32 %v2606, %v2997
        %v3008 = vsub.f32 %v2608, %v2997
        %v3009 = vsub.f32 %v2962, %v2997
        %v3010 = vsub.f32 %v2964, %v2997
        %v3011 = vsub.f32 %v2612, %v2998
        %v3012 = vsub.f32 %v2614, %v2998
        %v3013 = vsub.f32 %v2968, %v2998
        %v3014 = vsub.f32 %v2970, %v2998
        %v3015 = vmul.f32 %v2999, %v2999
        %v3016 = vmul.f32 %v3000, %v3000
        %v3017 = vmul.f32 %v3001, %v3001
        %v3018 = vmul.f32 %v3002, %v3002
        %v3019 = vmul.f32 %v3003, %v3003
        %v3020 = vmul.f32 %v3004, %v3004
        %v3021 = vmul.f32 %v3005, %v3005
        %v3022 = vmul.f32 %v3006, %v3006
        %v3023 = vmul.f32 %v3007, %v3007
        %v3024 = vmul.f32 %v3008, %v3008
        %v3025 = vmul.f32 %v3009, %v3009
        %v3026 = vmul.f32 %v3010, %v3010
        %v3027 = vmul.f32 %v3011, %v3011
        %v3028 = vmul.f32 %v3012, %v3012
        %v3029 = vmul.f32 %v3013, %v3013
        %v3030 = vmul.f32 %v3014, %v3014
        %v3031 = vadd.f32 %v3015, %v3016
        %v3032 = vadd.f32 %v3031, %v3017
        %v3033 = vadd.f32 %v3032, %v3018
        %3034 = vadd.xlane.f32.xlu0 %v3033
        %v3035 = vpop.xlane.xlu0 %3034
        %v3036 = vadd.f32 %v3019, %v3020
        %v3037 = vadd.f32 %v3036, %v3021
        %v3038 = vadd.f32 %v3037, %v3022
        %3039 = vadd.xlane.f32.xlu0 %v3038
        %v3040 = vpop.xlane.xlu0 %3039
        %v3041 = vadd.f32 %v3023, %v3024
        %v3042 = vadd.f32 %v3041, %v3025
        %v3043 = vadd.f32 %v3042, %v3026
        %3044 = vadd.xlane.f32.xlu0 %v3043
        %v3045 = vpop.xlane.xlu0 %3044
        %v3046 = vadd.f32 %v3027, %v3028
        %v3047 = vadd.f32 %v3046, %v3029
        %v3048 = vadd.f32 %v3047, %v3030
        %3049 = vadd.xlane.f32.xlu0 %v3048
        %v3050 = vpop.xlane.xlu0 %3049
        %v3051 = vmul.f32 %v3035, %v2994
        %v3052 = vmul.f32 %v3040, %v2994
        %v3053 = vmul.f32 %v3045, %v2994
        %v3054 = vmul.f32 %v3050, %v2994
        %v3055 = vadd.f32 %v3051, 1e-05
        %v3056 = vadd.f32 %v3052, 1e-05
        %v3057 = vadd.f32 %v3053, 1e-05
        %v3058 = vadd.f32 %v3054, 1e-05
        %v3059 = vrsqrt.pop %v3055
        %v3060 = vrsqrt.pop %v3056
        %v3061 = vrsqrt.pop %v3057
        %v3062 = vrsqrt.pop %v3058
        %v3064 = vlaneseq
        %v3065 = vshrl.u32 %v3064, 7
        %v3066 = vsub.s32 0, %v3065
        %v3067 = vrot.slane %v2972, %v3066
        %v3068 = vlaneseq
        %v3069 = vshrl.u32 %v3068, 7
        %v3070 = vsub.s32 1, %v3069
        %v3071 = vrot.slane %v2972, %v3070
        %v3072 = vlaneseq
        %v3073 = vshrl.u32 %v3072, 7
        %v3074 = vsub.s32 2, %v3073
        %v3075 = vrot.slane %v2972, %v3074
        %v3076 = vlaneseq
        %v3077 = vshrl.u32 %v3076, 7
        %v3078 = vsub.s32 3, %v3077
        %v3079 = vrot.slane %v2972, %v3078
        %v3084 = vmul.f32 %v3067, %v3059
        %v3085 = vmul.f32 %v3071, %v3059
        %v3086 = vmul.f32 %v3075, %v3059
        %v3087 = vmul.f32 %v3079, %v3059
        %v3088 = vmul.f32 %v3067, %v3060
        %v3089 = vmul.f32 %v3071, %v3060
        %v3090 = vmul.f32 %v3075, %v3060
        %v3091 = vmul.f32 %v3079, %v3060
        %v3092 = vmul.f32 %v3067, %v3061
        %v3093 = vmul.f32 %v3071, %v3061
        %v3094 = vmul.f32 %v3075, %v3061
        %v3095 = vmul.f32 %v3079, %v3061
        %v3096 = vmul.f32 %v3067, %v3062
        %v3097 = vmul.f32 %v3071, %v3062
        %v3098 = vmul.f32 %v3075, %v3062
        %v3099 = vmul.f32 %v3079, %v3062
        %v3100 = vmul.f32 %v2999, %v3084
        %v3101 = vmul.f32 %v3000, %v3085
        %v3102 = vmul.f32 %v3001, %v3086
        %v3103 = vmul.f32 %v3002, %v3087
        %v3104 = vmul.f32 %v3003, %v3088
        %v3105 = vmul.f32 %v3004, %v3089
        %v3106 = vmul.f32 %v3005, %v3090
        %v3107 = vmul.f32 %v3006, %v3091
        %v3108 = vmul.f32 %v3007, %v3092
        %v3109 = vmul.f32 %v3008, %v3093
        %v3110 = vmul.f32 %v3009, %v3094
        %v3111 = vmul.f32 %v3010, %v3095
        %v3112 = vmul.f32 %v3011, %v3096
        %v3113 = vmul.f32 %v3012, %v3097
        %v3114 = vmul.f32 %v3013, %v3098
        %v3115 = vmul.f32 %v3014, %v3099
        %v3117 = vlaneseq
        %v3118 = vshrl.u32 %v3117, 7
        %v3119 = vsub.s32 0, %v3118
        %v3120 = vrot.slane %v2973, %v3119
        %v3121 = vlaneseq
        %v3122 = vshrl.u32 %v3121, 7
        %v3123 = vsub.s32 1, %v3122
        %v3124 = vrot.slane %v2973, %v3123
        %v3125 = vlaneseq
        %v3126 = vshrl.u32 %v3125, 7
        %v3127 = vsub.s32 2, %v3126
        %v3128 = vrot.slane %v2973, %v3127
        %v3129 = vlaneseq
        %v3130 = vshrl.u32 %v3129, 7
        %v3131 = vsub.s32 3, %v3130
        %v3132 = vrot.slane %v2973, %v3131
        %v3137 = vadd.f32 %v3100, %v3120
        %v3138 = vadd.f32 %v3101, %v3124
        %v3139 = vadd.f32 %v3102, %v3128
        %v3140 = vadd.f32 %v3103, %v3132
        %v3141 = vadd.f32 %v3104, %v3120
        %v3142 = vadd.f32 %v3105, %v3124
        %v3143 = vadd.f32 %v3106, %v3128
        %v3144 = vadd.f32 %v3107, %v3132
        %v3145 = vadd.f32 %v3108, %v3120
        %v3146 = vadd.f32 %v3109, %v3124
        %v3147 = vadd.f32 %v3110, %v3128
        %v3148 = vadd.f32 %v3111, %v3132
        %v3149 = vadd.f32 %v3112, %v3120
        %v3150 = vadd.f32 %v3113, %v3124
        %v3151 = vadd.f32 %v3114, %v3128
        %v3152 = vadd.f32 %v3115, %v3132
        %v3153 = vmax.f32 %v3137, 0.0
        %v3154 = vmax.f32 %v3138, 0.0
        %v3155 = vmax.f32 %v3139, 0.0
        %v3156 = vmax.f32 %v3140, 0.0
        %v3157 = vmax.f32 %v3141, 0.0
        %v3158 = vmax.f32 %v3142, 0.0
        %v3159 = vmax.f32 %v3143, 0.0
        %v3160 = vmax.f32 %v3144, 0.0
        %v3161 = vmax.f32 %v3145, 0.0
        %v3162 = vmax.f32 %v3146, 0.0
        %v3163 = vmax.f32 %v3147, 0.0
        %v3164 = vmax.f32 %v3148, 0.0
        %v3165 = vmax.f32 %v3149, 0.0
        %v3166 = vmax.f32 %v3150, 0.0
        %v3167 = vmax.f32 %v3151, 0.0
        %v3168 = vmax.f32 %v3152, 0.0
        %v3169 = vld [vmem:[#allocation17] sm:$0xff]
        %v3170 = vld [vmem:[#allocation17 + $0x8] sm:$0xff]
        %v3171 = vld [vmem:[#allocation17 + $0x10] sm:$0xff]
        %v3172 = vld [vmem:[#allocation17 + $0x18] sm:$0xff]
        %v3173 = vld [vmem:[#allocation17 + $0x20] sm:$0xff]
        %v3174 = vld [vmem:[#allocation17 + $0x28] sm:$0xff]
        %v3175 = vld [vmem:[#allocation17 + $0x30] sm:$0xff]
        %v3176 = vld [vmem:[#allocation17 + $0x38] sm:$0xff]
        %v3177 = vld [vmem:[#allocation17 + $0x40] sm:$0xff]
        %v3178 = vld [vmem:[#allocation17 + $0x48] sm:$0xff]
        %v3179 = vld [vmem:[#allocation17 + $0x50] sm:$0xff]
        %v3180 = vld [vmem:[#allocation17 + $0x58] sm:$0xff]
        %v3181 = vld [vmem:[#allocation17 + $0x60] sm:$0xff]
        %v3182 = vld [vmem:[#allocation17 + $0x68] sm:$0xff]
        %v3183 = vld [vmem:[#allocation17 + $0x70] sm:$0xff]
        %v3184 = vld [vmem:[#allocation17 + $0x78] sm:$0xff]
        %v3185 = vld [vmem:[#allocation17 + $0x80] sm:$0xff]
        %v3186 = vld [vmem:[#allocation17 + $0x88] sm:$0xff]
        %v3187 = vld [vmem:[#allocation17 + $0x90] sm:$0xff]
        %v3188 = vld [vmem:[#allocation17 + $0x98] sm:$0xff]
        %v3189 = vld [vmem:[#allocation17 + $0xa0] sm:$0xff]
        %v3190 = vld [vmem:[#allocation17 + $0xa8] sm:$0xff]
        %v3191 = vld [vmem:[#allocation17 + $0xb0] sm:$0xff]
        %v3192 = vld [vmem:[#allocation17 + $0xb8] sm:$0xff]
        %v3193 = vld [vmem:[#allocation17 + $0xc0] sm:$0xff]
        %v3194 = vld [vmem:[#allocation17 + $0xc8] sm:$0xff]
        %v3195 = vld [vmem:[#allocation17 + $0xd0] sm:$0xff]
        %v3196 = vld [vmem:[#allocation17 + $0xd8] sm:$0xff]
        %v3197 = vld [vmem:[#allocation17 + $0xe0] sm:$0xff]
        %v3198 = vld [vmem:[#allocation17 + $0xe8] sm:$0xff]
        %v3199 = vld [vmem:[#allocation17 + $0xf0] sm:$0xff]
        %v3200 = vld [vmem:[#allocation17 + $0xf8] sm:$0xff]
        %v3201 = vld [vmem:[#allocation17 + $0x100] sm:$0xff]
        %v3202 = vld [vmem:[#allocation17 + $0x108] sm:$0xff]
        %v3203 = vld [vmem:[#allocation17 + $0x110] sm:$0xff]
        %v3204 = vld [vmem:[#allocation17 + $0x118] sm:$0xff]
        %v3205 = vld [vmem:[#allocation17 + $0x120] sm:$0xff]
        %v3206 = vld [vmem:[#allocation17 + $0x128] sm:$0xff]
        %v3207 = vld [vmem:[#allocation17 + $0x130] sm:$0xff]
        %v3208 = vld [vmem:[#allocation17 + $0x138] sm:$0xff]
        %v3209 = vld [vmem:[#allocation17 + $0x140] sm:$0xff]
        %v3210 = vld [vmem:[#allocation17 + $0x148] sm:$0xff]
        %v3211 = vld [vmem:[#allocation17 + $0x150] sm:$0xff]
        %v3212 = vld [vmem:[#allocation17 + $0x158] sm:$0xff]
        %v3213 = vld [vmem:[#allocation17 + $0x160] sm:$0xff]
        %v3214 = vld [vmem:[#allocation17 + $0x168] sm:$0xff]
        %v3215 = vld [vmem:[#allocation17 + $0x170] sm:$0xff]
        %v3216 = vld [vmem:[#allocation17 + $0x178] sm:$0xff]
        %v3217 = vld [vmem:[#allocation17 + $0x180] sm:$0xff]
        %v3218 = vld [vmem:[#allocation17 + $0x188] sm:$0xff]
        %v3219 = vld [vmem:[#allocation17 + $0x190] sm:$0xff]
        %v3220 = vld [vmem:[#allocation17 + $0x198] sm:$0xff]
        %v3221 = vld [vmem:[#allocation17 + $0x1a0] sm:$0xff]
        %v3222 = vld [vmem:[#allocation17 + $0x1a8] sm:$0xff]
        %v3223 = vld [vmem:[#allocation17 + $0x1b0] sm:$0xff]
        %v3224 = vld [vmem:[#allocation17 + $0x1b8] sm:$0xff]
        %v3225 = vld [vmem:[#allocation17 + $0x1c0] sm:$0xff]
        %v3226 = vld [vmem:[#allocation17 + $0x1c8] sm:$0xff]
        %v3227 = vld [vmem:[#allocation17 + $0x1d0] sm:$0xff]
        %v3228 = vld [vmem:[#allocation17 + $0x1d8] sm:$0xff]
        %v3229 = vld [vmem:[#allocation17 + $0x1e0] sm:$0xff]
        %v3230 = vld [vmem:[#allocation17 + $0x1e8] sm:$0xff]
        %v3231 = vld [vmem:[#allocation17 + $0x1f0] sm:$0xff]
        %v3232 = vld [vmem:[#allocation17 + $0x1f8] sm:$0xff]
        %v3233 = vld [vmem:[#allocation17 + $0x200] sm:$0xff]
        %v3234 = vld [vmem:[#allocation17 + $0x208] sm:$0xff]
        %v3235 = vld [vmem:[#allocation17 + $0x210] sm:$0xff]
        %v3236 = vld [vmem:[#allocation17 + $0x218] sm:$0xff]
        %v3237 = vld [vmem:[#allocation17 + $0x220] sm:$0xff]
        %v3238 = vld [vmem:[#allocation17 + $0x228] sm:$0xff]
        %v3239 = vld [vmem:[#allocation17 + $0x230] sm:$0xff]
        %v3240 = vld [vmem:[#allocation17 + $0x238] sm:$0xff]
        %v3241 = vld [vmem:[#allocation17 + $0x240] sm:$0xff]
        %v3242 = vld [vmem:[#allocation17 + $0x248] sm:$0xff]
        %v3243 = vld [vmem:[#allocation17 + $0x250] sm:$0xff]
        %v3244 = vld [vmem:[#allocation17 + $0x258] sm:$0xff]
        %v3245 = vld [vmem:[#allocation17 + $0x260] sm:$0xff]
        %v3246 = vld [vmem:[#allocation17 + $0x268] sm:$0xff]
        %v3247 = vld [vmem:[#allocation17 + $0x270] sm:$0xff]
        %v3248 = vld [vmem:[#allocation17 + $0x278] sm:$0xff]
        %v3249 = vld [vmem:[#allocation17 + $0x280] sm:$0xff]
        %v3250 = vld [vmem:[#allocation17 + $0x288] sm:$0xff]
        %v3251 = vld [vmem:[#allocation17 + $0x290] sm:$0xff]
        %v3252 = vld [vmem:[#allocation17 + $0x298] sm:$0xff]
        %v3253 = vld [vmem:[#allocation17 + $0x2a0] sm:$0xff]
        %v3254 = vld [vmem:[#allocation17 + $0x2a8] sm:$0xff]
        %v3255 = vld [vmem:[#allocation17 + $0x2b0] sm:$0xff]
        %v3256 = vld [vmem:[#allocation17 + $0x2b8] sm:$0xff]
        %v3257 = vld [vmem:[#allocation17 + $0x2c0] sm:$0xff]
        %v3258 = vld [vmem:[#allocation17 + $0x2c8] sm:$0xff]
        %v3259 = vld [vmem:[#allocation17 + $0x2d0] sm:$0xff]
        %v3260 = vld [vmem:[#allocation17 + $0x2d8] sm:$0xff]
        %v3261 = vld [vmem:[#allocation17 + $0x2e0] sm:$0xff]
        %v3262 = vld [vmem:[#allocation17 + $0x2e8] sm:$0xff]
        %v3263 = vld [vmem:[#allocation17 + $0x2f0] sm:$0xff]
        %v3264 = vld [vmem:[#allocation17 + $0x2f8] sm:$0xff]
        %v3265 = vld [vmem:[#allocation17 + $0x300] sm:$0xff]
        %v3266 = vld [vmem:[#allocation17 + $0x308] sm:$0xff]
        %v3267 = vld [vmem:[#allocation17 + $0x310] sm:$0xff]
        %v3268 = vld [vmem:[#allocation17 + $0x318] sm:$0xff]
        %v3269 = vld [vmem:[#allocation17 + $0x320] sm:$0xff]
        %v3270 = vld [vmem:[#allocation17 + $0x328] sm:$0xff]
        %v3271 = vld [vmem:[#allocation17 + $0x330] sm:$0xff]
        %v3272 = vld [vmem:[#allocation17 + $0x338] sm:$0xff]
        %v3273 = vld [vmem:[#allocation17 + $0x340] sm:$0xff]
        %v3274 = vld [vmem:[#allocation17 + $0x348] sm:$0xff]
        %v3275 = vld [vmem:[#allocation17 + $0x350] sm:$0xff]
        %v3276 = vld [vmem:[#allocation17 + $0x358] sm:$0xff]
        %v3277 = vld [vmem:[#allocation17 + $0x360] sm:$0xff]
        %v3278 = vld [vmem:[#allocation17 + $0x368] sm:$0xff]
        %v3279 = vld [vmem:[#allocation17 + $0x370] sm:$0xff]
        %v3280 = vld [vmem:[#allocation17 + $0x378] sm:$0xff]
        %v3281 = vld [vmem:[#allocation17 + $0x380] sm:$0xff]
        %v3282 = vld [vmem:[#allocation17 + $0x388] sm:$0xff]
        %v3283 = vld [vmem:[#allocation17 + $0x390] sm:$0xff]
        %v3284 = vld [vmem:[#allocation17 + $0x398] sm:$0xff]
        %v3285 = vld [vmem:[#allocation17 + $0x3a0] sm:$0xff]
        %v3286 = vld [vmem:[#allocation17 + $0x3a8] sm:$0xff]
        %v3287 = vld [vmem:[#allocation17 + $0x3b0] sm:$0xff]
        %v3288 = vld [vmem:[#allocation17 + $0x3b8] sm:$0xff]
        %v3289 = vld [vmem:[#allocation17 + $0x3c0] sm:$0xff]
        %v3290 = vld [vmem:[#allocation17 + $0x3c8] sm:$0xff]
        %v3291 = vld [vmem:[#allocation17 + $0x3d0] sm:$0xff]
        %v3292 = vld [vmem:[#allocation17 + $0x3d8] sm:$0xff]
        %v3293 = vld [vmem:[#allocation17 + $0x3e0] sm:$0xff]
        %v3294 = vld [vmem:[#allocation17 + $0x3e8] sm:$0xff]
        %v3295 = vld [vmem:[#allocation17 + $0x3f0] sm:$0xff]
        %v3296 = vld [vmem:[#allocation17 + $0x3f8] sm:$0xff]
        %v3297 = vld [vmem:[#allocation19] sm:$0x3]
        %v3299 = vlaneseq
        %v3300 = vshrl.u32 %v3299, 7
        %v3301 = vsub.s32 0, %v3300
        %v3302 = vrot.slane %v3297, %v3301
        %v3303 = vlaneseq
        %v3304 = vshrl.u32 %v3303, 7
        %v3305 = vsub.s32 1, %v3304
        %v3306 = vrot.slane %v3297, %v3305
        %3309 = vmatprep.subr.mxu0 %v3170
        %3310 = vmatpush1.msra.mxu0 %v3169
        %3311 = vmatprep.subr.mxu0 %v3172
        %3312 = vmatpush1.msra.mxu0 %v3171
        %3313 = vmatprep.subr.mxu0 %v3174
        %3314 = vmatpush1.msra.mxu0 %v3173
        %3315 = vmatprep.subr.mxu0 %v3176
        %3316 = vmatpush1.msra.mxu0 %v3175
        %3317 = vmatprep.subr.mxu0 %v3178
        %3318 = vmatpush1.msra.mxu0 %v3177
        %3319 = vmatprep.subr.mxu0 %v3180
        %3320 = vmatpush1.msra.mxu0 %v3179
        %3321 = vmatprep.subr.mxu0 %v3182
        %3322 = vmatpush1.msra.mxu0 %v3181
        %3323 = vmatprep.subr.mxu0 %v3184
        %3324 = vmatpush1.msra.mxu0 %v3183
        %3325 = vmatprep.subr.mxu0 %v3186
        %3326 = vmatpush1.msra.mxu0 %v3185
        %3327 = vmatprep.subr.mxu0 %v3188
        %3328 = vmatpush1.msra.mxu0 %v3187
        %3329 = vmatprep.subr.mxu0 %v3190
        %3330 = vmatpush1.msra.mxu0 %v3189
        %3331 = vmatprep.subr.mxu0 %v3192
        %3332 = vmatpush1.msra.mxu0 %v3191
        %3333 = vmatprep.subr.mxu0 %v3194
        %3334 = vmatpush1.msra.mxu0 %v3193
        %3335 = vmatprep.subr.mxu0 %v3196
        %3336 = vmatpush1.msra.mxu0 %v3195
        %3337 = vmatprep.subr.mxu0 %v3198
        %3338 = vmatpush1.msra.mxu0 %v3197
        %3339 = vmatprep.subr.mxu0 %v3200
        %3340 = vmatpush1.msra.mxu0 %v3199
        %3341 = vmatprep.subr.mxu0 %v3202
        %3342 = vmatpush1.msra.mxu0 %v3201
        %3343 = vmatprep.subr.mxu0 %v3204
        %3344 = vmatpush1.msra.mxu0 %v3203
        %3345 = vmatprep.subr.mxu0 %v3206
        %3346 = vmatpush1.msra.mxu0 %v3205
        %3347 = vmatprep.subr.mxu0 %v3208
        %3348 = vmatpush1.msra.mxu0 %v3207
        %3349 = vmatprep.subr.mxu0 %v3210
        %3350 = vmatpush1.msra.mxu0 %v3209
        %3351 = vmatprep.subr.mxu0 %v3212
        %3352 = vmatpush1.msra.mxu0 %v3211
        %3353 = vmatprep.subr.mxu0 %v3214
        %3354 = vmatpush1.msra.mxu0 %v3213
        %3355 = vmatprep.subr.mxu0 %v3216
        %3356 = vmatpush1.msra.mxu0 %v3215
        %3357 = vmatprep.subr.mxu0 %v3218
        %3358 = vmatpush1.msra.mxu0 %v3217
        %3359 = vmatprep.subr.mxu0 %v3220
        %3360 = vmatpush1.msra.mxu0 %v3219
        %3361 = vmatprep.subr.mxu0 %v3222
        %3362 = vmatpush1.msra.mxu0 %v3221
        %3363 = vmatprep.subr.mxu0 %v3224
        %3364 = vmatpush1.msra.mxu0 %v3223
        %3365 = vmatprep.subr.mxu0 %v3226
        %3366 = vmatpush1.msra.mxu0 %v3225
        %3367 = vmatprep.subr.mxu0 %v3228
        %3368 = vmatpush1.msra.mxu0 %v3227
        %3369 = vmatprep.subr.mxu0 %v3230
        %3370 = vmatpush1.msra.mxu0 %v3229
        %3371 = vmatprep.subr.mxu0 %v3232
        %3372 = vmatpush1.msra.mxu0 %v3231
        %3373 = vmatprep.mubr.f32.mxu0 %v3154
        %3374 = vmatmul.mubr.f32.gmra.mrb[0].mxu0 %v3153
        %v3375 = vpop.f32.mrb[0].mxu0
        %v3376 = vadd.f32 %v3302, %v3375
        %v3377 = vpop.f32.mrb[0].mxu0
        %v3378 = vadd.f32 %v3306, %v3377
        %3379 = vmatprep.mubr.f32.mxu0 %v3158
        %3380 = vmatmul.mubr.f32.gmra.mrb[0].mxu0 %v3157
        %v3381 = vpop.f32.mrb[0].mxu0
        %v3382 = vadd.f32 %v3302, %v3381
        %v3383 = vpop.f32.mrb[0].mxu0
        %v3384 = vadd.f32 %v3306, %v3383
        %3385 = vmatprep.mubr.f32.mxu0 %v3162
        %3386 = vmatmul.mubr.f32.gmra.mrb[0].mxu0 %v3161
        %v3387 = vpop.f32.mrb[0].mxu0
        %v3388 = vadd.f32 %v3302, %v3387
        %v3389 = vpop.f32.mrb[0].mxu0
        %v3390 = vadd.f32 %v3306, %v3389
        %3391 = vmatprep.mubr.f32.mxu0 %v3166
        %3392 = vmatmul.mubr.f32.gmra.mrb[0].mxu0 %v3165
        %v3393 = vpop.f32.mrb[0].mxu0
        %v3394 = vadd.f32 %v3302, %v3393
        %v3395 = vpop.f32.mrb[0].mxu0
        %v3396 = vadd.f32 %v3306, %v3395
        %3397 = vdwg.mxu0
        %3398 = vmatprep.subr.mxu0 %v3234
        %3399 = vmatpush1.msra.mxu0 %v3233
        %3400 = vmatprep.subr.mxu0 %v3236
        %3401 = vmatpush1.msra.mxu0 %v3235
        %3402 = vmatprep.subr.mxu0 %v3238
        %3403 = vmatpush1.msra.mxu0 %v3237
        %3404 = vmatprep.subr.mxu0 %v3240
        %3405 = vmatpush1.msra.mxu0 %v3239
        %3406 = vmatprep.subr.mxu0 %v3242
        %3407 = vmatpush1.msra.mxu0 %v3241
        %3408 = vmatprep.subr.mxu0 %v3244
        %3409 = vmatpush1.msra.mxu0 %v3243
        %3410 = vmatprep.subr.mxu0 %v3246
        %3411 = vmatpush1.msra.mxu0 %v3245
        %3412 = vmatprep.subr.mxu0 %v3248
        %3413 = vmatpush1.msra.mxu0 %v3247
        %3414 = vmatprep.subr.mxu0 %v3250
        %3415 = vmatpush1.msra.mxu0 %v3249
        %3416 = vmatprep.subr.mxu0 %v3252
        %3417 = vmatpush1.msra.mxu0 %v3251
        %3418 = vmatprep.subr.mxu0 %v3254
        %3419 = vmatpush1.msra.mxu0 %v3253
        %3420 = vmatprep.subr.mxu0 %v3256
        %3421 = vmatpush1.msra.mxu0 %v3255
        %3422 = vmatprep.subr.mxu0 %v3258
        %3423 = vmatpush1.msra.mxu0 %v3257
        %3424 = vmatprep.subr.mxu0 %v3260
        %3425 = vmatpush1.msra.mxu0 %v3259
        %3426 = vmatprep.subr.mxu0 %v3262
        %3427 = vmatpush1.msra.mxu0 %v3261
        %3428 = vmatprep.subr.mxu0 %v3264
        %3429 = vmatpush1.msra.mxu0 %v3263
        %3430 = vmatprep.subr.mxu0 %v3266
        %3431 = vmatpush1.msra.mxu0 %v3265
        %3432 = vmatprep.subr.mxu0 %v3268
        %3433 = vmatpush1.msra.mxu0 %v3267
        %3434 = vmatprep.subr.mxu0 %v3270
        %3435 = vmatpush1.msra.mxu0 %v3269
        %3436 = vmatprep.subr.mxu0 %v3272
        %3437 = vmatpush1.msra.mxu0 %v3271
        %3438 = vmatprep.subr.mxu0 %v3274
        %3439 = vmatpush1.msra.mxu0 %v3273
        %3440 = vmatprep.subr.mxu0 %v3276
        %3441 = vmatpush1.msra.mxu0 %v3275
        %3442 = vmatprep.subr.mxu0 %v3278
        %3443 = vmatpush1.msra.mxu0 %v3277
        %3444 = vmatprep.subr.mxu0 %v3280
        %3445 = vmatpush1.msra.mxu0 %v3279
        %3446 = vmatprep.subr.mxu0 %v3282
        %3447 = vmatpush1.msra.mxu0 %v3281
        %3448 = vmatprep.subr.mxu0 %v3284
        %3449 = vmatpush1.msra.mxu0 %v3283
        %3450 = vmatprep.subr.mxu0 %v3286
        %3451 = vmatpush1.msra.mxu0 %v3285
        %3452 = vmatprep.subr.mxu0 %v3288
        %3453 = vmatpush1.msra.mxu0 %v3287
        %3454 = vmatprep.subr.mxu0 %v3290
        %3455 = vmatpush1.msra.mxu0 %v3289
        %3456 = vmatprep.subr.mxu0 %v3292
        %3457 = vmatpush1.msra.mxu0 %v3291
        %3458 = vmatprep.subr.mxu0 %v3294
        %3459 = vmatpush1.msra.mxu0 %v3293
        %3460 = vmatprep.subr.mxu0 %v3296
        %3461 = vmatpush1.msra.mxu0 %v3295
        %3462 = vmatprep.mubr.f32.mxu0 %v3156
        %3463 = vmatmul.mubr.f32.gmra.mrb[0].mxu0 %v3155
        %v3464 = vpop.f32.mrb[0].mxu0
        %v3465 = vadd.f32 %v3376, %v3464
        %v3466 = vpop.f32.mrb[0].mxu0
        %v3467 = vadd.f32 %v3378, %v3466
        %3468 = vmatprep.mubr.f32.mxu0 %v3160
        %3469 = vmatmul.mubr.f32.gmra.mrb[0].mxu0 %v3159
        %v3470 = vpop.f32.mrb[0].mxu0
        %v3471 = vadd.f32 %v3382, %v3470
        %v3472 = vpop.f32.mrb[0].mxu0
        %v3473 = vadd.f32 %v3384, %v3472
        %3474 = vmatprep.mubr.f32.mxu0 %v3164
        %3475 = vmatmul.mubr.f32.gmra.mrb[0].mxu0 %v3163
        %v3476 = vpop.f32.mrb[0].mxu0
        %v3477 = vadd.f32 %v3388, %v3476
        %v3478 = vpop.f32.mrb[0].mxu0
        %v3479 = vadd.f32 %v3390, %v3478
        %3480 = vmatprep.mubr.f32.mxu0 %v3168
        %3481 = vmatmul.mubr.f32.gmra.mrb[0].mxu0 %v3167
        %v3482 = vpop.f32.mrb[0].mxu0
        %v3483 = vadd.f32 %v3394, %v3482
        %v3484 = vpop.f32.mrb[0].mxu0
        %v3485 = vadd.f32 %v3396, %v3484
        %3486 = vdwg.mxu0
        %v3487 = vld [vmem:[#allocation20] sm:$0x3]
        %v3488 = vld [vmem:[#allocation22] sm:$0x3]
        %v3489 = vadd.f32 %v3465, %v3467
        %3490 = vadd.xlane.f32.xlu0 %v3489
        %v3491 = vpop.xlane.xlu0 %3490
        %v3492 = vadd.f32 %v3471, %v3473
        %3493 = vadd.xlane.f32.xlu0 %v3492
        %v3494 = vpop.xlane.xlu0 %3493
        %v3495 = vadd.f32 %v3477, %v3479
        %3496 = vadd.xlane.f32.xlu0 %v3495
        %v3497 = vpop.xlane.xlu0 %3496
        %v3498 = vadd.f32 %v3483, %v3485
        %3499 = vadd.xlane.f32.xlu0 %v3498
        %v3500 = vpop.xlane.xlu0 %3499
        %v3501 = vrcp.pop 256.0
        %v3502 = vmul.f32 %v3491, %v3501
        %v3503 = vmul.f32 %v3494, %v3501
        %v3504 = vmul.f32 %v3497, %v3501
        %v3505 = vmul.f32 %v3500, %v3501
        %v3506 = vsub.f32 %v3465, %v3502
        %v3507 = vsub.f32 %v3467, %v3502
        %v3508 = vsub.f32 %v3471, %v3503
        %v3509 = vsub.f32 %v3473, %v3503
        %v3510 = vsub.f32 %v3477, %v3504
        %v3511 = vsub.f32 %v3479, %v3504
        %v3512 = vsub.f32 %v3483, %v3505
        %v3513 = vsub.f32 %v3485, %v3505
        %v3514 = vmul.f32 %v3506, %v3506
        %v3515 = vmul.f32 %v3507, %v3507
        %v3516 = vmul.f32 %v3508, %v3508
        %v3517 = vmul.f32 %v3509, %v3509
        %v3518 = vmul.f32 %v3510, %v3510
        %v3519 = vmul.f32 %v3511, %v3511
        %v3520 = vmul.f32 %v3512, %v3512
        %v3521 = vmul.f32 %v3513, %v3513
        %v3522 = vadd.f32 %v3514, %v3515
        %3523 = vadd.xlane.f32.xlu0 %v3522
        %v3524 = vpop.xlane.xlu0 %3523
        %v3525 = vadd.f32 %v3516, %v3517
        %3526 = vadd.xlane.f32.xlu0 %v3525
        %v3527 = vpop.xlane.xlu0 %3526
        %v3528 = vadd.f32 %v3518, %v3519
        %3529 = vadd.xlane.f32.xlu0 %v3528
        %v3530 = vpop.xlane.xlu0 %3529
        %v3531 = vadd.f32 %v3520, %v3521
        %3532 = vadd.xlane.f32.xlu0 %v3531
        %v3533 = vpop.xlane.xlu0 %3532
        %v3534 = vmul.f32 %v3524, %v3501
        %v3535 = vmul.f32 %v3527, %v3501
        %v3536 = vmul.f32 %v3530, %v3501
        %v3537 = vmul.f32 %v3533, %v3501
        %v3538 = vadd.f32 %v3534, 1e-05
        %v3539 = vadd.f32 %v3535, 1e-05
        %v3540 = vadd.f32 %v3536, 1e-05
        %v3541 = vadd.f32 %v3537, 1e-05
        %v3542 = vrsqrt.pop %v3538
        %v3543 = vrsqrt.pop %v3539
        %v3544 = vrsqrt.pop %v3540
        %v3545 = vrsqrt.pop %v3541
        %v3547 = vlaneseq
        %v3548 = vshrl.u32 %v3547, 7
        %v3549 = vsub.s32 0, %v3548
        %v3550 = vrot.slane %v3487, %v3549
        %v3551 = vlaneseq
        %v3552 = vshrl.u32 %v3551, 7
        %v3553 = vsub.s32 1, %v3552
        %v3554 = vrot.slane %v3487, %v3553
        %v3557 = vmul.f32 %v3550, %v3542
        %v3558 = vmul.f32 %v3554, %v3542
        %v3559 = vmul.f32 %v3550, %v3543
        %v3560 = vmul.f32 %v3554, %v3543
        %v3561 = vmul.f32 %v3550, %v3544
        %v3562 = vmul.f32 %v3554, %v3544
        %v3563 = vmul.f32 %v3550, %v3545
        %v3564 = vmul.f32 %v3554, %v3545
        %v3565 = vmul.f32 %v3506, %v3557
        %v3566 = vmul.f32 %v3507, %v3558
        %v3567 = vmul.f32 %v3508, %v3559
        %v3568 = vmul.f32 %v3509, %v3560
        %v3569 = vmul.f32 %v3510, %v3561
        %v3570 = vmul.f32 %v3511, %v3562
        %v3571 = vmul.f32 %v3512, %v3563
        %v3572 = vmul.f32 %v3513, %v3564
        %v3574 = vlaneseq
        %v3575 = vshrl.u32 %v3574, 7
        %v3576 = vsub.s32 0, %v3575
        %v3577 = vrot.slane %v3488, %v3576
        %v3578 = vlaneseq
        %v3579 = vshrl.u32 %v3578, 7
        %v3580 = vsub.s32 1, %v3579
        %v3581 = vrot.slane %v3488, %v3580
        %v3584 = vadd.f32 %v3565, %v3577
        %v3585 = vadd.f32 %v3566, %v3581
        %v3586 = vadd.f32 %v3567, %v3577
        %v3587 = vadd.f32 %v3568, %v3581
        %v3588 = vadd.f32 %v3569, %v3577
        %v3589 = vadd.f32 %v3570, %v3581
        %v3590 = vadd.f32 %v3571, %v3577
        %v3591 = vadd.f32 %v3572, %v3581
        %v3592 = vmax.f32 %v3584, 0.0
        %v3593 = vmax.f32 %v3585, 0.0
        %v3594 = vmax.f32 %v3586, 0.0
        %v3595 = vmax.f32 %v3587, 0.0
        %v3596 = vmax.f32 %v3588, 0.0
        %v3597 = vmax.f32 %v3589, 0.0
        %v3598 = vmax.f32 %v3590, 0.0
        %v3599 = vmax.f32 %v3591, 0.0
        %v3600 = vld [vmem:[#allocation23] sm:$0xff]
        %v3601 = vld [vmem:[#allocation23 + $0x8] sm:$0xff]
        %v3602 = vld [vmem:[#allocation23 + $0x10] sm:$0xff]
        %v3603 = vld [vmem:[#allocation23 + $0x18] sm:$0xff]
        %v3604 = vld [vmem:[#allocation23 + $0x20] sm:$0xff]
        %v3605 = vld [vmem:[#allocation23 + $0x28] sm:$0xff]
        %v3606 = vld [vmem:[#allocation23 + $0x30] sm:$0xff]
        %v3607 = vld [vmem:[#allocation23 + $0x38] sm:$0xff]
        %v3608 = vld [vmem:[#allocation23 + $0x40] sm:$0xff]
        %v3609 = vld [vmem:[#allocation23 + $0x48] sm:$0xff]
        %v3610 = vld [vmem:[#allocation23 + $0x50] sm:$0xff]
        %v3611 = vld [vmem:[#allocation23 + $0x58] sm:$0xff]
        %v3612 = vld [vmem:[#allocation23 + $0x60] sm:$0xff]
        %v3613 = vld [vmem:[#allocation23 + $0x68] sm:$0xff]
        %v3614 = vld [vmem:[#allocation23 + $0x70] sm:$0xff]
        %v3615 = vld [vmem:[#allocation23 + $0x78] sm:$0xff]
        %v3616 = vld [vmem:[#allocation23 + $0x80] sm:$0xff]
        %v3617 = vld [vmem:[#allocation23 + $0x88] sm:$0xff]
        %v3618 = vld [vmem:[#allocation23 + $0x90] sm:$0xff]
        %v3619 = vld [vmem:[#allocation23 + $0x98] sm:$0xff]
        %v3620 = vld [vmem:[#allocation23 + $0xa0] sm:$0xff]
        %v3621 = vld [vmem:[#allocation23 + $0xa8] sm:$0xff]
        %v3622 = vld [vmem:[#allocation23 + $0xb0] sm:$0xff]
        %v3623 = vld [vmem:[#allocation23 + $0xb8] sm:$0xff]
        %v3624 = vld [vmem:[#allocation23 + $0xc0] sm:$0xff]
        %v3625 = vld [vmem:[#allocation23 + $0xc8] sm:$0xff]
        %v3626 = vld [vmem:[#allocation23 + $0xd0] sm:$0xff]
        %v3627 = vld [vmem:[#allocation23 + $0xd8] sm:$0xff]
        %v3628 = vld [vmem:[#allocation23 + $0xe0] sm:$0xff]
        %v3629 = vld [vmem:[#allocation23 + $0xe8] sm:$0xff]
        %v3630 = vld [vmem:[#allocation23 + $0xf0] sm:$0xff]
        %v3631 = vld [vmem:[#allocation23 + $0xf8] sm:$0xff]
        %v3632 = vld [vmem:[#allocation25] sm:$0x1]
        %v3634 = vlaneseq
        %v3635 = vshrl.u32 %v3634, 7
        %v3636 = vsub.s32 0, %v3635
        %v3637 = vrot.slane %v3632, %v3636
        %3639 = vmatprep.subr.mxu0 0.0
        %3640 = vmatpush1.msra.mxu0 %v3600
        %3641 = vmatprep.subr.mxu0 0.0
        %3642 = vmatpush1.msra.mxu0 %v3601
        %3643 = vmatprep.subr.mxu0 0.0
        %3644 = vmatpush1.msra.mxu0 %v3602
        %3645 = vmatprep.subr.mxu0 0.0
        %3646 = vmatpush1.msra.mxu0 %v3603
        %3647 = vmatprep.subr.mxu0 0.0
        %3648 = vmatpush1.msra.mxu0 %v3604
        %3649 = vmatprep.subr.mxu0 0.0
        %3650 = vmatpush1.msra.mxu0 %v3605
        %3651 = vmatprep.subr.mxu0 0.0
        %3652 = vmatpush1.msra.mxu0 %v3606
        %3653 = vmatprep.subr.mxu0 0.0
        %3654 = vmatpush1.msra.mxu0 %v3607
        %3655 = vmatprep.subr.mxu0 0.0
        %3656 = vmatpush1.msra.mxu0 %v3608
        %3657 = vmatprep.subr.mxu0 0.0
        %3658 = vmatpush1.msra.mxu0 %v3609
        %3659 = vmatprep.subr.mxu0 0.0
        %3660 = vmatpush1.msra.mxu0 %v3610
        %3661 = vmatprep.subr.mxu0 0.0
        %3662 = vmatpush1.msra.mxu0 %v3611
        %3663 = vmatprep.subr.mxu0 0.0
        %3664 = vmatpush1.msra.mxu0 %v3612
        %3665 = vmatprep.subr.mxu0 0.0
        %3666 = vmatpush1.msra.mxu0 %v3613
        %3667 = vmatprep.subr.mxu0 0.0
        %3668 = vmatpush1.msra.mxu0 %v3614
        %3669 = vmatprep.subr.mxu0 0.0
        %3670 = vmatpush1.msra.mxu0 %v3615
        %3671 = vmatprep.subr.mxu0 0.0
        %3672 = vmatpush1.msra.mxu0 %v3616
        %3673 = vmatprep.subr.mxu0 0.0
        %3674 = vmatpush1.msra.mxu0 %v3617
        %3675 = vmatprep.subr.mxu0 0.0
        %3676 = vmatpush1.msra.mxu0 %v3618
        %3677 = vmatprep.subr.mxu0 0.0
        %3678 = vmatpush1.msra.mxu0 %v3619
        %3679 = vmatprep.subr.mxu0 0.0
        %3680 = vmatpush1.msra.mxu0 %v3620
        %3681 = vmatprep.subr.mxu0 0.0
        %3682 = vmatpush1.msra.mxu0 %v3621
        %3683 = vmatprep.subr.mxu0 0.0
        %3684 = vmatpush1.msra.mxu0 %v3622
        %3685 = vmatprep.subr.mxu0 0.0
        %3686 = vmatpush1.msra.mxu0 %v3623
        %3687 = vmatprep.subr.mxu0 0.0
        %3688 = vmatpush1.msra.mxu0 %v3624
        %3689 = vmatprep.subr.mxu0 0.0
        %3690 = vmatpush1.msra.mxu0 %v3625
        %3691 = vmatprep.subr.mxu0 0.0
        %3692 = vmatpush1.msra.mxu0 %v3626
        %3693 = vmatprep.subr.mxu0 0.0
        %3694 = vmatpush1.msra.mxu0 %v3627
        %3695 = vmatprep.subr.mxu0 0.0
        %3696 = vmatpush1.msra.mxu0 %v3628
        %3697 = vmatprep.subr.mxu0 0.0
        %3698 = vmatpush1.msra.mxu0 %v3629
        %3699 = vmatprep.subr.mxu0 0.0
        %3700 = vmatpush1.msra.mxu0 %v3630
        %3701 = vmatprep.subr.mxu0 0.0
        %3702 = vmatpush1.msra.mxu0 %v3631
        %3703 = vmatprep.mubr.f32.mxu0 %v3593
        %3704 = vmatmul.mubr.f32.gmra.mrb[0].mxu0 %v3592
        %v3705 = vpop.f32.mrb[0].mxu0
        %v3706 = vadd.f32 %v3637, %v3705
        %v3707 = vpop.f32.mrb[0].mxu0
        %3708 = vmatprep.mubr.f32.mxu0 %v3595
        %3709 = vmatmul.mubr.f32.gmra.mrb[0].mxu0 %v3594
        %v3710 = vpop.f32.mrb[0].mxu0
        %v3711 = vadd.f32 %v3637, %v3710
        %v3712 = vpop.f32.mrb[0].mxu0
        %3713 = vmatprep.mubr.f32.mxu0 %v3597
        %3714 = vmatmul.mubr.f32.gmra.mrb[0].mxu0 %v3596
        %v3715 = vpop.f32.mrb[0].mxu0
        %v3716 = vadd.f32 %v3637, %v3715
        %v3717 = vpop.f32.mrb[0].mxu0
        %3718 = vmatprep.mubr.f32.mxu0 %v3599
        %3719 = vmatmul.mubr.f32.gmra.mrb[0].mxu0 %v3598
        %v3720 = vpop.f32.mrb[0].mxu0
        %v3721 = vadd.f32 %v3637, %v3720
        %v3722 = vpop.f32.mrb[0].mxu0
        %3723 = vdwg.mxu0
        %3724 = vst [vmem:[%s696] sm:$0xff] %v3706
        %3725 = vst [vmem:[%s696 + $0x8] sm:$0xff] %v3711
        %3726 = vst [vmem:[%s696 + $0x10] sm:$0xff] %v3716
        %3727 = vst [vmem:[%s696 + $0x18] sm:$0xff] %v3721
        %s3728 = sand.u32 %s367, 1
        %s3729 = scalar_lea.sflag [#allocation4], %s3728
        %s3730 = sand.u32 %s367, 1
        %s3731 = smul.addr %s3730, 32
        %s3732 = scalar_lea.vmem [#allocation26], %s3731
        // Predicated region
        $region141: #{tpu_custom_call.1} parent=79 // pred_check
          %p3733 = pneg %p377
        $region142: #{tpu_custom_call.1} parent=79 // pred_check_branch
          %3735 = sbr.rel (%p3733) target = $region144
        $region143: #{tpu_custom_call.1} parent=79 // pred_region
          %s3736 = smul.u32 4, %s39
          %s3738 = ssub.s32 512, 512
          %3739 = vsyncadd %s3729, %s3738
          %s3740 = smul.addr %s3736, 128
          %s3741 = scalar_lea.hbm %s15, %s3740
          %s3742 = sshll.u32 %s3732, 4
          %s3743 = int_to_ptr.vmem [resolvable:$true] %s3742
          %3748 = dma.vmem_to_hbm [thread:$0]  %s3743, 512, %s3741, %s3729, 128, 128, 8
        $region144: #{tpu_custom_call.1} parent=79 // pred_fallthru
          _
      $region80: #{tpu_custom_call.1} parent=5 // pred_fallthru
        _
      %p3749 = scmp.le.s32.totalorder 2, %s34
      // Predicated region
      $region145: #{tpu_custom_call.1} parent=5 // pred_check
        %p3750 = pneg %p3749
      $region146: #{tpu_custom_call.1} parent=5 // pred_check_branch
        %3752 = sbr.rel (%p3750) target = $region148
      $region147: #{tpu_custom_call.1} parent=5 // pred_region
        %s3753 = ssub.s32 %s34, 2
        // Predicated region
        $region149: #{tpu_custom_call.1} parent=147 // pred_check
          %p3754 = pneg %p383
        $region150: #{tpu_custom_call.1} parent=147 // pred_check_branch
          %3756 = sbr.rel (%p3754) target = $region152
        $region151: #{tpu_custom_call.1} parent=147 // pred_region
          %s3757 = sand.u32 %s368, 1
          %s3758 = scalar_lea.sflag [#allocation4], %s3757
          %s3759 = sand.u32 %s368, 1
          %s3760 = smul.addr %s3759, 32
          %s3761 = scalar_lea.vmem [#allocation26], %s3760
          %3762 = dma.done %s3758, 512
        $region152: #{tpu_custom_call.1} parent=147 // pred_fallthru
          _
      $region148: #{tpu_custom_call.1} parent=5 // pred_fallthru
        _
    $region6: #{tpu_custom_call.1} parent=1 // loop_footer
      %s38 = sadd.s32 1, %s34
    $region7: #{tpu_custom_call.1} parent=1 // loop_footer_branch
      %33 = sbr.rel target = $region3
    $region8: #{tpu_custom_call.1} parent=1 // loop_exit
      _
    %3763 = vsyncpa [#allocation3], 1
    %s3764 = scalar_lea.sflag [#allocation3], 1
    %3765 = vsyncpa %s3764, 1
    %3766 = vsyncpa [#allocation6], 1
    %3767 = vsyncpa [#allocation9], 1
    %3768 = vsyncpa [#allocation12], 1
    %3769 = vsyncpa [#allocation15], 1
    %3770 = vsyncpa [#allocation18], 1
    %3771 = vsyncpa [#allocation21], 1
    %3772 = vsyncpa [#allocation24], 1
    %3773 = vsyncpa [#allocation4], 1
    %s3774 = scalar_lea.sflag [#allocation4], 1
    %3775 = vsyncpa %s3774, 1

</llo_original>
